<compile_context>
chip_gen: v7x
topology: tpu7x:2x2x1
jax: 0.10.0
libtpu: 0.0.40
codegen_flags: <defaults>
</compile_context>

<pallas_src>
import jax
import jax.numpy as jnp
from jax import lax
from jax.experimental import pallas as pl
from jax.experimental.pallas import tpu as pltpu


# ----------------------------------------------------------------------------
# helpers
# ----------------------------------------------------------------------------
def _const_spec(shape):
    """BlockSpec covering the whole array, resident across the grid."""
    nd = len(shape)
    return pl.BlockSpec(shape, lambda j, _nd=nd: (0,) * _nd)


# ----------------------------------------------------------------------------
# Fused STAR kernel: trunk (Modules 2..5) at grid step 0, scores tile every step
# ----------------------------------------------------------------------------
def star_fused_kernel(item_ref, asum_ref, bsum_ref,
                      wihr, wihz, wihn, whhr, whhz, whhn,
                      bihr, bihz, bihn, bhhr, bhhz, bhhn,
                      wa, ba, wb, bb, wc, bc,
                      embt_ref,
                      out_ref,
                      hs_scr, fh_scr):
    B, L, D = item_ref.shape
    H = whhr.shape[0]
    bf = jnp.bfloat16

    @pl.when(pl.program_id(0) == 0)
    def _trunk():
        # ---- Module_2: GRU (input-gate matmuls hoisted out of the loop) ----
        x_bf = item_ref[...].astype(bf).reshape(B * L, D)
        gi_r = (jnp.dot(x_bf, wihr[...], preferred_element_type=jnp.float32)
                + bihr[...]).reshape(B, L, H)
        gi_z = (jnp.dot(x_bf, wihz[...], preferred_element_type=jnp.float32)
                + bihz[...]).reshape(B, L, H)
        gi_n = (jnp.dot(x_bf, wihn[...], preferred_element_type=jnp.float32)
                + bihn[...]).reshape(B, L, H)

        h = jnp.zeros((B, H), jnp.float32)
        for t in range(L):  # L is static & small -> full unroll
            hb = h.astype(bf)
            gh_r = jnp.dot(hb, whhr[...], preferred_element_type=jnp.float32) + bhhr[...]
            gh_z = jnp.dot(hb, whhz[...], preferred_element_type=jnp.float32) + bhhz[...]
            gh_n = jnp.dot(hb, whhn[...], preferred_element_type=jnp.float32) + bhhn[...]
            r = jax.nn.sigmoid(gi_r[:, t, :] + gh_r)
            z = jax.nn.sigmoid(gi_z[:, t, :] + gh_z)
            n = jnp.tanh(gi_n[:, t, :] + r * gh_n)
            h = (1.0 - z) * n + z * h
            hs_scr[:, t, :] = h
        hs = hs_scr[...]                                           # [B, L, H]

        # ---- Module_3: fuse hour/min/sec embeddings (a, b) -> linear + tanh ----
        a2 = asum_ref[...].astype(bf).reshape(B * L, D)
        b2 = bsum_ref[...].astype(bf).reshape(B * L, D)
        a_emb = jnp.tanh(jnp.dot(a2, wa[...], preferred_element_type=jnp.float32)
                         + ba[...]).reshape(B, L, D)
        b_emb = jnp.tanh(jnp.dot(b2, wb[...], preferred_element_type=jnp.float32)
                         + bb[...]).reshape(B, L, D)

        # ---- Module_4: attention against the last hidden state ----
        q = h                                                      # [B, H]
        scale = 1.0 / (float(H) ** 0.5)
        s = jnp.sum(hs * q[:, None, :], axis=-1) * scale           # [B, L]
        s = s - jnp.max(s, axis=-1, keepdims=True)
        w = jnp.exp(s)
        inv = pl.reciprocal(jnp.sum(w, axis=-1, keepdims=True), approx=True)
        a3 = (w * inv)[:, :, None]                                 # [B, L, 1]

        # ---- Module_5: six accumulating [B,D]@[D,D] dots (no concat scratch) ----
        feats = (jnp.sum(a3 * hs, axis=1), q,
                 jnp.sum(a3 * b_emb, axis=1), b_emb[:, L - 1, :],
                 jnp.sum(a3 * a_emb, axis=1), a_emb[:, L - 1, :])
        acc = jnp.zeros((B, D), jnp.float32)
        for i, f in enumerate(feats):
            acc = acc + jnp.dot(f.astype(bf), wc[i],
                                preferred_element_type=jnp.float32)
        fh_scr[...] = jnp.tanh(acc + bc[...]).astype(bf)

    # ---- Module_1_6.get_scores: bf16 x bf16 -> f32, one item tile per step ----
    out_ref[...] = jnp.dot(fh_scr[...], embt_ref[...],
                           preferred_element_type=jnp.float32)


def run_star(item_e, a_sum, b_sum, p, tile_n=4096):
    B, L, D = item_e.shape
    H = p["w_hh_r"].shape[0]
    assert H == D, "STAR design requires hidden_size == embedding_dim"
    N = p["item_emb_t_bf16"].shape[1]
    tile_n = min(tile_n, pl.cdiv(N, 128) * 128)   # keep block <= padded catalog
    grid = (pl.cdiv(N, tile_n),)                  # tail tile handled by masking

    in_specs = ([_const_spec((B, L, D))] * 3
                + [_const_spec((D, H))] * 3
                + [_const_spec((H, H))] * 3
                + [_const_spec((1, H))] * 6
                + [_const_spec((D, D)), _const_spec((1, D)),
                   _const_spec((D, D)), _const_spec((1, D)),
                   _const_spec((6, D, D)), _const_spec((1, D)),
                   pl.BlockSpec((D, tile_n), lambda j: (0, j))])

    return pl.pallas_call(
        star_fused_kernel,
        out_shape=jax.ShapeDtypeStruct((B, N), jnp.float32),
        grid=grid,
        in_specs=in_specs,
        out_specs=pl.BlockSpec((B, tile_n), lambda j: (0, j)),
        scratch_shapes=[pltpu.VMEM((B, L, H), jnp.float32),
                        pltpu.VMEM((B, D), jnp.bfloat16)],
        compiler_params=pltpu.CompilerParams(
            dimension_semantics=("arbitrary",)),   # trunk-at-step-0 needs sequential grid
    )(item_e, a_sum, b_sum,
      p["w_ih_r"], p["w_ih_z"], p["w_ih_n"],
      p["w_hh_r"], p["w_hh_z"], p["w_hh_n"],
      p["b_ih_r"], p["b_ih_z"], p["b_ih_n"],
      p["b_hh_r"], p["b_hh_z"], p["b_hh_n"],
      p["w_a"], p["b_a"], p["w_b"], p["b_b"],
      p["w_c"], p["b_c"],
      p["item_emb_t_bf16"])


# ----------------------------------------------------------------------------
# Parameters
# ----------------------------------------------------------------------------
def init_params(n_items, emb_dim, hidden_size, key):
    D, H = emb_dim, hidden_size
    ks = jax.random.split(key, 24)
    s = 0.1
    bf = jnp.bfloat16

    def w(k, shape):   # matmul weights stored bf16 (MXU operands)
        return (s * jax.random.normal(k, shape, jnp.float32)).astype(bf)

    def b(k, shape):   # biases stay f32
        return s * jax.random.normal(k, shape, jnp.float32)

    item_emb = s * jax.random.normal(ks[0], (n_items, D), jnp.float32)
    p = {
        "item_emb": item_emb,                      # f32 master, sequence gathers
        # lane-dense, transposed bf16 copy used only by get_scores
        # TODO(synk): on v5e keep only a low-precision master (capacity), and on
        #             v6e/v7x an int8/fp8 per-row-scaled copy would halve the stream.
        "item_emb_t_bf16": item_emb.T.astype(bf),  # [D, N]
        "emb_h_a": s * jax.random.normal(ks[1], (24, D), jnp.float32),
        "emb_m_a": s * jax.random.normal(ks[2], (60, D), jnp.float32),
        "emb_s_a": s * jax.random.normal(ks[3], (60, D), jnp.float32),
        "emb_h_b": s * jax.random.normal(ks[4], (24, D), jnp.float32),
        "emb_m_b": s * jax.random.normal(ks[5], (60, D), jnp.float32),
        "emb_s_b": s * jax.random.normal(ks[6], (60, D), jnp.float32),
        # GRU params, split per gate (r / z / n)
        "w_ih_r": w(ks[7], (D, H)), "w_ih_z": w(ks[8], (D, H)), "w_ih_n": w(ks[9], (D, H)),
        "w_hh_r": w(ks[10], (H, H)), "w_hh_z": w(ks[11], (H, H)), "w_hh_n": w(ks[12], (H, H)),
        "b_ih_r": b(ks[13], (1, H)), "b_ih_z": b(ks[14], (1, H)), "b_ih_n": b(ks[15], (1, H)),
        "b_hh_r": b(ks[16], (1, H)), "b_hh_z": b(ks[17], (1, H)), "b_hh_n": b(ks[18], (1, H)),
        # Module_3 fusion layers (a and b)
        "w_a": w(ks[19], (D, D)), "b_a": b(ks[20], (1, D)),
        "w_b": w(ks[21], (D, D)), "b_b": b(ks[22], (1, D)),
        # Module_5 combine: [6, D, D] + bias
        "w_c": w(ks[23], (6, D, D)),
        "b_c": jnp.zeros((1, D), jnp.float32),
    }
    return p


# ----------------------------------------------------------------------------
# Full STAR forward (JAX glue: embedding gathers only, then ONE Pallas kernel)
# ----------------------------------------------------------------------------
@jax.jit
def star_forward(params, item_sequence, h_a_o, m_a_o, s_a_o, h_b_o, m_b_o, s_b_o):
    # ---- Module_1_6: embedding lookups (data-dependent gathers stay in XLA) ----
    item_e = jnp.take(params["item_emb"], item_sequence, axis=0)     # [B, L, D]
    a_sum = (jnp.take(params["emb_h_a"], h_a_o, axis=0)
             + jnp.take(params["emb_m_a"], m_a_o, axis=0)
             + jnp.take(params["emb_s_a"], s_a_o, axis=0))
    b_sum = (jnp.take(params["emb_h_b"], h_b_o, axis=0)
             + jnp.take(params["emb_m_b"], m_b_o, axis=0)
             + jnp.take(params["emb_s_b"], s_b_o, axis=0))
    # ---- Modules 2..5 + get_scores, fused in one pallas_call ----
    return run_star(item_e, a_sum, b_sum, params)                    # [B, N] f32


# ----------------------------------------------------------------------------
# Pure-JAX reference (mirrors the kernel's bf16 matmul operands) for x-check
# ----------------------------------------------------------------------------
def star_reference(params, item_sequence, h_a_o, m_a_o, s_a_o, h_b_o, m_b_o, s_b_o):
    bf = jnp.bfloat16

    def bdot(a, w):
        return jnp.dot(a.astype(bf), w.astype(bf), preferred_element_type=jnp.float32)

    item_e = jnp.take(params["item_emb"], item_sequence, axis=0)
    a_sum = (jnp.take(params["emb_h_a"], h_a_o, axis=0)
             + jnp.take(params["emb_m_a"], m_a_o, axis=0)
             + jnp.take(params["emb_s_a"], s_a_o, axis=0))
    b_sum = (jnp.take(params["emb_h_b"], h_b_o, axis=0)
             + jnp.take(params["emb_m_b"], m_b_o, axis=0)
             + jnp.take(params["emb_s_b"], s_b_o, axis=0))
    B, L, D = item_e.shape
    H = params["w_hh_r"].shape[0]

    x2 = item_e.reshape(B * L, D)
    gi_r = (bdot(x2, params["w_ih_r"]) + params["b_ih_r"]).reshape(B, L, H)
    gi_z = (bdot(x2, params["w_ih_z"]) + params["b_ih_z"]).reshape(B, L, H)
    gi_n = (bdot(x2, params["w_ih_n"]) + params["b_ih_n"]).reshape(B, L, H)

    h = jnp.zeros((B, H), jnp.float32)
    hs_list = []
    for t in range(L):
        gh_r = bdot(h, params["w_hh_r"]) + params["b_hh_r"]
        gh_z = bdot(h, params["w_hh_z"]) + params["b_hh_z"]
        gh_n = bdot(h, params["w_hh_n"]) + params["b_hh_n"]
        r = jax.nn.sigmoid(gi_r[:, t, :] + gh_r)
        z = jax.nn.sigmoid(gi_z[:, t, :] + gh_z)
        n = jnp.tanh(gi_n[:, t, :] + r * gh_n)
        h = (1.0 - z) * n + z * h
        hs_list.append(h)
    hs = jnp.stack(hs_list, axis=1)                                  # [B, L, H]

    a_emb = jnp.tanh(bdot(a_sum.reshape(B * L, D), params["w_a"])
                     + params["b_a"]).reshape(B, L, D)
    b_emb = jnp.tanh(bdot(b_sum.reshape(B * L, D), params["w_b"])
                     + params["b_b"]).reshape(B, L, D)

    q = h
    s = jnp.einsum("blh,bh->bl", hs, q) / jnp.sqrt(float(H))
    alpha = jax.nn.softmax(s, axis=-1)
    ctx = lambda x: jnp.einsum("bl,bld->bd", alpha, x)
    feats = [ctx(hs), q, ctx(b_emb), b_emb[:, -1, :], ctx(a_emb), a_emb[:, -1, :]]
    acc = sum(bdot(f, params["w_c"][i]) for i, f in enumerate(feats))
    fh = jnp.tanh(acc + params["b_c"])
    return jnp.dot(fh.astype(bf), params["item_emb_t_bf16"],
                   preferred_element_type=jnp.float32)


# ----------------------------------------------------------------------------
# main
# ----------------------------------------------------------------------------
if __name__ == "__main__":
    B, L = 2, 8
    emb_dim = 32
    hidden_size = 32          # model design requires hidden_size == embedding_dim
    n_items = 5003            # deliberately NOT a multiple of the scores tile

    params = init_params(n_items, emb_dim, hidden_size, jax.random.PRNGKey(42))

    key = jax.random.PRNGKey(0)
    k1, k2, k3, k4, k5, k6, k7 = jax.random.split(key, 7)
    item_sequence = jax.random.randint(k1, (B, L), 0, n_items, jnp.int32)
    h_a_o = jax.random.randint(k2, (B, L), 0, 24, jnp.int32)
    m_a_o = jax.random.randint(k3, (B, L), 0, 60, jnp.int32)
    s_a_o = jax.random.randint(k4, (B, L), 0, 60, jnp.int32)
    h_b_o = jax.random.randint(k5, (B, L), 0, 24, jnp.int32)
    m_b_o = jax.random.randint(k6, (B, L), 0, 60, jnp.int32)
    s_b_o = jax.random.randint(k7, (B, L), 0, 60, jnp.int32)

    y = star_forward(params, item_sequence, h_a_o, m_a_o, s_a_o,
                     h_b_o, m_b_o, s_b_o)
    y = jax.block_until_ready(y)

    assert y.shape == (B, n_items), y.shape
    assert bool(jnp.all(jnp.isfinite(y))), "non-finite scores"

    y_ref = star_reference(params, item_sequence, h_a_o, m_a_o, s_a_o,
                           h_b_o, m_b_o, s_b_o)
    assert bool(jnp.allclose(y, y_ref, rtol=2e-2, atol=2e-2)), \
        "Pallas result does not match pure-JAX reference"

    print("KERNEL_OK")
</pallas_src>

<mosaic_0001>
module attributes {stable_mosaic.version = 11 : i64} {
  func.func @star_fused_kernel(%arg0: i32, %arg1: memref<2x8x32xf32, #tpu.memory_space<vmem>>, %arg2: memref<2x8x32xf32, #tpu.memory_space<vmem>>, %arg3: memref<2x8x32xf32, #tpu.memory_space<vmem>>, %arg4: memref<32x32xbf16, #tpu.memory_space<vmem>>, %arg5: memref<32x32xbf16, #tpu.memory_space<vmem>>, %arg6: memref<32x32xbf16, #tpu.memory_space<vmem>>, %arg7: memref<32x32xbf16, #tpu.memory_space<vmem>>, %arg8: memref<32x32xbf16, #tpu.memory_space<vmem>>, %arg9: memref<32x32xbf16, #tpu.memory_space<vmem>>, %arg10: memref<1x32xf32, #tpu.memory_space<vmem>>, %arg11: memref<1x32xf32, #tpu.memory_space<vmem>>, %arg12: memref<1x32xf32, #tpu.memory_space<vmem>>, %arg13: memref<1x32xf32, #tpu.memory_space<vmem>>, %arg14: memref<1x32xf32, #tpu.memory_space<vmem>>, %arg15: memref<1x32xf32, #tpu.memory_space<vmem>>, %arg16: memref<32x32xbf16, #tpu.memory_space<vmem>>, %arg17: memref<1x32xf32, #tpu.memory_space<vmem>>, %arg18: memref<32x32xbf16, #tpu.memory_space<vmem>>, %arg19: memref<1x32xf32, #tpu.memory_space<vmem>>, %arg20: memref<6x32x32xbf16, #tpu.memory_space<vmem>>, %arg21: memref<1x32xf32, #tpu.memory_space<vmem>>, %arg22: memref<32x4096xbf16, #tpu.memory_space<vmem>>, %arg23: memref<2x4096xf32, #tpu.memory_space<vmem>>, %arg24: memref<2x8x32xf32, #tpu.memory_space<vmem>>, %arg25: memref<2x32xbf16, #tpu.memory_space<vmem>>) attributes {dimension_semantics = [#tpu.dimension_semantics<arbitrary>], iteration_bounds = array<i64: 2>, scalar_prefetch = 0 : i64, scratch_operands = 2 : i64, tpu.core_type = #tpu.core_type<tc>, window_params = [{pipeline_mode = #tpu.pipeline_mode<synchronous>, transform_indices = @transform_0, window_bounds = array<i64: 2, 8, 32>}, {pipeline_mode = #tpu.pipeline_mode<synchronous>, transform_indices = @transform_1, window_bounds = array<i64: 2, 8, 32>}, {pipeline_mode = #tpu.pipeline_mode<synchronous>, transform_indices = @transform_2, window_bounds = array<i64: 2, 8, 32>}, {pipeline_mode = #tpu.pipeline_mode<synchronous>, transform_indices = @transform_3, window_bounds = array<i64: 32, 32>}, {pipeline_mode = #tpu.pipeline_mode<synchronous>, transform_indices = @transform_4, window_bounds = array<i64: 32, 32>}, {pipeline_mode = #tpu.pipeline_mode<synchronous>, transform_indices = @transform_5, window_bounds = array<i64: 32, 32>}, {pipeline_mode = #tpu.pipeline_mode<synchronous>, transform_indices = @transform_6, window_bounds = array<i64: 32, 32>}, {pipeline_mode = #tpu.pipeline_mode<synchronous>, transform_indices = @transform_7, window_bounds = array<i64: 32, 32>}, {pipeline_mode = #tpu.pipeline_mode<synchronous>, transform_indices = @transform_8, window_bounds = array<i64: 32, 32>}, {pipeline_mode = #tpu.pipeline_mode<synchronous>, transform_indices = @transform_9, window_bounds = array<i64: 1, 32>}, {pipeline_mode = #tpu.pipeline_mode<synchronous>, transform_indices = @transform_10, window_bounds = array<i64: 1, 32>}, {pipeline_mode = #tpu.pipeline_mode<synchronous>, transform_indices = @transform_11, window_bounds = array<i64: 1, 32>}, {pipeline_mode = #tpu.pipeline_mode<synchronous>, transform_indices = @transform_12, window_bounds = array<i64: 1, 32>}, {pipeline_mode = #tpu.pipeline_mode<synchronous>, transform_indices = @transform_13, window_bounds = array<i64: 1, 32>}, {pipeline_mode = #tpu.pipeline_mode<synchronous>, transform_indices = @transform_14, window_bounds = array<i64: 1, 32>}, {pipeline_mode = #tpu.pipeline_mode<synchronous>, transform_indices = @transform_15, window_bounds = array<i64: 32, 32>}, {pipeline_mode = #tpu.pipeline_mode<synchronous>, transform_indices = @transform_16, window_bounds = array<i64: 1, 32>}, {pipeline_mode = #tpu.pipeline_mode<synchronous>, transform_indices = @transform_17, window_bounds = array<i64: 32, 32>}, {pipeline_mode = #tpu.pipeline_mode<synchronous>, transform_indices = @transform_18, window_bounds = array<i64: 1, 32>}, {pipeline_mode = #tpu.pipeline_mode<synchronous>, transform_indices = @transform_19, window_bounds = array<i64: 6, 32, 32>}, {pipeline_mode = #tpu.pipeline_mode<synchronous>, transform_indices = @transform_20, window_bounds = array<i64: 1, 32>}, {transform_indices = @transform_21, window_bounds = array<i64: 32, 4096>}, {transform_indices = @transform_22, window_bounds = array<i64: 2, 4096>}]} {
    %c0_i32 = arith.constant 0 : i32
    %0 = arith.cmpi eq, %arg0, %c0_i32 : i32
    %1 = arith.extui %0 : i1 to i32
    %c0_i32_0 = arith.constant 0 : i32
    %2 = arith.cmpi ne, %1, %c0_i32_0 : i32
    scf.if %2 {
      %c0_6 = arith.constant 0 : index
      %c0_7 = arith.constant 0 : index
      %c0_8 = arith.constant 0 : index
      %7 = vector.load %arg1[%c0_6, %c0_7, %c0_8] : memref<2x8x32xf32, #tpu.memory_space<vmem>>, vector<2x8x32xf32>
      %8 = arith.truncf %7 : vector<2x8x32xf32> to vector<2x8x32xbf16>
      %9 = vector.shape_cast %8 : vector<2x8x32xbf16> to vector<16x32xbf16>
      %c0_9 = arith.constant 0 : index
      %c0_10 = arith.constant 0 : index
      %10 = vector.load %arg4[%c0_9, %c0_10] : memref<32x32xbf16, #tpu.memory_space<vmem>>, vector<32x32xbf16>
      %cst_11 = arith.constant dense<0.000000e+00> : vector<16x32xf32>
      %11 = tpu.matmul %9, %10, %cst_11 {dimension_numbers = #tpu.dot_dimension_numbers<[1], [0], [0], [1], [0, 0, 1, 1], [], []>} : vector<16x32xbf16>, vector<32x32xbf16>, vector<16x32xf32> -> vector<16x32xf32>
      %c0_12 = arith.constant 0 : index
      %c0_13 = arith.constant 0 : index
      %12 = vector.load %arg10[%c0_12, %c0_13] : memref<1x32xf32, #tpu.memory_space<vmem>>, vector<1x32xf32>
      %13 = vector.broadcast %12 : vector<1x32xf32> to vector<16x32xf32>
      %14 = arith.addf %11, %13 : vector<16x32xf32>
      %15 = vector.shape_cast %14 : vector<16x32xf32> to vector<2x8x32xf32>
      %c0_14 = arith.constant 0 : index
      %c0_15 = arith.constant 0 : index
      %16 = vector.load %arg5[%c0_14, %c0_15] : memref<32x32xbf16, #tpu.memory_space<vmem>>, vector<32x32xbf16>
      %cst_16 = arith.constant dense<0.000000e+00> : vector<16x32xf32>
      %17 = tpu.matmul %9, %16, %cst_16 {dimension_numbers = #tpu.dot_dimension_numbers<[1], [0], [0], [1], [0, 0, 1, 1], [], []>} : vector<16x32xbf16>, vector<32x32xbf16>, vector<16x32xf32> -> vector<16x32xf32>
      %c0_17 = arith.constant 0 : index
      %c0_18 = arith.constant 0 : index
      %18 = vector.load %arg11[%c0_17, %c0_18] : memref<1x32xf32, #tpu.memory_space<vmem>>, vector<1x32xf32>
      %19 = vector.broadcast %18 : vector<1x32xf32> to vector<16x32xf32>
      %20 = arith.addf %17, %19 : vector<16x32xf32>
      %21 = vector.shape_cast %20 : vector<16x32xf32> to vector<2x8x32xf32>
      %c0_19 = arith.constant 0 : index
      %c0_20 = arith.constant 0 : index
      %22 = vector.load %arg6[%c0_19, %c0_20] : memref<32x32xbf16, #tpu.memory_space<vmem>>, vector<32x32xbf16>
      %cst_21 = arith.constant dense<0.000000e+00> : vector<16x32xf32>
      %23 = tpu.matmul %9, %22, %cst_21 {dimension_numbers = #tpu.dot_dimension_numbers<[1], [0], [0], [1], [0, 0, 1, 1], [], []>} : vector<16x32xbf16>, vector<32x32xbf16>, vector<16x32xf32> -> vector<16x32xf32>
      %c0_22 = arith.constant 0 : index
      %c0_23 = arith.constant 0 : index
      %24 = vector.load %arg12[%c0_22, %c0_23] : memref<1x32xf32, #tpu.memory_space<vmem>>, vector<1x32xf32>
      %25 = vector.broadcast %24 : vector<1x32xf32> to vector<16x32xf32>
      %26 = arith.addf %23, %25 : vector<16x32xf32>
      %27 = vector.shape_cast %26 : vector<16x32xf32> to vector<2x8x32xf32>
      %cst_24 = arith.constant 0.000000e+00 : f32
      %28 = vector.broadcast %cst_24 : f32 to vector<2x32xf32>
      %29 = arith.truncf %28 : vector<2x32xf32> to vector<2x32xbf16>
      %c0_25 = arith.constant 0 : index
      %c0_26 = arith.constant 0 : index
      %30 = vector.load %arg7[%c0_25, %c0_26] : memref<32x32xbf16, #tpu.memory_space<vmem>>, vector<32x32xbf16>
      %cst_27 = arith.constant dense<0.000000e+00> : vector<2x32xf32>
      %31 = tpu.matmul %29, %30, %cst_27 {dimension_numbers = #tpu.dot_dimension_numbers<[1], [0], [0], [1], [0, 0, 1, 1], [], []>} : vector<2x32xbf16>, vector<32x32xbf16>, vector<2x32xf32> -> vector<2x32xf32>
      %c0_28 = arith.constant 0 : index
      %c0_29 = arith.constant 0 : index
      %32 = vector.load %arg13[%c0_28, %c0_29] : memref<1x32xf32, #tpu.memory_space<vmem>>, vector<1x32xf32>
      %33 = vector.broadcast %32 : vector<1x32xf32> to vector<2x32xf32>
      %34 = arith.addf %31, %33 : vector<2x32xf32>
      %c0_30 = arith.constant 0 : index
      %c0_31 = arith.constant 0 : index
      %35 = vector.load %arg8[%c0_30, %c0_31] : memref<32x32xbf16, #tpu.memory_space<vmem>>, vector<32x32xbf16>
      %cst_32 = arith.constant dense<0.000000e+00> : vector<2x32xf32>
      %36 = tpu.matmul %29, %35, %cst_32 {dimension_numbers = #tpu.dot_dimension_numbers<[1], [0], [0], [1], [0, 0, 1, 1], [], []>} : vector<2x32xbf16>, vector<32x32xbf16>, vector<2x32xf32> -> vector<2x32xf32>
      %c0_33 = arith.constant 0 : index
      %c0_34 = arith.constant 0 : index
      %37 = vector.load %arg14[%c0_33, %c0_34] : memref<1x32xf32, #tpu.memory_space<vmem>>, vector<1x32xf32>
      %38 = vector.broadcast %37 : vector<1x32xf32> to vector<2x32xf32>
      %39 = arith.addf %36, %38 : vector<2x32xf32>
      %c0_35 = arith.constant 0 : index
      %c0_36 = arith.constant 0 : index
      %40 = vector.load %arg9[%c0_35, %c0_36] : memref<32x32xbf16, #tpu.memory_space<vmem>>, vector<32x32xbf16>
      %cst_37 = arith.constant dense<0.000000e+00> : vector<2x32xf32>
      %41 = tpu.matmul %29, %40, %cst_37 {dimension_numbers = #tpu.dot_dimension_numbers<[1], [0], [0], [1], [0, 0, 1, 1], [], []>} : vector<2x32xbf16>, vector<32x32xbf16>, vector<2x32xf32> -> vector<2x32xf32>
      %c0_38 = arith.constant 0 : index
      %c0_39 = arith.constant 0 : index
      %42 = vector.load %arg15[%c0_38, %c0_39] : memref<1x32xf32, #tpu.memory_space<vmem>>, vector<1x32xf32>
      %43 = vector.broadcast %42 : vector<1x32xf32> to vector<2x32xf32>
      %44 = arith.addf %41, %43 : vector<2x32xf32>
      %45 = vector.extract_strided_slice %15 {offsets = [0, 0, 0], sizes = [2, 1, 32], strides = [1, 1, 1]} : vector<2x8x32xf32> to vector<2x1x32xf32>
      %46 = vector.shape_cast %45 : vector<2x1x32xf32> to vector<2x32xf32>
      %47 = arith.addf %46, %34 : vector<2x32xf32>
      %48 = arith.negf %47 : vector<2x32xf32>
      %49 = math.exp %48 : vector<2x32xf32>
      %cst_40 = arith.constant 1.000000e+00 : f32
      %50 = vector.broadcast %cst_40 : f32 to vector<2x32xf32>
      %51 = arith.addf %50, %49 : vector<2x32xf32>
      %52 = arith.divf %50, %51 : vector<2x32xf32>
      %53 = vector.extract_strided_slice %21 {offsets = [0, 0, 0], sizes = [2, 1, 32], strides = [1, 1, 1]} : vector<2x8x32xf32> to vector<2x1x32xf32>
      %54 = vector.shape_cast %53 : vector<2x1x32xf32> to vector<2x32xf32>
      %55 = arith.addf %54, %39 : vector<2x32xf32>
      %56 = arith.negf %55 : vector<2x32xf32>
      %57 = math.exp %56 : vector<2x32xf32>
      %cst_41 = arith.constant 1.000000e+00 : f32
      %58 = vector.broadcast %cst_41 : f32 to vector<2x32xf32>
      %59 = arith.addf %58, %57 : vector<2x32xf32>
      %60 = arith.divf %58, %59 : vector<2x32xf32>
      %61 = vector.extract_strided_slice %27 {offsets = [0, 0, 0], sizes = [2, 1, 32], strides = [1, 1, 1]} : vector<2x8x32xf32> to vector<2x1x32xf32>
      %62 = vector.shape_cast %61 : vector<2x1x32xf32> to vector<2x32xf32>
      %63 = arith.mulf %52, %44 : vector<2x32xf32>
      %64 = arith.addf %62, %63 : vector<2x32xf32>
      %65 = math.tanh %64 : vector<2x32xf32>
      %cst_42 = arith.constant 1.000000e+00 : f32
      %66 = vector.broadcast %cst_42 : f32 to vector<2x32xf32>
      %67 = arith.subf %66, %60 : vector<2x32xf32>
      %68 = arith.mulf %67, %65 : vector<2x32xf32>
      %69 = arith.mulf %60, %28 : vector<2x32xf32>
      %70 = arith.addf %68, %69 : vector<2x32xf32>
      %c0_43 = arith.constant 0 : index
      %c0_44 = arith.constant 0 : index
      %c0_45 = arith.constant 0 : index
      %71 = vector.load %arg24[%c0_43, %c0_44, %c0_45] : memref<2x8x32xf32, #tpu.memory_space<vmem>>, vector<2x1x32xf32>
      %72 = vector.shape_cast %71 : vector<2x1x32xf32> to vector<2x32xf32>
      %73 = vector.shape_cast %70 : vector<2x32xf32> to vector<2x1x32xf32>
      tpu.vector_store %arg24[%c0_43, %c0_44, %c0_45], %73 {strides = array<i32>} : memref<2x8x32xf32, #tpu.memory_space<vmem>>, vector<2x1x32xf32>,
      %74 = arith.truncf %70 : vector<2x32xf32> to vector<2x32xbf16>
      %c0_46 = arith.constant 0 : index
      %c0_47 = arith.constant 0 : index
      %75 = vector.load %arg7[%c0_46, %c0_47] : memref<32x32xbf16, #tpu.memory_space<vmem>>, vector<32x32xbf16>
      %cst_48 = arith.constant dense<0.000000e+00> : vector<2x32xf32>
      %76 = tpu.matmul %74, %75, %cst_48 {dimension_numbers = #tpu.dot_dimension_numbers<[1], [0], [0], [1], [0, 0, 1, 1], [], []>} : vector<2x32xbf16>, vector<32x32xbf16>, vector<2x32xf32> -> vector<2x32xf32>
      %c0_49 = arith.constant 0 : index
      %c0_50 = arith.constant 0 : index
      %77 = vector.load %arg13[%c0_49, %c0_50] : memref<1x32xf32, #tpu.memory_space<vmem>>, vector<1x32xf32>
      %78 = vector.broadcast %77 : vector<1x32xf32> to vector<2x32xf32>
      %79 = arith.addf %76, %78 : vector<2x32xf32>
      %c0_51 = arith.constant 0 : index
      %c0_52 = arith.constant 0 : index
      %80 = vector.load %arg8[%c0_51, %c0_52] : memref<32x32xbf16, #tpu.memory_space<vmem>>, vector<32x32xbf16>
      %cst_53 = arith.constant dense<0.000000e+00> : vector<2x32xf32>
      %81 = tpu.matmul %74, %80, %cst_53 {dimension_numbers = #tpu.dot_dimension_numbers<[1], [0], [0], [1], [0, 0, 1, 1], [], []>} : vector<2x32xbf16>, vector<32x32xbf16>, vector<2x32xf32> -> vector<2x32xf32>
      %c0_54 = arith.constant 0 : index
      %c0_55 = arith.constant 0 : index
      %82 = vector.load %arg14[%c0_54, %c0_55] : memref<1x32xf32, #tpu.memory_space<vmem>>, vector<1x32xf32>
      %83 = vector.broadcast %82 : vector<1x32xf32> to vector<2x32xf32>
      %84 = arith.addf %81, %83 : vector<2x32xf32>
      %c0_56 = arith.constant 0 : index
      %c0_57 = arith.constant 0 : index
      %85 = vector.load %arg9[%c0_56, %c0_57] : memref<32x32xbf16, #tpu.memory_space<vmem>>, vector<32x32xbf16>
      %cst_58 = arith.constant dense<0.000000e+00> : vector<2x32xf32>
      %86 = tpu.matmul %74, %85, %cst_58 {dimension_numbers = #tpu.dot_dimension_numbers<[1], [0], [0], [1], [0, 0, 1, 1], [], []>} : vector<2x32xbf16>, vector<32x32xbf16>, vector<2x32xf32> -> vector<2x32xf32>
      %c0_59 = arith.constant 0 : index
      %c0_60 = arith.constant 0 : index
      %87 = vector.load %arg15[%c0_59, %c0_60] : memref<1x32xf32, #tpu.memory_space<vmem>>, vector<1x32xf32>
      %88 = vector.broadcast %87 : vector<1x32xf32> to vector<2x32xf32>
      %89 = arith.addf %86, %88 : vector<2x32xf32>
      %90 = vector.extract_strided_slice %15 {offsets = [0, 1, 0], sizes = [2, 1, 32], strides = [1, 1, 1]} : vector<2x8x32xf32> to vector<2x1x32xf32>
      %91 = vector.shape_cast %90 : vector<2x1x32xf32> to vector<2x32xf32>
      %92 = arith.addf %91, %79 : vector<2x32xf32>
      %93 = arith.negf %92 : vector<2x32xf32>
      %94 = math.exp %93 : vector<2x32xf32>
      %cst_61 = arith.constant 1.000000e+00 : f32
      %95 = vector.broadcast %cst_61 : f32 to vector<2x32xf32>
      %96 = arith.addf %95, %94 : vector<2x32xf32>
      %97 = arith.divf %95, %96 : vector<2x32xf32>
      %98 = vector.extract_strided_slice %21 {offsets = [0, 1, 0], sizes = [2, 1, 32], strides = [1, 1, 1]} : vector<2x8x32xf32> to vector<2x1x32xf32>
      %99 = vector.shape_cast %98 : vector<2x1x32xf32> to vector<2x32xf32>
      %100 = arith.addf %99, %84 : vector<2x32xf32>
      %101 = arith.negf %100 : vector<2x32xf32>
      %102 = math.exp %101 : vector<2x32xf32>
      %cst_62 = arith.constant 1.000000e+00 : f32
      %103 = vector.broadcast %cst_62 : f32 to vector<2x32xf32>
      %104 = arith.addf %103, %102 : vector<2x32xf32>
      %105 = arith.divf %103, %104 : vector<2x32xf32>
      %106 = vector.extract_strided_slice %27 {offsets = [0, 1, 0], sizes = [2, 1, 32], strides = [1, 1, 1]} : vector<2x8x32xf32> to vector<2x1x32xf32>
      %107 = vector.shape_cast %106 : vector<2x1x32xf32> to vector<2x32xf32>
      %108 = arith.mulf %97, %89 : vector<2x32xf32>
      %109 = arith.addf %107, %108 : vector<2x32xf32>
      %110 = math.tanh %109 : vector<2x32xf32>
      %cst_63 = arith.constant 1.000000e+00 : f32
      %111 = vector.broadcast %cst_63 : f32 to vector<2x32xf32>
      %112 = arith.subf %111, %105 : vector<2x32xf32>
      %113 = arith.mulf %112, %110 : vector<2x32xf32>
      %114 = arith.mulf %105, %70 : vector<2x32xf32>
      %115 = arith.addf %113, %114 : vector<2x32xf32>
      %c0_64 = arith.constant 0 : index
      %c1 = arith.constant 1 : index
      %c0_65 = arith.constant 0 : index
      %116 = vector.load %arg24[%c0_64, %c1, %c0_65] : memref<2x8x32xf32, #tpu.memory_space<vmem>>, vector<2x1x32xf32>
      %117 = vector.shape_cast %116 : vector<2x1x32xf32> to vector<2x32xf32>
      %118 = vector.shape_cast %115 : vector<2x32xf32> to vector<2x1x32xf32>
      tpu.vector_store %arg24[%c0_64, %c1, %c0_65], %118 {strides = array<i32>} : memref<2x8x32xf32, #tpu.memory_space<vmem>>, vector<2x1x32xf32>,
      %119 = arith.truncf %115 : vector<2x32xf32> to vector<2x32xbf16>
      %c0_66 = arith.constant 0 : index
      %c0_67 = arith.constant 0 : index
      %120 = vector.load %arg7[%c0_66, %c0_67] : memref<32x32xbf16, #tpu.memory_space<vmem>>, vector<32x32xbf16>
      %cst_68 = arith.constant dense<0.000000e+00> : vector<2x32xf32>
      %121 = tpu.matmul %119, %120, %cst_68 {dimension_numbers = #tpu.dot_dimension_numbers<[1], [0], [0], [1], [0, 0, 1, 1], [], []>} : vector<2x32xbf16>, vector<32x32xbf16>, vector<2x32xf32> -> vector<2x32xf32>
      %c0_69 = arith.constant 0 : index
      %c0_70 = arith.constant 0 : index
      %122 = vector.load %arg13[%c0_69, %c0_70] : memref<1x32xf32, #tpu.memory_space<vmem>>, vector<1x32xf32>
      %123 = vector.broadcast %122 : vector<1x32xf32> to vector<2x32xf32>
      %124 = arith.addf %121, %123 : vector<2x32xf32>
      %c0_71 = arith.constant 0 : index
      %c0_72 = arith.constant 0 : index
      %125 = vector.load %arg8[%c0_71, %c0_72] : memref<32x32xbf16, #tpu.memory_space<vmem>>, vector<32x32xbf16>
      %cst_73 = arith.constant dense<0.000000e+00> : vector<2x32xf32>
      %126 = tpu.matmul %119, %125, %cst_73 {dimension_numbers = #tpu.dot_dimension_numbers<[1], [0], [0], [1], [0, 0, 1, 1], [], []>} : vector<2x32xbf16>, vector<32x32xbf16>, vector<2x32xf32> -> vector<2x32xf32>
      %c0_74 = arith.constant 0 : index
      %c0_75 = arith.constant 0 : index
      %127 = vector.load %arg14[%c0_74, %c0_75] : memref<1x32xf32, #tpu.memory_space<vmem>>, vector<1x32xf32>
      %128 = vector.broadcast %127 : vector<1x32xf32> to vector<2x32xf32>
      %129 = arith.addf %126, %128 : vector<2x32xf32>
      %c0_76 = arith.constant 0 : index
      %c0_77 = arith.constant 0 : index
      %130 = vector.load %arg9[%c0_76, %c0_77] : memref<32x32xbf16, #tpu.memory_space<vmem>>, vector<32x32xbf16>
      %cst_78 = arith.constant dense<0.000000e+00> : vector<2x32xf32>
      %131 = tpu.matmul %119, %130, %cst_78 {dimension_numbers = #tpu.dot_dimension_numbers<[1], [0], [0], [1], [0, 0, 1, 1], [], []>} : vector<2x32xbf16>, vector<32x32xbf16>, vector<2x32xf32> -> vector<2x32xf32>
      %c0_79 = arith.constant 0 : index
      %c0_80 = arith.constant 0 : index
      %132 = vector.load %arg15[%c0_79, %c0_80] : memref<1x32xf32, #tpu.memory_space<vmem>>, vector<1x32xf32>
      %133 = vector.broadcast %132 : vector<1x32xf32> to vector<2x32xf32>
      %134 = arith.addf %131, %133 : vector<2x32xf32>
      %135 = vector.extract_strided_slice %15 {offsets = [0, 2, 0], sizes = [2, 1, 32], strides = [1, 1, 1]} : vector<2x8x32xf32> to vector<2x1x32xf32>
      %136 = vector.shape_cast %135 : vector<2x1x32xf32> to vector<2x32xf32>
      %137 = arith.addf %136, %124 : vector<2x32xf32>
      %138 = arith.negf %137 : vector<2x32xf32>
      %139 = math.exp %138 : vector<2x32xf32>
      %cst_81 = arith.constant 1.000000e+00 : f32
      %140 = vector.broadcast %cst_81 : f32 to vector<2x32xf32>
      %141 = arith.addf %140, %139 : vector<2x32xf32>
      %142 = arith.divf %140, %141 : vector<2x32xf32>
      %143 = vector.extract_strided_slice %21 {offsets = [0, 2, 0], sizes = [2, 1, 32], strides = [1, 1, 1]} : vector<2x8x32xf32> to vector<2x1x32xf32>
      %144 = vector.shape_cast %143 : vector<2x1x32xf32> to vector<2x32xf32>
      %145 = arith.addf %144, %129 : vector<2x32xf32>
      %146 = arith.negf %145 : vector<2x32xf32>
      %147 = math.exp %146 : vector<2x32xf32>
      %cst_82 = arith.constant 1.000000e+00 : f32
      %148 = vector.broadcast %cst_82 : f32 to vector<2x32xf32>
      %149 = arith.addf %148, %147 : vector<2x32xf32>
      %150 = arith.divf %148, %149 : vector<2x32xf32>
      %151 = vector.extract_strided_slice %27 {offsets = [0, 2, 0], sizes = [2, 1, 32], strides = [1, 1, 1]} : vector<2x8x32xf32> to vector<2x1x32xf32>
      %152 = vector.shape_cast %151 : vector<2x1x32xf32> to vector<2x32xf32>
      %153 = arith.mulf %142, %134 : vector<2x32xf32>
      %154 = arith.addf %152, %153 : vector<2x32xf32>
      %155 = math.tanh %154 : vector<2x32xf32>
      %cst_83 = arith.constant 1.000000e+00 : f32
      %156 = vector.broadcast %cst_83 : f32 to vector<2x32xf32>
      %157 = arith.subf %156, %150 : vector<2x32xf32>
      %158 = arith.mulf %157, %155 : vector<2x32xf32>
      %159 = arith.mulf %150, %115 : vector<2x32xf32>
      %160 = arith.addf %158, %159 : vector<2x32xf32>
      %c0_84 = arith.constant 0 : index
      %c2 = arith.constant 2 : index
      %c0_85 = arith.constant 0 : index
      %161 = vector.load %arg24[%c0_84, %c2, %c0_85] : memref<2x8x32xf32, #tpu.memory_space<vmem>>, vector<2x1x32xf32>
      %162 = vector.shape_cast %161 : vector<2x1x32xf32> to vector<2x32xf32>
      %163 = vector.shape_cast %160 : vector<2x32xf32> to vector<2x1x32xf32>
      tpu.vector_store %arg24[%c0_84, %c2, %c0_85], %163 {strides = array<i32>} : memref<2x8x32xf32, #tpu.memory_space<vmem>>, vector<2x1x32xf32>,
      %164 = arith.truncf %160 : vector<2x32xf32> to vector<2x32xbf16>
      %c0_86 = arith.constant 0 : index
      %c0_87 = arith.constant 0 : index
      %165 = vector.load %arg7[%c0_86, %c0_87] : memref<32x32xbf16, #tpu.memory_space<vmem>>, vector<32x32xbf16>
      %cst_88 = arith.constant dense<0.000000e+00> : vector<2x32xf32>
      %166 = tpu.matmul %164, %165, %cst_88 {dimension_numbers = #tpu.dot_dimension_numbers<[1], [0], [0], [1], [0, 0, 1, 1], [], []>} : vector<2x32xbf16>, vector<32x32xbf16>, vector<2x32xf32> -> vector<2x32xf32>
      %c0_89 = arith.constant 0 : index
      %c0_90 = arith.constant 0 : index
      %167 = vector.load %arg13[%c0_89, %c0_90] : memref<1x32xf32, #tpu.memory_space<vmem>>, vector<1x32xf32>
      %168 = vector.broadcast %167 : vector<1x32xf32> to vector<2x32xf32>
      %169 = arith.addf %166, %168 : vector<2x32xf32>
      %c0_91 = arith.constant 0 : index
      %c0_92 = arith.constant 0 : index
      %170 = vector.load %arg8[%c0_91, %c0_92] : memref<32x32xbf16, #tpu.memory_space<vmem>>, vector<32x32xbf16>
      %cst_93 = arith.constant dense<0.000000e+00> : vector<2x32xf32>
      %171 = tpu.matmul %164, %170, %cst_93 {dimension_numbers = #tpu.dot_dimension_numbers<[1], [0], [0], [1], [0, 0, 1, 1], [], []>} : vector<2x32xbf16>, vector<32x32xbf16>, vector<2x32xf32> -> vector<2x32xf32>
      %c0_94 = arith.constant 0 : index
      %c0_95 = arith.constant 0 : index
      %172 = vector.load %arg14[%c0_94, %c0_95] : memref<1x32xf32, #tpu.memory_space<vmem>>, vector<1x32xf32>
      %173 = vector.broadcast %172 : vector<1x32xf32> to vector<2x32xf32>
      %174 = arith.addf %171, %173 : vector<2x32xf32>
      %c0_96 = arith.constant 0 : index
      %c0_97 = arith.constant 0 : index
      %175 = vector.load %arg9[%c0_96, %c0_97] : memref<32x32xbf16, #tpu.memory_space<vmem>>, vector<32x32xbf16>
      %cst_98 = arith.constant dense<0.000000e+00> : vector<2x32xf32>
      %176 = tpu.matmul %164, %175, %cst_98 {dimension_numbers = #tpu.dot_dimension_numbers<[1], [0], [0], [1], [0, 0, 1, 1], [], []>} : vector<2x32xbf16>, vector<32x32xbf16>, vector<2x32xf32> -> vector<2x32xf32>
      %c0_99 = arith.constant 0 : index
      %c0_100 = arith.constant 0 : index
      %177 = vector.load %arg15[%c0_99, %c0_100] : memref<1x32xf32, #tpu.memory_space<vmem>>, vector<1x32xf32>
      %178 = vector.broadcast %177 : vector<1x32xf32> to vector<2x32xf32>
      %179 = arith.addf %176, %178 : vector<2x32xf32>
      %180 = vector.extract_strided_slice %15 {offsets = [0, 3, 0], sizes = [2, 1, 32], strides = [1, 1, 1]} : vector<2x8x32xf32> to vector<2x1x32xf32>
      %181 = vector.shape_cast %180 : vector<2x1x32xf32> to vector<2x32xf32>
      %182 = arith.addf %181, %169 : vector<2x32xf32>
      %183 = arith.negf %182 : vector<2x32xf32>
      %184 = math.exp %183 : vector<2x32xf32>
      %cst_101 = arith.constant 1.000000e+00 : f32
      %185 = vector.broadcast %cst_101 : f32 to vector<2x32xf32>
      %186 = arith.addf %185, %184 : vector<2x32xf32>
      %187 = arith.divf %185, %186 : vector<2x32xf32>
      %188 = vector.extract_strided_slice %21 {offsets = [0, 3, 0], sizes = [2, 1, 32], strides = [1, 1, 1]} : vector<2x8x32xf32> to vector<2x1x32xf32>
      %189 = vector.shape_cast %188 : vector<2x1x32xf32> to vector<2x32xf32>
      %190 = arith.addf %189, %174 : vector<2x32xf32>
      %191 = arith.negf %190 : vector<2x32xf32>
      %192 = math.exp %191 : vector<2x32xf32>
      %cst_102 = arith.constant 1.000000e+00 : f32
      %193 = vector.broadcast %cst_102 : f32 to vector<2x32xf32>
      %194 = arith.addf %193, %192 : vector<2x32xf32>
      %195 = arith.divf %193, %194 : vector<2x32xf32>
      %196 = vector.extract_strided_slice %27 {offsets = [0, 3, 0], sizes = [2, 1, 32], strides = [1, 1, 1]} : vector<2x8x32xf32> to vector<2x1x32xf32>
      %197 = vector.shape_cast %196 : vector<2x1x32xf32> to vector<2x32xf32>
      %198 = arith.mulf %187, %179 : vector<2x32xf32>
      %199 = arith.addf %197, %198 : vector<2x32xf32>
      %200 = math.tanh %199 : vector<2x32xf32>
      %cst_103 = arith.constant 1.000000e+00 : f32
      %201 = vector.broadcast %cst_103 : f32 to vector<2x32xf32>
      %202 = arith.subf %201, %195 : vector<2x32xf32>
      %203 = arith.mulf %202, %200 : vector<2x32xf32>
      %204 = arith.mulf %195, %160 : vector<2x32xf32>
      %205 = arith.addf %203, %204 : vector<2x32xf32>
      %c0_104 = arith.constant 0 : index
      %c3 = arith.constant 3 : index
      %c0_105 = arith.constant 0 : index
      %206 = vector.load %arg24[%c0_104, %c3, %c0_105] : memref<2x8x32xf32, #tpu.memory_space<vmem>>, vector<2x1x32xf32>
      %207 = vector.shape_cast %206 : vector<2x1x32xf32> to vector<2x32xf32>
      %208 = vector.shape_cast %205 : vector<2x32xf32> to vector<2x1x32xf32>
      tpu.vector_store %arg24[%c0_104, %c3, %c0_105], %208 {strides = array<i32>} : memref<2x8x32xf32, #tpu.memory_space<vmem>>, vector<2x1x32xf32>,
      %209 = arith.truncf %205 : vector<2x32xf32> to vector<2x32xbf16>
      %c0_106 = arith.constant 0 : index
      %c0_107 = arith.constant 0 : index
      %210 = vector.load %arg7[%c0_106, %c0_107] : memref<32x32xbf16, #tpu.memory_space<vmem>>, vector<32x32xbf16>
      %cst_108 = arith.constant dense<0.000000e+00> : vector<2x32xf32>
      %211 = tpu.matmul %209, %210, %cst_108 {dimension_numbers = #tpu.dot_dimension_numbers<[1], [0], [0], [1], [0, 0, 1, 1], [], []>} : vector<2x32xbf16>, vector<32x32xbf16>, vector<2x32xf32> -> vector<2x32xf32>
      %c0_109 = arith.constant 0 : index
      %c0_110 = arith.constant 0 : index
      %212 = vector.load %arg13[%c0_109, %c0_110] : memref<1x32xf32, #tpu.memory_space<vmem>>, vector<1x32xf32>
      %213 = vector.broadcast %212 : vector<1x32xf32> to vector<2x32xf32>
      %214 = arith.addf %211, %213 : vector<2x32xf32>
      %c0_111 = arith.constant 0 : index
      %c0_112 = arith.constant 0 : index
      %215 = vector.load %arg8[%c0_111, %c0_112] : memref<32x32xbf16, #tpu.memory_space<vmem>>, vector<32x32xbf16>
      %cst_113 = arith.constant dense<0.000000e+00> : vector<2x32xf32>
      %216 = tpu.matmul %209, %215, %cst_113 {dimension_numbers = #tpu.dot_dimension_numbers<[1], [0], [0], [1], [0, 0, 1, 1], [], []>} : vector<2x32xbf16>, vector<32x32xbf16>, vector<2x32xf32> -> vector<2x32xf32>
      %c0_114 = arith.constant 0 : index
      %c0_115 = arith.constant 0 : index
      %217 = vector.load %arg14[%c0_114, %c0_115] : memref<1x32xf32, #tpu.memory_space<vmem>>, vector<1x32xf32>
      %218 = vector.broadcast %217 : vector<1x32xf32> to vector<2x32xf32>
      %219 = arith.addf %216, %218 : vector<2x32xf32>
      %c0_116 = arith.constant 0 : index
      %c0_117 = arith.constant 0 : index
      %220 = vector.load %arg9[%c0_116, %c0_117] : memref<32x32xbf16, #tpu.memory_space<vmem>>, vector<32x32xbf16>
      %cst_118 = arith.constant dense<0.000000e+00> : vector<2x32xf32>
      %221 = tpu.matmul %209, %220, %cst_118 {dimension_numbers = #tpu.dot_dimension_numbers<[1], [0], [0], [1], [0, 0, 1, 1], [], []>} : vector<2x32xbf16>, vector<32x32xbf16>, vector<2x32xf32> -> vector<2x32xf32>
      %c0_119 = arith.constant 0 : index
      %c0_120 = arith.constant 0 : index
      %222 = vector.load %arg15[%c0_119, %c0_120] : memref<1x32xf32, #tpu.memory_space<vmem>>, vector<1x32xf32>
      %223 = vector.broadcast %222 : vector<1x32xf32> to vector<2x32xf32>
      %224 = arith.addf %221, %223 : vector<2x32xf32>
      %225 = vector.extract_strided_slice %15 {offsets = [0, 4, 0], sizes = [2, 1, 32], strides = [1, 1, 1]} : vector<2x8x32xf32> to vector<2x1x32xf32>
      %226 = vector.shape_cast %225 : vector<2x1x32xf32> to vector<2x32xf32>
      %227 = arith.addf %226, %214 : vector<2x32xf32>
      %228 = arith.negf %227 : vector<2x32xf32>
      %229 = math.exp %228 : vector<2x32xf32>
      %cst_121 = arith.constant 1.000000e+00 : f32
      %230 = vector.broadcast %cst_121 : f32 to vector<2x32xf32>
      %231 = arith.addf %230, %229 : vector<2x32xf32>
      %232 = arith.divf %230, %231 : vector<2x32xf32>
      %233 = vector.extract_strided_slice %21 {offsets = [0, 4, 0], sizes = [2, 1, 32], strides = [1, 1, 1]} : vector<2x8x32xf32> to vector<2x1x32xf32>
      %234 = vector.shape_cast %233 : vector<2x1x32xf32> to vector<2x32xf32>
      %235 = arith.addf %234, %219 : vector<2x32xf32>
      %236 = arith.negf %235 : vector<2x32xf32>
      %237 = math.exp %236 : vector<2x32xf32>
      %cst_122 = arith.constant 1.000000e+00 : f32
      %238 = vector.broadcast %cst_122 : f32 to vector<2x32xf32>
      %239 = arith.addf %238, %237 : vector<2x32xf32>
      %240 = arith.divf %238, %239 : vector<2x32xf32>
      %241 = vector.extract_strided_slice %27 {offsets = [0, 4, 0], sizes = [2, 1, 32], strides = [1, 1, 1]} : vector<2x8x32xf32> to vector<2x1x32xf32>
      %242 = vector.shape_cast %241 : vector<2x1x32xf32> to vector<2x32xf32>
      %243 = arith.mulf %232, %224 : vector<2x32xf32>
      %244 = arith.addf %242, %243 : vector<2x32xf32>
      %245 = math.tanh %244 : vector<2x32xf32>
      %cst_123 = arith.constant 1.000000e+00 : f32
      %246 = vector.broadcast %cst_123 : f32 to vector<2x32xf32>
      %247 = arith.subf %246, %240 : vector<2x32xf32>
      %248 = arith.mulf %247, %245 : vector<2x32xf32>
      %249 = arith.mulf %240, %205 : vector<2x32xf32>
      %250 = arith.addf %248, %249 : vector<2x32xf32>
      %c0_124 = arith.constant 0 : index
      %c4 = arith.constant 4 : index
      %c0_125 = arith.constant 0 : index
      %251 = vector.load %arg24[%c0_124, %c4, %c0_125] : memref<2x8x32xf32, #tpu.memory_space<vmem>>, vector<2x1x32xf32>
      %252 = vector.shape_cast %251 : vector<2x1x32xf32> to vector<2x32xf32>
      %253 = vector.shape_cast %250 : vector<2x32xf32> to vector<2x1x32xf32>
      tpu.vector_store %arg24[%c0_124, %c4, %c0_125], %253 {strides = array<i32>} : memref<2x8x32xf32, #tpu.memory_space<vmem>>, vector<2x1x32xf32>,
      %254 = arith.truncf %250 : vector<2x32xf32> to vector<2x32xbf16>
      %c0_126 = arith.constant 0 : index
      %c0_127 = arith.constant 0 : index
      %255 = vector.load %arg7[%c0_126, %c0_127] : memref<32x32xbf16, #tpu.memory_space<vmem>>, vector<32x32xbf16>
      %cst_128 = arith.constant dense<0.000000e+00> : vector<2x32xf32>
      %256 = tpu.matmul %254, %255, %cst_128 {dimension_numbers = #tpu.dot_dimension_numbers<[1], [0], [0], [1], [0, 0, 1, 1], [], []>} : vector<2x32xbf16>, vector<32x32xbf16>, vector<2x32xf32> -> vector<2x32xf32>
      %c0_129 = arith.constant 0 : index
      %c0_130 = arith.constant 0 : index
      %257 = vector.load %arg13[%c0_129, %c0_130] : memref<1x32xf32, #tpu.memory_space<vmem>>, vector<1x32xf32>
      %258 = vector.broadcast %257 : vector<1x32xf32> to vector<2x32xf32>
      %259 = arith.addf %256, %258 : vector<2x32xf32>
      %c0_131 = arith.constant 0 : index
      %c0_132 = arith.constant 0 : index
      %260 = vector.load %arg8[%c0_131, %c0_132] : memref<32x32xbf16, #tpu.memory_space<vmem>>, vector<32x32xbf16>
      %cst_133 = arith.constant dense<0.000000e+00> : vector<2x32xf32>
      %261 = tpu.matmul %254, %260, %cst_133 {dimension_numbers = #tpu.dot_dimension_numbers<[1], [0], [0], [1], [0, 0, 1, 1], [], []>} : vector<2x32xbf16>, vector<32x32xbf16>, vector<2x32xf32> -> vector<2x32xf32>
      %c0_134 = arith.constant 0 : index
      %c0_135 = arith.constant 0 : index
      %262 = vector.load %arg14[%c0_134, %c0_135] : memref<1x32xf32, #tpu.memory_space<vmem>>, vector<1x32xf32>
      %263 = vector.broadcast %262 : vector<1x32xf32> to vector<2x32xf32>
      %264 = arith.addf %261, %263 : vector<2x32xf32>
      %c0_136 = arith.constant 0 : index
      %c0_137 = arith.constant 0 : index
      %265 = vector.load %arg9[%c0_136, %c0_137] : memref<32x32xbf16, #tpu.memory_space<vmem>>, vector<32x32xbf16>
      %cst_138 = arith.constant dense<0.000000e+00> : vector<2x32xf32>
      %266 = tpu.matmul %254, %265, %cst_138 {dimension_numbers = #tpu.dot_dimension_numbers<[1], [0], [0], [1], [0, 0, 1, 1], [], []>} : vector<2x32xbf16>, vector<32x32xbf16>, vector<2x32xf32> -> vector<2x32xf32>
      %c0_139 = arith.constant 0 : index
      %c0_140 = arith.constant 0 : index
      %267 = vector.load %arg15[%c0_139, %c0_140] : memref<1x32xf32, #tpu.memory_space<vmem>>, vector<1x32xf32>
      %268 = vector.broadcast %267 : vector<1x32xf32> to vector<2x32xf32>
      %269 = arith.addf %266, %268 : vector<2x32xf32>
      %270 = vector.extract_strided_slice %15 {offsets = [0, 5, 0], sizes = [2, 1, 32], strides = [1, 1, 1]} : vector<2x8x32xf32> to vector<2x1x32xf32>
      %271 = vector.shape_cast %270 : vector<2x1x32xf32> to vector<2x32xf32>
      %272 = arith.addf %271, %259 : vector<2x32xf32>
      %273 = arith.negf %272 : vector<2x32xf32>
      %274 = math.exp %273 : vector<2x32xf32>
      %cst_141 = arith.constant 1.000000e+00 : f32
      %275 = vector.broadcast %cst_141 : f32 to vector<2x32xf32>
      %276 = arith.addf %275, %274 : vector<2x32xf32>
      %277 = arith.divf %275, %276 : vector<2x32xf32>
      %278 = vector.extract_strided_slice %21 {offsets = [0, 5, 0], sizes = [2, 1, 32], strides = [1, 1, 1]} : vector<2x8x32xf32> to vector<2x1x32xf32>
      %279 = vector.shape_cast %278 : vector<2x1x32xf32> to vector<2x32xf32>
      %280 = arith.addf %279, %264 : vector<2x32xf32>
      %281 = arith.negf %280 : vector<2x32xf32>
      %282 = math.exp %281 : vector<2x32xf32>
      %cst_142 = arith.constant 1.000000e+00 : f32
      %283 = vector.broadcast %cst_142 : f32 to vector<2x32xf32>
      %284 = arith.addf %283, %282 : vector<2x32xf32>
      %285 = arith.divf %283, %284 : vector<2x32xf32>
      %286 = vector.extract_strided_slice %27 {offsets = [0, 5, 0], sizes = [2, 1, 32], strides = [1, 1, 1]} : vector<2x8x32xf32> to vector<2x1x32xf32>
      %287 = vector.shape_cast %286 : vector<2x1x32xf32> to vector<2x32xf32>
      %288 = arith.mulf %277, %269 : vector<2x32xf32>
      %289 = arith.addf %287, %288 : vector<2x32xf32>
      %290 = math.tanh %289 : vector<2x32xf32>
      %cst_143 = arith.constant 1.000000e+00 : f32
      %291 = vector.broadcast %cst_143 : f32 to vector<2x32xf32>
      %292 = arith.subf %291, %285 : vector<2x32xf32>
      %293 = arith.mulf %292, %290 : vector<2x32xf32>
      %294 = arith.mulf %285, %250 : vector<2x32xf32>
      %295 = arith.addf %293, %294 : vector<2x32xf32>
      %c0_144 = arith.constant 0 : index
      %c5 = arith.constant 5 : index
      %c0_145 = arith.constant 0 : index
      %296 = vector.load %arg24[%c0_144, %c5, %c0_145] : memref<2x8x32xf32, #tpu.memory_space<vmem>>, vector<2x1x32xf32>
      %297 = vector.shape_cast %296 : vector<2x1x32xf32> to vector<2x32xf32>
      %298 = vector.shape_cast %295 : vector<2x32xf32> to vector<2x1x32xf32>
      tpu.vector_store %arg24[%c0_144, %c5, %c0_145], %298 {strides = array<i32>} : memref<2x8x32xf32, #tpu.memory_space<vmem>>, vector<2x1x32xf32>,
      %299 = arith.truncf %295 : vector<2x32xf32> to vector<2x32xbf16>
      %c0_146 = arith.constant 0 : index
      %c0_147 = arith.constant 0 : index
      %300 = vector.load %arg7[%c0_146, %c0_147] : memref<32x32xbf16, #tpu.memory_space<vmem>>, vector<32x32xbf16>
      %cst_148 = arith.constant dense<0.000000e+00> : vector<2x32xf32>
      %301 = tpu.matmul %299, %300, %cst_148 {dimension_numbers = #tpu.dot_dimension_numbers<[1], [0], [0], [1], [0, 0, 1, 1], [], []>} : vector<2x32xbf16>, vector<32x32xbf16>, vector<2x32xf32> -> vector<2x32xf32>
      %c0_149 = arith.constant 0 : index
      %c0_150 = arith.constant 0 : index
      %302 = vector.load %arg13[%c0_149, %c0_150] : memref<1x32xf32, #tpu.memory_space<vmem>>, vector<1x32xf32>
      %303 = vector.broadcast %302 : vector<1x32xf32> to vector<2x32xf32>
      %304 = arith.addf %301, %303 : vector<2x32xf32>
      %c0_151 = arith.constant 0 : index
      %c0_152 = arith.constant 0 : index
      %305 = vector.load %arg8[%c0_151, %c0_152] : memref<32x32xbf16, #tpu.memory_space<vmem>>, vector<32x32xbf16>
      %cst_153 = arith.constant dense<0.000000e+00> : vector<2x32xf32>
      %306 = tpu.matmul %299, %305, %cst_153 {dimension_numbers = #tpu.dot_dimension_numbers<[1], [0], [0], [1], [0, 0, 1, 1], [], []>} : vector<2x32xbf16>, vector<32x32xbf16>, vector<2x32xf32> -> vector<2x32xf32>
      %c0_154 = arith.constant 0 : index
      %c0_155 = arith.constant 0 : index
      %307 = vector.load %arg14[%c0_154, %c0_155] : memref<1x32xf32, #tpu.memory_space<vmem>>, vector<1x32xf32>
      %308 = vector.broadcast %307 : vector<1x32xf32> to vector<2x32xf32>
      %309 = arith.addf %306, %308 : vector<2x32xf32>
      %c0_156 = arith.constant 0 : index
      %c0_157 = arith.constant 0 : index
      %310 = vector.load %arg9[%c0_156, %c0_157] : memref<32x32xbf16, #tpu.memory_space<vmem>>, vector<32x32xbf16>
      %cst_158 = arith.constant dense<0.000000e+00> : vector<2x32xf32>
      %311 = tpu.matmul %299, %310, %cst_158 {dimension_numbers = #tpu.dot_dimension_numbers<[1], [0], [0], [1], [0, 0, 1, 1], [], []>} : vector<2x32xbf16>, vector<32x32xbf16>, vector<2x32xf32> -> vector<2x32xf32>
      %c0_159 = arith.constant 0 : index
      %c0_160 = arith.constant 0 : index
      %312 = vector.load %arg15[%c0_159, %c0_160] : memref<1x32xf32, #tpu.memory_space<vmem>>, vector<1x32xf32>
      %313 = vector.broadcast %312 : vector<1x32xf32> to vector<2x32xf32>
      %314 = arith.addf %311, %313 : vector<2x32xf32>
      %315 = vector.extract_strided_slice %15 {offsets = [0, 6, 0], sizes = [2, 1, 32], strides = [1, 1, 1]} : vector<2x8x32xf32> to vector<2x1x32xf32>
      %316 = vector.shape_cast %315 : vector<2x1x32xf32> to vector<2x32xf32>
      %317 = arith.addf %316, %304 : vector<2x32xf32>
      %318 = arith.negf %317 : vector<2x32xf32>
      %319 = math.exp %318 : vector<2x32xf32>
      %cst_161 = arith.constant 1.000000e+00 : f32
      %320 = vector.broadcast %cst_161 : f32 to vector<2x32xf32>
      %321 = arith.addf %320, %319 : vector<2x32xf32>
      %322 = arith.divf %320, %321 : vector<2x32xf32>
      %323 = vector.extract_strided_slice %21 {offsets = [0, 6, 0], sizes = [2, 1, 32], strides = [1, 1, 1]} : vector<2x8x32xf32> to vector<2x1x32xf32>
      %324 = vector.shape_cast %323 : vector<2x1x32xf32> to vector<2x32xf32>
      %325 = arith.addf %324, %309 : vector<2x32xf32>
      %326 = arith.negf %325 : vector<2x32xf32>
      %327 = math.exp %326 : vector<2x32xf32>
      %cst_162 = arith.constant 1.000000e+00 : f32
      %328 = vector.broadcast %cst_162 : f32 to vector<2x32xf32>
      %329 = arith.addf %328, %327 : vector<2x32xf32>
      %330 = arith.divf %328, %329 : vector<2x32xf32>
      %331 = vector.extract_strided_slice %27 {offsets = [0, 6, 0], sizes = [2, 1, 32], strides = [1, 1, 1]} : vector<2x8x32xf32> to vector<2x1x32xf32>
      %332 = vector.shape_cast %331 : vector<2x1x32xf32> to vector<2x32xf32>
      %333 = arith.mulf %322, %314 : vector<2x32xf32>
      %334 = arith.addf %332, %333 : vector<2x32xf32>
      %335 = math.tanh %334 : vector<2x32xf32>
      %cst_163 = arith.constant 1.000000e+00 : f32
      %336 = vector.broadcast %cst_163 : f32 to vector<2x32xf32>
      %337 = arith.subf %336, %330 : vector<2x32xf32>
      %338 = arith.mulf %337, %335 : vector<2x32xf32>
      %339 = arith.mulf %330, %295 : vector<2x32xf32>
      %340 = arith.addf %338, %339 : vector<2x32xf32>
      %c0_164 = arith.constant 0 : index
      %c6 = arith.constant 6 : index
      %c0_165 = arith.constant 0 : index
      %341 = vector.load %arg24[%c0_164, %c6, %c0_165] : memref<2x8x32xf32, #tpu.memory_space<vmem>>, vector<2x1x32xf32>
      %342 = vector.shape_cast %341 : vector<2x1x32xf32> to vector<2x32xf32>
      %343 = vector.shape_cast %340 : vector<2x32xf32> to vector<2x1x32xf32>
      tpu.vector_store %arg24[%c0_164, %c6, %c0_165], %343 {strides = array<i32>} : memref<2x8x32xf32, #tpu.memory_space<vmem>>, vector<2x1x32xf32>,
      %344 = arith.truncf %340 : vector<2x32xf32> to vector<2x32xbf16>
      %c0_166 = arith.constant 0 : index
      %c0_167 = arith.constant 0 : index
      %345 = vector.load %arg7[%c0_166, %c0_167] : memref<32x32xbf16, #tpu.memory_space<vmem>>, vector<32x32xbf16>
      %cst_168 = arith.constant dense<0.000000e+00> : vector<2x32xf32>
      %346 = tpu.matmul %344, %345, %cst_168 {dimension_numbers = #tpu.dot_dimension_numbers<[1], [0], [0], [1], [0, 0, 1, 1], [], []>} : vector<2x32xbf16>, vector<32x32xbf16>, vector<2x32xf32> -> vector<2x32xf32>
      %c0_169 = arith.constant 0 : index
      %c0_170 = arith.constant 0 : index
      %347 = vector.load %arg13[%c0_169, %c0_170] : memref<1x32xf32, #tpu.memory_space<vmem>>, vector<1x32xf32>
      %348 = vector.broadcast %347 : vector<1x32xf32> to vector<2x32xf32>
      %349 = arith.addf %346, %348 : vector<2x32xf32>
      %c0_171 = arith.constant 0 : index
      %c0_172 = arith.constant 0 : index
      %350 = vector.load %arg8[%c0_171, %c0_172] : memref<32x32xbf16, #tpu.memory_space<vmem>>, vector<32x32xbf16>
      %cst_173 = arith.constant dense<0.000000e+00> : vector<2x32xf32>
      %351 = tpu.matmul %344, %350, %cst_173 {dimension_numbers = #tpu.dot_dimension_numbers<[1], [0], [0], [1], [0, 0, 1, 1], [], []>} : vector<2x32xbf16>, vector<32x32xbf16>, vector<2x32xf32> -> vector<2x32xf32>
      %c0_174 = arith.constant 0 : index
      %c0_175 = arith.constant 0 : index
      %352 = vector.load %arg14[%c0_174, %c0_175] : memref<1x32xf32, #tpu.memory_space<vmem>>, vector<1x32xf32>
      %353 = vector.broadcast %352 : vector<1x32xf32> to vector<2x32xf32>
      %354 = arith.addf %351, %353 : vector<2x32xf32>
      %c0_176 = arith.constant 0 : index
      %c0_177 = arith.constant 0 : index
      %355 = vector.load %arg9[%c0_176, %c0_177] : memref<32x32xbf16, #tpu.memory_space<vmem>>, vector<32x32xbf16>
      %cst_178 = arith.constant dense<0.000000e+00> : vector<2x32xf32>
      %356 = tpu.matmul %344, %355, %cst_178 {dimension_numbers = #tpu.dot_dimension_numbers<[1], [0], [0], [1], [0, 0, 1, 1], [], []>} : vector<2x32xbf16>, vector<32x32xbf16>, vector<2x32xf32> -> vector<2x32xf32>
      %c0_179 = arith.constant 0 : index
      %c0_180 = arith.constant 0 : index
      %357 = vector.load %arg15[%c0_179, %c0_180] : memref<1x32xf32, #tpu.memory_space<vmem>>, vector<1x32xf32>
      %358 = vector.broadcast %357 : vector<1x32xf32> to vector<2x32xf32>
      %359 = arith.addf %356, %358 : vector<2x32xf32>
      %360 = vector.extract_strided_slice %15 {offsets = [0, 7, 0], sizes = [2, 1, 32], strides = [1, 1, 1]} : vector<2x8x32xf32> to vector<2x1x32xf32>
      %361 = vector.shape_cast %360 : vector<2x1x32xf32> to vector<2x32xf32>
      %362 = arith.addf %361, %349 : vector<2x32xf32>
      %363 = arith.negf %362 : vector<2x32xf32>
      %364 = math.exp %363 : vector<2x32xf32>
      %cst_181 = arith.constant 1.000000e+00 : f32
      %365 = vector.broadcast %cst_181 : f32 to vector<2x32xf32>
      %366 = arith.addf %365, %364 : vector<2x32xf32>
      %367 = arith.divf %365, %366 : vector<2x32xf32>
      %368 = vector.extract_strided_slice %21 {offsets = [0, 7, 0], sizes = [2, 1, 32], strides = [1, 1, 1]} : vector<2x8x32xf32> to vector<2x1x32xf32>
      %369 = vector.shape_cast %368 : vector<2x1x32xf32> to vector<2x32xf32>
      %370 = arith.addf %369, %354 : vector<2x32xf32>
      %371 = arith.negf %370 : vector<2x32xf32>
      %372 = math.exp %371 : vector<2x32xf32>
      %cst_182 = arith.constant 1.000000e+00 : f32
      %373 = vector.broadcast %cst_182 : f32 to vector<2x32xf32>
      %374 = arith.addf %373, %372 : vector<2x32xf32>
      %375 = arith.divf %373, %374 : vector<2x32xf32>
      %376 = vector.extract_strided_slice %27 {offsets = [0, 7, 0], sizes = [2, 1, 32], strides = [1, 1, 1]} : vector<2x8x32xf32> to vector<2x1x32xf32>
      %377 = vector.shape_cast %376 : vector<2x1x32xf32> to vector<2x32xf32>
      %378 = arith.mulf %367, %359 : vector<2x32xf32>
      %379 = arith.addf %377, %378 : vector<2x32xf32>
      %380 = math.tanh %379 : vector<2x32xf32>
      %cst_183 = arith.constant 1.000000e+00 : f32
      %381 = vector.broadcast %cst_183 : f32 to vector<2x32xf32>
      %382 = arith.subf %381, %375 : vector<2x32xf32>
      %383 = arith.mulf %382, %380 : vector<2x32xf32>
      %384 = arith.mulf %375, %340 : vector<2x32xf32>
      %385 = arith.addf %383, %384 : vector<2x32xf32>
      %c0_184 = arith.constant 0 : index
      %c7 = arith.constant 7 : index
      %c0_185 = arith.constant 0 : index
      %386 = vector.load %arg24[%c0_184, %c7, %c0_185] : memref<2x8x32xf32, #tpu.memory_space<vmem>>, vector<2x1x32xf32>
      %387 = vector.shape_cast %386 : vector<2x1x32xf32> to vector<2x32xf32>
      %388 = vector.shape_cast %385 : vector<2x32xf32> to vector<2x1x32xf32>
      tpu.vector_store %arg24[%c0_184, %c7, %c0_185], %388 {strides = array<i32>} : memref<2x8x32xf32, #tpu.memory_space<vmem>>, vector<2x1x32xf32>,
      %c0_186 = arith.constant 0 : index
      %c0_187 = arith.constant 0 : index
      %c0_188 = arith.constant 0 : index
      %389 = vector.load %arg24[%c0_186, %c0_187, %c0_188] : memref<2x8x32xf32, #tpu.memory_space<vmem>>, vector<2x8x32xf32>
      %c0_189 = arith.constant 0 : index
      %c0_190 = arith.constant 0 : index
      %c0_191 = arith.constant 0 : index
      %390 = vector.load %arg2[%c0_189, %c0_190, %c0_191] : memref<2x8x32xf32, #tpu.memory_space<vmem>>, vector<2x8x32xf32>
      %391 = arith.truncf %390 : vector<2x8x32xf32> to vector<2x8x32xbf16>
      %392 = vector.shape_cast %391 : vector<2x8x32xbf16> to vector<16x32xbf16>
      %c0_192 = arith.constant 0 : index
      %c0_193 = arith.constant 0 : index
      %c0_194 = arith.constant 0 : index
      %393 = vector.load %arg3[%c0_192, %c0_193, %c0_194] : memref<2x8x32xf32, #tpu.memory_space<vmem>>, vector<2x8x32xf32>
      %394 = arith.truncf %393 : vector<2x8x32xf32> to vector<2x8x32xbf16>
      %395 = vector.shape_cast %394 : vector<2x8x32xbf16> to vector<16x32xbf16>
      %c0_195 = arith.constant 0 : index
      %c0_196 = arith.constant 0 : index
      %396 = vector.load %arg16[%c0_195, %c0_196] : memref<32x32xbf16, #tpu.memory_space<vmem>>, vector<32x32xbf16>
      %cst_197 = arith.constant dense<0.000000e+00> : vector<16x32xf32>
      %397 = tpu.matmul %392, %396, %cst_197 {dimension_numbers = #tpu.dot_dimension_numbers<[1], [0], [0], [1], [0, 0, 1, 1], [], []>} : vector<16x32xbf16>, vector<32x32xbf16>, vector<16x32xf32> -> vector<16x32xf32>
      %c0_198 = arith.constant 0 : index
      %c0_199 = arith.constant 0 : index
      %398 = vector.load %arg17[%c0_198, %c0_199] : memref<1x32xf32, #tpu.memory_space<vmem>>, vector<1x32xf32>
      %399 = vector.broadcast %398 : vector<1x32xf32> to vector<16x32xf32>
      %400 = arith.addf %397, %399 : vector<16x32xf32>
      %401 = math.tanh %400 : vector<16x32xf32>
      %402 = vector.shape_cast %401 : vector<16x32xf32> to vector<2x8x32xf32>
      %c0_200 = arith.constant 0 : index
      %c0_201 = arith.constant 0 : index
      %403 = vector.load %arg18[%c0_200, %c0_201] : memref<32x32xbf16, #tpu.memory_space<vmem>>, vector<32x32xbf16>
      %cst_202 = arith.constant dense<0.000000e+00> : vector<16x32xf32>
      %404 = tpu.matmul %395, %403, %cst_202 {dimension_numbers = #tpu.dot_dimension_numbers<[1], [0], [0], [1], [0, 0, 1, 1], [], []>} : vector<16x32xbf16>, vector<32x32xbf16>, vector<16x32xf32> -> vector<16x32xf32>
      %c0_203 = arith.constant 0 : index
      %c0_204 = arith.constant 0 : index
      %405 = vector.load %arg19[%c0_203, %c0_204] : memref<1x32xf32, #tpu.memory_space<vmem>>, vector<1x32xf32>
      %406 = vector.broadcast %405 : vector<1x32xf32> to vector<16x32xf32>
      %407 = arith.addf %404, %406 : vector<16x32xf32>
      %408 = math.tanh %407 : vector<16x32xf32>
      %409 = vector.shape_cast %408 : vector<16x32xf32> to vector<2x8x32xf32>
      %410 = vector.shape_cast %385 : vector<2x32xf32> to vector<2x1x32xf32>
      %411 = vector.broadcast %410 : vector<2x1x32xf32> to vector<2x8x32xf32>
      %412 = arith.mulf %389, %411 : vector<2x8x32xf32>
      %cst_205 = arith.constant dense<0.000000e+00> : vector<2x8xf32>
      %413 = vector.multi_reduction <add>, %412, %cst_205 [2] : vector<2x8x32xf32> to vector<2x8xf32>
      %cst_206 = arith.constant 0.176776692 : f32
      %414 = vector.broadcast %cst_206 : f32 to vector<2x8xf32>
      %415 = arith.mulf %413, %414 : vector<2x8xf32>
      %cst_207 = arith.constant dense<0xFF800000> : vector<2xf32>
      %416 = vector.multi_reduction <maximumf>, %415, %cst_207 [1] : vector<2x8xf32> to vector<2xf32>
      %417 = vector.shape_cast %416 : vector<2xf32> to vector<2x1xf32>
      %418 = vector.broadcast %417 : vector<2x1xf32> to vector<2x8xf32>
      %419 = arith.subf %415, %418 : vector<2x8xf32>
      %420 = math.exp %419 : vector<2x8xf32>
      %cst_208 = arith.constant dense<0.000000e+00> : vector<2xf32>
      %421 = vector.multi_reduction <add>, %420, %cst_208 [1] : vector<2x8xf32> to vector<2xf32>
      %422 = vector.shape_cast %421 : vector<2xf32> to vector<2x1xf32>
      %423 = tpu.reciprocal %422 {approx = true} : vector<2x1xf32> -> vector<2x1xf32>
      %424 = vector.broadcast %423 : vector<2x1xf32> to vector<2x8xf32>
      %425 = arith.mulf %420, %424 : vector<2x8xf32>
      %426 = vector.shape_cast %425 : vector<2x8xf32> to vector<2x8x1xf32>
      %427 = vector.broadcast %426 : vector<2x8x1xf32> to vector<2x8x32xf32>
      %428 = arith.mulf %427, %389 : vector<2x8x32xf32>
      %cst_209 = arith.constant dense<0.000000e+00> : vector<2x32xf32>
      %429 = vector.multi_reduction <add>, %428, %cst_209 [1] : vector<2x8x32xf32> to vector<2x32xf32>
      %430 = vector.broadcast %426 : vector<2x8x1xf32> to vector<2x8x32xf32>
      %431 = arith.mulf %430, %409 : vector<2x8x32xf32>
      %cst_210 = arith.constant dense<0.000000e+00> : vector<2x32xf32>
      %432 = vector.multi_reduction <add>, %431, %cst_210 [1] : vector<2x8x32xf32> to vector<2x32xf32>
      %433 = vector.extract_strided_slice %409 {offsets = [0, 7, 0], sizes = [2, 1, 32], strides = [1, 1, 1]} : vector<2x8x32xf32> to vector<2x1x32xf32>
      %434 = vector.shape_cast %433 : vector<2x1x32xf32> to vector<2x32xf32>
      %435 = vector.broadcast %426 : vector<2x8x1xf32> to vector<2x8x32xf32>
      %436 = arith.mulf %435, %402 : vector<2x8x32xf32>
      %cst_211 = arith.constant dense<0.000000e+00> : vector<2x32xf32>
      %437 = vector.multi_reduction <add>, %436, %cst_211 [1] : vector<2x8x32xf32> to vector<2x32xf32>
      %438 = vector.extract_strided_slice %402 {offsets = [0, 7, 0], sizes = [2, 1, 32], strides = [1, 1, 1]} : vector<2x8x32xf32> to vector<2x1x32xf32>
      %439 = vector.shape_cast %438 : vector<2x1x32xf32> to vector<2x32xf32>
      %cst_212 = arith.constant 0.000000e+00 : f32
      %440 = vector.broadcast %cst_212 : f32 to vector<2x32xf32>
      %441 = arith.truncf %429 : vector<2x32xf32> to vector<2x32xbf16>
      %c0_213 = arith.constant 0 : index
      %c0_214 = arith.constant 0 : index
      %c0_215 = arith.constant 0 : index
      %442 = vector.load %arg20[%c0_213, %c0_214, %c0_215] : memref<6x32x32xbf16, #tpu.memory_space<vmem>>, vector<1x32x32xbf16>
      %443 = vector.shape_cast %442 : vector<1x32x32xbf16> to vector<32x32xbf16>
      %cst_216 = arith.constant dense<0.000000e+00> : vector<2x32xf32>
      %444 = tpu.matmul %441, %443, %cst_216 {dimension_numbers = #tpu.dot_dimension_numbers<[1], [0], [0], [1], [0, 0, 1, 1], [], []>} : vector<2x32xbf16>, vector<32x32xbf16>, vector<2x32xf32> -> vector<2x32xf32>
      %445 = arith.addf %440, %444 : vector<2x32xf32>
      %446 = arith.truncf %385 : vector<2x32xf32> to vector<2x32xbf16>
      %c1_217 = arith.constant 1 : index
      %c0_218 = arith.constant 0 : index
      %c0_219 = arith.constant 0 : index
      %447 = vector.load %arg20[%c1_217, %c0_218, %c0_219] : memref<6x32x32xbf16, #tpu.memory_space<vmem>>, vector<1x32x32xbf16>
      %448 = vector.shape_cast %447 : vector<1x32x32xbf16> to vector<32x32xbf16>
      %cst_220 = arith.constant dense<0.000000e+00> : vector<2x32xf32>
      %449 = tpu.matmul %446, %448, %cst_220 {dimension_numbers = #tpu.dot_dimension_numbers<[1], [0], [0], [1], [0, 0, 1, 1], [], []>} : vector<2x32xbf16>, vector<32x32xbf16>, vector<2x32xf32> -> vector<2x32xf32>
      %450 = arith.addf %445, %449 : vector<2x32xf32>
      %451 = arith.truncf %432 : vector<2x32xf32> to vector<2x32xbf16>
      %c2_221 = arith.constant 2 : index
      %c0_222 = arith.constant 0 : index
      %c0_223 = arith.constant 0 : index
      %452 = vector.load %arg20[%c2_221, %c0_222, %c0_223] : memref<6x32x32xbf16, #tpu.memory_space<vmem>>, vector<1x32x32xbf16>
      %453 = vector.shape_cast %452 : vector<1x32x32xbf16> to vector<32x32xbf16>
      %cst_224 = arith.constant dense<0.000000e+00> : vector<2x32xf32>
      %454 = tpu.matmul %451, %453, %cst_224 {dimension_numbers = #tpu.dot_dimension_numbers<[1], [0], [0], [1], [0, 0, 1, 1], [], []>} : vector<2x32xbf16>, vector<32x32xbf16>, vector<2x32xf32> -> vector<2x32xf32>
      %455 = arith.addf %450, %454 : vector<2x32xf32>
      %456 = arith.truncf %434 : vector<2x32xf32> to vector<2x32xbf16>
      %c3_225 = arith.constant 3 : index
      %c0_226 = arith.constant 0 : index
      %c0_227 = arith.constant 0 : index
      %457 = vector.load %arg20[%c3_225, %c0_226, %c0_227] : memref<6x32x32xbf16, #tpu.memory_space<vmem>>, vector<1x32x32xbf16>
      %458 = vector.shape_cast %457 : vector<1x32x32xbf16> to vector<32x32xbf16>
      %cst_228 = arith.constant dense<0.000000e+00> : vector<2x32xf32>
      %459 = tpu.matmul %456, %458, %cst_228 {dimension_numbers = #tpu.dot_dimension_numbers<[1], [0], [0], [1], [0, 0, 1, 1], [], []>} : vector<2x32xbf16>, vector<32x32xbf16>, vector<2x32xf32> -> vector<2x32xf32>
      %460 = arith.addf %455, %459 : vector<2x32xf32>
      %461 = arith.truncf %437 : vector<2x32xf32> to vector<2x32xbf16>
      %c4_229 = arith.constant 4 : index
      %c0_230 = arith.constant 0 : index
      %c0_231 = arith.constant 0 : index
      %462 = vector.load %arg20[%c4_229, %c0_230, %c0_231] : memref<6x32x32xbf16, #tpu.memory_space<vmem>>, vector<1x32x32xbf16>
      %463 = vector.shape_cast %462 : vector<1x32x32xbf16> to vector<32x32xbf16>
      %cst_232 = arith.constant dense<0.000000e+00> : vector<2x32xf32>
      %464 = tpu.matmul %461, %463, %cst_232 {dimension_numbers = #tpu.dot_dimension_numbers<[1], [0], [0], [1], [0, 0, 1, 1], [], []>} : vector<2x32xbf16>, vector<32x32xbf16>, vector<2x32xf32> -> vector<2x32xf32>
      %465 = arith.addf %460, %464 : vector<2x32xf32>
      %466 = arith.truncf %439 : vector<2x32xf32> to vector<2x32xbf16>
      %c5_233 = arith.constant 5 : index
      %c0_234 = arith.constant 0 : index
      %c0_235 = arith.constant 0 : index
      %467 = vector.load %arg20[%c5_233, %c0_234, %c0_235] : memref<6x32x32xbf16, #tpu.memory_space<vmem>>, vector<1x32x32xbf16>
      %468 = vector.shape_cast %467 : vector<1x32x32xbf16> to vector<32x32xbf16>
      %cst_236 = arith.constant dense<0.000000e+00> : vector<2x32xf32>
      %469 = tpu.matmul %466, %468, %cst_236 {dimension_numbers = #tpu.dot_dimension_numbers<[1], [0], [0], [1], [0, 0, 1, 1], [], []>} : vector<2x32xbf16>, vector<32x32xbf16>, vector<2x32xf32> -> vector<2x32xf32>
      %470 = arith.addf %465, %469 : vector<2x32xf32>
      %c0_237 = arith.constant 0 : index
      %c0_238 = arith.constant 0 : index
      %471 = vector.load %arg21[%c0_237, %c0_238] : memref<1x32xf32, #tpu.memory_space<vmem>>, vector<1x32xf32>
      %472 = vector.broadcast %471 : vector<1x32xf32> to vector<2x32xf32>
      %473 = arith.addf %470, %472 : vector<2x32xf32>
      %474 = math.tanh %473 : vector<2x32xf32>
      %475 = arith.truncf %474 : vector<2x32xf32> to vector<2x32xbf16>
      %c0_239 = arith.constant 0 : index
      %c0_240 = arith.constant 0 : index
      %476 = vector.load %arg25[%c0_239, %c0_240] : memref<2x32xbf16, #tpu.memory_space<vmem>>, vector<2x32xbf16>
      tpu.vector_store %arg25[%c0_239, %c0_240], %475 {strides = array<i32>} : memref<2x32xbf16, #tpu.memory_space<vmem>>, vector<2x32xbf16>,
    } else {
    }
    %c0 = arith.constant 0 : index
    %c0_1 = arith.constant 0 : index
    %3 = vector.load %arg25[%c0, %c0_1] : memref<2x32xbf16, #tpu.memory_space<vmem>>, vector<2x32xbf16>
    %c0_2 = arith.constant 0 : index
    %c0_3 = arith.constant 0 : index
    %4 = vector.load %arg22[%c0_2, %c0_3] : memref<32x4096xbf16, #tpu.memory_space<vmem>>, vector<32x4096xbf16>
    %cst = arith.constant dense<0.000000e+00> : vector<2x4096xf32>
    %5 = tpu.matmul %3, %4, %cst {dimension_numbers = #tpu.dot_dimension_numbers<[1], [0], [0], [1], [0, 0, 1, 1], [], []>} : vector<2x32xbf16>, vector<32x4096xbf16>, vector<2x4096xf32> -> vector<2x4096xf32>
    %c0_4 = arith.constant 0 : index
    %c0_5 = arith.constant 0 : index
    %6 = vector.load %arg23[%c0_4, %c0_5] : memref<2x4096xf32, #tpu.memory_space<vmem>>, vector<2x4096xf32>
    tpu.vector_store %arg23[%c0_4, %c0_5], %5 {strides = array<i32>} : memref<2x4096xf32, #tpu.memory_space<vmem>>, vector<2x4096xf32>,
    return
  }
  func.func @transform_0(%arg0: i32) -> (i32, i32, i32) {
    %c0_i32 = arith.constant 0 : i32
    %c0_i32_0 = arith.constant 0 : i32
    %c0_i32_1 = arith.constant 0 : i32
    %c0_i32_2 = arith.constant 0 : i32
    return %c0_i32, %c0_i32_0, %c0_i32_1 : i32, i32, i32
  }
  func.func @transform_1(%arg0: i32) -> (i32, i32, i32) {
    %c0_i32 = arith.constant 0 : i32
    %c0_i32_0 = arith.constant 0 : i32
    %c0_i32_1 = arith.constant 0 : i32
    %c0_i32_2 = arith.constant 0 : i32
    return %c0_i32, %c0_i32_0, %c0_i32_1 : i32, i32, i32
  }
  func.func @transform_2(%arg0: i32) -> (i32, i32, i32) {
    %c0_i32 = arith.constant 0 : i32
    %c0_i32_0 = arith.constant 0 : i32
    %c0_i32_1 = arith.constant 0 : i32
    %c0_i32_2 = arith.constant 0 : i32
    return %c0_i32, %c0_i32_0, %c0_i32_1 : i32, i32, i32
  }
  func.func @transform_3(%arg0: i32) -> (i32, i32) {
    %c0_i32 = arith.constant 0 : i32
    %c0_i32_0 = arith.constant 0 : i32
    %c0_i32_1 = arith.constant 0 : i32
    return %c0_i32, %c0_i32_0 : i32, i32
  }
  func.func @transform_4(%arg0: i32) -> (i32, i32) {
    %c0_i32 = arith.constant 0 : i32
    %c0_i32_0 = arith.constant 0 : i32
    %c0_i32_1 = arith.constant 0 : i32
    return %c0_i32, %c0_i32_0 : i32, i32
  }
  func.func @transform_5(%arg0: i32) -> (i32, i32) {
    %c0_i32 = arith.constant 0 : i32
    %c0_i32_0 = arith.constant 0 : i32
    %c0_i32_1 = arith.constant 0 : i32
    return %c0_i32, %c0_i32_0 : i32, i32
  }
  func.func @transform_6(%arg0: i32) -> (i32, i32) {
    %c0_i32 = arith.constant 0 : i32
    %c0_i32_0 = arith.constant 0 : i32
    %c0_i32_1 = arith.constant 0 : i32
    return %c0_i32, %c0_i32_0 : i32, i32
  }
  func.func @transform_7(%arg0: i32) -> (i32, i32) {
    %c0_i32 = arith.constant 0 : i32
    %c0_i32_0 = arith.constant 0 : i32
    %c0_i32_1 = arith.constant 0 : i32
    return %c0_i32, %c0_i32_0 : i32, i32
  }
  func.func @transform_8(%arg0: i32) -> (i32, i32) {
    %c0_i32 = arith.constant 0 : i32
    %c0_i32_0 = arith.constant 0 : i32
    %c0_i32_1 = arith.constant 0 : i32
    return %c0_i32, %c0_i32_0 : i32, i32
  }
  func.func @transform_9(%arg0: i32) -> (i32, i32) {
    %c0_i32 = arith.constant 0 : i32
    %c0_i32_0 = arith.constant 0 : i32
    %c0_i32_1 = arith.constant 0 : i32
    return %c0_i32, %c0_i32_0 : i32, i32
  }
  func.func @transform_10(%arg0: i32) -> (i32, i32) {
    %c0_i32 = arith.constant 0 : i32
    %c0_i32_0 = arith.constant 0 : i32
    %c0_i32_1 = arith.constant 0 : i32
    return %c0_i32, %c0_i32_0 : i32, i32
  }
  func.func @transform_11(%arg0: i32) -> (i32, i32) {
    %c0_i32 = arith.constant 0 : i32
    %c0_i32_0 = arith.constant 0 : i32
    %c0_i32_1 = arith.constant 0 : i32
    return %c0_i32, %c0_i32_0 : i32, i32
  }
  func.func @transform_12(%arg0: i32) -> (i32, i32) {
    %c0_i32 = arith.constant 0 : i32
    %c0_i32_0 = arith.constant 0 : i32
    %c0_i32_1 = arith.constant 0 : i32
    return %c0_i32, %c0_i32_0 : i32, i32
  }
  func.func @transform_13(%arg0: i32) -> (i32, i32) {
    %c0_i32 = arith.constant 0 : i32
    %c0_i32_0 = arith.constant 0 : i32
    %c0_i32_1 = arith.constant 0 : i32
    return %c0_i32, %c0_i32_0 : i32, i32
  }
  func.func @transform_14(%arg0: i32) -> (i32, i32) {
    %c0_i32 = arith.constant 0 : i32
    %c0_i32_0 = arith.constant 0 : i32
    %c0_i32_1 = arith.constant 0 : i32
    return %c0_i32, %c0_i32_0 : i32, i32
  }
  func.func @transform_15(%arg0: i32) -> (i32, i32) {
    %c0_i32 = arith.constant 0 : i32
    %c0_i32_0 = arith.constant 0 : i32
    %c0_i32_1 = arith.constant 0 : i32
    return %c0_i32, %c0_i32_0 : i32, i32
  }
  func.func @transform_16(%arg0: i32) -> (i32, i32) {
    %c0_i32 = arith.constant 0 : i32
    %c0_i32_0 = arith.constant 0 : i32
    %c0_i32_1 = arith.constant 0 : i32
    return %c0_i32, %c0_i32_0 : i32, i32
  }
  func.func @transform_17(%arg0: i32) -> (i32, i32) {
    %c0_i32 = arith.constant 0 : i32
    %c0_i32_0 = arith.constant 0 : i32
    %c0_i32_1 = arith.constant 0 : i32
    return %c0_i32, %c0_i32_0 : i32, i32
  }
  func.func @transform_18(%arg0: i32) -> (i32, i32) {
    %c0_i32 = arith.constant 0 : i32
    %c0_i32_0 = arith.constant 0 : i32
    %c0_i32_1 = arith.constant 0 : i32
    return %c0_i32, %c0_i32_0 : i32, i32
  }
  func.func @transform_19(%arg0: i32) -> (i32, i32, i32) {
    %c0_i32 = arith.constant 0 : i32
    %c0_i32_0 = arith.constant 0 : i32
    %c0_i32_1 = arith.constant 0 : i32
    %c0_i32_2 = arith.constant 0 : i32
    return %c0_i32, %c0_i32_0, %c0_i32_1 : i32, i32, i32
  }
  func.func @transform_20(%arg0: i32) -> (i32, i32) {
    %c0_i32 = arith.constant 0 : i32
    %c0_i32_0 = arith.constant 0 : i32
    %c0_i32_1 = arith.constant 0 : i32
    return %c0_i32, %c0_i32_0 : i32, i32
  }
  func.func @transform_21(%arg0: i32) -> (i32, i32) {
    %c0_i32 = arith.constant 0 : i32
    %c0_i32_0 = arith.constant 0 : i32
    return %c0_i32, %arg0 : i32, i32
  }
  func.func @transform_22(%arg0: i32) -> (i32, i32) {
    %c0_i32 = arith.constant 0 : i32
    %c0_i32_0 = arith.constant 0 : i32
    return %c0_i32, %arg0 : i32, i32
  }
}

</mosaic_0001>

<llo_original>
// kernel: star_forward.1
$region0: #{star_forward.1}
  #allocation0 [shape = 'u32[]', space=smem, size = 0x4, offset = 0x4, fixed_abs, tag = 'smem constant byte address 0x4 - core index']
  #allocation1 [shape = 'u32[144,128]{1,0:T(1,128)}', space=vmem, size = 0x12000, scoped, tag = 'internal scratch']
  #allocation2 [shape = 'f32[2,8,32]{2,1,0:T(8,128)}', space=vmem, size = 0x2000, scoped, tag = 'scratch operand']
  #allocation3 [shape = 'bf16[2,32]{1,0:T(2,128)(2,1)}', space=vmem, size = 0x200, scoped, tag = 'scratch operand']
  %s0 = inlined_call_operand.vmem [shape: f32[2,8,32], index: 0, kind: input, shape index: {}]
  %s1 = inlined_call_operand.vmem [shape: f32[2,8,32], index: 1, kind: input, shape index: {}]
  %s2 = inlined_call_operand.vmem [shape: f32[2,8,32], index: 2, kind: input, shape index: {}]
  %s3 = inlined_call_operand.vmem [shape: bf16[32,32], index: 3, kind: input, shape index: {}]
  %s4 = inlined_call_operand.vmem [shape: bf16[32,32], index: 4, kind: input, shape index: {}]
  %s5 = inlined_call_operand.vmem [shape: bf16[32,32], index: 5, kind: input, shape index: {}]
  %s6 = inlined_call_operand.vmem [shape: bf16[32,32], index: 6, kind: input, shape index: {}]
  %s7 = inlined_call_operand.vmem [shape: bf16[32,32], index: 7, kind: input, shape index: {}]
  %s8 = inlined_call_operand.vmem [shape: bf16[32,32], index: 8, kind: input, shape index: {}]
  %s9 = inlined_call_operand.vmem [shape: f32[1,32], index: 9, kind: input, shape index: {}]
  %s10 = inlined_call_operand.vmem [shape: f32[1,32], index: 10, kind: input, shape index: {}]
  %s11 = inlined_call_operand.vmem [shape: f32[1,32], index: 11, kind: input, shape index: {}]
  %s12 = inlined_call_operand.vmem [shape: f32[1,32], index: 12, kind: input, shape index: {}]
  %s13 = inlined_call_operand.vmem [shape: f32[1,32], index: 13, kind: input, shape index: {}]
  %s14 = inlined_call_operand.vmem [shape: f32[1,32], index: 14, kind: input, shape index: {}]
  %s15 = inlined_call_operand.vmem [shape: bf16[32,32], index: 15, kind: input, shape index: {}]
  %s16 = inlined_call_operand.vmem [shape: f32[1,32], index: 16, kind: input, shape index: {}]
  %s17 = inlined_call_operand.vmem [shape: bf16[32,32], index: 17, kind: input, shape index: {}]
  %s18 = inlined_call_operand.vmem [shape: f32[1,32], index: 18, kind: input, shape index: {}]
  %s19 = inlined_call_operand.vmem [shape: bf16[6,32,32], index: 19, kind: input, shape index: {}]
  %s20 = inlined_call_operand.vmem [shape: f32[1,32], index: 20, kind: input, shape index: {}]
  %s21 = inlined_call_operand.vmem [shape: bf16[32,5003], index: 21, kind: input, shape index: {}]
  %s22 = inlined_call_operand.hbm [shape: f32[2,5003], index: 22, kind: output, shape index: {}]
  %s23 = sld [smem:[#allocation0]]
  $region191: #{star_forward.1} parent=0
    _
  %s25 = ssub.s32 1, %s23
  %s26 = scalar_select 0, %s25, %s23
  $region1: #{star_forward.1} parent=0
    #allocation4 [shape = 'u8[524288]{0}', space=vmem, size = 0x80000, scoped, tag = 'input window, operand 21']
    #allocation5 [shape = 'u8[65536]{0}', space=vmem, size = 0x10000, scoped, tag = 'output window, operand 0']
    #allocation6 [shape = 's32[2]{0}', space=sflag, size = 0x8, scoped, tag = 'scoped memory for star_forward.1']
    %27 = vsyncpa [#allocation6], 0
    %s28 = scalar_lea.sflag [#allocation6], 1
    %29 = vsyncpa %s28, 0
    loop: start=0, step=1, limit=4
    $region2: #{star_forward.1} parent=1 // loop_pre_header
      _
    $region3: #{star_forward.1} parent=1 // loop_header
      %s31 = sphi 0, %s35
      %p32 = scmp.ge.s32.totalorder %s31, 4
      %s39 = sphi 0, %s39
      %s41 = sphi 0, %s39
      %s42 = sphi 0, %s41
      %s56 = sphi 0, %s42
      %s60 = sphi 0, %s60
      %s62 = sphi 0, %s60
      %s63 = sphi 0, %s62
      %s77 = sphi 0, %s63
      %s81 = sphi 0, %s81
      %s83 = sphi 0, %s81
      %s84 = sphi 0, %s83
      %s98 = sphi 0, %s84
      %s102 = sphi 0, %s102
      %s104 = sphi 0, %s102
      %s105 = sphi 0, %s104
      %s119 = sphi 0, %s105
      %s123 = sphi 0, %s123
      %s125 = sphi 0, %s123
      %s126 = sphi 0, %s125
      %s140 = sphi 0, %s126
      %s144 = sphi 0, %s144
      %s146 = sphi 0, %s144
      %s147 = sphi 0, %s146
      %s161 = sphi 0, %s147
      %s165 = sphi 0, %s165
      %s167 = sphi 0, %s165
      %s168 = sphi 0, %s167
      %s182 = sphi 0, %s168
      %s186 = sphi 0, %s186
      %s188 = sphi 0, %s186
      %s189 = sphi 0, %s188
      %s203 = sphi 0, %s189
      %s207 = sphi 0, %s207
      %s209 = sphi 0, %s207
      %s210 = sphi 0, %s209
      %s224 = sphi 0, %s210
      %s228 = sphi 0, %s228
      %s230 = sphi 0, %s228
      %s231 = sphi 0, %s230
      %s245 = sphi 0, %s231
      %s249 = sphi 0, %s249
      %s251 = sphi 0, %s249
      %s252 = sphi 0, %s251
      %s266 = sphi 0, %s252
      %s270 = sphi 0, %s270
      %s272 = sphi 0, %s270
      %s273 = sphi 0, %s272
      %s287 = sphi 0, %s273
      %s291 = sphi 0, %s291
      %s293 = sphi 0, %s291
      %s294 = sphi 0, %s293
      %s308 = sphi 0, %s294
      %s312 = sphi 0, %s312
      %s314 = sphi 0, %s312
      %s315 = sphi 0, %s314
      %s329 = sphi 0, %s315
      %s333 = sphi 0, %s333
      %s335 = sphi 0, %s333
      %s336 = sphi 0, %s335
      %s350 = sphi 0, %s336
      %s354 = sphi 0, %s354
      %s356 = sphi 0, %s354
      %s357 = sphi 0, %s356
      %s371 = sphi 0, %s357
      %s375 = sphi 0, %s375
      %s377 = sphi 0, %s375
      %s378 = sphi 0, %s377
      %s392 = sphi 0, %s378
      %s396 = sphi 0, %s396
      %s398 = sphi 0, %s396
      %s399 = sphi 0, %s398
      %s413 = sphi 0, %s399
      %s417 = sphi 0, %s417
      %s419 = sphi 0, %s417
      %s420 = sphi 0, %s419
      %s434 = sphi 0, %s420
      %s438 = sphi 0, %s438
      %s440 = sphi 0, %s438
      %s441 = sphi 0, %s440
      %s455 = sphi 0, %s441
      %s459 = sphi 0, %s459
      %s461 = sphi 0, %s459
      %s462 = sphi 0, %s461
      %s476 = sphi 0, %s462
      %s482 = sphi 0, %s484
      %s485 = sphi 0, %s482
      %s486 = sphi 0, %s485
      %s502 = sphi 0, %s486
      %s508 = sphi 0, %s510
      %s511 = sphi 0, %s508
      %s512 = sphi 0, %s511
      %s528 = sphi 0, %s512
    $region4: #{star_forward.1} parent=1 // loop_header_branch
      %34 = sbr.rel (%p32) target = $region8
    $region5: #{star_forward.1} parent=1 // loop_body
      %s36 = ssub.s32 %s31, 1
      %s37 = ssub.s32 %s31, 2
      %s38 = sadd.s32 %s31, 1
      %s40 = sadd.s32 %s39, 1
      %p43 = scmp.eq.s32.totalorder %s31, 1
      %p44 = scmp.ne.s32.totalorder %s39, %s41
      %p45 = scmp.eq.s32.totalorder %s31, 0
      %p46 = por %p44, %p45
      %p47 = scmp.ne.s32.totalorder %s39, %s41
      %p48 = scmp.eq.s32.totalorder %s36, 1
      %p49 = por %p47, %p48
      %p50 = scmp.ne.s32.totalorder %s41, %s42
      %p51 = scmp.eq.s32.totalorder %s36, 0
      %p52 = por %p50, %p51
      %p53 = scmp.ne.s32.totalorder %s41, %s42
      %p54 = scmp.eq.s32.totalorder %s37, 1
      %p55 = por %p53, %p54
      %p57 = scmp.ne.s32.totalorder %s42, %s56
      %p58 = scmp.eq.s32.totalorder %s37, 0
      %p59 = por %p57, %p58
      %s61 = sadd.s32 %s60, 1
      %p64 = scmp.eq.s32.totalorder %s31, 1
      %p65 = scmp.ne.s32.totalorder %s60, %s62
      %p66 = scmp.eq.s32.totalorder %s31, 0
      %p67 = por %p65, %p66
      %p68 = scmp.ne.s32.totalorder %s60, %s62
      %p69 = scmp.eq.s32.totalorder %s36, 1
      %p70 = por %p68, %p69
      %p71 = scmp.ne.s32.totalorder %s62, %s63
      %p72 = scmp.eq.s32.totalorder %s36, 0
      %p73 = por %p71, %p72
      %p74 = scmp.ne.s32.totalorder %s62, %s63
      %p75 = scmp.eq.s32.totalorder %s37, 1
      %p76 = por %p74, %p75
      %p78 = scmp.ne.s32.totalorder %s63, %s77
      %p79 = scmp.eq.s32.totalorder %s37, 0
      %p80 = por %p78, %p79
      %s82 = sadd.s32 %s81, 1
      %p85 = scmp.eq.s32.totalorder %s31, 1
      %p86 = scmp.ne.s32.totalorder %s81, %s83
      %p87 = scmp.eq.s32.totalorder %s31, 0
      %p88 = por %p86, %p87
      %p89 = scmp.ne.s32.totalorder %s81, %s83
      %p90 = scmp.eq.s32.totalorder %s36, 1
      %p91 = por %p89, %p90
      %p92 = scmp.ne.s32.totalorder %s83, %s84
      %p93 = scmp.eq.s32.totalorder %s36, 0
      %p94 = por %p92, %p93
      %p95 = scmp.ne.s32.totalorder %s83, %s84
      %p96 = scmp.eq.s32.totalorder %s37, 1
      %p97 = por %p95, %p96
      %p99 = scmp.ne.s32.totalorder %s84, %s98
      %p100 = scmp.eq.s32.totalorder %s37, 0
      %p101 = por %p99, %p100
      %s103 = sadd.s32 %s102, 1
      %p106 = scmp.eq.s32.totalorder %s31, 1
      %p107 = scmp.ne.s32.totalorder %s102, %s104
      %p108 = scmp.eq.s32.totalorder %s31, 0
      %p109 = por %p107, %p108
      %p110 = scmp.ne.s32.totalorder %s102, %s104
      %p111 = scmp.eq.s32.totalorder %s36, 1
      %p112 = por %p110, %p111
      %p113 = scmp.ne.s32.totalorder %s104, %s105
      %p114 = scmp.eq.s32.totalorder %s36, 0
      %p115 = por %p113, %p114
      %p116 = scmp.ne.s32.totalorder %s104, %s105
      %p117 = scmp.eq.s32.totalorder %s37, 1
      %p118 = por %p116, %p117
      %p120 = scmp.ne.s32.totalorder %s105, %s119
      %p121 = scmp.eq.s32.totalorder %s37, 0
      %p122 = por %p120, %p121
      %s124 = sadd.s32 %s123, 1
      %p127 = scmp.eq.s32.totalorder %s31, 1
      %p128 = scmp.ne.s32.totalorder %s123, %s125
      %p129 = scmp.eq.s32.totalorder %s31, 0
      %p130 = por %p128, %p129
      %p131 = scmp.ne.s32.totalorder %s123, %s125
      %p132 = scmp.eq.s32.totalorder %s36, 1
      %p133 = por %p131, %p132
      %p134 = scmp.ne.s32.totalorder %s125, %s126
      %p135 = scmp.eq.s32.totalorder %s36, 0
      %p136 = por %p134, %p135
      %p137 = scmp.ne.s32.totalorder %s125, %s126
      %p138 = scmp.eq.s32.totalorder %s37, 1
      %p139 = por %p137, %p138
      %p141 = scmp.ne.s32.totalorder %s126, %s140
      %p142 = scmp.eq.s32.totalorder %s37, 0
      %p143 = por %p141, %p142
      %s145 = sadd.s32 %s144, 1
      %p148 = scmp.eq.s32.totalorder %s31, 1
      %p149 = scmp.ne.s32.totalorder %s144, %s146
      %p150 = scmp.eq.s32.totalorder %s31, 0
      %p151 = por %p149, %p150
      %p152 = scmp.ne.s32.totalorder %s144, %s146
      %p153 = scmp.eq.s32.totalorder %s36, 1
      %p154 = por %p152, %p153
      %p155 = scmp.ne.s32.totalorder %s146, %s147
      %p156 = scmp.eq.s32.totalorder %s36, 0
      %p157 = por %p155, %p156
      %p158 = scmp.ne.s32.totalorder %s146, %s147
      %p159 = scmp.eq.s32.totalorder %s37, 1
      %p160 = por %p158, %p159
      %p162 = scmp.ne.s32.totalorder %s147, %s161
      %p163 = scmp.eq.s32.totalorder %s37, 0
      %p164 = por %p162, %p163
      %s166 = sadd.s32 %s165, 1
      %p169 = scmp.eq.s32.totalorder %s31, 1
      %p170 = scmp.ne.s32.totalorder %s165, %s167
      %p171 = scmp.eq.s32.totalorder %s31, 0
      %p172 = por %p170, %p171
      %p173 = scmp.ne.s32.totalorder %s165, %s167
      %p174 = scmp.eq.s32.totalorder %s36, 1
      %p175 = por %p173, %p174
      %p176 = scmp.ne.s32.totalorder %s167, %s168
      %p177 = scmp.eq.s32.totalorder %s36, 0
      %p178 = por %p176, %p177
      %p179 = scmp.ne.s32.totalorder %s167, %s168
      %p180 = scmp.eq.s32.totalorder %s37, 1
      %p181 = por %p179, %p180
      %p183 = scmp.ne.s32.totalorder %s168, %s182
      %p184 = scmp.eq.s32.totalorder %s37, 0
      %p185 = por %p183, %p184
      %s187 = sadd.s32 %s186, 1
      %p190 = scmp.eq.s32.totalorder %s31, 1
      %p191 = scmp.ne.s32.totalorder %s186, %s188
      %p192 = scmp.eq.s32.totalorder %s31, 0
      %p193 = por %p191, %p192
      %p194 = scmp.ne.s32.totalorder %s186, %s188
      %p195 = scmp.eq.s32.totalorder %s36, 1
      %p196 = por %p194, %p195
      %p197 = scmp.ne.s32.totalorder %s188, %s189
      %p198 = scmp.eq.s32.totalorder %s36, 0
      %p199 = por %p197, %p198
      %p200 = scmp.ne.s32.totalorder %s188, %s189
      %p201 = scmp.eq.s32.totalorder %s37, 1
      %p202 = por %p200, %p201
      %p204 = scmp.ne.s32.totalorder %s189, %s203
      %p205 = scmp.eq.s32.totalorder %s37, 0
      %p206 = por %p204, %p205
      %s208 = sadd.s32 %s207, 1
      %p211 = scmp.eq.s32.totalorder %s31, 1
      %p212 = scmp.ne.s32.totalorder %s207, %s209
      %p213 = scmp.eq.s32.totalorder %s31, 0
      %p214 = por %p212, %p213
      %p215 = scmp.ne.s32.totalorder %s207, %s209
      %p216 = scmp.eq.s32.totalorder %s36, 1
      %p217 = por %p215, %p216
      %p218 = scmp.ne.s32.totalorder %s209, %s210
      %p219 = scmp.eq.s32.totalorder %s36, 0
      %p220 = por %p218, %p219
      %p221 = scmp.ne.s32.totalorder %s209, %s210
      %p222 = scmp.eq.s32.totalorder %s37, 1
      %p223 = por %p221, %p222
      %p225 = scmp.ne.s32.totalorder %s210, %s224
      %p226 = scmp.eq.s32.totalorder %s37, 0
      %p227 = por %p225, %p226
      %s229 = sadd.s32 %s228, 1
      %p232 = scmp.eq.s32.totalorder %s31, 1
      %p233 = scmp.ne.s32.totalorder %s228, %s230
      %p234 = scmp.eq.s32.totalorder %s31, 0
      %p235 = por %p233, %p234
      %p236 = scmp.ne.s32.totalorder %s228, %s230
      %p237 = scmp.eq.s32.totalorder %s36, 1
      %p238 = por %p236, %p237
      %p239 = scmp.ne.s32.totalorder %s230, %s231
      %p240 = scmp.eq.s32.totalorder %s36, 0
      %p241 = por %p239, %p240
      %p242 = scmp.ne.s32.totalorder %s230, %s231
      %p243 = scmp.eq.s32.totalorder %s37, 1
      %p244 = por %p242, %p243
      %p246 = scmp.ne.s32.totalorder %s231, %s245
      %p247 = scmp.eq.s32.totalorder %s37, 0
      %p248 = por %p246, %p247
      %s250 = sadd.s32 %s249, 1
      %p253 = scmp.eq.s32.totalorder %s31, 1
      %p254 = scmp.ne.s32.totalorder %s249, %s251
      %p255 = scmp.eq.s32.totalorder %s31, 0
      %p256 = por %p254, %p255
      %p257 = scmp.ne.s32.totalorder %s249, %s251
      %p258 = scmp.eq.s32.totalorder %s36, 1
      %p259 = por %p257, %p258
      %p260 = scmp.ne.s32.totalorder %s251, %s252
      %p261 = scmp.eq.s32.totalorder %s36, 0
      %p262 = por %p260, %p261
      %p263 = scmp.ne.s32.totalorder %s251, %s252
      %p264 = scmp.eq.s32.totalorder %s37, 1
      %p265 = por %p263, %p264
      %p267 = scmp.ne.s32.totalorder %s252, %s266
      %p268 = scmp.eq.s32.totalorder %s37, 0
      %p269 = por %p267, %p268
      %s271 = sadd.s32 %s270, 1
      %p274 = scmp.eq.s32.totalorder %s31, 1
      %p275 = scmp.ne.s32.totalorder %s270, %s272
      %p276 = scmp.eq.s32.totalorder %s31, 0
      %p277 = por %p275, %p276
      %p278 = scmp.ne.s32.totalorder %s270, %s272
      %p279 = scmp.eq.s32.totalorder %s36, 1
      %p280 = por %p278, %p279
      %p281 = scmp.ne.s32.totalorder %s272, %s273
      %p282 = scmp.eq.s32.totalorder %s36, 0
      %p283 = por %p281, %p282
      %p284 = scmp.ne.s32.totalorder %s272, %s273
      %p285 = scmp.eq.s32.totalorder %s37, 1
      %p286 = por %p284, %p285
      %p288 = scmp.ne.s32.totalorder %s273, %s287
      %p289 = scmp.eq.s32.totalorder %s37, 0
      %p290 = por %p288, %p289
      %s292 = sadd.s32 %s291, 1
      %p295 = scmp.eq.s32.totalorder %s31, 1
      %p296 = scmp.ne.s32.totalorder %s291, %s293
      %p297 = scmp.eq.s32.totalorder %s31, 0
      %p298 = por %p296, %p297
      %p299 = scmp.ne.s32.totalorder %s291, %s293
      %p300 = scmp.eq.s32.totalorder %s36, 1
      %p301 = por %p299, %p300
      %p302 = scmp.ne.s32.totalorder %s293, %s294
      %p303 = scmp.eq.s32.totalorder %s36, 0
      %p304 = por %p302, %p303
      %p305 = scmp.ne.s32.totalorder %s293, %s294
      %p306 = scmp.eq.s32.totalorder %s37, 1
      %p307 = por %p305, %p306
      %p309 = scmp.ne.s32.totalorder %s294, %s308
      %p310 = scmp.eq.s32.totalorder %s37, 0
      %p311 = por %p309, %p310
      %s313 = sadd.s32 %s312, 1
      %p316 = scmp.eq.s32.totalorder %s31, 1
      %p317 = scmp.ne.s32.totalorder %s312, %s314
      %p318 = scmp.eq.s32.totalorder %s31, 0
      %p319 = por %p317, %p318
      %p320 = scmp.ne.s32.totalorder %s312, %s314
      %p321 = scmp.eq.s32.totalorder %s36, 1
      %p322 = por %p320, %p321
      %p323 = scmp.ne.s32.totalorder %s314, %s315
      %p324 = scmp.eq.s32.totalorder %s36, 0
      %p325 = por %p323, %p324
      %p326 = scmp.ne.s32.totalorder %s314, %s315
      %p327 = scmp.eq.s32.totalorder %s37, 1
      %p328 = por %p326, %p327
      %p330 = scmp.ne.s32.totalorder %s315, %s329
      %p331 = scmp.eq.s32.totalorder %s37, 0
      %p332 = por %p330, %p331
      %s334 = sadd.s32 %s333, 1
      %p337 = scmp.eq.s32.totalorder %s31, 1
      %p338 = scmp.ne.s32.totalorder %s333, %s335
      %p339 = scmp.eq.s32.totalorder %s31, 0
      %p340 = por %p338, %p339
      %p341 = scmp.ne.s32.totalorder %s333, %s335
      %p342 = scmp.eq.s32.totalorder %s36, 1
      %p343 = por %p341, %p342
      %p344 = scmp.ne.s32.totalorder %s335, %s336
      %p345 = scmp.eq.s32.totalorder %s36, 0
      %p346 = por %p344, %p345
      %p347 = scmp.ne.s32.totalorder %s335, %s336
      %p348 = scmp.eq.s32.totalorder %s37, 1
      %p349 = por %p347, %p348
      %p351 = scmp.ne.s32.totalorder %s336, %s350
      %p352 = scmp.eq.s32.totalorder %s37, 0
      %p353 = por %p351, %p352
      %s355 = sadd.s32 %s354, 1
      %p358 = scmp.eq.s32.totalorder %s31, 1
      %p359 = scmp.ne.s32.totalorder %s354, %s356
      %p360 = scmp.eq.s32.totalorder %s31, 0
      %p361 = por %p359, %p360
      %p362 = scmp.ne.s32.totalorder %s354, %s356
      %p363 = scmp.eq.s32.totalorder %s36, 1
      %p364 = por %p362, %p363
      %p365 = scmp.ne.s32.totalorder %s356, %s357
      %p366 = scmp.eq.s32.totalorder %s36, 0
      %p367 = por %p365, %p366
      %p368 = scmp.ne.s32.totalorder %s356, %s357
      %p369 = scmp.eq.s32.totalorder %s37, 1
      %p370 = por %p368, %p369
      %p372 = scmp.ne.s32.totalorder %s357, %s371
      %p373 = scmp.eq.s32.totalorder %s37, 0
      %p374 = por %p372, %p373
      %s376 = sadd.s32 %s375, 1
      %p379 = scmp.eq.s32.totalorder %s31, 1
      %p380 = scmp.ne.s32.totalorder %s375, %s377
      %p381 = scmp.eq.s32.totalorder %s31, 0
      %p382 = por %p380, %p381
      %p383 = scmp.ne.s32.totalorder %s375, %s377
      %p384 = scmp.eq.s32.totalorder %s36, 1
      %p385 = por %p383, %p384
      %p386 = scmp.ne.s32.totalorder %s377, %s378
      %p387 = scmp.eq.s32.totalorder %s36, 0
      %p388 = por %p386, %p387
      %p389 = scmp.ne.s32.totalorder %s377, %s378
      %p390 = scmp.eq.s32.totalorder %s37, 1
      %p391 = por %p389, %p390
      %p393 = scmp.ne.s32.totalorder %s378, %s392
      %p394 = scmp.eq.s32.totalorder %s37, 0
      %p395 = por %p393, %p394
      %s397 = sadd.s32 %s396, 1
      %p400 = scmp.eq.s32.totalorder %s31, 1
      %p401 = scmp.ne.s32.totalorder %s396, %s398
      %p402 = scmp.eq.s32.totalorder %s31, 0
      %p403 = por %p401, %p402
      %p404 = scmp.ne.s32.totalorder %s396, %s398
      %p405 = scmp.eq.s32.totalorder %s36, 1
      %p406 = por %p404, %p405
      %p407 = scmp.ne.s32.totalorder %s398, %s399
      %p408 = scmp.eq.s32.totalorder %s36, 0
      %p409 = por %p407, %p408
      %p410 = scmp.ne.s32.totalorder %s398, %s399
      %p411 = scmp.eq.s32.totalorder %s37, 1
      %p412 = por %p410, %p411
      %p414 = scmp.ne.s32.totalorder %s399, %s413
      %p415 = scmp.eq.s32.totalorder %s37, 0
      %p416 = por %p414, %p415
      %s418 = sadd.s32 %s417, 1
      %p421 = scmp.eq.s32.totalorder %s31, 1
      %p422 = scmp.ne.s32.totalorder %s417, %s419
      %p423 = scmp.eq.s32.totalorder %s31, 0
      %p424 = por %p422, %p423
      %p425 = scmp.ne.s32.totalorder %s417, %s419
      %p426 = scmp.eq.s32.totalorder %s36, 1
      %p427 = por %p425, %p426
      %p428 = scmp.ne.s32.totalorder %s419, %s420
      %p429 = scmp.eq.s32.totalorder %s36, 0
      %p430 = por %p428, %p429
      %p431 = scmp.ne.s32.totalorder %s419, %s420
      %p432 = scmp.eq.s32.totalorder %s37, 1
      %p433 = por %p431, %p432
      %p435 = scmp.ne.s32.totalorder %s420, %s434
      %p436 = scmp.eq.s32.totalorder %s37, 0
      %p437 = por %p435, %p436
      %s439 = sadd.s32 %s438, 1
      %p442 = scmp.eq.s32.totalorder %s31, 1
      %p443 = scmp.ne.s32.totalorder %s438, %s440
      %p444 = scmp.eq.s32.totalorder %s31, 0
      %p445 = por %p443, %p444
      %p446 = scmp.ne.s32.totalorder %s438, %s440
      %p447 = scmp.eq.s32.totalorder %s36, 1
      %p448 = por %p446, %p447
      %p449 = scmp.ne.s32.totalorder %s440, %s441
      %p450 = scmp.eq.s32.totalorder %s36, 0
      %p451 = por %p449, %p450
      %p452 = scmp.ne.s32.totalorder %s440, %s441
      %p453 = scmp.eq.s32.totalorder %s37, 1
      %p454 = por %p452, %p453
      %p456 = scmp.ne.s32.totalorder %s441, %s455
      %p457 = scmp.eq.s32.totalorder %s37, 0
      %p458 = por %p456, %p457
      %s460 = sadd.s32 %s459, 1
      %p463 = scmp.eq.s32.totalorder %s31, 1
      %p464 = scmp.ne.s32.totalorder %s459, %s461
      %p465 = scmp.eq.s32.totalorder %s31, 0
      %p466 = por %p464, %p465
      %p467 = scmp.ne.s32.totalorder %s459, %s461
      %p468 = scmp.eq.s32.totalorder %s36, 1
      %p469 = por %p467, %p468
      %p470 = scmp.ne.s32.totalorder %s461, %s462
      %p471 = scmp.eq.s32.totalorder %s36, 0
      %p472 = por %p470, %p471
      %p473 = scmp.ne.s32.totalorder %s461, %s462
      %p474 = scmp.eq.s32.totalorder %s37, 1
      %p475 = por %p473, %p474
      %p477 = scmp.ne.s32.totalorder %s462, %s476
      %p478 = scmp.eq.s32.totalorder %s37, 0
      %p479 = por %p477, %p478
      %s480 = ssub.s32 %s31, %s38
      %p481 = scmp.eq.s32.totalorder %s480, 0
      %s483 = sadd.s32 %s482, 1
      %s484 = scalar_select %p481, %s482, %s483
      %p487 = pneg %p481
      %p488 = scmp.eq.s32.totalorder %s31, 1
      %p489 = por %p487, %p488
      %p490 = scmp.ne.s32.totalorder %s482, %s485
      %p491 = scmp.eq.s32.totalorder %s31, 0
      %p492 = por %p490, %p491
      %p493 = scmp.ne.s32.totalorder %s482, %s485
      %p494 = scmp.eq.s32.totalorder %s36, 1
      %p495 = por %p493, %p494
      %p496 = scmp.ne.s32.totalorder %s485, %s486
      %p497 = scmp.eq.s32.totalorder %s36, 0
      %p498 = por %p496, %p497
      %p499 = scmp.ne.s32.totalorder %s485, %s486
      %p500 = scmp.eq.s32.totalorder %s37, 1
      %p501 = por %p499, %p500
      %p503 = scmp.ne.s32.totalorder %s486, %s502
      %p504 = scmp.eq.s32.totalorder %s37, 0
      %p505 = por %p503, %p504
      %s506 = ssub.s32 %s31, %s38
      %p507 = scmp.eq.s32.totalorder %s506, 0
      %s509 = sadd.s32 %s508, 1
      %s510 = scalar_select %p507, %s508, %s509
      %p513 = pneg %p507
      %p514 = scmp.eq.s32.totalorder %s31, 1
      %p515 = por %p513, %p514
      %p516 = scmp.ne.s32.totalorder %s508, %s511
      %p517 = scmp.eq.s32.totalorder %s31, 0
      %p518 = por %p516, %p517
      %p519 = scmp.ne.s32.totalorder %s508, %s511
      %p520 = scmp.eq.s32.totalorder %s36, 1
      %p521 = por %p519, %p520
      %p522 = scmp.ne.s32.totalorder %s511, %s512
      %p523 = scmp.eq.s32.totalorder %s36, 0
      %p524 = por %p522, %p523
      %p525 = scmp.ne.s32.totalorder %s511, %s512
      %p526 = scmp.eq.s32.totalorder %s37, 1
      %p527 = por %p525, %p526
      %p529 = scmp.ne.s32.totalorder %s512, %s528
      %p530 = scmp.eq.s32.totalorder %s37, 0
      %p531 = por %p529, %p530
      %p532 = scmp.le.s32.totalorder 1, %s31
      %p533 = scmp.lt.s32.totalorder %s31, 3
      %p534 = pnand %p532, %p533
      %p535 = pneg %p534
      // Predicated region
      $region9: #{star_forward.1} parent=5 // pred_check
        _
      $region10: #{star_forward.1} parent=5 // pred_check_branch
        %537 = sbr.rel (%p534) target = $region12
      $region11: #{star_forward.1} parent=5 // pred_region
        %s538 = ssub.s32 %s31, 1
        // Predicated region
        $region13: #{star_forward.1} parent=11 // pred_check
          %p539 = pneg %p52
        $region14: #{star_forward.1} parent=11 // pred_check_branch
          %541 = sbr.rel (%p539) target = $region16
        $region15: #{star_forward.1} parent=11 // pred_region
          _
        $region16: #{star_forward.1} parent=11 // pred_fallthru
          _
        // Predicated region
        $region17: #{star_forward.1} parent=11 // pred_check
          %p542 = pneg %p73
        $region18: #{star_forward.1} parent=11 // pred_check_branch
          %544 = sbr.rel (%p542) target = $region20
        $region19: #{star_forward.1} parent=11 // pred_region
          _
        $region20: #{star_forward.1} parent=11 // pred_fallthru
          _
        // Predicated region
        $region21: #{star_forward.1} parent=11 // pred_check
          %p545 = pneg %p94
        $region22: #{star_forward.1} parent=11 // pred_check_branch
          %547 = sbr.rel (%p545) target = $region24
        $region23: #{star_forward.1} parent=11 // pred_region
          _
        $region24: #{star_forward.1} parent=11 // pred_fallthru
          _
        // Predicated region
        $region25: #{star_forward.1} parent=11 // pred_check
          %p548 = pneg %p115
        $region26: #{star_forward.1} parent=11 // pred_check_branch
          %550 = sbr.rel (%p548) target = $region28
        $region27: #{star_forward.1} parent=11 // pred_region
          _
        $region28: #{star_forward.1} parent=11 // pred_fallthru
          _
        // Predicated region
        $region29: #{star_forward.1} parent=11 // pred_check
          %p551 = pneg %p136
        $region30: #{star_forward.1} parent=11 // pred_check_branch
          %553 = sbr.rel (%p551) target = $region32
        $region31: #{star_forward.1} parent=11 // pred_region
          _
        $region32: #{star_forward.1} parent=11 // pred_fallthru
          _
        // Predicated region
        $region33: #{star_forward.1} parent=11 // pred_check
          %p554 = pneg %p157
        $region34: #{star_forward.1} parent=11 // pred_check_branch
          %556 = sbr.rel (%p554) target = $region36
        $region35: #{star_forward.1} parent=11 // pred_region
          _
        $region36: #{star_forward.1} parent=11 // pred_fallthru
          _
        // Predicated region
        $region37: #{star_forward.1} parent=11 // pred_check
          %p557 = pneg %p178
        $region38: #{star_forward.1} parent=11 // pred_check_branch
          %559 = sbr.rel (%p557) target = $region40
        $region39: #{star_forward.1} parent=11 // pred_region
          _
        $region40: #{star_forward.1} parent=11 // pred_fallthru
          _
        // Predicated region
        $region41: #{star_forward.1} parent=11 // pred_check
          %p560 = pneg %p199
        $region42: #{star_forward.1} parent=11 // pred_check_branch
          %562 = sbr.rel (%p560) target = $region44
        $region43: #{star_forward.1} parent=11 // pred_region
          _
        $region44: #{star_forward.1} parent=11 // pred_fallthru
          _
        // Predicated region
        $region45: #{star_forward.1} parent=11 // pred_check
          %p563 = pneg %p220
        $region46: #{star_forward.1} parent=11 // pred_check_branch
          %565 = sbr.rel (%p563) target = $region48
        $region47: #{star_forward.1} parent=11 // pred_region
          _
        $region48: #{star_forward.1} parent=11 // pred_fallthru
          _
        // Predicated region
        $region49: #{star_forward.1} parent=11 // pred_check
          %p566 = pneg %p241
        $region50: #{star_forward.1} parent=11 // pred_check_branch
          %568 = sbr.rel (%p566) target = $region52
        $region51: #{star_forward.1} parent=11 // pred_region
          _
        $region52: #{star_forward.1} parent=11 // pred_fallthru
          _
        // Predicated region
        $region53: #{star_forward.1} parent=11 // pred_check
          %p569 = pneg %p262
        $region54: #{star_forward.1} parent=11 // pred_check_branch
          %571 = sbr.rel (%p569) target = $region56
        $region55: #{star_forward.1} parent=11 // pred_region
          _
        $region56: #{star_forward.1} parent=11 // pred_fallthru
          _
        // Predicated region
        $region57: #{star_forward.1} parent=11 // pred_check
          %p572 = pneg %p283
        $region58: #{star_forward.1} parent=11 // pred_check_branch
          %574 = sbr.rel (%p572) target = $region60
        $region59: #{star_forward.1} parent=11 // pred_region
          _
        $region60: #{star_forward.1} parent=11 // pred_fallthru
          _
        // Predicated region
        $region61: #{star_forward.1} parent=11 // pred_check
          %p575 = pneg %p304
        $region62: #{star_forward.1} parent=11 // pred_check_branch
          %577 = sbr.rel (%p575) target = $region64
        $region63: #{star_forward.1} parent=11 // pred_region
          _
        $region64: #{star_forward.1} parent=11 // pred_fallthru
          _
        // Predicated region
        $region65: #{star_forward.1} parent=11 // pred_check
          %p578 = pneg %p325
        $region66: #{star_forward.1} parent=11 // pred_check_branch
          %580 = sbr.rel (%p578) target = $region68
        $region67: #{star_forward.1} parent=11 // pred_region
          _
        $region68: #{star_forward.1} parent=11 // pred_fallthru
          _
        // Predicated region
        $region69: #{star_forward.1} parent=11 // pred_check
          %p581 = pneg %p346
        $region70: #{star_forward.1} parent=11 // pred_check_branch
          %583 = sbr.rel (%p581) target = $region72
        $region71: #{star_forward.1} parent=11 // pred_region
          _
        $region72: #{star_forward.1} parent=11 // pred_fallthru
          _
        // Predicated region
        $region73: #{star_forward.1} parent=11 // pred_check
          %p584 = pneg %p367
        $region74: #{star_forward.1} parent=11 // pred_check_branch
          %586 = sbr.rel (%p584) target = $region76
        $region75: #{star_forward.1} parent=11 // pred_region
          _
        $region76: #{star_forward.1} parent=11 // pred_fallthru
          _
        // Predicated region
        $region77: #{star_forward.1} parent=11 // pred_check
          %p587 = pneg %p388
        $region78: #{star_forward.1} parent=11 // pred_check_branch
          %589 = sbr.rel (%p587) target = $region80
        $region79: #{star_forward.1} parent=11 // pred_region
          _
        $region80: #{star_forward.1} parent=11 // pred_fallthru
          _
        // Predicated region
        $region81: #{star_forward.1} parent=11 // pred_check
          %p590 = pneg %p409
        $region82: #{star_forward.1} parent=11 // pred_check_branch
          %592 = sbr.rel (%p590) target = $region84
        $region83: #{star_forward.1} parent=11 // pred_region
          _
        $region84: #{star_forward.1} parent=11 // pred_fallthru
          _
        // Predicated region
        $region85: #{star_forward.1} parent=11 // pred_check
          %p593 = pneg %p430
        $region86: #{star_forward.1} parent=11 // pred_check_branch
          %595 = sbr.rel (%p593) target = $region88
        $region87: #{star_forward.1} parent=11 // pred_region
          _
        $region88: #{star_forward.1} parent=11 // pred_fallthru
          _
        // Predicated region
        $region89: #{star_forward.1} parent=11 // pred_check
          %p596 = pneg %p451
        $region90: #{star_forward.1} parent=11 // pred_check_branch
          %598 = sbr.rel (%p596) target = $region92
        $region91: #{star_forward.1} parent=11 // pred_region
          _
        $region92: #{star_forward.1} parent=11 // pred_fallthru
          _
        // Predicated region
        $region93: #{star_forward.1} parent=11 // pred_check
          %p599 = pneg %p472
        $region94: #{star_forward.1} parent=11 // pred_check_branch
          %601 = sbr.rel (%p599) target = $region96
        $region95: #{star_forward.1} parent=11 // pred_region
          _
        $region96: #{star_forward.1} parent=11 // pred_fallthru
          _
      $region12: #{star_forward.1} parent=5 // pred_fallthru
        _
      %p602 = scmp.lt.s32.totalorder %s31, 2
      // Predicated region
      $region97: #{star_forward.1} parent=5 // pred_check
        %p603 = pneg %p602
      $region98: #{star_forward.1} parent=5 // pred_check_branch
        %605 = sbr.rel (%p603) target = $region100
      $region99: #{star_forward.1} parent=5 // pred_region
        // Predicated region
        $region101: #{star_forward.1} parent=99 // pred_check
          %p606 = pneg %p492
        $region102: #{star_forward.1} parent=99 // pred_check_branch
          %608 = sbr.rel (%p606) target = $region104
        $region103: #{star_forward.1} parent=99 // pred_region
          %s609 = sand.u32 %s482, 1
          %s610 = sand.u32 %s482, 1
          %s611 = smul.addr %s610, 512
          %s612 = scalar_lea.vmem [#allocation4], %s611
          %s613 = smul.u32 32, %s31
          %s614 = ssub.s32 40, %s613
          %p615 = scmp.lt.s32.totalorder %s614, 32
          %s616 = scalar_select %p615, %s614, 32
          %s617 = smul.u32 256, %s616
          %p618 = scmp.ne.s32.totalorder 0, %s617
          %s619 = smul.addr %s613, 4
          %s620 = scalar_lea.vmem %s21, %s619
          %s621 = smul.u32 %s616, 4
          // Predicated region
          $region105: #{star_forward.1} parent=103 // pred_check
            %p622 = pneg %p618
          $region106: #{star_forward.1} parent=103 // pred_check_branch
            %624 = sbr.rel (%p622) target = $region108
          $region107: #{star_forward.1} parent=103 // pred_region
            %p625 = scmp.lt.u32.totalorder %s621, 8
            %p626 = pneg %p625
            // Predicated region
            $region109: #{star_forward.1} parent=107 // pred_check
              _
            $region110: #{star_forward.1} parent=107 // pred_check_branch
              %628 = sbr.rel (%p625) target = $region112
            $region111: #{star_forward.1} parent=107 // pred_region
              %s649 = sand.u32 %s621, 7
              %p650 = scmp.eq.s32.totalorder %s649, 0
              // Predicated region
              $region124: #{star_forward.1} parent=111 // pred_check
                %p651 = pneg %p650
              $region125: #{star_forward.1} parent=111 // pred_check_branch
                %653 = sbr.rel (%p651) target = $region127
              $region126: #{star_forward.1} parent=111 // pred_region
                %s654 = sshrl.u32 %s621, 3
                %s655 = sshrl.u32 %s654, 4
                // While loop
                $region128: #{star_forward.1} parent=126 // loop_pre_header
                  _
                $region129: #{star_forward.1} parent=126 // loop_header
                  %s659 = sphi 0, %s661
                  %p660 = scmp.ge.s32.totalorder %s659, %s655
                  %s664 = sphi 0, %s797
                  %s665 = sphi %s620, %s800
                  %s666 = sphi %s612, %s801
                $region130: #{star_forward.1} parent=126 // loop_header_branch
                  %663 = sbr.rel (%p660) target = $region134
                $region131: #{star_forward.1} parent=126 // loop_body
                  %v667 = vld [vmem:[%s665] sm:$0xff]
                  %668 = vst [vmem:[%s666] sm:$0xff] %v667
                  %v669 = vld [vmem:[%s665 + $0x8] sm:$0xff]
                  %670 = vst [vmem:[%s666 + $0x8] sm:$0xff] %v669
                  %v671 = vld [vmem:[%s665 + $0x10] sm:$0xff]
                  %672 = vst [vmem:[%s666 + $0x10] sm:$0xff] %v671
                  %v673 = vld [vmem:[%s665 + $0x18] sm:$0xff]
                  %674 = vst [vmem:[%s666 + $0x18] sm:$0xff] %v673
                  %v675 = vld [vmem:[%s665 + $0x20] sm:$0xff]
                  %676 = vst [vmem:[%s666 + $0x20] sm:$0xff] %v675
                  %v677 = vld [vmem:[%s665 + $0x28] sm:$0xff]
                  %678 = vst [vmem:[%s666 + $0x28] sm:$0xff] %v677
                  %v679 = vld [vmem:[%s665 + $0x30] sm:$0xff]
                  %680 = vst [vmem:[%s666 + $0x30] sm:$0xff] %v679
                  %v681 = vld [vmem:[%s665 + $0x38] sm:$0xff]
                  %682 = vst [vmem:[%s666 + $0x38] sm:$0xff] %v681
                  %v683 = vld [vmem:[%s665 + $0x40] sm:$0xff]
                  %684 = vst [vmem:[%s666 + $0x40] sm:$0xff] %v683
                  %v685 = vld [vmem:[%s665 + $0x48] sm:$0xff]
                  %686 = vst [vmem:[%s666 + $0x48] sm:$0xff] %v685
                  %v687 = vld [vmem:[%s665 + $0x50] sm:$0xff]
                  %688 = vst [vmem:[%s666 + $0x50] sm:$0xff] %v687
                  %v689 = vld [vmem:[%s665 + $0x58] sm:$0xff]
                  %690 = vst [vmem:[%s666 + $0x58] sm:$0xff] %v689
                  %v691 = vld [vmem:[%s665 + $0x60] sm:$0xff]
                  %692 = vst [vmem:[%s666 + $0x60] sm:$0xff] %v691
                  %v693 = vld [vmem:[%s665 + $0x68] sm:$0xff]
                  %694 = vst [vmem:[%s666 + $0x68] sm:$0xff] %v693
                  %v695 = vld [vmem:[%s665 + $0x70] sm:$0xff]
                  %696 = vst [vmem:[%s666 + $0x70] sm:$0xff] %v695
                  %v697 = vld [vmem:[%s665 + $0x78] sm:$0xff]
                  %698 = vst [vmem:[%s666 + $0x78] sm:$0xff] %v697
                  %v699 = vld [vmem:[%s665 + $0xa0] sm:$0xff]
                  %700 = vst [vmem:[%s666 + $0x80] sm:$0xff] %v699
                  %v701 = vld [vmem:[%s665 + $0xa8] sm:$0xff]
                  %702 = vst [vmem:[%s666 + $0x88] sm:$0xff] %v701
                  %v703 = vld [vmem:[%s665 + $0xb0] sm:$0xff]
                  %704 = vst [vmem:[%s666 + $0x90] sm:$0xff] %v703
                  %v705 = vld [vmem:[%s665 + $0xb8] sm:$0xff]
                  %706 = vst [vmem:[%s666 + $0x98] sm:$0xff] %v705
                  %v707 = vld [vmem:[%s665 + $0xc0] sm:$0xff]
                  %708 = vst [vmem:[%s666 + $0xa0] sm:$0xff] %v707
                  %v709 = vld [vmem:[%s665 + $0xc8] sm:$0xff]
                  %710 = vst [vmem:[%s666 + $0xa8] sm:$0xff] %v709
                  %v711 = vld [vmem:[%s665 + $0xd0] sm:$0xff]
                  %712 = vst [vmem:[%s666 + $0xb0] sm:$0xff] %v711
                  %v713 = vld [vmem:[%s665 + $0xd8] sm:$0xff]
                  %714 = vst [vmem:[%s666 + $0xb8] sm:$0xff] %v713
                  %v715 = vld [vmem:[%s665 + $0xe0] sm:$0xff]
                  %716 = vst [vmem:[%s666 + $0xc0] sm:$0xff] %v715
                  %v717 = vld [vmem:[%s665 + $0xe8] sm:$0xff]
                  %718 = vst [vmem:[%s666 + $0xc8] sm:$0xff] %v717
                  %v719 = vld [vmem:[%s665 + $0xf0] sm:$0xff]
                  %720 = vst [vmem:[%s666 + $0xd0] sm:$0xff] %v719
                  %v721 = vld [vmem:[%s665 + $0xf8] sm:$0xff]
                  %722 = vst [vmem:[%s666 + $0xd8] sm:$0xff] %v721
                  %v723 = vld [vmem:[%s665 + $0x100] sm:$0xff]
                  %724 = vst [vmem:[%s666 + $0xe0] sm:$0xff] %v723
                  %v725 = vld [vmem:[%s665 + $0x108] sm:$0xff]
                  %726 = vst [vmem:[%s666 + $0xe8] sm:$0xff] %v725
                  %v727 = vld [vmem:[%s665 + $0x110] sm:$0xff]
                  %728 = vst [vmem:[%s666 + $0xf0] sm:$0xff] %v727
                  %v729 = vld [vmem:[%s665 + $0x118] sm:$0xff]
                  %730 = vst [vmem:[%s666 + $0xf8] sm:$0xff] %v729
                  %v731 = vld [vmem:[%s665 + $0x140] sm:$0xff]
                  %732 = vst [vmem:[%s666 + $0x100] sm:$0xff] %v731
                  %v733 = vld [vmem:[%s665 + $0x148] sm:$0xff]
                  %734 = vst [vmem:[%s666 + $0x108] sm:$0xff] %v733
                  %v735 = vld [vmem:[%s665 + $0x150] sm:$0xff]
                  %736 = vst [vmem:[%s666 + $0x110] sm:$0xff] %v735
                  %v737 = vld [vmem:[%s665 + $0x158] sm:$0xff]
                  %738 = vst [vmem:[%s666 + $0x118] sm:$0xff] %v737
                  %v739 = vld [vmem:[%s665 + $0x160] sm:$0xff]
                  %740 = vst [vmem:[%s666 + $0x120] sm:$0xff] %v739
                  %v741 = vld [vmem:[%s665 + $0x168] sm:$0xff]
                  %742 = vst [vmem:[%s666 + $0x128] sm:$0xff] %v741
                  %v743 = vld [vmem:[%s665 + $0x170] sm:$0xff]
                  %744 = vst [vmem:[%s666 + $0x130] sm:$0xff] %v743
                  %v745 = vld [vmem:[%s665 + $0x178] sm:$0xff]
                  %746 = vst [vmem:[%s666 + $0x138] sm:$0xff] %v745
                  %v747 = vld [vmem:[%s665 + $0x180] sm:$0xff]
                  %748 = vst [vmem:[%s666 + $0x140] sm:$0xff] %v747
                  %v749 = vld [vmem:[%s665 + $0x188] sm:$0xff]
                  %750 = vst [vmem:[%s666 + $0x148] sm:$0xff] %v749
                  %v751 = vld [vmem:[%s665 + $0x190] sm:$0xff]
                  %752 = vst [vmem:[%s666 + $0x150] sm:$0xff] %v751
                  %v753 = vld [vmem:[%s665 + $0x198] sm:$0xff]
                  %754 = vst [vmem:[%s666 + $0x158] sm:$0xff] %v753
                  %v755 = vld [vmem:[%s665 + $0x1a0] sm:$0xff]
                  %756 = vst [vmem:[%s666 + $0x160] sm:$0xff] %v755
                  %v757 = vld [vmem:[%s665 + $0x1a8] sm:$0xff]
                  %758 = vst [vmem:[%s666 + $0x168] sm:$0xff] %v757
                  %v759 = vld [vmem:[%s665 + $0x1b0] sm:$0xff]
                  %760 = vst [vmem:[%s666 + $0x170] sm:$0xff] %v759
                  %v761 = vld [vmem:[%s665 + $0x1b8] sm:$0xff]
                  %762 = vst [vmem:[%s666 + $0x178] sm:$0xff] %v761
                  %v763 = vld [vmem:[%s665 + $0x1e0] sm:$0xff]
                  %764 = vst [vmem:[%s666 + $0x180] sm:$0xff] %v763
                  %v765 = vld [vmem:[%s665 + $0x1e8] sm:$0xff]
                  %766 = vst [vmem:[%s666 + $0x188] sm:$0xff] %v765
                  %v767 = vld [vmem:[%s665 + $0x1f0] sm:$0xff]
                  %768 = vst [vmem:[%s666 + $0x190] sm:$0xff] %v767
                  %v769 = vld [vmem:[%s665 + $0x1f8] sm:$0xff]
                  %770 = vst [vmem:[%s666 + $0x198] sm:$0xff] %v769
                  %v771 = vld [vmem:[%s665 + $0x200] sm:$0xff]
                  %772 = vst [vmem:[%s666 + $0x1a0] sm:$0xff] %v771
                  %v773 = vld [vmem:[%s665 + $0x208] sm:$0xff]
                  %774 = vst [vmem:[%s666 + $0x1a8] sm:$0xff] %v773
                  %v775 = vld [vmem:[%s665 + $0x210] sm:$0xff]
                  %776 = vst [vmem:[%s666 + $0x1b0] sm:$0xff] %v775
                  %v777 = vld [vmem:[%s665 + $0x218] sm:$0xff]
                  %778 = vst [vmem:[%s666 + $0x1b8] sm:$0xff] %v777
                  %v779 = vld [vmem:[%s665 + $0x220] sm:$0xff]
                  %780 = vst [vmem:[%s666 + $0x1c0] sm:$0xff] %v779
                  %v781 = vld [vmem:[%s665 + $0x228] sm:$0xff]
                  %782 = vst [vmem:[%s666 + $0x1c8] sm:$0xff] %v781
                  %v783 = vld [vmem:[%s665 + $0x230] sm:$0xff]
                  %784 = vst [vmem:[%s666 + $0x1d0] sm:$0xff] %v783
                  %v785 = vld [vmem:[%s665 + $0x238] sm:$0xff]
                  %786 = vst [vmem:[%s666 + $0x1d8] sm:$0xff] %v785
                  %v787 = vld [vmem:[%s665 + $0x240] sm:$0xff]
                  %788 = vst [vmem:[%s666 + $0x1e0] sm:$0xff] %v787
                  %v789 = vld [vmem:[%s665 + $0x248] sm:$0xff]
                  %790 = vst [vmem:[%s666 + $0x1e8] sm:$0xff] %v789
                  %v791 = vld [vmem:[%s665 + $0x250] sm:$0xff]
                  %792 = vst [vmem:[%s666 + $0x1f0] sm:$0xff] %v791
                  %v793 = vld [vmem:[%s665 + $0x258] sm:$0xff]
                  %794 = vst [vmem:[%s666 + $0x1f8] sm:$0xff] %v793
                  %s795 = sadd.s32 1, %s664
                  %p796 = scmp.ge.s32.totalorder %s795, %s655
                  %s797 = scalar_select %p796, 0, %s795
                  %s798 = smul.u32 %s797, 128
                  %s799 = smul.u32 %s797, 128
                  %s800 = scalar_lea.vmem %s620, %s798
                  %s801 = scalar_lea.vmem %s612, %s799 [#allocation4]
                $region132: #{star_forward.1} parent=126 // loop_footer
                  %s661 = sadd.s32 %s659, 1
                $region133: #{star_forward.1} parent=126 // loop_footer_branch
                  %658 = sbr.rel target = $region129
                $region134: #{star_forward.1} parent=126 // loop_exit
                  _
                %s802 = sshrl.u32 %s654, 4
                %s803 = sand.u32 %s654, 15
                %s804 = smul.u32 %s802, 16
                %s805 = smul.u32 128, %s804
                %s806 = sshra.s32 %s805, 4
                %s807 = scalar_lea.vmem %s620, %s806
                %s808 = smul.u32 128, %s804
                %s809 = sshra.s32 %s808, 4
                %s810 = scalar_lea.vmem %s612, %s809 [#allocation4]
                // While loop
                $region135: #{star_forward.1} parent=126 // loop_pre_header
                  _
                $region136: #{star_forward.1} parent=126 // loop_header
                  %s814 = sphi 0, %s816
                  %p815 = scmp.ge.s32.totalorder %s814, %s803
                  %s819 = sphi 0, %s832
                  %s820 = sphi %s807, %s835
                  %s821 = sphi %s810, %s836
                $region137: #{star_forward.1} parent=126 // loop_header_branch
                  %818 = sbr.rel (%p815) target = $region141
                $region138: #{star_forward.1} parent=126 // loop_body
                  %v822 = vld [vmem:[%s820] sm:$0xff]
                  %823 = vst [vmem:[%s821] sm:$0xff] %v822
                  %v824 = vld [vmem:[%s820 + $0xa0] sm:$0xff]
                  %825 = vst [vmem:[%s821 + $0x80] sm:$0xff] %v824
                  %v826 = vld [vmem:[%s820 + $0x140] sm:$0xff]
                  %827 = vst [vmem:[%s821 + $0x100] sm:$0xff] %v826
                  %v828 = vld [vmem:[%s820 + $0x1e0] sm:$0xff]
                  %829 = vst [vmem:[%s821 + $0x180] sm:$0xff] %v828
                  %s830 = sadd.s32 1, %s819
                  %p831 = scmp.ge.s32.totalorder %s830, %s803
                  %s832 = scalar_select %p831, 0, %s830
                  %s833 = smul.u32 %s832, 8
                  %s834 = smul.u32 %s832, 8
                  %s835 = scalar_lea.vmem %s807, %s833
                  %s836 = scalar_lea.vmem %s810, %s834 [#allocation4]
                $region139: #{star_forward.1} parent=126 // loop_footer
                  %s816 = sadd.s32 %s814, 1
                $region140: #{star_forward.1} parent=126 // loop_footer_branch
                  %813 = sbr.rel target = $region136
                $region141: #{star_forward.1} parent=126 // loop_exit
                  _
              $region127: #{star_forward.1} parent=111 // pred_fallthru
                _
              %p837 = pneg %p650
              // Predicated region
              $region142: #{star_forward.1} parent=111 // pred_check
                _
              $region143: #{star_forward.1} parent=111 // pred_check_branch
                %839 = sbr.rel (%p650) target = $region145
              $region144: #{star_forward.1} parent=111 // pred_region
                %s840 = sand.u32 %s621, 7
                %s841 = ssub.s32 %s621, %s840
                %s842 = scalar_lea.vmem %s620, %s841
                %s843 = ssub.s32 %s621, %s840
                %s844 = scalar_lea.vmem %s612, %s843 [#allocation4]
                %s845 = sshrl.u32 %s621, 3
                %s846 = sshrl.u32 %s845, 4
                // While loop
                $region146: #{star_forward.1} parent=144 // loop_pre_header
                  _
                $region147: #{star_forward.1} parent=144 // loop_header
                  %s850 = sphi 0, %s852
                  %p851 = scmp.ge.s32.totalorder %s850, %s846
                  %s855 = sphi 0, %s988
                  %s856 = sphi %s620, %s991
                  %s857 = sphi %s612, %s992
                $region148: #{star_forward.1} parent=144 // loop_header_branch
                  %854 = sbr.rel (%p851) target = $region152
                $region149: #{star_forward.1} parent=144 // loop_body
                  %v858 = vld [vmem:[%s856] sm:$0xff]
                  %859 = vst [vmem:[%s857] sm:$0xff] %v858
                  %v860 = vld [vmem:[%s856 + $0x8] sm:$0xff]
                  %861 = vst [vmem:[%s857 + $0x8] sm:$0xff] %v860
                  %v862 = vld [vmem:[%s856 + $0x10] sm:$0xff]
                  %863 = vst [vmem:[%s857 + $0x10] sm:$0xff] %v862
                  %v864 = vld [vmem:[%s856 + $0x18] sm:$0xff]
                  %865 = vst [vmem:[%s857 + $0x18] sm:$0xff] %v864
                  %v866 = vld [vmem:[%s856 + $0x20] sm:$0xff]
                  %867 = vst [vmem:[%s857 + $0x20] sm:$0xff] %v866
                  %v868 = vld [vmem:[%s856 + $0x28] sm:$0xff]
                  %869 = vst [vmem:[%s857 + $0x28] sm:$0xff] %v868
                  %v870 = vld [vmem:[%s856 + $0x30] sm:$0xff]
                  %871 = vst [vmem:[%s857 + $0x30] sm:$0xff] %v870
                  %v872 = vld [vmem:[%s856 + $0x38] sm:$0xff]
                  %873 = vst [vmem:[%s857 + $0x38] sm:$0xff] %v872
                  %v874 = vld [vmem:[%s856 + $0x40] sm:$0xff]
                  %875 = vst [vmem:[%s857 + $0x40] sm:$0xff] %v874
                  %v876 = vld [vmem:[%s856 + $0x48] sm:$0xff]
                  %877 = vst [vmem:[%s857 + $0x48] sm:$0xff] %v876
                  %v878 = vld [vmem:[%s856 + $0x50] sm:$0xff]
                  %879 = vst [vmem:[%s857 + $0x50] sm:$0xff] %v878
                  %v880 = vld [vmem:[%s856 + $0x58] sm:$0xff]
                  %881 = vst [vmem:[%s857 + $0x58] sm:$0xff] %v880
                  %v882 = vld [vmem:[%s856 + $0x60] sm:$0xff]
                  %883 = vst [vmem:[%s857 + $0x60] sm:$0xff] %v882
                  %v884 = vld [vmem:[%s856 + $0x68] sm:$0xff]
                  %885 = vst [vmem:[%s857 + $0x68] sm:$0xff] %v884
                  %v886 = vld [vmem:[%s856 + $0x70] sm:$0xff]
                  %887 = vst [vmem:[%s857 + $0x70] sm:$0xff] %v886
                  %v888 = vld [vmem:[%s856 + $0x78] sm:$0xff]
                  %889 = vst [vmem:[%s857 + $0x78] sm:$0xff] %v888
                  %v890 = vld [vmem:[%s856 + $0xa0] sm:$0xff]
                  %891 = vst [vmem:[%s857 + $0x80] sm:$0xff] %v890
                  %v892 = vld [vmem:[%s856 + $0xa8] sm:$0xff]
                  %893 = vst [vmem:[%s857 + $0x88] sm:$0xff] %v892
                  %v894 = vld [vmem:[%s856 + $0xb0] sm:$0xff]
                  %895 = vst [vmem:[%s857 + $0x90] sm:$0xff] %v894
                  %v896 = vld [vmem:[%s856 + $0xb8] sm:$0xff]
                  %897 = vst [vmem:[%s857 + $0x98] sm:$0xff] %v896
                  %v898 = vld [vmem:[%s856 + $0xc0] sm:$0xff]
                  %899 = vst [vmem:[%s857 + $0xa0] sm:$0xff] %v898
                  %v900 = vld [vmem:[%s856 + $0xc8] sm:$0xff]
                  %901 = vst [vmem:[%s857 + $0xa8] sm:$0xff] %v900
                  %v902 = vld [vmem:[%s856 + $0xd0] sm:$0xff]
                  %903 = vst [vmem:[%s857 + $0xb0] sm:$0xff] %v902
                  %v904 = vld [vmem:[%s856 + $0xd8] sm:$0xff]
                  %905 = vst [vmem:[%s857 + $0xb8] sm:$0xff] %v904
                  %v906 = vld [vmem:[%s856 + $0xe0] sm:$0xff]
                  %907 = vst [vmem:[%s857 + $0xc0] sm:$0xff] %v906
                  %v908 = vld [vmem:[%s856 + $0xe8] sm:$0xff]
                  %909 = vst [vmem:[%s857 + $0xc8] sm:$0xff] %v908
                  %v910 = vld [vmem:[%s856 + $0xf0] sm:$0xff]
                  %911 = vst [vmem:[%s857 + $0xd0] sm:$0xff] %v910
                  %v912 = vld [vmem:[%s856 + $0xf8] sm:$0xff]
                  %913 = vst [vmem:[%s857 + $0xd8] sm:$0xff] %v912
                  %v914 = vld [vmem:[%s856 + $0x100] sm:$0xff]
                  %915 = vst [vmem:[%s857 + $0xe0] sm:$0xff] %v914
                  %v916 = vld [vmem:[%s856 + $0x108] sm:$0xff]
                  %917 = vst [vmem:[%s857 + $0xe8] sm:$0xff] %v916
                  %v918 = vld [vmem:[%s856 + $0x110] sm:$0xff]
                  %919 = vst [vmem:[%s857 + $0xf0] sm:$0xff] %v918
                  %v920 = vld [vmem:[%s856 + $0x118] sm:$0xff]
                  %921 = vst [vmem:[%s857 + $0xf8] sm:$0xff] %v920
                  %v922 = vld [vmem:[%s856 + $0x140] sm:$0xff]
                  %923 = vst [vmem:[%s857 + $0x100] sm:$0xff] %v922
                  %v924 = vld [vmem:[%s856 + $0x148] sm:$0xff]
                  %925 = vst [vmem:[%s857 + $0x108] sm:$0xff] %v924
                  %v926 = vld [vmem:[%s856 + $0x150] sm:$0xff]
                  %927 = vst [vmem:[%s857 + $0x110] sm:$0xff] %v926
                  %v928 = vld [vmem:[%s856 + $0x158] sm:$0xff]
                  %929 = vst [vmem:[%s857 + $0x118] sm:$0xff] %v928
                  %v930 = vld [vmem:[%s856 + $0x160] sm:$0xff]
                  %931 = vst [vmem:[%s857 + $0x120] sm:$0xff] %v930
                  %v932 = vld [vmem:[%s856 + $0x168] sm:$0xff]
                  %933 = vst [vmem:[%s857 + $0x128] sm:$0xff] %v932
                  %v934 = vld [vmem:[%s856 + $0x170] sm:$0xff]
                  %935 = vst [vmem:[%s857 + $0x130] sm:$0xff] %v934
                  %v936 = vld [vmem:[%s856 + $0x178] sm:$0xff]
                  %937 = vst [vmem:[%s857 + $0x138] sm:$0xff] %v936
                  %v938 = vld [vmem:[%s856 + $0x180] sm:$0xff]
                  %939 = vst [vmem:[%s857 + $0x140] sm:$0xff] %v938
                  %v940 = vld [vmem:[%s856 + $0x188] sm:$0xff]
                  %941 = vst [vmem:[%s857 + $0x148] sm:$0xff] %v940
                  %v942 = vld [vmem:[%s856 + $0x190] sm:$0xff]
                  %943 = vst [vmem:[%s857 + $0x150] sm:$0xff] %v942
                  %v944 = vld [vmem:[%s856 + $0x198] sm:$0xff]
                  %945 = vst [vmem:[%s857 + $0x158] sm:$0xff] %v944
                  %v946 = vld [vmem:[%s856 + $0x1a0] sm:$0xff]
                  %947 = vst [vmem:[%s857 + $0x160] sm:$0xff] %v946
                  %v948 = vld [vmem:[%s856 + $0x1a8] sm:$0xff]
                  %949 = vst [vmem:[%s857 + $0x168] sm:$0xff] %v948
                  %v950 = vld [vmem:[%s856 + $0x1b0] sm:$0xff]
                  %951 = vst [vmem:[%s857 + $0x170] sm:$0xff] %v950
                  %v952 = vld [vmem:[%s856 + $0x1b8] sm:$0xff]
                  %953 = vst [vmem:[%s857 + $0x178] sm:$0xff] %v952
                  %v954 = vld [vmem:[%s856 + $0x1e0] sm:$0xff]
                  %955 = vst [vmem:[%s857 + $0x180] sm:$0xff] %v954
                  %v956 = vld [vmem:[%s856 + $0x1e8] sm:$0xff]
                  %957 = vst [vmem:[%s857 + $0x188] sm:$0xff] %v956
                  %v958 = vld [vmem:[%s856 + $0x1f0] sm:$0xff]
                  %959 = vst [vmem:[%s857 + $0x190] sm:$0xff] %v958
                  %v960 = vld [vmem:[%s856 + $0x1f8] sm:$0xff]
                  %961 = vst [vmem:[%s857 + $0x198] sm:$0xff] %v960
                  %v962 = vld [vmem:[%s856 + $0x200] sm:$0xff]
                  %963 = vst [vmem:[%s857 + $0x1a0] sm:$0xff] %v962
                  %v964 = vld [vmem:[%s856 + $0x208] sm:$0xff]
                  %965 = vst [vmem:[%s857 + $0x1a8] sm:$0xff] %v964
                  %v966 = vld [vmem:[%s856 + $0x210] sm:$0xff]
                  %967 = vst [vmem:[%s857 + $0x1b0] sm:$0xff] %v966
                  %v968 = vld [vmem:[%s856 + $0x218] sm:$0xff]
                  %969 = vst [vmem:[%s857 + $0x1b8] sm:$0xff] %v968
                  %v970 = vld [vmem:[%s856 + $0x220] sm:$0xff]
                  %971 = vst [vmem:[%s857 + $0x1c0] sm:$0xff] %v970
                  %v972 = vld [vmem:[%s856 + $0x228] sm:$0xff]
                  %973 = vst [vmem:[%s857 + $0x1c8] sm:$0xff] %v972
                  %v974 = vld [vmem:[%s856 + $0x230] sm:$0xff]
                  %975 = vst [vmem:[%s857 + $0x1d0] sm:$0xff] %v974
                  %v976 = vld [vmem:[%s856 + $0x238] sm:$0xff]
                  %977 = vst [vmem:[%s857 + $0x1d8] sm:$0xff] %v976
                  %v978 = vld [vmem:[%s856 + $0x240] sm:$0xff]
                  %979 = vst [vmem:[%s857 + $0x1e0] sm:$0xff] %v978
                  %v980 = vld [vmem:[%s856 + $0x248] sm:$0xff]
                  %981 = vst [vmem:[%s857 + $0x1e8] sm:$0xff] %v980
                  %v982 = vld [vmem:[%s856 + $0x250] sm:$0xff]
                  %983 = vst [vmem:[%s857 + $0x1f0] sm:$0xff] %v982
                  %v984 = vld [vmem:[%s856 + $0x258] sm:$0xff]
                  %985 = vst [vmem:[%s857 + $0x1f8] sm:$0xff] %v984
                  %s986 = sadd.s32 1, %s855
                  %p987 = scmp.ge.s32.totalorder %s986, %s846
                  %s988 = scalar_select %p987, 0, %s986
                  %s989 = smul.u32 %s988, 128
                  %s990 = smul.u32 %s988, 128
                  %s991 = scalar_lea.vmem %s620, %s989
                  %s992 = scalar_lea.vmem %s612, %s990 [#allocation4]
                $region150: #{star_forward.1} parent=144 // loop_footer
                  %s852 = sadd.s32 %s850, 1
                $region151: #{star_forward.1} parent=144 // loop_footer_branch
                  %849 = sbr.rel target = $region147
                $region152: #{star_forward.1} parent=144 // loop_exit
                  _
                %s993 = sshrl.u32 %s845, 4
                %s994 = sand.u32 %s845, 15
                %s995 = smul.u32 %s993, 16
                %s996 = smul.u32 128, %s995
                %s997 = sshra.s32 %s996, 4
                %s998 = scalar_lea.vmem %s620, %s997
                %s999 = smul.u32 128, %s995
                %s1000 = sshra.s32 %s999, 4
                %s1001 = scalar_lea.vmem %s612, %s1000 [#allocation4]
                // While loop
                $region153: #{star_forward.1} parent=144 // loop_pre_header
                  _
                $region154: #{star_forward.1} parent=144 // loop_header
                  %s1005 = sphi 0, %s1007
                  %p1006 = scmp.ge.s32.totalorder %s1005, %s994
                  %s1010 = sphi 0, %s1023
                  %s1011 = sphi %s998, %s1026
                  %s1012 = sphi %s1001, %s1027
                $region155: #{star_forward.1} parent=144 // loop_header_branch
                  %1009 = sbr.rel (%p1006) target = $region159
                $region156: #{star_forward.1} parent=144 // loop_body
                  %v1013 = vld [vmem:[%s1011] sm:$0xff]
                  %1014 = vst [vmem:[%s1012] sm:$0xff] %v1013
                  %v1015 = vld [vmem:[%s1011 + $0xa0] sm:$0xff]
                  %1016 = vst [vmem:[%s1012 + $0x80] sm:$0xff] %v1015
                  %v1017 = vld [vmem:[%s1011 + $0x140] sm:$0xff]
                  %1018 = vst [vmem:[%s1012 + $0x100] sm:$0xff] %v1017
                  %v1019 = vld [vmem:[%s1011 + $0x1e0] sm:$0xff]
                  %1020 = vst [vmem:[%s1012 + $0x180] sm:$0xff] %v1019
                  %s1021 = sadd.s32 1, %s1010
                  %p1022 = scmp.ge.s32.totalorder %s1021, %s994
                  %s1023 = scalar_select %p1022, 0, %s1021
                  %s1024 = smul.u32 %s1023, 8
                  %s1025 = smul.u32 %s1023, 8
                  %s1026 = scalar_lea.vmem %s998, %s1024
                  %s1027 = scalar_lea.vmem %s1001, %s1025 [#allocation4]
                $region157: #{star_forward.1} parent=144 // loop_footer
                  %s1007 = sadd.s32 %s1005, 1
                $region158: #{star_forward.1} parent=144 // loop_footer_branch
                  %1004 = sbr.rel target = $region154
                $region159: #{star_forward.1} parent=144 // loop_exit
                  _
                %s1028 = sshllo.u32 0, %s840
                loop: start=0, step=1, limit=1
                $region160: #{star_forward.1} parent=144 // loop_pre_header
                  _
                $region161: #{star_forward.1} parent=144 // loop_header
                  %s1030 = sphi 0, %s1034
                  %p1031 = scmp.ge.s32.totalorder %s1030, 1
                  %s1035 = sphi %s842, %s842
                  %s1036 = sphi %s844, %s844
                $region162: #{star_forward.1} parent=144 // loop_header_branch
                  %1033 = sbr.rel (%p1031) target = $region166
                $region163: #{star_forward.1} parent=144 // loop_body
                  %v1037 = vld [vmem:[%s1035] sm:%s1028]
                  %1038 = vst [vmem:[%s1036] sm:%s1028] %v1037
                  %v1039 = vld [vmem:[%s1035 + $0xa0] sm:%s1028]
                  %1040 = vst [vmem:[%s1036 + $0x80] sm:%s1028] %v1039
                  %v1041 = vld [vmem:[%s1035 + $0x140] sm:%s1028]
                  %1042 = vst [vmem:[%s1036 + $0x100] sm:%s1028] %v1041
                  %v1043 = vld [vmem:[%s1035 + $0x1e0] sm:%s1028]
                  %1044 = vst [vmem:[%s1036 + $0x180] sm:%s1028] %v1043
                $region164: #{star_forward.1} parent=144 // loop_footer
                  %s1034 = sadd.s32 1, %s1030
                $region165: #{star_forward.1} parent=144 // loop_footer_branch
                  %1029 = sbr.rel target = $region161
                $region166: #{star_forward.1} parent=144 // loop_exit
                  _
              $region145: #{star_forward.1} parent=111 // pred_fallthru
                _
            $region112: #{star_forward.1} parent=107 // pred_fallthru
              _
            // Predicated region
            $region113: #{star_forward.1} parent=107 // pred_check
              %p629 = pneg %p625
            $region114: #{star_forward.1} parent=107 // pred_check_branch
              %631 = sbr.rel (%p629) target = $region116
            $region115: #{star_forward.1} parent=107 // pred_region
              %s632 = sshllo.u32 0, %s621
              loop: start=0, step=1, limit=1
              $region117: #{star_forward.1} parent=115 // loop_pre_header
                _
              $region118: #{star_forward.1} parent=115 // loop_header
                %s634 = sphi 0, %s638
                %p635 = scmp.ge.s32.totalorder %s634, 1
                %s639 = sphi %s620, %s620
                %s640 = sphi %s612, %s612
              $region119: #{star_forward.1} parent=115 // loop_header_branch
                %637 = sbr.rel (%p635) target = $region123
              $region120: #{star_forward.1} parent=115 // loop_body
                %v641 = vld [vmem:[%s639] sm:%s632]
                %642 = vst [vmem:[%s640] sm:%s632] %v641
                %v643 = vld [vmem:[%s639 + $0xa0] sm:%s632]
                %644 = vst [vmem:[%s640 + $0x80] sm:%s632] %v643
                %v645 = vld [vmem:[%s639 + $0x140] sm:%s632]
                %646 = vst [vmem:[%s640 + $0x100] sm:%s632] %v645
                %v647 = vld [vmem:[%s639 + $0x1e0] sm:%s632]
                %648 = vst [vmem:[%s640 + $0x180] sm:%s632] %v647
              $region121: #{star_forward.1} parent=115 // loop_footer
                %s638 = sadd.s32 1, %s634
              $region122: #{star_forward.1} parent=115 // loop_footer_branch
                %633 = sbr.rel target = $region118
              $region123: #{star_forward.1} parent=115 // loop_exit
                _
            $region116: #{star_forward.1} parent=107 // pred_fallthru
              _
          $region108: #{star_forward.1} parent=103 // pred_fallthru
            _
          %1045 = vnop
        $region104: #{star_forward.1} parent=99 // pred_fallthru
          _
      $region100: #{star_forward.1} parent=5 // pred_fallthru
        _
      %p1046 = scmp.le.s32.totalorder 1, %s31
      %p1047 = scmp.lt.s32.totalorder %s31, 3
      %p1048 = pnand %p1046, %p1047
      %p1049 = pneg %p1048
      // Predicated region
      $region167: #{star_forward.1} parent=5 // pred_check
        _
      $region168: #{star_forward.1} parent=5 // pred_check_branch
        %1051 = sbr.rel (%p1048) target = $region170
      $region169: #{star_forward.1} parent=5 // pred_region
        %s1052 = ssub.s32 %s31, 1
        %s1053 = sand.u32 %s485, 1
        %s1054 = sand.u32 %s485, 1
        %s1055 = smul.addr %s1054, 512
        %s1056 = scalar_lea.vmem [#allocation4], %s1055
        // Predicated region
        $region171: #{star_forward.1} parent=169 // pred_check
          %p1057 = pneg %p498
        $region172: #{star_forward.1} parent=169 // pred_check_branch
          %1059 = sbr.rel (%p1057) target = $region174
        $region173: #{star_forward.1} parent=169 // pred_region
          _
        $region174: #{star_forward.1} parent=169 // pred_fallthru
          _
        %p1060 = pneg %p52
        %p1061 = pneg %p49
        %p1062 = pneg %p73
        %p1063 = pneg %p70
        %p1064 = pneg %p94
        %p1065 = pneg %p91
        %p1066 = pneg %p115
        %p1067 = pneg %p112
        %p1068 = pneg %p136
        %p1069 = pneg %p133
        %p1070 = pneg %p157
        %p1071 = pneg %p154
        %p1072 = pneg %p178
        %p1073 = pneg %p175
        %p1074 = pneg %p199
        %p1075 = pneg %p196
        %p1076 = pneg %p220
        %p1077 = pneg %p217
        %p1078 = pneg %p241
        %p1079 = pneg %p238
        %p1080 = pneg %p262
        %p1081 = pneg %p259
        %p1082 = pneg %p283
        %p1083 = pneg %p280
        %p1084 = pneg %p304
        %p1085 = pneg %p301
        %p1086 = pneg %p325
        %p1087 = pneg %p322
        %p1088 = pneg %p346
        %p1089 = pneg %p343
        %p1090 = pneg %p367
        %p1091 = pneg %p364
        %p1092 = pneg %p388
        %p1093 = pneg %p385
        %p1094 = pneg %p409
        %p1095 = pneg %p406
        %p1096 = pneg %p430
        %p1097 = pneg %p427
        %p1098 = pneg %p451
        %p1099 = pneg %p448
        %p1100 = pneg %p472
        %p1101 = pneg %p469
        %s1102 = sand.u32 %s485, 1
        %s1103 = sand.u32 %s485, 1
        %s1104 = smul.addr %s1103, 512
        %s1105 = scalar_lea.vmem [#allocation4], %s1104
        %p1106 = pneg %p498
        %p1107 = pneg %p495
        %p1108 = pneg %p524
        %p1109 = pneg %p521
        %s1110 = sand.u32 %s511, 1
        %s1111 = scalar_lea.sflag [#allocation6], %s1110
        %s1112 = sand.u32 %s511, 1
        %s1113 = smul.addr %s1112, 64
        %s1114 = scalar_lea.vmem [#allocation5], %s1113
        %s1115 = smul.u32 32, %s36
        %s1116 = ssub.s32 40, %s1115
        %p1117 = scmp.lt.s32.totalorder %s1116, 32
        %s1118 = scalar_select %p1117, %s1116, 32
        %s1119 = smul.u32 256, %s1118
        %s1120 = smul.u32 32, %s36
        %s1121 = ssub.s32 40, %s1120
        %p1122 = scmp.lt.s32.totalorder %s1121, 32
        %s1123 = scalar_select %p1122, %s1121, 32
        %s1124 = smul.u32 32, %s1123
        %p1126 = scmp.eq.s32.totalorder %s36, 0
        // Predicated region
        $region175: #{star_forward.1} parent=169 // pred_check
          %p1127 = pneg %p1126
        $region176: #{star_forward.1} parent=169 // pred_check_branch
          %1129 = sbr.rel (%p1127) target = $region178
        $region177: #{star_forward.1} parent=169 // pred_region
          %v1130 = vld [vmem:[%s0] sm:$0xff]
          %v1131 = vld [vmem:[%s0 + $0x8] sm:$0xff]
          %v1132 = vpack.c.bf16 %v1130, %v1130
          %v1133 = vpack.c.bf16 %v1131, %v1131
          %v1134 = vld [vmem:[%s3] sm:$0xf]
          %v1135 = vld [vmem:[%s3 + $0x4] sm:$0xf]
          %v1136 = vld [vmem:[%s3 + $0x8] sm:$0xf]
          %v1137 = vld [vmem:[%s3 + $0xc] sm:$0xf]
          %v1138 = vld [vmem:[%s9] sm:$0x1]
          %v1140 = vlaneseq
          %v1141 = vshrl.u32 %v1140, 7
          %v1142 = vsub.s32 0, %v1141
          %v1143 = vrot.slane %v1138, %v1142
          %v1147 = vunpack.c.l.b16 %v1132
          %v1148 = vunpack.c.l.b16 %v1133
          %v1149 = vpack.c.b16 %v1148, %v1147
          %v1154 = vunpack.c.l.b16 %v1134
          %v1155 = vunpack.c.l.b16 %v1135
          %v1156 = vunpack.c.l.b16 %v1136
          %v1157 = vunpack.c.l.b16 %v1137
          %v1158 = vpack.c.b16 %v1155, %v1154
          %v1159 = vpack.c.b16 %v1157, %v1156
          %vm1162 = vcmask 261120
          %v1164 = vsel %vm1162, %v1149, 0
          %1166 = vmatprep.subr.bf16.mxu0 0
          %1167 = vmatpush1.bf16.msra.mxu0 %v1158
          %1168 = vmatprep.subr.bf16.mxu0 0
          %1169 = vmatpush1.bf16.msra.mxu0 %v1159
          %1170 = vmatprep.subr.bf16.mxu0 0
          %1171 = vmatpush1.bf16.msra.mxu0 0
          %1172 = vmatprep.subr.bf16.mxu0 0
          %1173 = vmatpush1.bf16.msra.mxu0 0
          %1174 = vmatprep.subr.bf16.mxu0 0
          %1175 = vmatpush1.bf16.msra.mxu0 0
          %1176 = vmatprep.subr.bf16.mxu0 0
          %1177 = vmatpush1.bf16.msra.mxu0 0
          %1178 = vmatprep.subr.bf16.mxu0 0
          %1179 = vmatpush1.bf16.msra.mxu0 0
          %1180 = vmatprep.subr.bf16.mxu0 0
          %1181 = vmatpush1.bf16.msra.mxu0 0
          %1182 = vmatprep.subr.bf16.mxu0 0
          %1183 = vmatpush1.bf16.msra.mxu0 0
          %1184 = vmatprep.subr.bf16.mxu0 0
          %1185 = vmatpush1.bf16.msra.mxu0 0
          %1186 = vmatprep.subr.bf16.mxu0 0
          %1187 = vmatpush1.bf16.msra.mxu0 0
          %1188 = vmatprep.subr.bf16.mxu0 0
          %1189 = vmatpush1.bf16.msra.mxu0 0
          %1190 = vmatprep.subr.bf16.mxu0 0
          %1191 = vmatpush1.bf16.msra.mxu0 0
          %1192 = vmatprep.subr.bf16.mxu0 0
          %1193 = vmatpush1.bf16.msra.mxu0 0
          %1194 = vmatprep.subr.bf16.mxu0 0
          %1195 = vmatpush1.bf16.msra.mxu0 0
          %1196 = vmatprep.subr.bf16.mxu0 0
          %1197 = vmatpush1.bf16.msra.mxu0 0
          %1198 = vmatprep.mubr.bf16.mxu0 0
          %1199 = vmatmul.mubr.bf16.gmra.mrb[0].mxu0 %v1164
          %v1200 = vpop.f32.mrb[0].mxu0
          %v1201 = vadd.f32 %v1143, %v1200
          %v1202 = vpop.f32.mrb[0].mxu0
          %v1203 = vpop.f32.mrb[0].mxu0
          %v1204 = vadd.f32 %v1143, %v1203
          %v1205 = vpop.f32.mrb[0].mxu0
          %1206 = vdwg.mxu0
          %v1207 = vld [vmem:[%s4] sm:$0xf]
          %v1208 = vld [vmem:[%s4 + $0x4] sm:$0xf]
          %v1209 = vld [vmem:[%s4 + $0x8] sm:$0xf]
          %v1210 = vld [vmem:[%s4 + $0xc] sm:$0xf]
          %v1211 = vld [vmem:[%s10] sm:$0x1]
          %v1213 = vlaneseq
          %v1214 = vshrl.u32 %v1213, 7
          %v1215 = vsub.s32 0, %v1214
          %v1216 = vrot.slane %v1211, %v1215
          %v1222 = vunpack.c.l.b16 %v1207
          %v1223 = vunpack.c.l.b16 %v1208
          %v1224 = vunpack.c.l.b16 %v1209
          %v1225 = vunpack.c.l.b16 %v1210
          %v1226 = vpack.c.b16 %v1223, %v1222
          %v1227 = vpack.c.b16 %v1225, %v1224
          %1230 = vmatprep.subr.bf16.mxu0 0
          %1231 = vmatpush1.bf16.msra.mxu0 %v1226
          %1232 = vmatprep.subr.bf16.mxu0 0
          %1233 = vmatpush1.bf16.msra.mxu0 %v1227
          %1234 = vmatprep.subr.bf16.mxu0 0
          %1235 = vmatpush1.bf16.msra.mxu0 0
          %1236 = vmatprep.subr.bf16.mxu0 0
          %1237 = vmatpush1.bf16.msra.mxu0 0
          %1238 = vmatprep.subr.bf16.mxu0 0
          %1239 = vmatpush1.bf16.msra.mxu0 0
          %1240 = vmatprep.subr.bf16.mxu0 0
          %1241 = vmatpush1.bf16.msra.mxu0 0
          %1242 = vmatprep.subr.bf16.mxu0 0
          %1243 = vmatpush1.bf16.msra.mxu0 0
          %1244 = vmatprep.subr.bf16.mxu0 0
          %1245 = vmatpush1.bf16.msra.mxu0 0
          %1246 = vmatprep.subr.bf16.mxu0 0
          %1247 = vmatpush1.bf16.msra.mxu0 0
          %1248 = vmatprep.subr.bf16.mxu0 0
          %1249 = vmatpush1.bf16.msra.mxu0 0
          %1250 = vmatprep.subr.bf16.mxu0 0
          %1251 = vmatpush1.bf16.msra.mxu0 0
          %1252 = vmatprep.subr.bf16.mxu0 0
          %1253 = vmatpush1.bf16.msra.mxu0 0
          %1254 = vmatprep.subr.bf16.mxu0 0
          %1255 = vmatpush1.bf16.msra.mxu0 0
          %1256 = vmatprep.subr.bf16.mxu0 0
          %1257 = vmatpush1.bf16.msra.mxu0 0
          %1258 = vmatprep.subr.bf16.mxu0 0
          %1259 = vmatpush1.bf16.msra.mxu0 0
          %1260 = vmatprep.subr.bf16.mxu0 0
          %1261 = vmatpush1.bf16.msra.mxu0 0
          %1262 = vmatprep.mubr.bf16.mxu0 0
          %1263 = vmatmul.mubr.bf16.gmra.mrb[0].mxu0 %v1164
          %v1264 = vpop.f32.mrb[0].mxu0
          %v1265 = vadd.f32 %v1216, %v1264
          %v1266 = vpop.f32.mrb[0].mxu0
          %v1267 = vpop.f32.mrb[0].mxu0
          %v1268 = vadd.f32 %v1216, %v1267
          %v1269 = vpop.f32.mrb[0].mxu0
          %1270 = vdwg.mxu0
          %v1271 = vld [vmem:[%s5] sm:$0xf]
          %v1272 = vld [vmem:[%s5 + $0x4] sm:$0xf]
          %v1273 = vld [vmem:[%s5 + $0x8] sm:$0xf]
          %v1274 = vld [vmem:[%s5 + $0xc] sm:$0xf]
          %v1275 = vld [vmem:[%s11] sm:$0x1]
          %v1277 = vlaneseq
          %v1278 = vshrl.u32 %v1277, 7
          %v1279 = vsub.s32 0, %v1278
          %v1280 = vrot.slane %v1275, %v1279
          %v1286 = vunpack.c.l.b16 %v1271
          %v1287 = vunpack.c.l.b16 %v1272
          %v1288 = vunpack.c.l.b16 %v1273
          %v1289 = vunpack.c.l.b16 %v1274
          %v1290 = vpack.c.b16 %v1287, %v1286
          %v1291 = vpack.c.b16 %v1289, %v1288
          %1294 = vmatprep.subr.bf16.mxu0 0
          %1295 = vmatpush1.bf16.msra.mxu0 %v1290
          %1296 = vmatprep.subr.bf16.mxu0 0
          %1297 = vmatpush1.bf16.msra.mxu0 %v1291
          %1298 = vmatprep.subr.bf16.mxu0 0
          %1299 = vmatpush1.bf16.msra.mxu0 0
          %1300 = vmatprep.subr.bf16.mxu0 0
          %1301 = vmatpush1.bf16.msra.mxu0 0
          %1302 = vmatprep.subr.bf16.mxu0 0
          %1303 = vmatpush1.bf16.msra.mxu0 0
          %1304 = vmatprep.subr.bf16.mxu0 0
          %1305 = vmatpush1.bf16.msra.mxu0 0
          %1306 = vmatprep.subr.bf16.mxu0 0
          %1307 = vmatpush1.bf16.msra.mxu0 0
          %1308 = vmatprep.subr.bf16.mxu0 0
          %1309 = vmatpush1.bf16.msra.mxu0 0
          %1310 = vmatprep.subr.bf16.mxu0 0
          %1311 = vmatpush1.bf16.msra.mxu0 0
          %1312 = vmatprep.subr.bf16.mxu0 0
          %1313 = vmatpush1.bf16.msra.mxu0 0
          %1314 = vmatprep.subr.bf16.mxu0 0
          %1315 = vmatpush1.bf16.msra.mxu0 0
          %1316 = vmatprep.subr.bf16.mxu0 0
          %1317 = vmatpush1.bf16.msra.mxu0 0
          %1318 = vmatprep.subr.bf16.mxu0 0
          %1319 = vmatpush1.bf16.msra.mxu0 0
          %1320 = vmatprep.subr.bf16.mxu0 0
          %1321 = vmatpush1.bf16.msra.mxu0 0
          %1322 = vmatprep.subr.bf16.mxu0 0
          %1323 = vmatpush1.bf16.msra.mxu0 0
          %1324 = vmatprep.subr.bf16.mxu0 0
          %1325 = vmatpush1.bf16.msra.mxu0 0
          %1326 = vmatprep.mubr.bf16.mxu0 0
          %1327 = vmatmul.mubr.bf16.gmra.mrb[0].mxu0 %v1164
          %v1328 = vpop.f32.mrb[0].mxu0
          %v1329 = vadd.f32 %v1280, %v1328
          %v1330 = vpop.f32.mrb[0].mxu0
          %v1331 = vpop.f32.mrb[0].mxu0
          %v1332 = vadd.f32 %v1280, %v1331
          %v1333 = vpop.f32.mrb[0].mxu0
          %1334 = vdwg.mxu0
          %v1335 = vld [vmem:[%s6] sm:$0xf]
          %v1336 = vld [vmem:[%s6 + $0x4] sm:$0xf]
          %v1337 = vld [vmem:[%s6 + $0x8] sm:$0xf]
          %v1338 = vld [vmem:[%s6 + $0xc] sm:$0xf]
          %v1339 = vld [vmem:[%s12] sm:$0x1]
          %v1341 = vlaneseq
          %v1342 = vshrl.u32 %v1341, 7
          %v1343 = vsub.s32 0, %v1342
          %v1344 = vrot.slane %v1339, %v1343
          %v1350 = vunpack.c.l.b16 %v1335
          %v1351 = vunpack.c.l.b16 %v1336
          %v1352 = vunpack.c.l.b16 %v1337
          %v1353 = vunpack.c.l.b16 %v1338
          %v1354 = vpack.c.b16 %v1351, %v1350
          %v1355 = vpack.c.b16 %v1353, %v1352
          %v1359 = vsel %vm1162, 0, 0
          %1361 = vmatprep.subr.bf16.mxu0 0
          %1362 = vmatpush1.bf16.msra.mxu0 %v1354
          %1363 = vmatprep.subr.bf16.mxu0 0
          %1364 = vmatpush1.bf16.msra.mxu0 %v1355
          %1365 = vmatprep.subr.bf16.mxu0 0
          %1366 = vmatpush1.bf16.msra.mxu0 0
          %1367 = vmatprep.subr.bf16.mxu0 0
          %1368 = vmatpush1.bf16.msra.mxu0 0
          %1369 = vmatprep.subr.bf16.mxu0 0
          %1370 = vmatpush1.bf16.msra.mxu0 0
          %1371 = vmatprep.subr.bf16.mxu0 0
          %1372 = vmatpush1.bf16.msra.mxu0 0
          %1373 = vmatprep.subr.bf16.mxu0 0
          %1374 = vmatpush1.bf16.msra.mxu0 0
          %1375 = vmatprep.subr.bf16.mxu0 0
          %1376 = vmatpush1.bf16.msra.mxu0 0
          %1377 = vmatprep.subr.bf16.mxu0 0
          %1378 = vmatpush1.bf16.msra.mxu0 0
          %1379 = vmatprep.subr.bf16.mxu0 0
          %1380 = vmatpush1.bf16.msra.mxu0 0
          %1381 = vmatprep.subr.bf16.mxu0 0
          %1382 = vmatpush1.bf16.msra.mxu0 0
          %1383 = vmatprep.subr.bf16.mxu0 0
          %1384 = vmatpush1.bf16.msra.mxu0 0
          %1385 = vmatprep.subr.bf16.mxu0 0
          %1386 = vmatpush1.bf16.msra.mxu0 0
          %1387 = vmatprep.subr.bf16.mxu0 0
          %1388 = vmatpush1.bf16.msra.mxu0 0
          %1389 = vmatprep.subr.bf16.mxu0 0
          %1390 = vmatpush1.bf16.msra.mxu0 0
          %1391 = vmatprep.subr.bf16.mxu0 0
          %1392 = vmatpush1.bf16.msra.mxu0 0
          %1393 = vmatprep.mubr.bf16.mxu0 0
          %1394 = vmatmul.mubr.bf16.gmra.mrb[0].mxu0 %v1359
          %v1395 = vpop.f32.mrb[0].mxu0
          %v1396 = vadd.f32 %v1344, %v1395
          %v1397 = vpop.f32.mrb[0].mxu0
          %v1398 = vpop.f32.mrb[0].mxu0
          %v1399 = vpop.f32.mrb[0].mxu0
          %1400 = vdwg.mxu0
          %v1401 = vld [vmem:[%s7] sm:$0xf]
          %v1402 = vld [vmem:[%s7 + $0x4] sm:$0xf]
          %v1403 = vld [vmem:[%s7 + $0x8] sm:$0xf]
          %v1404 = vld [vmem:[%s7 + $0xc] sm:$0xf]
          %v1405 = vld [vmem:[%s13] sm:$0x1]
          %v1407 = vlaneseq
          %v1408 = vshrl.u32 %v1407, 7
          %v1409 = vsub.s32 0, %v1408
          %v1410 = vrot.slane %v1405, %v1409
          %v1416 = vunpack.c.l.b16 %v1401
          %v1417 = vunpack.c.l.b16 %v1402
          %v1418 = vunpack.c.l.b16 %v1403
          %v1419 = vunpack.c.l.b16 %v1404
          %v1420 = vpack.c.b16 %v1417, %v1416
          %v1421 = vpack.c.b16 %v1419, %v1418
          %1424 = vmatprep.subr.bf16.mxu0 0
          %1425 = vmatpush1.bf16.msra.mxu0 %v1420
          %1426 = vmatprep.subr.bf16.mxu0 0
          %1427 = vmatpush1.bf16.msra.mxu0 %v1421
          %1428 = vmatprep.subr.bf16.mxu0 0
          %1429 = vmatpush1.bf16.msra.mxu0 0
          %1430 = vmatprep.subr.bf16.mxu0 0
          %1431 = vmatpush1.bf16.msra.mxu0 0
          %1432 = vmatprep.subr.bf16.mxu0 0
          %1433 = vmatpush1.bf16.msra.mxu0 0
          %1434 = vmatprep.subr.bf16.mxu0 0
          %1435 = vmatpush1.bf16.msra.mxu0 0
          %1436 = vmatprep.subr.bf16.mxu0 0
          %1437 = vmatpush1.bf16.msra.mxu0 0
          %1438 = vmatprep.subr.bf16.mxu0 0
          %1439 = vmatpush1.bf16.msra.mxu0 0
          %1440 = vmatprep.subr.bf16.mxu0 0
          %1441 = vmatpush1.bf16.msra.mxu0 0
          %1442 = vmatprep.subr.bf16.mxu0 0
          %1443 = vmatpush1.bf16.msra.mxu0 0
          %1444 = vmatprep.subr.bf16.mxu0 0
          %1445 = vmatpush1.bf16.msra.mxu0 0
          %1446 = vmatprep.subr.bf16.mxu0 0
          %1447 = vmatpush1.bf16.msra.mxu0 0
          %1448 = vmatprep.subr.bf16.mxu0 0
          %1449 = vmatpush1.bf16.msra.mxu0 0
          %1450 = vmatprep.subr.bf16.mxu0 0
          %1451 = vmatpush1.bf16.msra.mxu0 0
          %1452 = vmatprep.subr.bf16.mxu0 0
          %1453 = vmatpush1.bf16.msra.mxu0 0
          %1454 = vmatprep.subr.bf16.mxu0 0
          %1455 = vmatpush1.bf16.msra.mxu0 0
          %1456 = vmatprep.mubr.bf16.mxu0 0
          %1457 = vmatmul.mubr.bf16.gmra.mrb[0].mxu0 %v1359
          %v1458 = vpop.f32.mrb[0].mxu0
          %v1459 = vadd.f32 %v1410, %v1458
          %v1460 = vpop.f32.mrb[0].mxu0
          %v1461 = vpop.f32.mrb[0].mxu0
          %v1462 = vpop.f32.mrb[0].mxu0
          %1463 = vdwg.mxu0
          %v1464 = vld [vmem:[%s8] sm:$0xf]
          %v1465 = vld [vmem:[%s8 + $0x4] sm:$0xf]
          %v1466 = vld [vmem:[%s8 + $0x8] sm:$0xf]
          %v1467 = vld [vmem:[%s8 + $0xc] sm:$0xf]
          %v1468 = vld [vmem:[%s14] sm:$0x1]
          %v1470 = vlaneseq
          %v1471 = vshrl.u32 %v1470, 7
          %v1472 = vsub.s32 0, %v1471
          %v1473 = vrot.slane %v1468, %v1472
          %v1479 = vunpack.c.l.b16 %v1464
          %v1480 = vunpack.c.l.b16 %v1465
          %v1481 = vunpack.c.l.b16 %v1466
          %v1482 = vunpack.c.l.b16 %v1467
          %v1483 = vpack.c.b16 %v1480, %v1479
          %v1484 = vpack.c.b16 %v1482, %v1481
          %1487 = vmatprep.subr.bf16.mxu0 0
          %1488 = vmatpush1.bf16.msra.mxu0 %v1483
          %1489 = vmatprep.subr.bf16.mxu0 0
          %1490 = vmatpush1.bf16.msra.mxu0 %v1484
          %1491 = vmatprep.subr.bf16.mxu0 0
          %1492 = vmatpush1.bf16.msra.mxu0 0
          %1493 = vmatprep.subr.bf16.mxu0 0
          %1494 = vmatpush1.bf16.msra.mxu0 0
          %1495 = vmatprep.subr.bf16.mxu0 0
          %1496 = vmatpush1.bf16.msra.mxu0 0
          %1497 = vmatprep.subr.bf16.mxu0 0
          %1498 = vmatpush1.bf16.msra.mxu0 0
          %1499 = vmatprep.subr.bf16.mxu0 0
          %1500 = vmatpush1.bf16.msra.mxu0 0
          %1501 = vmatprep.subr.bf16.mxu0 0
          %1502 = vmatpush1.bf16.msra.mxu0 0
          %1503 = vmatprep.subr.bf16.mxu0 0
          %1504 = vmatpush1.bf16.msra.mxu0 0
          %1505 = vmatprep.subr.bf16.mxu0 0
          %1506 = vmatpush1.bf16.msra.mxu0 0
          %1507 = vmatprep.subr.bf16.mxu0 0
          %1508 = vmatpush1.bf16.msra.mxu0 0
          %1509 = vmatprep.subr.bf16.mxu0 0
          %1510 = vmatpush1.bf16.msra.mxu0 0
          %1511 = vmatprep.subr.bf16.mxu0 0
          %1512 = vmatpush1.bf16.msra.mxu0 0
          %1513 = vmatprep.subr.bf16.mxu0 0
          %1514 = vmatpush1.bf16.msra.mxu0 0
          %1515 = vmatprep.subr.bf16.mxu0 0
          %1516 = vmatpush1.bf16.msra.mxu0 0
          %1517 = vmatprep.subr.bf16.mxu0 0
          %1518 = vmatpush1.bf16.msra.mxu0 0
          %1519 = vmatprep.mubr.bf16.mxu0 0
          %1520 = vmatmul.mubr.bf16.gmra.mrb[0].mxu0 %v1359
          %v1521 = vpop.f32.mrb[0].mxu0
          %v1522 = vadd.f32 %v1473, %v1521
          %v1523 = vpop.f32.mrb[0].mxu0
          %v1524 = vpop.f32.mrb[0].mxu0
          %v1525 = vpop.f32.mrb[0].mxu0
          %1526 = vdwg.mxu0
          %v1528 = vrot.slane %v1396, 1
          %v1531 = vadd.f32 %v1201, %v1396
          %v1532 = vadd.f32 %v1204, %v1528
          %v1533 = vxor.u32 %v1531, 2147483648
          %v1534 = vxor.u32 %v1532, 2147483648
          %v1535 = vmul.f32 %v1533, 1.442695
          %v1536 = vpow.pop %v1535
          %v1537 = vmul.f32 %v1534, 1.442695
          %v1538 = vpow.pop %v1537
          %v1539 = vadd.f32 %v1536, 1.0
          %v1540 = vadd.f32 %v1538, 1.0
          %v1541 = vrcp.pop %v1539
          %v1542 = vmul.f32 1.0, %v1541
          %v1543 = vrcp.pop %v1540
          %v1544 = vmul.f32 1.0, %v1543
          %v1546 = vrot.slane %v1459, 1
          %v1549 = vadd.f32 %v1265, %v1459
          %v1550 = vadd.f32 %v1268, %v1546
          %v1551 = vxor.u32 %v1549, 2147483648
          %v1552 = vxor.u32 %v1550, 2147483648
          %v1553 = vmul.f32 %v1551, 1.442695
          %v1554 = vpow.pop %v1553
          %v1555 = vmul.f32 %v1552, 1.442695
          %v1556 = vpow.pop %v1555
          %v1557 = vadd.f32 %v1554, 1.0
          %v1558 = vadd.f32 %v1556, 1.0
          %v1559 = vrcp.pop %v1557
          %v1560 = vmul.f32 1.0, %v1559
          %v1561 = vrcp.pop %v1558
          %v1562 = vmul.f32 1.0, %v1561
          %v1564 = vrot.slane %v1522, 1
          %v1567 = vmul.f32 %v1542, %v1522
          %v1568 = vmul.f32 %v1544, %v1564
          %v1569 = vadd.f32 %v1329, %v1567
          %v1570 = vadd.f32 %v1332, %v1568
          %v1571 = vtanh.pop %v1569
          %v1572 = vtanh.pop %v1570
          %v1573 = vsub.f32 1.0, %v1560
          %v1574 = vsub.f32 1.0, %v1562
          %v1575 = vmul.f32 %v1573, %v1571
          %v1576 = vmul.f32 %v1574, %v1572
          %v1577 = vmul.f32 %v1560, 0.0
          %v1578 = vmul.f32 %v1562, 0.0
          %v1579 = vadd.f32 %v1575, %v1577
          %v1580 = vadd.f32 %v1576, %v1578
          %vm1581 = vcmask 253952
          %1582 = vst.msk [vmem:[#allocation2] sm:$0x1] %vm1581, %v1579
          %1583 = vst.msk [vmem:[#allocation2 + $0x8] sm:$0x1] %vm1581, %v1580
          %v1584 = vpack.c.bf16 %v1579, %v1579
          %v1585 = vpack.c.bf16 %v1580, %v1580
          %v1586 = vld [vmem:[%s6] sm:$0xf]
          %v1587 = vld [vmem:[%s6 + $0x4] sm:$0xf]
          %v1588 = vld [vmem:[%s6 + $0x8] sm:$0xf]
          %v1589 = vld [vmem:[%s6 + $0xc] sm:$0xf]
          %v1590 = vld [vmem:[%s12] sm:$0x1]
          %v1592 = vlaneseq
          %v1593 = vshrl.u32 %v1592, 7
          %v1594 = vsub.s32 0, %v1593
          %v1595 = vrot.slane %v1590, %v1594
          %v1599 = vunpack.c.l.b16 %v1584
          %v1600 = vunpack.c.l.b16 %v1585
          %v1601 = vrot.slane %v1600, 7
          %vm1602 = vcmask 1041409
          %v1603 = vsel %vm1602, %v1601, %v1599
          %v1604 = vpack.c.b16 %v1603, %v1603
          %v1609 = vunpack.c.l.b16 %v1586
          %v1610 = vunpack.c.l.b16 %v1587
          %v1611 = vunpack.c.l.b16 %v1588
          %v1612 = vunpack.c.l.b16 %v1589
          %v1613 = vpack.c.b16 %v1610, %v1609
          %v1614 = vpack.c.b16 %v1612, %v1611
          %v1618 = vsel %vm1162, %v1604, 0
          %1620 = vmatprep.subr.bf16.mxu0 0
          %1621 = vmatpush1.bf16.msra.mxu0 %v1613
          %1622 = vmatprep.subr.bf16.mxu0 0
          %1623 = vmatpush1.bf16.msra.mxu0 %v1614
          %1624 = vmatprep.subr.bf16.mxu0 0
          %1625 = vmatpush1.bf16.msra.mxu0 0
          %1626 = vmatprep.subr.bf16.mxu0 0
          %1627 = vmatpush1.bf16.msra.mxu0 0
          %1628 = vmatprep.subr.bf16.mxu0 0
          %1629 = vmatpush1.bf16.msra.mxu0 0
          %1630 = vmatprep.subr.bf16.mxu0 0
          %1631 = vmatpush1.bf16.msra.mxu0 0
          %1632 = vmatprep.subr.bf16.mxu0 0
          %1633 = vmatpush1.bf16.msra.mxu0 0
          %1634 = vmatprep.subr.bf16.mxu0 0
          %1635 = vmatpush1.bf16.msra.mxu0 0
          %1636 = vmatprep.subr.bf16.mxu0 0
          %1637 = vmatpush1.bf16.msra.mxu0 0
          %1638 = vmatprep.subr.bf16.mxu0 0
          %1639 = vmatpush1.bf16.msra.mxu0 0
          %1640 = vmatprep.subr.bf16.mxu0 0
          %1641 = vmatpush1.bf16.msra.mxu0 0
          %1642 = vmatprep.subr.bf16.mxu0 0
          %1643 = vmatpush1.bf16.msra.mxu0 0
          %1644 = vmatprep.subr.bf16.mxu0 0
          %1645 = vmatpush1.bf16.msra.mxu0 0
          %1646 = vmatprep.subr.bf16.mxu0 0
          %1647 = vmatpush1.bf16.msra.mxu0 0
          %1648 = vmatprep.subr.bf16.mxu0 0
          %1649 = vmatpush1.bf16.msra.mxu0 0
          %1650 = vmatprep.subr.bf16.mxu0 0
          %1651 = vmatpush1.bf16.msra.mxu0 0
          %1652 = vmatprep.mubr.bf16.mxu0 0
          %1653 = vmatmul.mubr.bf16.gmra.mrb[0].mxu0 %v1618
          %v1654 = vpop.f32.mrb[0].mxu0
          %v1655 = vadd.f32 %v1595, %v1654
          %v1656 = vpop.f32.mrb[0].mxu0
          %v1657 = vpop.f32.mrb[0].mxu0
          %v1658 = vpop.f32.mrb[0].mxu0
          %1659 = vdwg.mxu0
          %v1660 = vld [vmem:[%s7] sm:$0xf]
          %v1661 = vld [vmem:[%s7 + $0x4] sm:$0xf]
          %v1662 = vld [vmem:[%s7 + $0x8] sm:$0xf]
          %v1663 = vld [vmem:[%s7 + $0xc] sm:$0xf]
          %v1664 = vld [vmem:[%s13] sm:$0x1]
          %v1666 = vlaneseq
          %v1667 = vshrl.u32 %v1666, 7
          %v1668 = vsub.s32 0, %v1667
          %v1669 = vrot.slane %v1664, %v1668
          %v1675 = vunpack.c.l.b16 %v1660
          %v1676 = vunpack.c.l.b16 %v1661
          %v1677 = vunpack.c.l.b16 %v1662
          %v1678 = vunpack.c.l.b16 %v1663
          %v1679 = vpack.c.b16 %v1676, %v1675
          %v1680 = vpack.c.b16 %v1678, %v1677
          %1683 = vmatprep.subr.bf16.mxu0 0
          %1684 = vmatpush1.bf16.msra.mxu0 %v1679
          %1685 = vmatprep.subr.bf16.mxu0 0
          %1686 = vmatpush1.bf16.msra.mxu0 %v1680
          %1687 = vmatprep.subr.bf16.mxu0 0
          %1688 = vmatpush1.bf16.msra.mxu0 0
          %1689 = vmatprep.subr.bf16.mxu0 0
          %1690 = vmatpush1.bf16.msra.mxu0 0
          %1691 = vmatprep.subr.bf16.mxu0 0
          %1692 = vmatpush1.bf16.msra.mxu0 0
          %1693 = vmatprep.subr.bf16.mxu0 0
          %1694 = vmatpush1.bf16.msra.mxu0 0
          %1695 = vmatprep.subr.bf16.mxu0 0
          %1696 = vmatpush1.bf16.msra.mxu0 0
          %1697 = vmatprep.subr.bf16.mxu0 0
          %1698 = vmatpush1.bf16.msra.mxu0 0
          %1699 = vmatprep.subr.bf16.mxu0 0
          %1700 = vmatpush1.bf16.msra.mxu0 0
          %1701 = vmatprep.subr.bf16.mxu0 0
          %1702 = vmatpush1.bf16.msra.mxu0 0
          %1703 = vmatprep.subr.bf16.mxu0 0
          %1704 = vmatpush1.bf16.msra.mxu0 0
          %1705 = vmatprep.subr.bf16.mxu0 0
          %1706 = vmatpush1.bf16.msra.mxu0 0
          %1707 = vmatprep.subr.bf16.mxu0 0
          %1708 = vmatpush1.bf16.msra.mxu0 0
          %1709 = vmatprep.subr.bf16.mxu0 0
          %1710 = vmatpush1.bf16.msra.mxu0 0
          %1711 = vmatprep.subr.bf16.mxu0 0
          %1712 = vmatpush1.bf16.msra.mxu0 0
          %1713 = vmatprep.subr.bf16.mxu0 0
          %1714 = vmatpush1.bf16.msra.mxu0 0
          %1715 = vmatprep.mubr.bf16.mxu0 0
          %1716 = vmatmul.mubr.bf16.gmra.mrb[0].mxu0 %v1618
          %v1717 = vpop.f32.mrb[0].mxu0
          %v1718 = vadd.f32 %v1669, %v1717
          %v1719 = vpop.f32.mrb[0].mxu0
          %v1720 = vpop.f32.mrb[0].mxu0
          %v1721 = vpop.f32.mrb[0].mxu0
          %1722 = vdwg.mxu0
          %v1723 = vld [vmem:[%s8] sm:$0xf]
          %v1724 = vld [vmem:[%s8 + $0x4] sm:$0xf]
          %v1725 = vld [vmem:[%s8 + $0x8] sm:$0xf]
          %v1726 = vld [vmem:[%s8 + $0xc] sm:$0xf]
          %v1727 = vld [vmem:[%s14] sm:$0x1]
          %v1729 = vlaneseq
          %v1730 = vshrl.u32 %v1729, 7
          %v1731 = vsub.s32 0, %v1730
          %v1732 = vrot.slane %v1727, %v1731
          %v1738 = vunpack.c.l.b16 %v1723
          %v1739 = vunpack.c.l.b16 %v1724
          %v1740 = vunpack.c.l.b16 %v1725
          %v1741 = vunpack.c.l.b16 %v1726
          %v1742 = vpack.c.b16 %v1739, %v1738
          %v1743 = vpack.c.b16 %v1741, %v1740
          %1746 = vmatprep.subr.bf16.mxu0 0
          %1747 = vmatpush1.bf16.msra.mxu0 %v1742
          %1748 = vmatprep.subr.bf16.mxu0 0
          %1749 = vmatpush1.bf16.msra.mxu0 %v1743
          %1750 = vmatprep.subr.bf16.mxu0 0
          %1751 = vmatpush1.bf16.msra.mxu0 0
          %1752 = vmatprep.subr.bf16.mxu0 0
          %1753 = vmatpush1.bf16.msra.mxu0 0
          %1754 = vmatprep.subr.bf16.mxu0 0
          %1755 = vmatpush1.bf16.msra.mxu0 0
          %1756 = vmatprep.subr.bf16.mxu0 0
          %1757 = vmatpush1.bf16.msra.mxu0 0
          %1758 = vmatprep.subr.bf16.mxu0 0
          %1759 = vmatpush1.bf16.msra.mxu0 0
          %1760 = vmatprep.subr.bf16.mxu0 0
          %1761 = vmatpush1.bf16.msra.mxu0 0
          %1762 = vmatprep.subr.bf16.mxu0 0
          %1763 = vmatpush1.bf16.msra.mxu0 0
          %1764 = vmatprep.subr.bf16.mxu0 0
          %1765 = vmatpush1.bf16.msra.mxu0 0
          %1766 = vmatprep.subr.bf16.mxu0 0
          %1767 = vmatpush1.bf16.msra.mxu0 0
          %1768 = vmatprep.subr.bf16.mxu0 0
          %1769 = vmatpush1.bf16.msra.mxu0 0
          %1770 = vmatprep.subr.bf16.mxu0 0
          %1771 = vmatpush1.bf16.msra.mxu0 0
          %1772 = vmatprep.subr.bf16.mxu0 0
          %1773 = vmatpush1.bf16.msra.mxu0 0
          %1774 = vmatprep.subr.bf16.mxu0 0
          %1775 = vmatpush1.bf16.msra.mxu0 0
          %1776 = vmatprep.subr.bf16.mxu0 0
          %1777 = vmatpush1.bf16.msra.mxu0 0
          %1778 = vmatprep.mubr.bf16.mxu0 0
          %1779 = vmatmul.mubr.bf16.gmra.mrb[0].mxu0 %v1618
          %v1780 = vpop.f32.mrb[0].mxu0
          %v1781 = vadd.f32 %v1732, %v1780
          %v1782 = vpop.f32.mrb[0].mxu0
          %v1783 = vpop.f32.mrb[0].mxu0
          %v1784 = vpop.f32.mrb[0].mxu0
          %1785 = vdwg.mxu0
          %v1787 = vrot.slane %v1655, 7
          %v1790 = vadd.f32 %v1201, %v1787
          %v1791 = vadd.f32 %v1204, %v1655
          %v1792 = vxor.u32 %v1790, 2147483648
          %v1793 = vxor.u32 %v1791, 2147483648
          %v1794 = vmul.f32 %v1792, 1.442695
          %v1795 = vpow.pop %v1794
          %v1796 = vmul.f32 %v1793, 1.442695
          %v1797 = vpow.pop %v1796
          %v1798 = vadd.f32 %v1795, 1.0
          %v1799 = vadd.f32 %v1797, 1.0
          %v1800 = vrcp.pop %v1798
          %v1801 = vmul.f32 1.0, %v1800
          %v1802 = vrcp.pop %v1799
          %v1803 = vmul.f32 1.0, %v1802
          %v1805 = vrot.slane %v1718, 7
          %v1808 = vadd.f32 %v1265, %v1805
          %v1809 = vadd.f32 %v1268, %v1718
          %v1810 = vxor.u32 %v1808, 2147483648
          %v1811 = vxor.u32 %v1809, 2147483648
          %v1812 = vmul.f32 %v1810, 1.442695
          %v1813 = vpow.pop %v1812
          %v1814 = vmul.f32 %v1811, 1.442695
          %v1815 = vpow.pop %v1814
          %v1816 = vadd.f32 %v1813, 1.0
          %v1817 = vadd.f32 %v1815, 1.0
          %v1818 = vrcp.pop %v1816
          %v1819 = vmul.f32 1.0, %v1818
          %v1820 = vrcp.pop %v1817
          %v1821 = vmul.f32 1.0, %v1820
          %v1823 = vrot.slane %v1781, 7
          %v1826 = vmul.f32 %v1801, %v1823
          %v1827 = vmul.f32 %v1803, %v1781
          %v1828 = vadd.f32 %v1329, %v1826
          %v1829 = vadd.f32 %v1332, %v1827
          %v1830 = vtanh.pop %v1828
          %v1831 = vtanh.pop %v1829
          %v1832 = vsub.f32 1.0, %v1819
          %v1833 = vsub.f32 1.0, %v1821
          %v1834 = vmul.f32 %v1832, %v1830
          %v1835 = vmul.f32 %v1833, %v1831
          %v1838 = vrot.slane %v1579, 7
          %v1839 = vrot.slane %v1580, 7
          %v1842 = vmul.f32 %v1819, %v1838
          %v1843 = vmul.f32 %v1821, %v1839
          %v1844 = vadd.f32 %v1834, %v1842
          %v1845 = vadd.f32 %v1835, %v1843
          %vm1846 = vcmask 254977
          %1847 = vst.msk [vmem:[#allocation2] sm:$0x2] %vm1846, %v1844
          %1848 = vst.msk [vmem:[#allocation2 + $0x8] sm:$0x2] %vm1846, %v1845
          %v1849 = vpack.c.bf16 %v1844, %v1844
          %v1850 = vpack.c.bf16 %v1845, %v1845
          %v1851 = vld [vmem:[%s6] sm:$0xf]
          %v1852 = vld [vmem:[%s6 + $0x4] sm:$0xf]
          %v1853 = vld [vmem:[%s6 + $0x8] sm:$0xf]
          %v1854 = vld [vmem:[%s6 + $0xc] sm:$0xf]
          %v1855 = vld [vmem:[%s12] sm:$0x1]
          %v1857 = vlaneseq
          %v1858 = vshrl.u32 %v1857, 7
          %v1859 = vsub.s32 0, %v1858
          %v1860 = vrot.slane %v1855, %v1859
          %v1864 = vunpack.c.l.b16 %v1849
          %v1865 = vunpack.c.l.b16 %v1850
          %v1866 = vrot.slane %v1864, 1
          %v1867 = vsel %vm1602, %v1865, %v1866
          %v1868 = vpack.c.b16 %v1867, %v1867
          %v1873 = vunpack.c.l.b16 %v1851
          %v1874 = vunpack.c.l.b16 %v1852
          %v1875 = vunpack.c.l.b16 %v1853
          %v1876 = vunpack.c.l.b16 %v1854
          %v1877 = vpack.c.b16 %v1874, %v1873
          %v1878 = vpack.c.b16 %v1876, %v1875
          %v1882 = vsel %vm1162, %v1868, 0
          %1884 = vmatprep.subr.bf16.mxu0 0
          %1885 = vmatpush1.bf16.msra.mxu0 %v1877
          %1886 = vmatprep.subr.bf16.mxu0 0
          %1887 = vmatpush1.bf16.msra.mxu0 %v1878
          %1888 = vmatprep.subr.bf16.mxu0 0
          %1889 = vmatpush1.bf16.msra.mxu0 0
          %1890 = vmatprep.subr.bf16.mxu0 0
          %1891 = vmatpush1.bf16.msra.mxu0 0
          %1892 = vmatprep.subr.bf16.mxu0 0
          %1893 = vmatpush1.bf16.msra.mxu0 0
          %1894 = vmatprep.subr.bf16.mxu0 0
          %1895 = vmatpush1.bf16.msra.mxu0 0
          %1896 = vmatprep.subr.bf16.mxu0 0
          %1897 = vmatpush1.bf16.msra.mxu0 0
          %1898 = vmatprep.subr.bf16.mxu0 0
          %1899 = vmatpush1.bf16.msra.mxu0 0
          %1900 = vmatprep.subr.bf16.mxu0 0
          %1901 = vmatpush1.bf16.msra.mxu0 0
          %1902 = vmatprep.subr.bf16.mxu0 0
          %1903 = vmatpush1.bf16.msra.mxu0 0
          %1904 = vmatprep.subr.bf16.mxu0 0
          %1905 = vmatpush1.bf16.msra.mxu0 0
          %1906 = vmatprep.subr.bf16.mxu0 0
          %1907 = vmatpush1.bf16.msra.mxu0 0
          %1908 = vmatprep.subr.bf16.mxu0 0
          %1909 = vmatpush1.bf16.msra.mxu0 0
          %1910 = vmatprep.subr.bf16.mxu0 0
          %1911 = vmatpush1.bf16.msra.mxu0 0
          %1912 = vmatprep.subr.bf16.mxu0 0
          %1913 = vmatpush1.bf16.msra.mxu0 0
          %1914 = vmatprep.subr.bf16.mxu0 0
          %1915 = vmatpush1.bf16.msra.mxu0 0
          %1916 = vmatprep.mubr.bf16.mxu0 0
          %1917 = vmatmul.mubr.bf16.gmra.mrb[0].mxu0 %v1882
          %v1918 = vpop.f32.mrb[0].mxu0
          %v1919 = vadd.f32 %v1860, %v1918
          %v1920 = vpop.f32.mrb[0].mxu0
          %v1921 = vpop.f32.mrb[0].mxu0
          %v1922 = vpop.f32.mrb[0].mxu0
          %1923 = vdwg.mxu0
          %v1924 = vld [vmem:[%s7] sm:$0xf]
          %v1925 = vld [vmem:[%s7 + $0x4] sm:$0xf]
          %v1926 = vld [vmem:[%s7 + $0x8] sm:$0xf]
          %v1927 = vld [vmem:[%s7 + $0xc] sm:$0xf]
          %v1928 = vld [vmem:[%s13] sm:$0x1]
          %v1930 = vlaneseq
          %v1931 = vshrl.u32 %v1930, 7
          %v1932 = vsub.s32 0, %v1931
          %v1933 = vrot.slane %v1928, %v1932
          %v1939 = vunpack.c.l.b16 %v1924
          %v1940 = vunpack.c.l.b16 %v1925
          %v1941 = vunpack.c.l.b16 %v1926
          %v1942 = vunpack.c.l.b16 %v1927
          %v1943 = vpack.c.b16 %v1940, %v1939
          %v1944 = vpack.c.b16 %v1942, %v1941
          %1947 = vmatprep.subr.bf16.mxu0 0
          %1948 = vmatpush1.bf16.msra.mxu0 %v1943
          %1949 = vmatprep.subr.bf16.mxu0 0
          %1950 = vmatpush1.bf16.msra.mxu0 %v1944
          %1951 = vmatprep.subr.bf16.mxu0 0
          %1952 = vmatpush1.bf16.msra.mxu0 0
          %1953 = vmatprep.subr.bf16.mxu0 0
          %1954 = vmatpush1.bf16.msra.mxu0 0
          %1955 = vmatprep.subr.bf16.mxu0 0
          %1956 = vmatpush1.bf16.msra.mxu0 0
          %1957 = vmatprep.subr.bf16.mxu0 0
          %1958 = vmatpush1.bf16.msra.mxu0 0
          %1959 = vmatprep.subr.bf16.mxu0 0
          %1960 = vmatpush1.bf16.msra.mxu0 0
          %1961 = vmatprep.subr.bf16.mxu0 0
          %1962 = vmatpush1.bf16.msra.mxu0 0
          %1963 = vmatprep.subr.bf16.mxu0 0
          %1964 = vmatpush1.bf16.msra.mxu0 0
          %1965 = vmatprep.subr.bf16.mxu0 0
          %1966 = vmatpush1.bf16.msra.mxu0 0
          %1967 = vmatprep.subr.bf16.mxu0 0
          %1968 = vmatpush1.bf16.msra.mxu0 0
          %1969 = vmatprep.subr.bf16.mxu0 0
          %1970 = vmatpush1.bf16.msra.mxu0 0
          %1971 = vmatprep.subr.bf16.mxu0 0
          %1972 = vmatpush1.bf16.msra.mxu0 0
          %1973 = vmatprep.subr.bf16.mxu0 0
          %1974 = vmatpush1.bf16.msra.mxu0 0
          %1975 = vmatprep.subr.bf16.mxu0 0
          %1976 = vmatpush1.bf16.msra.mxu0 0
          %1977 = vmatprep.subr.bf16.mxu0 0
          %1978 = vmatpush1.bf16.msra.mxu0 0
          %1979 = vmatprep.mubr.bf16.mxu0 0
          %1980 = vmatmul.mubr.bf16.gmra.mrb[0].mxu0 %v1882
          %v1981 = vpop.f32.mrb[0].mxu0
          %v1982 = vadd.f32 %v1933, %v1981
          %v1983 = vpop.f32.mrb[0].mxu0
          %v1984 = vpop.f32.mrb[0].mxu0
          %v1985 = vpop.f32.mrb[0].mxu0
          %1986 = vdwg.mxu0
          %v1987 = vld [vmem:[%s8] sm:$0xf]
          %v1988 = vld [vmem:[%s8 + $0x4] sm:$0xf]
          %v1989 = vld [vmem:[%s8 + $0x8] sm:$0xf]
          %v1990 = vld [vmem:[%s8 + $0xc] sm:$0xf]
          %v1991 = vld [vmem:[%s14] sm:$0x1]
          %v1993 = vlaneseq
          %v1994 = vshrl.u32 %v1993, 7
          %v1995 = vsub.s32 0, %v1994
          %v1996 = vrot.slane %v1991, %v1995
          %v2002 = vunpack.c.l.b16 %v1987
          %v2003 = vunpack.c.l.b16 %v1988
          %v2004 = vunpack.c.l.b16 %v1989
          %v2005 = vunpack.c.l.b16 %v1990
          %v2006 = vpack.c.b16 %v2003, %v2002
          %v2007 = vpack.c.b16 %v2005, %v2004
          %2010 = vmatprep.subr.bf16.mxu0 0
          %2011 = vmatpush1.bf16.msra.mxu0 %v2006
          %2012 = vmatprep.subr.bf16.mxu0 0
          %2013 = vmatpush1.bf16.msra.mxu0 %v2007
          %2014 = vmatprep.subr.bf16.mxu0 0
          %2015 = vmatpush1.bf16.msra.mxu0 0
          %2016 = vmatprep.subr.bf16.mxu0 0
          %2017 = vmatpush1.bf16.msra.mxu0 0
          %2018 = vmatprep.subr.bf16.mxu0 0
          %2019 = vmatpush1.bf16.msra.mxu0 0
          %2020 = vmatprep.subr.bf16.mxu0 0
          %2021 = vmatpush1.bf16.msra.mxu0 0
          %2022 = vmatprep.subr.bf16.mxu0 0
          %2023 = vmatpush1.bf16.msra.mxu0 0
          %2024 = vmatprep.subr.bf16.mxu0 0
          %2025 = vmatpush1.bf16.msra.mxu0 0
          %2026 = vmatprep.subr.bf16.mxu0 0
          %2027 = vmatpush1.bf16.msra.mxu0 0
          %2028 = vmatprep.subr.bf16.mxu0 0
          %2029 = vmatpush1.bf16.msra.mxu0 0
          %2030 = vmatprep.subr.bf16.mxu0 0
          %2031 = vmatpush1.bf16.msra.mxu0 0
          %2032 = vmatprep.subr.bf16.mxu0 0
          %2033 = vmatpush1.bf16.msra.mxu0 0
          %2034 = vmatprep.subr.bf16.mxu0 0
          %2035 = vmatpush1.bf16.msra.mxu0 0
          %2036 = vmatprep.subr.bf16.mxu0 0
          %2037 = vmatpush1.bf16.msra.mxu0 0
          %2038 = vmatprep.subr.bf16.mxu0 0
          %2039 = vmatpush1.bf16.msra.mxu0 0
          %2040 = vmatprep.subr.bf16.mxu0 0
          %2041 = vmatpush1.bf16.msra.mxu0 0
          %2042 = vmatprep.mubr.bf16.mxu0 0
          %2043 = vmatmul.mubr.bf16.gmra.mrb[0].mxu0 %v1882
          %v2044 = vpop.f32.mrb[0].mxu0
          %v2045 = vadd.f32 %v1996, %v2044
          %v2046 = vpop.f32.mrb[0].mxu0
          %v2047 = vpop.f32.mrb[0].mxu0
          %v2048 = vpop.f32.mrb[0].mxu0
          %2049 = vdwg.mxu0
          %v2051 = vrot.slane %v1919, 6
          %v2052 = vrot.slane %v1919, 7
          %v2055 = vadd.f32 %v1201, %v2051
          %v2056 = vadd.f32 %v1204, %v2052
          %v2057 = vxor.u32 %v2055, 2147483648
          %v2058 = vxor.u32 %v2056, 2147483648
          %v2059 = vmul.f32 %v2057, 1.442695
          %v2060 = vpow.pop %v2059
          %v2061 = vmul.f32 %v2058, 1.442695
          %v2062 = vpow.pop %v2061
          %v2063 = vadd.f32 %v2060, 1.0
          %v2064 = vadd.f32 %v2062, 1.0
          %v2065 = vrcp.pop %v2063
          %v2066 = vmul.f32 1.0, %v2065
          %v2067 = vrcp.pop %v2064
          %v2068 = vmul.f32 1.0, %v2067
          %v2070 = vrot.slane %v1982, 6
          %v2071 = vrot.slane %v1982, 7
          %v2074 = vadd.f32 %v1265, %v2070
          %v2075 = vadd.f32 %v1268, %v2071
          %v2076 = vxor.u32 %v2074, 2147483648
          %v2077 = vxor.u32 %v2075, 2147483648
          %v2078 = vmul.f32 %v2076, 1.442695
          %v2079 = vpow.pop %v2078
          %v2080 = vmul.f32 %v2077, 1.442695
          %v2081 = vpow.pop %v2080
          %v2082 = vadd.f32 %v2079, 1.0
          %v2083 = vadd.f32 %v2081, 1.0
          %v2084 = vrcp.pop %v2082
          %v2085 = vmul.f32 1.0, %v2084
          %v2086 = vrcp.pop %v2083
          %v2087 = vmul.f32 1.0, %v2086
          %v2089 = vrot.slane %v2045, 6
          %v2090 = vrot.slane %v2045, 7
          %v2093 = vmul.f32 %v2066, %v2089
          %v2094 = vmul.f32 %v2068, %v2090
          %v2095 = vadd.f32 %v1329, %v2093
          %v2096 = vadd.f32 %v1332, %v2094
          %v2097 = vtanh.pop %v2095
          %v2098 = vtanh.pop %v2096
          %v2099 = vsub.f32 1.0, %v2085
          %v2100 = vsub.f32 1.0, %v2087
          %v2101 = vmul.f32 %v2099, %v2097
          %v2102 = vmul.f32 %v2100, %v2098
          %v2105 = vrot.slane %v1844, 7
          %v2106 = vrot.slane %v1845, 7
          %v2109 = vmul.f32 %v2085, %v2105
          %v2110 = vmul.f32 %v2087, %v2106
          %v2111 = vadd.f32 %v2101, %v2109
          %v2112 = vadd.f32 %v2102, %v2110
          %vm2113 = vcmask 256002
          %2114 = vst.msk [vmem:[#allocation2] sm:$0x4] %vm2113, %v2111
          %2115 = vst.msk [vmem:[#allocation2 + $0x8] sm:$0x4] %vm2113, %v2112
          %v2116 = vpack.c.bf16 %v2111, %v2111
          %v2117 = vpack.c.bf16 %v2112, %v2112
          %v2118 = vld [vmem:[%s6] sm:$0xf]
          %v2119 = vld [vmem:[%s6 + $0x4] sm:$0xf]
          %v2120 = vld [vmem:[%s6 + $0x8] sm:$0xf]
          %v2121 = vld [vmem:[%s6 + $0xc] sm:$0xf]
          %v2122 = vld [vmem:[%s12] sm:$0x1]
          %v2124 = vlaneseq
          %v2125 = vshrl.u32 %v2124, 7
          %v2126 = vsub.s32 0, %v2125
          %v2127 = vrot.slane %v2122, %v2126
          %v2131 = vunpack.c.l.b16 %v2116
          %v2132 = vunpack.c.l.b16 %v2117
          %v2133 = vrot.slane %v2131, 2
          %v2134 = vrot.slane %v2132, 1
          %v2135 = vsel %vm1602, %v2134, %v2133
          %v2136 = vpack.c.b16 %v2135, %v2135
          %v2141 = vunpack.c.l.b16 %v2118
          %v2142 = vunpack.c.l.b16 %v2119
          %v2143 = vunpack.c.l.b16 %v2120
          %v2144 = vunpack.c.l.b16 %v2121
          %v2145 = vpack.c.b16 %v2142, %v2141
          %v2146 = vpack.c.b16 %v2144, %v2143
          %v2150 = vsel %vm1162, %v2136, 0
          %2152 = vmatprep.subr.bf16.mxu0 0
          %2153 = vmatpush1.bf16.msra.mxu0 %v2145
          %2154 = vmatprep.subr.bf16.mxu0 0
          %2155 = vmatpush1.bf16.msra.mxu0 %v2146
          %2156 = vmatprep.subr.bf16.mxu0 0
          %2157 = vmatpush1.bf16.msra.mxu0 0
          %2158 = vmatprep.subr.bf16.mxu0 0
          %2159 = vmatpush1.bf16.msra.mxu0 0
          %2160 = vmatprep.subr.bf16.mxu0 0
          %2161 = vmatpush1.bf16.msra.mxu0 0
          %2162 = vmatprep.subr.bf16.mxu0 0
          %2163 = vmatpush1.bf16.msra.mxu0 0
          %2164 = vmatprep.subr.bf16.mxu0 0
          %2165 = vmatpush1.bf16.msra.mxu0 0
          %2166 = vmatprep.subr.bf16.mxu0 0
          %2167 = vmatpush1.bf16.msra.mxu0 0
          %2168 = vmatprep.subr.bf16.mxu0 0
          %2169 = vmatpush1.bf16.msra.mxu0 0
          %2170 = vmatprep.subr.bf16.mxu0 0
          %2171 = vmatpush1.bf16.msra.mxu0 0
          %2172 = vmatprep.subr.bf16.mxu0 0
          %2173 = vmatpush1.bf16.msra.mxu0 0
          %2174 = vmatprep.subr.bf16.mxu0 0
          %2175 = vmatpush1.bf16.msra.mxu0 0
          %2176 = vmatprep.subr.bf16.mxu0 0
          %2177 = vmatpush1.bf16.msra.mxu0 0
          %2178 = vmatprep.subr.bf16.mxu0 0
          %2179 = vmatpush1.bf16.msra.mxu0 0
          %2180 = vmatprep.subr.bf16.mxu0 0
          %2181 = vmatpush1.bf16.msra.mxu0 0
          %2182 = vmatprep.subr.bf16.mxu0 0
          %2183 = vmatpush1.bf16.msra.mxu0 0
          %2184 = vmatprep.mubr.bf16.mxu0 0
          %2185 = vmatmul.mubr.bf16.gmra.mrb[0].mxu0 %v2150
          %v2186 = vpop.f32.mrb[0].mxu0
          %v2187 = vadd.f32 %v2127, %v2186
          %v2188 = vpop.f32.mrb[0].mxu0
          %v2189 = vpop.f32.mrb[0].mxu0
          %v2190 = vpop.f32.mrb[0].mxu0
          %2191 = vdwg.mxu0
          %v2192 = vld [vmem:[%s7] sm:$0xf]
          %v2193 = vld [vmem:[%s7 + $0x4] sm:$0xf]
          %v2194 = vld [vmem:[%s7 + $0x8] sm:$0xf]
          %v2195 = vld [vmem:[%s7 + $0xc] sm:$0xf]
          %v2196 = vld [vmem:[%s13] sm:$0x1]
          %v2198 = vlaneseq
          %v2199 = vshrl.u32 %v2198, 7
          %v2200 = vsub.s32 0, %v2199
          %v2201 = vrot.slane %v2196, %v2200
          %v2207 = vunpack.c.l.b16 %v2192
          %v2208 = vunpack.c.l.b16 %v2193
          %v2209 = vunpack.c.l.b16 %v2194
          %v2210 = vunpack.c.l.b16 %v2195
          %v2211 = vpack.c.b16 %v2208, %v2207
          %v2212 = vpack.c.b16 %v2210, %v2209
          %2215 = vmatprep.subr.bf16.mxu0 0
          %2216 = vmatpush1.bf16.msra.mxu0 %v2211
          %2217 = vmatprep.subr.bf16.mxu0 0
          %2218 = vmatpush1.bf16.msra.mxu0 %v2212
          %2219 = vmatprep.subr.bf16.mxu0 0
          %2220 = vmatpush1.bf16.msra.mxu0 0
          %2221 = vmatprep.subr.bf16.mxu0 0
          %2222 = vmatpush1.bf16.msra.mxu0 0
          %2223 = vmatprep.subr.bf16.mxu0 0
          %2224 = vmatpush1.bf16.msra.mxu0 0
          %2225 = vmatprep.subr.bf16.mxu0 0
          %2226 = vmatpush1.bf16.msra.mxu0 0
          %2227 = vmatprep.subr.bf16.mxu0 0
          %2228 = vmatpush1.bf16.msra.mxu0 0
          %2229 = vmatprep.subr.bf16.mxu0 0
          %2230 = vmatpush1.bf16.msra.mxu0 0
          %2231 = vmatprep.subr.bf16.mxu0 0
          %2232 = vmatpush1.bf16.msra.mxu0 0
          %2233 = vmatprep.subr.bf16.mxu0 0
          %2234 = vmatpush1.bf16.msra.mxu0 0
          %2235 = vmatprep.subr.bf16.mxu0 0
          %2236 = vmatpush1.bf16.msra.mxu0 0
          %2237 = vmatprep.subr.bf16.mxu0 0
          %2238 = vmatpush1.bf16.msra.mxu0 0
          %2239 = vmatprep.subr.bf16.mxu0 0
          %2240 = vmatpush1.bf16.msra.mxu0 0
          %2241 = vmatprep.subr.bf16.mxu0 0
          %2242 = vmatpush1.bf16.msra.mxu0 0
          %2243 = vmatprep.subr.bf16.mxu0 0
          %2244 = vmatpush1.bf16.msra.mxu0 0
          %2245 = vmatprep.subr.bf16.mxu0 0
          %2246 = vmatpush1.bf16.msra.mxu0 0
          %2247 = vmatprep.mubr.bf16.mxu0 0
          %2248 = vmatmul.mubr.bf16.gmra.mrb[0].mxu0 %v2150
          %v2249 = vpop.f32.mrb[0].mxu0
          %v2250 = vadd.f32 %v2201, %v2249
          %v2251 = vpop.f32.mrb[0].mxu0
          %v2252 = vpop.f32.mrb[0].mxu0
          %v2253 = vpop.f32.mrb[0].mxu0
          %2254 = vdwg.mxu0
          %v2255 = vld [vmem:[%s8] sm:$0xf]
          %v2256 = vld [vmem:[%s8 + $0x4] sm:$0xf]
          %v2257 = vld [vmem:[%s8 + $0x8] sm:$0xf]
          %v2258 = vld [vmem:[%s8 + $0xc] sm:$0xf]
          %v2259 = vld [vmem:[%s14] sm:$0x1]
          %v2261 = vlaneseq
          %v2262 = vshrl.u32 %v2261, 7
          %v2263 = vsub.s32 0, %v2262
          %v2264 = vrot.slane %v2259, %v2263
          %v2270 = vunpack.c.l.b16 %v2255
          %v2271 = vunpack.c.l.b16 %v2256
          %v2272 = vunpack.c.l.b16 %v2257
          %v2273 = vunpack.c.l.b16 %v2258
          %v2274 = vpack.c.b16 %v2271, %v2270
          %v2275 = vpack.c.b16 %v2273, %v2272
          %2278 = vmatprep.subr.bf16.mxu0 0
          %2279 = vmatpush1.bf16.msra.mxu0 %v2274
          %2280 = vmatprep.subr.bf16.mxu0 0
          %2281 = vmatpush1.bf16.msra.mxu0 %v2275
          %2282 = vmatprep.subr.bf16.mxu0 0
          %2283 = vmatpush1.bf16.msra.mxu0 0
          %2284 = vmatprep.subr.bf16.mxu0 0
          %2285 = vmatpush1.bf16.msra.mxu0 0
          %2286 = vmatprep.subr.bf16.mxu0 0
          %2287 = vmatpush1.bf16.msra.mxu0 0
          %2288 = vmatprep.subr.bf16.mxu0 0
          %2289 = vmatpush1.bf16.msra.mxu0 0
          %2290 = vmatprep.subr.bf16.mxu0 0
          %2291 = vmatpush1.bf16.msra.mxu0 0
          %2292 = vmatprep.subr.bf16.mxu0 0
          %2293 = vmatpush1.bf16.msra.mxu0 0
          %2294 = vmatprep.subr.bf16.mxu0 0
          %2295 = vmatpush1.bf16.msra.mxu0 0
          %2296 = vmatprep.subr.bf16.mxu0 0
          %2297 = vmatpush1.bf16.msra.mxu0 0
          %2298 = vmatprep.subr.bf16.mxu0 0
          %2299 = vmatpush1.bf16.msra.mxu0 0
          %2300 = vmatprep.subr.bf16.mxu0 0
          %2301 = vmatpush1.bf16.msra.mxu0 0
          %2302 = vmatprep.subr.bf16.mxu0 0
          %2303 = vmatpush1.bf16.msra.mxu0 0
          %2304 = vmatprep.subr.bf16.mxu0 0
          %2305 = vmatpush1.bf16.msra.mxu0 0
          %2306 = vmatprep.subr.bf16.mxu0 0
          %2307 = vmatpush1.bf16.msra.mxu0 0
          %2308 = vmatprep.subr.bf16.mxu0 0
          %2309 = vmatpush1.bf16.msra.mxu0 0
          %2310 = vmatprep.mubr.bf16.mxu0 0
          %2311 = vmatmul.mubr.bf16.gmra.mrb[0].mxu0 %v2150
          %v2312 = vpop.f32.mrb[0].mxu0
          %v2313 = vadd.f32 %v2264, %v2312
          %v2314 = vpop.f32.mrb[0].mxu0
          %v2315 = vpop.f32.mrb[0].mxu0
          %v2316 = vpop.f32.mrb[0].mxu0
          %2317 = vdwg.mxu0
          %v2319 = vrot.slane %v2187, 5
          %v2320 = vrot.slane %v2187, 6
          %v2323 = vadd.f32 %v1201, %v2319
          %v2324 = vadd.f32 %v1204, %v2320
          %v2325 = vxor.u32 %v2323, 2147483648
          %v2326 = vxor.u32 %v2324, 2147483648
          %v2327 = vmul.f32 %v2325, 1.442695
          %v2328 = vpow.pop %v2327
          %v2329 = vmul.f32 %v2326, 1.442695
          %v2330 = vpow.pop %v2329
          %v2331 = vadd.f32 %v2328, 1.0
          %v2332 = vadd.f32 %v2330, 1.0
          %v2333 = vrcp.pop %v2331
          %v2334 = vmul.f32 1.0, %v2333
          %v2335 = vrcp.pop %v2332
          %v2336 = vmul.f32 1.0, %v2335
          %v2338 = vrot.slane %v2250, 5
          %v2339 = vrot.slane %v2250, 6
          %v2342 = vadd.f32 %v1265, %v2338
          %v2343 = vadd.f32 %v1268, %v2339
          %v2344 = vxor.u32 %v2342, 2147483648
          %v2345 = vxor.u32 %v2343, 2147483648
          %v2346 = vmul.f32 %v2344, 1.442695
          %v2347 = vpow.pop %v2346
          %v2348 = vmul.f32 %v2345, 1.442695
          %v2349 = vpow.pop %v2348
          %v2350 = vadd.f32 %v2347, 1.0
          %v2351 = vadd.f32 %v2349, 1.0
          %v2352 = vrcp.pop %v2350
          %v2353 = vmul.f32 1.0, %v2352
          %v2354 = vrcp.pop %v2351
          %v2355 = vmul.f32 1.0, %v2354
          %v2357 = vrot.slane %v2313, 5
          %v2358 = vrot.slane %v2313, 6
          %v2361 = vmul.f32 %v2334, %v2357
          %v2362 = vmul.f32 %v2336, %v2358
          %v2363 = vadd.f32 %v1329, %v2361
          %v2364 = vadd.f32 %v1332, %v2362
          %v2365 = vtanh.pop %v2363
          %v2366 = vtanh.pop %v2364
          %v2367 = vsub.f32 1.0, %v2353
          %v2368 = vsub.f32 1.0, %v2355
          %v2369 = vmul.f32 %v2367, %v2365
          %v2370 = vmul.f32 %v2368, %v2366
          %v2373 = vrot.slane %v2111, 7
          %v2374 = vrot.slane %v2112, 7
          %v2377 = vmul.f32 %v2353, %v2373
          %v2378 = vmul.f32 %v2355, %v2374
          %v2379 = vadd.f32 %v2369, %v2377
          %v2380 = vadd.f32 %v2370, %v2378
          %vm2381 = vcmask 257027
          %2382 = vst.msk [vmem:[#allocation2] sm:$0x8] %vm2381, %v2379
          %2383 = vst.msk [vmem:[#allocation2 + $0x8] sm:$0x8] %vm2381, %v2380
          %v2384 = vpack.c.bf16 %v2379, %v2379
          %v2385 = vpack.c.bf16 %v2380, %v2380
          %v2386 = vld [vmem:[%s6] sm:$0xf]
          %v2387 = vld [vmem:[%s6 + $0x4] sm:$0xf]
          %v2388 = vld [vmem:[%s6 + $0x8] sm:$0xf]
          %v2389 = vld [vmem:[%s6 + $0xc] sm:$0xf]
          %v2390 = vld [vmem:[%s12] sm:$0x1]
          %v2392 = vlaneseq
          %v2393 = vshrl.u32 %v2392, 7
          %v2394 = vsub.s32 0, %v2393
          %v2395 = vrot.slane %v2390, %v2394
          %v2399 = vunpack.c.l.b16 %v2384
          %v2400 = vunpack.c.l.b16 %v2385
          %v2401 = vrot.slane %v2399, 3
          %v2402 = vrot.slane %v2400, 2
          %v2403 = vsel %vm1602, %v2402, %v2401
          %v2404 = vpack.c.b16 %v2403, %v2403
          %v2409 = vunpack.c.l.b16 %v2386
          %v2410 = vunpack.c.l.b16 %v2387
          %v2411 = vunpack.c.l.b16 %v2388
          %v2412 = vunpack.c.l.b16 %v2389
          %v2413 = vpack.c.b16 %v2410, %v2409
          %v2414 = vpack.c.b16 %v2412, %v2411
          %v2418 = vsel %vm1162, %v2404, 0
          %2420 = vmatprep.subr.bf16.mxu0 0
          %2421 = vmatpush1.bf16.msra.mxu0 %v2413
          %2422 = vmatprep.subr.bf16.mxu0 0
          %2423 = vmatpush1.bf16.msra.mxu0 %v2414
          %2424 = vmatprep.subr.bf16.mxu0 0
          %2425 = vmatpush1.bf16.msra.mxu0 0
          %2426 = vmatprep.subr.bf16.mxu0 0
          %2427 = vmatpush1.bf16.msra.mxu0 0
          %2428 = vmatprep.subr.bf16.mxu0 0
          %2429 = vmatpush1.bf16.msra.mxu0 0
          %2430 = vmatprep.subr.bf16.mxu0 0
          %2431 = vmatpush1.bf16.msra.mxu0 0
          %2432 = vmatprep.subr.bf16.mxu0 0
          %2433 = vmatpush1.bf16.msra.mxu0 0
          %2434 = vmatprep.subr.bf16.mxu0 0
          %2435 = vmatpush1.bf16.msra.mxu0 0
          %2436 = vmatprep.subr.bf16.mxu0 0
          %2437 = vmatpush1.bf16.msra.mxu0 0
          %2438 = vmatprep.subr.bf16.mxu0 0
          %2439 = vmatpush1.bf16.msra.mxu0 0
          %2440 = vmatprep.subr.bf16.mxu0 0
          %2441 = vmatpush1.bf16.msra.mxu0 0
          %2442 = vmatprep.subr.bf16.mxu0 0
          %2443 = vmatpush1.bf16.msra.mxu0 0
          %2444 = vmatprep.subr.bf16.mxu0 0
          %2445 = vmatpush1.bf16.msra.mxu0 0
          %2446 = vmatprep.subr.bf16.mxu0 0
          %2447 = vmatpush1.bf16.msra.mxu0 0
          %2448 = vmatprep.subr.bf16.mxu0 0
          %2449 = vmatpush1.bf16.msra.mxu0 0
          %2450 = vmatprep.subr.bf16.mxu0 0
          %2451 = vmatpush1.bf16.msra.mxu0 0
          %2452 = vmatprep.mubr.bf16.mxu0 0
          %2453 = vmatmul.mubr.bf16.gmra.mrb[0].mxu0 %v2418
          %v2454 = vpop.f32.mrb[0].mxu0
          %v2455 = vadd.f32 %v2395, %v2454
          %v2456 = vpop.f32.mrb[0].mxu0
          %v2457 = vpop.f32.mrb[0].mxu0
          %v2458 = vpop.f32.mrb[0].mxu0
          %2459 = vdwg.mxu0
          %v2460 = vld [vmem:[%s7] sm:$0xf]
          %v2461 = vld [vmem:[%s7 + $0x4] sm:$0xf]
          %v2462 = vld [vmem:[%s7 + $0x8] sm:$0xf]
          %v2463 = vld [vmem:[%s7 + $0xc] sm:$0xf]
          %v2464 = vld [vmem:[%s13] sm:$0x1]
          %v2466 = vlaneseq
          %v2467 = vshrl.u32 %v2466, 7
          %v2468 = vsub.s32 0, %v2467
          %v2469 = vrot.slane %v2464, %v2468
          %v2475 = vunpack.c.l.b16 %v2460
          %v2476 = vunpack.c.l.b16 %v2461
          %v2477 = vunpack.c.l.b16 %v2462
          %v2478 = vunpack.c.l.b16 %v2463
          %v2479 = vpack.c.b16 %v2476, %v2475
          %v2480 = vpack.c.b16 %v2478, %v2477
          %2483 = vmatprep.subr.bf16.mxu0 0
          %2484 = vmatpush1.bf16.msra.mxu0 %v2479
          %2485 = vmatprep.subr.bf16.mxu0 0
          %2486 = vmatpush1.bf16.msra.mxu0 %v2480
          %2487 = vmatprep.subr.bf16.mxu0 0
          %2488 = vmatpush1.bf16.msra.mxu0 0
          %2489 = vmatprep.subr.bf16.mxu0 0
          %2490 = vmatpush1.bf16.msra.mxu0 0
          %2491 = vmatprep.subr.bf16.mxu0 0
          %2492 = vmatpush1.bf16.msra.mxu0 0
          %2493 = vmatprep.subr.bf16.mxu0 0
          %2494 = vmatpush1.bf16.msra.mxu0 0
          %2495 = vmatprep.subr.bf16.mxu0 0
          %2496 = vmatpush1.bf16.msra.mxu0 0
          %2497 = vmatprep.subr.bf16.mxu0 0
          %2498 = vmatpush1.bf16.msra.mxu0 0
          %2499 = vmatprep.subr.bf16.mxu0 0
          %2500 = vmatpush1.bf16.msra.mxu0 0
          %2501 = vmatprep.subr.bf16.mxu0 0
          %2502 = vmatpush1.bf16.msra.mxu0 0
          %2503 = vmatprep.subr.bf16.mxu0 0
          %2504 = vmatpush1.bf16.msra.mxu0 0
          %2505 = vmatprep.subr.bf16.mxu0 0
          %2506 = vmatpush1.bf16.msra.mxu0 0
          %2507 = vmatprep.subr.bf16.mxu0 0
          %2508 = vmatpush1.bf16.msra.mxu0 0
          %2509 = vmatprep.subr.bf16.mxu0 0
          %2510 = vmatpush1.bf16.msra.mxu0 0
          %2511 = vmatprep.subr.bf16.mxu0 0
          %2512 = vmatpush1.bf16.msra.mxu0 0
          %2513 = vmatprep.subr.bf16.mxu0 0
          %2514 = vmatpush1.bf16.msra.mxu0 0
          %2515 = vmatprep.mubr.bf16.mxu0 0
          %2516 = vmatmul.mubr.bf16.gmra.mrb[0].mxu0 %v2418
          %v2517 = vpop.f32.mrb[0].mxu0
          %v2518 = vadd.f32 %v2469, %v2517
          %v2519 = vpop.f32.mrb[0].mxu0
          %v2520 = vpop.f32.mrb[0].mxu0
          %v2521 = vpop.f32.mrb[0].mxu0
          %2522 = vdwg.mxu0
          %v2523 = vld [vmem:[%s8] sm:$0xf]
          %v2524 = vld [vmem:[%s8 + $0x4] sm:$0xf]
          %v2525 = vld [vmem:[%s8 + $0x8] sm:$0xf]
          %v2526 = vld [vmem:[%s8 + $0xc] sm:$0xf]
          %v2527 = vld [vmem:[%s14] sm:$0x1]
          %v2529 = vlaneseq
          %v2530 = vshrl.u32 %v2529, 7
          %v2531 = vsub.s32 0, %v2530
          %v2532 = vrot.slane %v2527, %v2531
          %v2538 = vunpack.c.l.b16 %v2523
          %v2539 = vunpack.c.l.b16 %v2524
          %v2540 = vunpack.c.l.b16 %v2525
          %v2541 = vunpack.c.l.b16 %v2526
          %v2542 = vpack.c.b16 %v2539, %v2538
          %v2543 = vpack.c.b16 %v2541, %v2540
          %2546 = vmatprep.subr.bf16.mxu0 0
          %2547 = vmatpush1.bf16.msra.mxu0 %v2542
          %2548 = vmatprep.subr.bf16.mxu0 0
          %2549 = vmatpush1.bf16.msra.mxu0 %v2543
          %2550 = vmatprep.subr.bf16.mxu0 0
          %2551 = vmatpush1.bf16.msra.mxu0 0
          %2552 = vmatprep.subr.bf16.mxu0 0
          %2553 = vmatpush1.bf16.msra.mxu0 0
          %2554 = vmatprep.subr.bf16.mxu0 0
          %2555 = vmatpush1.bf16.msra.mxu0 0
          %2556 = vmatprep.subr.bf16.mxu0 0
          %2557 = vmatpush1.bf16.msra.mxu0 0
          %2558 = vmatprep.subr.bf16.mxu0 0
          %2559 = vmatpush1.bf16.msra.mxu0 0
          %2560 = vmatprep.subr.bf16.mxu0 0
          %2561 = vmatpush1.bf16.msra.mxu0 0
          %2562 = vmatprep.subr.bf16.mxu0 0
          %2563 = vmatpush1.bf16.msra.mxu0 0
          %2564 = vmatprep.subr.bf16.mxu0 0
          %2565 = vmatpush1.bf16.msra.mxu0 0
          %2566 = vmatprep.subr.bf16.mxu0 0
          %2567 = vmatpush1.bf16.msra.mxu0 0
          %2568 = vmatprep.subr.bf16.mxu0 0
          %2569 = vmatpush1.bf16.msra.mxu0 0
          %2570 = vmatprep.subr.bf16.mxu0 0
          %2571 = vmatpush1.bf16.msra.mxu0 0
          %2572 = vmatprep.subr.bf16.mxu0 0
          %2573 = vmatpush1.bf16.msra.mxu0 0
          %2574 = vmatprep.subr.bf16.mxu0 0
          %2575 = vmatpush1.bf16.msra.mxu0 0
          %2576 = vmatprep.subr.bf16.mxu0 0
          %2577 = vmatpush1.bf16.msra.mxu0 0
          %2578 = vmatprep.mubr.bf16.mxu0 0
          %2579 = vmatmul.mubr.bf16.gmra.mrb[0].mxu0 %v2418
          %v2580 = vpop.f32.mrb[0].mxu0
          %v2581 = vadd.f32 %v2532, %v2580
          %v2582 = vpop.f32.mrb[0].mxu0
          %v2583 = vpop.f32.mrb[0].mxu0
          %v2584 = vpop.f32.mrb[0].mxu0
          %2585 = vdwg.mxu0
          %v2587 = vrot.slane %v2455, 4
          %v2588 = vrot.slane %v2455, 5
          %v2591 = vadd.f32 %v1201, %v2587
          %v2592 = vadd.f32 %v1204, %v2588
          %v2593 = vxor.u32 %v2591, 2147483648
          %v2594 = vxor.u32 %v2592, 2147483648
          %v2595 = vmul.f32 %v2593, 1.442695
          %v2596 = vpow.pop %v2595
          %v2597 = vmul.f32 %v2594, 1.442695
          %v2598 = vpow.pop %v2597
          %v2599 = vadd.f32 %v2596, 1.0
          %v2600 = vadd.f32 %v2598, 1.0
          %v2601 = vrcp.pop %v2599
          %v2602 = vmul.f32 1.0, %v2601
          %v2603 = vrcp.pop %v2600
          %v2604 = vmul.f32 1.0, %v2603
          %v2606 = vrot.slane %v2518, 4
          %v2607 = vrot.slane %v2518, 5
          %v2610 = vadd.f32 %v1265, %v2606
          %v2611 = vadd.f32 %v1268, %v2607
          %v2612 = vxor.u32 %v2610, 2147483648
          %v2613 = vxor.u32 %v2611, 2147483648
          %v2614 = vmul.f32 %v2612, 1.442695
          %v2615 = vpow.pop %v2614
          %v2616 = vmul.f32 %v2613, 1.442695
          %v2617 = vpow.pop %v2616
          %v2618 = vadd.f32 %v2615, 1.0
          %v2619 = vadd.f32 %v2617, 1.0
          %v2620 = vrcp.pop %v2618
          %v2621 = vmul.f32 1.0, %v2620
          %v2622 = vrcp.pop %v2619
          %v2623 = vmul.f32 1.0, %v2622
          %v2625 = vrot.slane %v2581, 4
          %v2626 = vrot.slane %v2581, 5
          %v2629 = vmul.f32 %v2602, %v2625
          %v2630 = vmul.f32 %v2604, %v2626
          %v2631 = vadd.f32 %v1329, %v2629
          %v2632 = vadd.f32 %v1332, %v2630
          %v2633 = vtanh.pop %v2631
          %v2634 = vtanh.pop %v2632
          %v2635 = vsub.f32 1.0, %v2621
          %v2636 = vsub.f32 1.0, %v2623
          %v2637 = vmul.f32 %v2635, %v2633
          %v2638 = vmul.f32 %v2636, %v2634
          %v2641 = vrot.slane %v2379, 7
          %v2642 = vrot.slane %v2380, 7
          %v2645 = vmul.f32 %v2621, %v2641
          %v2646 = vmul.f32 %v2623, %v2642
          %v2647 = vadd.f32 %v2637, %v2645
          %v2648 = vadd.f32 %v2638, %v2646
          %vm2649 = vcmask 258052
          %2650 = vst.msk [vmem:[#allocation2] sm:$0x10] %vm2649, %v2647
          %2651 = vst.msk [vmem:[#allocation2 + $0x8] sm:$0x10] %vm2649, %v2648
          %v2652 = vpack.c.bf16 %v2647, %v2647
          %v2653 = vpack.c.bf16 %v2648, %v2648
          %v2654 = vld [vmem:[%s6] sm:$0xf]
          %v2655 = vld [vmem:[%s6 + $0x4] sm:$0xf]
          %v2656 = vld [vmem:[%s6 + $0x8] sm:$0xf]
          %v2657 = vld [vmem:[%s6 + $0xc] sm:$0xf]
          %v2658 = vld [vmem:[%s12] sm:$0x1]
          %v2660 = vlaneseq
          %v2661 = vshrl.u32 %v2660, 7
          %v2662 = vsub.s32 0, %v2661
          %v2663 = vrot.slane %v2658, %v2662
          %v2667 = vunpack.c.l.b16 %v2652
          %v2668 = vunpack.c.l.b16 %v2653
          %v2669 = vrot.slane %v2667, 4
          %v2670 = vrot.slane %v2668, 3
          %v2671 = vsel %vm1602, %v2670, %v2669
          %v2672 = vpack.c.b16 %v2671, %v2671
          %v2677 = vunpack.c.l.b16 %v2654
          %v2678 = vunpack.c.l.b16 %v2655
          %v2679 = vunpack.c.l.b16 %v2656
          %v2680 = vunpack.c.l.b16 %v2657
          %v2681 = vpack.c.b16 %v2678, %v2677
          %v2682 = vpack.c.b16 %v2680, %v2679
          %v2686 = vsel %vm1162, %v2672, 0
          %2688 = vmatprep.subr.bf16.mxu0 0
          %2689 = vmatpush1.bf16.msra.mxu0 %v2681
          %2690 = vmatprep.subr.bf16.mxu0 0
          %2691 = vmatpush1.bf16.msra.mxu0 %v2682
          %2692 = vmatprep.subr.bf16.mxu0 0
          %2693 = vmatpush1.bf16.msra.mxu0 0
          %2694 = vmatprep.subr.bf16.mxu0 0
          %2695 = vmatpush1.bf16.msra.mxu0 0
          %2696 = vmatprep.subr.bf16.mxu0 0
          %2697 = vmatpush1.bf16.msra.mxu0 0
          %2698 = vmatprep.subr.bf16.mxu0 0
          %2699 = vmatpush1.bf16.msra.mxu0 0
          %2700 = vmatprep.subr.bf16.mxu0 0
          %2701 = vmatpush1.bf16.msra.mxu0 0
          %2702 = vmatprep.subr.bf16.mxu0 0
          %2703 = vmatpush1.bf16.msra.mxu0 0
          %2704 = vmatprep.subr.bf16.mxu0 0
          %2705 = vmatpush1.bf16.msra.mxu0 0
          %2706 = vmatprep.subr.bf16.mxu0 0
          %2707 = vmatpush1.bf16.msra.mxu0 0
          %2708 = vmatprep.subr.bf16.mxu0 0
          %2709 = vmatpush1.bf16.msra.mxu0 0
          %2710 = vmatprep.subr.bf16.mxu0 0
          %2711 = vmatpush1.bf16.msra.mxu0 0
          %2712 = vmatprep.subr.bf16.mxu0 0
          %2713 = vmatpush1.bf16.msra.mxu0 0
          %2714 = vmatprep.subr.bf16.mxu0 0
          %2715 = vmatpush1.bf16.msra.mxu0 0
          %2716 = vmatprep.subr.bf16.mxu0 0
          %2717 = vmatpush1.bf16.msra.mxu0 0
          %2718 = vmatprep.subr.bf16.mxu0 0
          %2719 = vmatpush1.bf16.msra.mxu0 0
          %2720 = vmatprep.mubr.bf16.mxu0 0
          %2721 = vmatmul.mubr.bf16.gmra.mrb[0].mxu0 %v2686
          %v2722 = vpop.f32.mrb[0].mxu0
          %v2723 = vadd.f32 %v2663, %v2722
          %v2724 = vpop.f32.mrb[0].mxu0
          %v2725 = vpop.f32.mrb[0].mxu0
          %v2726 = vpop.f32.mrb[0].mxu0
          %2727 = vdwg.mxu0
          %v2728 = vld [vmem:[%s7] sm:$0xf]
          %v2729 = vld [vmem:[%s7 + $0x4] sm:$0xf]
          %v2730 = vld [vmem:[%s7 + $0x8] sm:$0xf]
          %v2731 = vld [vmem:[%s7 + $0xc] sm:$0xf]
          %v2732 = vld [vmem:[%s13] sm:$0x1]
          %v2734 = vlaneseq
          %v2735 = vshrl.u32 %v2734, 7
          %v2736 = vsub.s32 0, %v2735
          %v2737 = vrot.slane %v2732, %v2736
          %v2743 = vunpack.c.l.b16 %v2728
          %v2744 = vunpack.c.l.b16 %v2729
          %v2745 = vunpack.c.l.b16 %v2730
          %v2746 = vunpack.c.l.b16 %v2731
          %v2747 = vpack.c.b16 %v2744, %v2743
          %v2748 = vpack.c.b16 %v2746, %v2745
          %2751 = vmatprep.subr.bf16.mxu0 0
          %2752 = vmatpush1.bf16.msra.mxu0 %v2747
          %2753 = vmatprep.subr.bf16.mxu0 0
          %2754 = vmatpush1.bf16.msra.mxu0 %v2748
          %2755 = vmatprep.subr.bf16.mxu0 0
          %2756 = vmatpush1.bf16.msra.mxu0 0
          %2757 = vmatprep.subr.bf16.mxu0 0
          %2758 = vmatpush1.bf16.msra.mxu0 0
          %2759 = vmatprep.subr.bf16.mxu0 0
          %2760 = vmatpush1.bf16.msra.mxu0 0
          %2761 = vmatprep.subr.bf16.mxu0 0
          %2762 = vmatpush1.bf16.msra.mxu0 0
          %2763 = vmatprep.subr.bf16.mxu0 0
          %2764 = vmatpush1.bf16.msra.mxu0 0
          %2765 = vmatprep.subr.bf16.mxu0 0
          %2766 = vmatpush1.bf16.msra.mxu0 0
          %2767 = vmatprep.subr.bf16.mxu0 0
          %2768 = vmatpush1.bf16.msra.mxu0 0
          %2769 = vmatprep.subr.bf16.mxu0 0
          %2770 = vmatpush1.bf16.msra.mxu0 0
          %2771 = vmatprep.subr.bf16.mxu0 0
          %2772 = vmatpush1.bf16.msra.mxu0 0
          %2773 = vmatprep.subr.bf16.mxu0 0
          %2774 = vmatpush1.bf16.msra.mxu0 0
          %2775 = vmatprep.subr.bf16.mxu0 0
          %2776 = vmatpush1.bf16.msra.mxu0 0
          %2777 = vmatprep.subr.bf16.mxu0 0
          %2778 = vmatpush1.bf16.msra.mxu0 0
          %2779 = vmatprep.subr.bf16.mxu0 0
          %2780 = vmatpush1.bf16.msra.mxu0 0
          %2781 = vmatprep.subr.bf16.mxu0 0
          %2782 = vmatpush1.bf16.msra.mxu0 0
          %2783 = vmatprep.mubr.bf16.mxu0 0
          %2784 = vmatmul.mubr.bf16.gmra.mrb[0].mxu0 %v2686
          %v2785 = vpop.f32.mrb[0].mxu0
          %v2786 = vadd.f32 %v2737, %v2785
          %v2787 = vpop.f32.mrb[0].mxu0
          %v2788 = vpop.f32.mrb[0].mxu0
          %v2789 = vpop.f32.mrb[0].mxu0
          %2790 = vdwg.mxu0
          %v2791 = vld [vmem:[%s8] sm:$0xf]
          %v2792 = vld [vmem:[%s8 + $0x4] sm:$0xf]
          %v2793 = vld [vmem:[%s8 + $0x8] sm:$0xf]
          %v2794 = vld [vmem:[%s8 + $0xc] sm:$0xf]
          %v2795 = vld [vmem:[%s14] sm:$0x1]
          %v2797 = vlaneseq
          %v2798 = vshrl.u32 %v2797, 7
          %v2799 = vsub.s32 0, %v2798
          %v2800 = vrot.slane %v2795, %v2799
          %v2806 = vunpack.c.l.b16 %v2791
          %v2807 = vunpack.c.l.b16 %v2792
          %v2808 = vunpack.c.l.b16 %v2793
          %v2809 = vunpack.c.l.b16 %v2794
          %v2810 = vpack.c.b16 %v2807, %v2806
          %v2811 = vpack.c.b16 %v2809, %v2808
          %2814 = vmatprep.subr.bf16.mxu0 0
          %2815 = vmatpush1.bf16.msra.mxu0 %v2810
          %2816 = vmatprep.subr.bf16.mxu0 0
          %2817 = vmatpush1.bf16.msra.mxu0 %v2811
          %2818 = vmatprep.subr.bf16.mxu0 0
          %2819 = vmatpush1.bf16.msra.mxu0 0
          %2820 = vmatprep.subr.bf16.mxu0 0
          %2821 = vmatpush1.bf16.msra.mxu0 0
          %2822 = vmatprep.subr.bf16.mxu0 0
          %2823 = vmatpush1.bf16.msra.mxu0 0
          %2824 = vmatprep.subr.bf16.mxu0 0
          %2825 = vmatpush1.bf16.msra.mxu0 0
          %2826 = vmatprep.subr.bf16.mxu0 0
          %2827 = vmatpush1.bf16.msra.mxu0 0
          %2828 = vmatprep.subr.bf16.mxu0 0
          %2829 = vmatpush1.bf16.msra.mxu0 0
          %2830 = vmatprep.subr.bf16.mxu0 0
          %2831 = vmatpush1.bf16.msra.mxu0 0
          %2832 = vmatprep.subr.bf16.mxu0 0
          %2833 = vmatpush1.bf16.msra.mxu0 0
          %2834 = vmatprep.subr.bf16.mxu0 0
          %2835 = vmatpush1.bf16.msra.mxu0 0
          %2836 = vmatprep.subr.bf16.mxu0 0
          %2837 = vmatpush1.bf16.msra.mxu0 0
          %2838 = vmatprep.subr.bf16.mxu0 0
          %2839 = vmatpush1.bf16.msra.mxu0 0
          %2840 = vmatprep.subr.bf16.mxu0 0
          %2841 = vmatpush1.bf16.msra.mxu0 0
          %2842 = vmatprep.subr.bf16.mxu0 0
          %2843 = vmatpush1.bf16.msra.mxu0 0
          %2844 = vmatprep.subr.bf16.mxu0 0
          %2845 = vmatpush1.bf16.msra.mxu0 0
          %2846 = vmatprep.mubr.bf16.mxu0 0
          %2847 = vmatmul.mubr.bf16.gmra.mrb[0].mxu0 %v2686
          %v2848 = vpop.f32.mrb[0].mxu0
          %v2849 = vadd.f32 %v2800, %v2848
          %v2850 = vpop.f32.mrb[0].mxu0
          %v2851 = vpop.f32.mrb[0].mxu0
          %v2852 = vpop.f32.mrb[0].mxu0
          %2853 = vdwg.mxu0
          %v2855 = vrot.slane %v2723, 3
          %v2856 = vrot.slane %v2723, 4
          %v2859 = vadd.f32 %v1201, %v2855
          %v2860 = vadd.f32 %v1204, %v2856
          %v2861 = vxor.u32 %v2859, 2147483648
          %v2862 = vxor.u32 %v2860, 2147483648
          %v2863 = vmul.f32 %v2861, 1.442695
          %v2864 = vpow.pop %v2863
          %v2865 = vmul.f32 %v2862, 1.442695
          %v2866 = vpow.pop %v2865
          %v2867 = vadd.f32 %v2864, 1.0
          %v2868 = vadd.f32 %v2866, 1.0
          %v2869 = vrcp.pop %v2867
          %v2870 = vmul.f32 1.0, %v2869
          %v2871 = vrcp.pop %v2868
          %v2872 = vmul.f32 1.0, %v2871
          %v2874 = vrot.slane %v2786, 3
          %v2875 = vrot.slane %v2786, 4
          %v2878 = vadd.f32 %v1265, %v2874
          %v2879 = vadd.f32 %v1268, %v2875
          %v2880 = vxor.u32 %v2878, 2147483648
          %v2881 = vxor.u32 %v2879, 2147483648
          %v2882 = vmul.f32 %v2880, 1.442695
          %v2883 = vpow.pop %v2882
          %v2884 = vmul.f32 %v2881, 1.442695
          %v2885 = vpow.pop %v2884
          %v2886 = vadd.f32 %v2883, 1.0
          %v2887 = vadd.f32 %v2885, 1.0
          %v2888 = vrcp.pop %v2886
          %v2889 = vmul.f32 1.0, %v2888
          %v2890 = vrcp.pop %v2887
          %v2891 = vmul.f32 1.0, %v2890
          %v2893 = vrot.slane %v2849, 3
          %v2894 = vrot.slane %v2849, 4
          %v2897 = vmul.f32 %v2870, %v2893
          %v2898 = vmul.f32 %v2872, %v2894
          %v2899 = vadd.f32 %v1329, %v2897
          %v2900 = vadd.f32 %v1332, %v2898
          %v2901 = vtanh.pop %v2899
          %v2902 = vtanh.pop %v2900
          %v2903 = vsub.f32 1.0, %v2889
          %v2904 = vsub.f32 1.0, %v2891
          %v2905 = vmul.f32 %v2903, %v2901
          %v2906 = vmul.f32 %v2904, %v2902
          %v2909 = vrot.slane %v2647, 7
          %v2910 = vrot.slane %v2648, 7
          %v2913 = vmul.f32 %v2889, %v2909
          %v2914 = vmul.f32 %v2891, %v2910
          %v2915 = vadd.f32 %v2905, %v2913
          %v2916 = vadd.f32 %v2906, %v2914
          %vm2917 = vcmask 259077
          %2918 = vst.msk [vmem:[#allocation2] sm:$0x20] %vm2917, %v2915
          %2919 = vst.msk [vmem:[#allocation2 + $0x8] sm:$0x20] %vm2917, %v2916
          %v2920 = vpack.c.bf16 %v2915, %v2915
          %v2921 = vpack.c.bf16 %v2916, %v2916
          %v2922 = vld [vmem:[%s6] sm:$0xf]
          %v2923 = vld [vmem:[%s6 + $0x4] sm:$0xf]
          %v2924 = vld [vmem:[%s6 + $0x8] sm:$0xf]
          %v2925 = vld [vmem:[%s6 + $0xc] sm:$0xf]
          %v2926 = vld [vmem:[%s12] sm:$0x1]
          %v2928 = vlaneseq
          %v2929 = vshrl.u32 %v2928, 7
          %v2930 = vsub.s32 0, %v2929
          %v2931 = vrot.slane %v2926, %v2930
          %v2935 = vunpack.c.l.b16 %v2920
          %v2936 = vunpack.c.l.b16 %v2921
          %v2937 = vrot.slane %v2935, 5
          %v2938 = vrot.slane %v2936, 4
          %v2939 = vsel %vm1602, %v2938, %v2937
          %v2940 = vpack.c.b16 %v2939, %v2939
          %v2945 = vunpack.c.l.b16 %v2922
          %v2946 = vunpack.c.l.b16 %v2923
          %v2947 = vunpack.c.l.b16 %v2924
          %v2948 = vunpack.c.l.b16 %v2925
          %v2949 = vpack.c.b16 %v2946, %v2945
          %v2950 = vpack.c.b16 %v2948, %v2947
          %v2954 = vsel %vm1162, %v2940, 0
          %2956 = vmatprep.subr.bf16.mxu0 0
          %2957 = vmatpush1.bf16.msra.mxu0 %v2949
          %2958 = vmatprep.subr.bf16.mxu0 0
          %2959 = vmatpush1.bf16.msra.mxu0 %v2950
          %2960 = vmatprep.subr.bf16.mxu0 0
          %2961 = vmatpush1.bf16.msra.mxu0 0
          %2962 = vmatprep.subr.bf16.mxu0 0
          %2963 = vmatpush1.bf16.msra.mxu0 0
          %2964 = vmatprep.subr.bf16.mxu0 0
          %2965 = vmatpush1.bf16.msra.mxu0 0
          %2966 = vmatprep.subr.bf16.mxu0 0
          %2967 = vmatpush1.bf16.msra.mxu0 0
          %2968 = vmatprep.subr.bf16.mxu0 0
          %2969 = vmatpush1.bf16.msra.mxu0 0
          %2970 = vmatprep.subr.bf16.mxu0 0
          %2971 = vmatpush1.bf16.msra.mxu0 0
          %2972 = vmatprep.subr.bf16.mxu0 0
          %2973 = vmatpush1.bf16.msra.mxu0 0
          %2974 = vmatprep.subr.bf16.mxu0 0
          %2975 = vmatpush1.bf16.msra.mxu0 0
          %2976 = vmatprep.subr.bf16.mxu0 0
          %2977 = vmatpush1.bf16.msra.mxu0 0
          %2978 = vmatprep.subr.bf16.mxu0 0
          %2979 = vmatpush1.bf16.msra.mxu0 0
          %2980 = vmatprep.subr.bf16.mxu0 0
          %2981 = vmatpush1.bf16.msra.mxu0 0
          %2982 = vmatprep.subr.bf16.mxu0 0
          %2983 = vmatpush1.bf16.msra.mxu0 0
          %2984 = vmatprep.subr.bf16.mxu0 0
          %2985 = vmatpush1.bf16.msra.mxu0 0
          %2986 = vmatprep.subr.bf16.mxu0 0
          %2987 = vmatpush1.bf16.msra.mxu0 0
          %2988 = vmatprep.mubr.bf16.mxu0 0
          %2989 = vmatmul.mubr.bf16.gmra.mrb[0].mxu0 %v2954
          %v2990 = vpop.f32.mrb[0].mxu0
          %v2991 = vadd.f32 %v2931, %v2990
          %v2992 = vpop.f32.mrb[0].mxu0
          %v2993 = vpop.f32.mrb[0].mxu0
          %v2994 = vpop.f32.mrb[0].mxu0
          %2995 = vdwg.mxu0
          %v2996 = vld [vmem:[%s7] sm:$0xf]
          %v2997 = vld [vmem:[%s7 + $0x4] sm:$0xf]
          %v2998 = vld [vmem:[%s7 + $0x8] sm:$0xf]
          %v2999 = vld [vmem:[%s7 + $0xc] sm:$0xf]
          %v3000 = vld [vmem:[%s13] sm:$0x1]
          %v3002 = vlaneseq
          %v3003 = vshrl.u32 %v3002, 7
          %v3004 = vsub.s32 0, %v3003
          %v3005 = vrot.slane %v3000, %v3004
          %v3011 = vunpack.c.l.b16 %v2996
          %v3012 = vunpack.c.l.b16 %v2997
          %v3013 = vunpack.c.l.b16 %v2998
          %v3014 = vunpack.c.l.b16 %v2999
          %v3015 = vpack.c.b16 %v3012, %v3011
          %v3016 = vpack.c.b16 %v3014, %v3013
          %3019 = vmatprep.subr.bf16.mxu0 0
          %3020 = vmatpush1.bf16.msra.mxu0 %v3015
          %3021 = vmatprep.subr.bf16.mxu0 0
          %3022 = vmatpush1.bf16.msra.mxu0 %v3016
          %3023 = vmatprep.subr.bf16.mxu0 0
          %3024 = vmatpush1.bf16.msra.mxu0 0
          %3025 = vmatprep.subr.bf16.mxu0 0
          %3026 = vmatpush1.bf16.msra.mxu0 0
          %3027 = vmatprep.subr.bf16.mxu0 0
          %3028 = vmatpush1.bf16.msra.mxu0 0
          %3029 = vmatprep.subr.bf16.mxu0 0
          %3030 = vmatpush1.bf16.msra.mxu0 0
          %3031 = vmatprep.subr.bf16.mxu0 0
          %3032 = vmatpush1.bf16.msra.mxu0 0
          %3033 = vmatprep.subr.bf16.mxu0 0
          %3034 = vmatpush1.bf16.msra.mxu0 0
          %3035 = vmatprep.subr.bf16.mxu0 0
          %3036 = vmatpush1.bf16.msra.mxu0 0
          %3037 = vmatprep.subr.bf16.mxu0 0
          %3038 = vmatpush1.bf16.msra.mxu0 0
          %3039 = vmatprep.subr.bf16.mxu0 0
          %3040 = vmatpush1.bf16.msra.mxu0 0
          %3041 = vmatprep.subr.bf16.mxu0 0
          %3042 = vmatpush1.bf16.msra.mxu0 0
          %3043 = vmatprep.subr.bf16.mxu0 0
          %3044 = vmatpush1.bf16.msra.mxu0 0
          %3045 = vmatprep.subr.bf16.mxu0 0
          %3046 = vmatpush1.bf16.msra.mxu0 0
          %3047 = vmatprep.subr.bf16.mxu0 0
          %3048 = vmatpush1.bf16.msra.mxu0 0
          %3049 = vmatprep.subr.bf16.mxu0 0
          %3050 = vmatpush1.bf16.msra.mxu0 0
          %3051 = vmatprep.mubr.bf16.mxu0 0
          %3052 = vmatmul.mubr.bf16.gmra.mrb[0].mxu0 %v2954
          %v3053 = vpop.f32.mrb[0].mxu0
          %v3054 = vadd.f32 %v3005, %v3053
          %v3055 = vpop.f32.mrb[0].mxu0
          %v3056 = vpop.f32.mrb[0].mxu0
          %v3057 = vpop.f32.mrb[0].mxu0
          %3058 = vdwg.mxu0
          %v3059 = vld [vmem:[%s8] sm:$0xf]
          %v3060 = vld [vmem:[%s8 + $0x4] sm:$0xf]
          %v3061 = vld [vmem:[%s8 + $0x8] sm:$0xf]
          %v3062 = vld [vmem:[%s8 + $0xc] sm:$0xf]
          %v3063 = vld [vmem:[%s14] sm:$0x1]
          %v3065 = vlaneseq
          %v3066 = vshrl.u32 %v3065, 7
          %v3067 = vsub.s32 0, %v3066
          %v3068 = vrot.slane %v3063, %v3067
          %v3074 = vunpack.c.l.b16 %v3059
          %v3075 = vunpack.c.l.b16 %v3060
          %v3076 = vunpack.c.l.b16 %v3061
          %v3077 = vunpack.c.l.b16 %v3062
          %v3078 = vpack.c.b16 %v3075, %v3074
          %v3079 = vpack.c.b16 %v3077, %v3076
          %3082 = vmatprep.subr.bf16.mxu0 0
          %3083 = vmatpush1.bf16.msra.mxu0 %v3078
          %3084 = vmatprep.subr.bf16.mxu0 0
          %3085 = vmatpush1.bf16.msra.mxu0 %v3079
          %3086 = vmatprep.subr.bf16.mxu0 0
          %3087 = vmatpush1.bf16.msra.mxu0 0
          %3088 = vmatprep.subr.bf16.mxu0 0
          %3089 = vmatpush1.bf16.msra.mxu0 0
          %3090 = vmatprep.subr.bf16.mxu0 0
          %3091 = vmatpush1.bf16.msra.mxu0 0
          %3092 = vmatprep.subr.bf16.mxu0 0
          %3093 = vmatpush1.bf16.msra.mxu0 0
          %3094 = vmatprep.subr.bf16.mxu0 0
          %3095 = vmatpush1.bf16.msra.mxu0 0
          %3096 = vmatprep.subr.bf16.mxu0 0
          %3097 = vmatpush1.bf16.msra.mxu0 0
          %3098 = vmatprep.subr.bf16.mxu0 0
          %3099 = vmatpush1.bf16.msra.mxu0 0
          %3100 = vmatprep.subr.bf16.mxu0 0
          %3101 = vmatpush1.bf16.msra.mxu0 0
          %3102 = vmatprep.subr.bf16.mxu0 0
          %3103 = vmatpush1.bf16.msra.mxu0 0
          %3104 = vmatprep.subr.bf16.mxu0 0
          %3105 = vmatpush1.bf16.msra.mxu0 0
          %3106 = vmatprep.subr.bf16.mxu0 0
          %3107 = vmatpush1.bf16.msra.mxu0 0
          %3108 = vmatprep.subr.bf16.mxu0 0
          %3109 = vmatpush1.bf16.msra.mxu0 0
          %3110 = vmatprep.subr.bf16.mxu0 0
          %3111 = vmatpush1.bf16.msra.mxu0 0
          %3112 = vmatprep.subr.bf16.mxu0 0
          %3113 = vmatpush1.bf16.msra.mxu0 0
          %3114 = vmatprep.mubr.bf16.mxu0 0
          %3115 = vmatmul.mubr.bf16.gmra.mrb[0].mxu0 %v2954
          %v3116 = vpop.f32.mrb[0].mxu0
          %v3117 = vadd.f32 %v3068, %v3116
          %v3118 = vpop.f32.mrb[0].mxu0
          %v3119 = vpop.f32.mrb[0].mxu0
          %v3120 = vpop.f32.mrb[0].mxu0
          %3121 = vdwg.mxu0
          %v3123 = vrot.slane %v2991, 2
          %v3124 = vrot.slane %v2991, 3
          %v3127 = vadd.f32 %v1201, %v3123
          %v3128 = vadd.f32 %v1204, %v3124
          %v3129 = vxor.u32 %v3127, 2147483648
          %v3130 = vxor.u32 %v3128, 2147483648
          %v3131 = vmul.f32 %v3129, 1.442695
          %v3132 = vpow.pop %v3131
          %v3133 = vmul.f32 %v3130, 1.442695
          %v3134 = vpow.pop %v3133
          %v3135 = vadd.f32 %v3132, 1.0
          %v3136 = vadd.f32 %v3134, 1.0
          %v3137 = vrcp.pop %v3135
          %v3138 = vmul.f32 1.0, %v3137
          %v3139 = vrcp.pop %v3136
          %v3140 = vmul.f32 1.0, %v3139
          %v3142 = vrot.slane %v3054, 2
          %v3143 = vrot.slane %v3054, 3
          %v3146 = vadd.f32 %v1265, %v3142
          %v3147 = vadd.f32 %v1268, %v3143
          %v3148 = vxor.u32 %v3146, 2147483648
          %v3149 = vxor.u32 %v3147, 2147483648
          %v3150 = vmul.f32 %v3148, 1.442695
          %v3151 = vpow.pop %v3150
          %v3152 = vmul.f32 %v3149, 1.442695
          %v3153 = vpow.pop %v3152
          %v3154 = vadd.f32 %v3151, 1.0
          %v3155 = vadd.f32 %v3153, 1.0
          %v3156 = vrcp.pop %v3154
          %v3157 = vmul.f32 1.0, %v3156
          %v3158 = vrcp.pop %v3155
          %v3159 = vmul.f32 1.0, %v3158
          %v3161 = vrot.slane %v3117, 2
          %v3162 = vrot.slane %v3117, 3
          %v3165 = vmul.f32 %v3138, %v3161
          %v3166 = vmul.f32 %v3140, %v3162
          %v3167 = vadd.f32 %v1329, %v3165
          %v3168 = vadd.f32 %v1332, %v3166
          %v3169 = vtanh.pop %v3167
          %v3170 = vtanh.pop %v3168
          %v3171 = vsub.f32 1.0, %v3157
          %v3172 = vsub.f32 1.0, %v3159
          %v3173 = vmul.f32 %v3171, %v3169
          %v3174 = vmul.f32 %v3172, %v3170
          %v3177 = vrot.slane %v2915, 7
          %v3178 = vrot.slane %v2916, 7
          %v3181 = vmul.f32 %v3157, %v3177
          %v3182 = vmul.f32 %v3159, %v3178
          %v3183 = vadd.f32 %v3173, %v3181
          %v3184 = vadd.f32 %v3174, %v3182
          %vm3185 = vcmask 260102
          %3186 = vst.msk [vmem:[#allocation2] sm:$0x40] %vm3185, %v3183
          %3187 = vst.msk [vmem:[#allocation2 + $0x8] sm:$0x40] %vm3185, %v3184
          %v3188 = vpack.c.bf16 %v3183, %v3183
          %v3189 = vpack.c.bf16 %v3184, %v3184
          %v3190 = vld [vmem:[%s6] sm:$0xf]
          %v3191 = vld [vmem:[%s6 + $0x4] sm:$0xf]
          %v3192 = vld [vmem:[%s6 + $0x8] sm:$0xf]
          %v3193 = vld [vmem:[%s6 + $0xc] sm:$0xf]
          %v3194 = vld [vmem:[%s12] sm:$0x1]
          %v3196 = vlaneseq
          %v3197 = vshrl.u32 %v3196, 7
          %v3198 = vsub.s32 0, %v3197
          %v3199 = vrot.slane %v3194, %v3198
          %v3203 = vunpack.c.l.b16 %v3188
          %v3204 = vunpack.c.l.b16 %v3189
          %v3205 = vrot.slane %v3203, 6
          %v3206 = vrot.slane %v3204, 5
          %v3207 = vsel %vm1602, %v3206, %v3205
          %v3208 = vpack.c.b16 %v3207, %v3207
          %v3213 = vunpack.c.l.b16 %v3190
          %v3214 = vunpack.c.l.b16 %v3191
          %v3215 = vunpack.c.l.b16 %v3192
          %v3216 = vunpack.c.l.b16 %v3193
          %v3217 = vpack.c.b16 %v3214, %v3213
          %v3218 = vpack.c.b16 %v3216, %v3215
          %v3222 = vsel %vm1162, %v3208, 0
          %3224 = vmatprep.subr.bf16.mxu0 0
          %3225 = vmatpush1.bf16.msra.mxu0 %v3217
          %3226 = vmatprep.subr.bf16.mxu0 0
          %3227 = vmatpush1.bf16.msra.mxu0 %v3218
          %3228 = vmatprep.subr.bf16.mxu0 0
          %3229 = vmatpush1.bf16.msra.mxu0 0
          %3230 = vmatprep.subr.bf16.mxu0 0
          %3231 = vmatpush1.bf16.msra.mxu0 0
          %3232 = vmatprep.subr.bf16.mxu0 0
          %3233 = vmatpush1.bf16.msra.mxu0 0
          %3234 = vmatprep.subr.bf16.mxu0 0
          %3235 = vmatpush1.bf16.msra.mxu0 0
          %3236 = vmatprep.subr.bf16.mxu0 0
          %3237 = vmatpush1.bf16.msra.mxu0 0
          %3238 = vmatprep.subr.bf16.mxu0 0
          %3239 = vmatpush1.bf16.msra.mxu0 0
          %3240 = vmatprep.subr.bf16.mxu0 0
          %3241 = vmatpush1.bf16.msra.mxu0 0
          %3242 = vmatprep.subr.bf16.mxu0 0
          %3243 = vmatpush1.bf16.msra.mxu0 0
          %3244 = vmatprep.subr.bf16.mxu0 0
          %3245 = vmatpush1.bf16.msra.mxu0 0
          %3246 = vmatprep.subr.bf16.mxu0 0
          %3247 = vmatpush1.bf16.msra.mxu0 0
          %3248 = vmatprep.subr.bf16.mxu0 0
          %3249 = vmatpush1.bf16.msra.mxu0 0
          %3250 = vmatprep.subr.bf16.mxu0 0
          %3251 = vmatpush1.bf16.msra.mxu0 0
          %3252 = vmatprep.subr.bf16.mxu0 0
          %3253 = vmatpush1.bf16.msra.mxu0 0
          %3254 = vmatprep.subr.bf16.mxu0 0
          %3255 = vmatpush1.bf16.msra.mxu0 0
          %3256 = vmatprep.mubr.bf16.mxu0 0
          %3257 = vmatmul.mubr.bf16.gmra.mrb[0].mxu0 %v3222
          %v3258 = vpop.f32.mrb[0].mxu0
          %v3259 = vadd.f32 %v3199, %v3258
          %v3260 = vpop.f32.mrb[0].mxu0
          %v3261 = vpop.f32.mrb[0].mxu0
          %v3262 = vpop.f32.mrb[0].mxu0
          %3263 = vdwg.mxu0
          %v3264 = vld [vmem:[%s7] sm:$0xf]
          %v3265 = vld [vmem:[%s7 + $0x4] sm:$0xf]
          %v3266 = vld [vmem:[%s7 + $0x8] sm:$0xf]
          %v3267 = vld [vmem:[%s7 + $0xc] sm:$0xf]
          %v3268 = vld [vmem:[%s13] sm:$0x1]
          %v3270 = vlaneseq
          %v3271 = vshrl.u32 %v3270, 7
          %v3272 = vsub.s32 0, %v3271
          %v3273 = vrot.slane %v3268, %v3272
          %v3279 = vunpack.c.l.b16 %v3264
          %v3280 = vunpack.c.l.b16 %v3265
          %v3281 = vunpack.c.l.b16 %v3266
          %v3282 = vunpack.c.l.b16 %v3267
          %v3283 = vpack.c.b16 %v3280, %v3279
          %v3284 = vpack.c.b16 %v3282, %v3281
          %3287 = vmatprep.subr.bf16.mxu0 0
          %3288 = vmatpush1.bf16.msra.mxu0 %v3283
          %3289 = vmatprep.subr.bf16.mxu0 0
          %3290 = vmatpush1.bf16.msra.mxu0 %v3284
          %3291 = vmatprep.subr.bf16.mxu0 0
          %3292 = vmatpush1.bf16.msra.mxu0 0
          %3293 = vmatprep.subr.bf16.mxu0 0
          %3294 = vmatpush1.bf16.msra.mxu0 0
          %3295 = vmatprep.subr.bf16.mxu0 0
          %3296 = vmatpush1.bf16.msra.mxu0 0
          %3297 = vmatprep.subr.bf16.mxu0 0
          %3298 = vmatpush1.bf16.msra.mxu0 0
          %3299 = vmatprep.subr.bf16.mxu0 0
          %3300 = vmatpush1.bf16.msra.mxu0 0
          %3301 = vmatprep.subr.bf16.mxu0 0
          %3302 = vmatpush1.bf16.msra.mxu0 0
          %3303 = vmatprep.subr.bf16.mxu0 0
          %3304 = vmatpush1.bf16.msra.mxu0 0
          %3305 = vmatprep.subr.bf16.mxu0 0
          %3306 = vmatpush1.bf16.msra.mxu0 0
          %3307 = vmatprep.subr.bf16.mxu0 0
          %3308 = vmatpush1.bf16.msra.mxu0 0
          %3309 = vmatprep.subr.bf16.mxu0 0
          %3310 = vmatpush1.bf16.msra.mxu0 0
          %3311 = vmatprep.subr.bf16.mxu0 0
          %3312 = vmatpush1.bf16.msra.mxu0 0
          %3313 = vmatprep.subr.bf16.mxu0 0
          %3314 = vmatpush1.bf16.msra.mxu0 0
          %3315 = vmatprep.subr.bf16.mxu0 0
          %3316 = vmatpush1.bf16.msra.mxu0 0
          %3317 = vmatprep.subr.bf16.mxu0 0
          %3318 = vmatpush1.bf16.msra.mxu0 0
          %3319 = vmatprep.mubr.bf16.mxu0 0
          %3320 = vmatmul.mubr.bf16.gmra.mrb[0].mxu0 %v3222
          %v3321 = vpop.f32.mrb[0].mxu0
          %v3322 = vadd.f32 %v3273, %v3321
          %v3323 = vpop.f32.mrb[0].mxu0
          %v3324 = vpop.f32.mrb[0].mxu0
          %v3325 = vpop.f32.mrb[0].mxu0
          %3326 = vdwg.mxu0
          %v3327 = vld [vmem:[%s8] sm:$0xf]
          %v3328 = vld [vmem:[%s8 + $0x4] sm:$0xf]
          %v3329 = vld [vmem:[%s8 + $0x8] sm:$0xf]
          %v3330 = vld [vmem:[%s8 + $0xc] sm:$0xf]
          %v3331 = vld [vmem:[%s14] sm:$0x1]
          %v3333 = vlaneseq
          %v3334 = vshrl.u32 %v3333, 7
          %v3335 = vsub.s32 0, %v3334
          %v3336 = vrot.slane %v3331, %v3335
          %v3342 = vunpack.c.l.b16 %v3327
          %v3343 = vunpack.c.l.b16 %v3328
          %v3344 = vunpack.c.l.b16 %v3329
          %v3345 = vunpack.c.l.b16 %v3330
          %v3346 = vpack.c.b16 %v3343, %v3342
          %v3347 = vpack.c.b16 %v3345, %v3344
          %3350 = vmatprep.subr.bf16.mxu0 0
          %3351 = vmatpush1.bf16.msra.mxu0 %v3346
          %3352 = vmatprep.subr.bf16.mxu0 0
          %3353 = vmatpush1.bf16.msra.mxu0 %v3347
          %3354 = vmatprep.subr.bf16.mxu0 0
          %3355 = vmatpush1.bf16.msra.mxu0 0
          %3356 = vmatprep.subr.bf16.mxu0 0
          %3357 = vmatpush1.bf16.msra.mxu0 0
          %3358 = vmatprep.subr.bf16.mxu0 0
          %3359 = vmatpush1.bf16.msra.mxu0 0
          %3360 = vmatprep.subr.bf16.mxu0 0
          %3361 = vmatpush1.bf16.msra.mxu0 0
          %3362 = vmatprep.subr.bf16.mxu0 0
          %3363 = vmatpush1.bf16.msra.mxu0 0
          %3364 = vmatprep.subr.bf16.mxu0 0
          %3365 = vmatpush1.bf16.msra.mxu0 0
          %3366 = vmatprep.subr.bf16.mxu0 0
          %3367 = vmatpush1.bf16.msra.mxu0 0
          %3368 = vmatprep.subr.bf16.mxu0 0
          %3369 = vmatpush1.bf16.msra.mxu0 0
          %3370 = vmatprep.subr.bf16.mxu0 0
          %3371 = vmatpush1.bf16.msra.mxu0 0
          %3372 = vmatprep.subr.bf16.mxu0 0
          %3373 = vmatpush1.bf16.msra.mxu0 0
          %3374 = vmatprep.subr.bf16.mxu0 0
          %3375 = vmatpush1.bf16.msra.mxu0 0
          %3376 = vmatprep.subr.bf16.mxu0 0
          %3377 = vmatpush1.bf16.msra.mxu0 0
          %3378 = vmatprep.subr.bf16.mxu0 0
          %3379 = vmatpush1.bf16.msra.mxu0 0
          %3380 = vmatprep.subr.bf16.mxu0 0
          %3381 = vmatpush1.bf16.msra.mxu0 0
          %3382 = vmatprep.mubr.bf16.mxu0 0
          %3383 = vmatmul.mubr.bf16.gmra.mrb[0].mxu0 %v3222
          %v3384 = vpop.f32.mrb[0].mxu0
          %v3385 = vadd.f32 %v3336, %v3384
          %v3386 = vpop.f32.mrb[0].mxu0
          %v3387 = vpop.f32.mrb[0].mxu0
          %v3388 = vpop.f32.mrb[0].mxu0
          %3389 = vdwg.mxu0
          %v3391 = vrot.slane %v3259, 1
          %v3392 = vrot.slane %v3259, 2
          %v3395 = vadd.f32 %v1201, %v3391
          %v3396 = vadd.f32 %v1204, %v3392
          %v3397 = vxor.u32 %v3395, 2147483648
          %v3398 = vxor.u32 %v3396, 2147483648
          %v3399 = vmul.f32 %v3397, 1.442695
          %v3400 = vpow.pop %v3399
          %v3401 = vmul.f32 %v3398, 1.442695
          %v3402 = vpow.pop %v3401
          %v3403 = vadd.f32 %v3400, 1.0
          %v3404 = vadd.f32 %v3402, 1.0
          %v3405 = vrcp.pop %v3403
          %v3406 = vmul.f32 1.0, %v3405
          %v3407 = vrcp.pop %v3404
          %v3408 = vmul.f32 1.0, %v3407
          %v3410 = vrot.slane %v3322, 1
          %v3411 = vrot.slane %v3322, 2
          %v3414 = vadd.f32 %v1265, %v3410
          %v3415 = vadd.f32 %v1268, %v3411
          %v3416 = vxor.u32 %v3414, 2147483648
          %v3417 = vxor.u32 %v3415, 2147483648
          %v3418 = vmul.f32 %v3416, 1.442695
          %v3419 = vpow.pop %v3418
          %v3420 = vmul.f32 %v3417, 1.442695
          %v3421 = vpow.pop %v3420
          %v3422 = vadd.f32 %v3419, 1.0
          %v3423 = vadd.f32 %v3421, 1.0
          %v3424 = vrcp.pop %v3422
          %v3425 = vmul.f32 1.0, %v3424
          %v3426 = vrcp.pop %v3423
          %v3427 = vmul.f32 1.0, %v3426
          %v3429 = vrot.slane %v3385, 1
          %v3430 = vrot.slane %v3385, 2
          %v3433 = vmul.f32 %v3406, %v3429
          %v3434 = vmul.f32 %v3408, %v3430
          %v3435 = vadd.f32 %v1329, %v3433
          %v3436 = vadd.f32 %v1332, %v3434
          %v3437 = vtanh.pop %v3435
          %v3438 = vtanh.pop %v3436
          %v3439 = vsub.f32 1.0, %v3425
          %v3440 = vsub.f32 1.0, %v3427
          %v3441 = vmul.f32 %v3439, %v3437
          %v3442 = vmul.f32 %v3440, %v3438
          %v3445 = vrot.slane %v3183, 7
          %v3446 = vrot.slane %v3184, 7
          %v3449 = vmul.f32 %v3425, %v3445
          %v3450 = vmul.f32 %v3427, %v3446
          %v3451 = vadd.f32 %v3441, %v3449
          %v3452 = vadd.f32 %v3442, %v3450
          %vm3453 = vcmask 261127
          %3454 = vst.msk [vmem:[#allocation2] sm:$0x80] %vm3453, %v3451
          %3455 = vst.msk [vmem:[#allocation2 + $0x8] sm:$0x80] %vm3453, %v3452
          %v3456 = vld [vmem:[#allocation2] sm:$0xff]
          %v3457 = vld [vmem:[#allocation2 + $0x8] sm:$0xff]
          %v3458 = vld [vmem:[%s1] sm:$0xff]
          %v3459 = vld [vmem:[%s1 + $0x8] sm:$0xff]
          %v3460 = vpack.c.bf16 %v3458, %v3458
          %v3461 = vpack.c.bf16 %v3459, %v3459
          %v3462 = vld [vmem:[%s2] sm:$0xff]
          %v3463 = vld [vmem:[%s2 + $0x8] sm:$0xff]
          %v3464 = vpack.c.bf16 %v3462, %v3462
          %v3465 = vpack.c.bf16 %v3463, %v3463
          %v3466 = vld [vmem:[%s15] sm:$0xf]
          %v3467 = vld [vmem:[%s15 + $0x4] sm:$0xf]
          %v3468 = vld [vmem:[%s15 + $0x8] sm:$0xf]
          %v3469 = vld [vmem:[%s15 + $0xc] sm:$0xf]
          %v3470 = vld [vmem:[%s16] sm:$0x1]
          %v3472 = vlaneseq
          %v3473 = vshrl.u32 %v3472, 7
          %v3474 = vsub.s32 0, %v3473
          %v3475 = vrot.slane %v3470, %v3474
          %v3479 = vunpack.c.l.b16 %v3460
          %v3480 = vunpack.c.l.b16 %v3461
          %v3481 = vpack.c.b16 %v3480, %v3479
          %v3486 = vunpack.c.l.b16 %v3466
          %v3487 = vunpack.c.l.b16 %v3467
          %v3488 = vunpack.c.l.b16 %v3468
          %v3489 = vunpack.c.l.b16 %v3469
          %v3490 = vpack.c.b16 %v3487, %v3486
          %v3491 = vpack.c.b16 %v3489, %v3488
          %v3495 = vsel %vm1162, %v3481, 0
          %3497 = vmatprep.subr.bf16.mxu0 0
          %3498 = vmatpush1.bf16.msra.mxu0 %v3490
          %3499 = vmatprep.subr.bf16.mxu0 0
          %3500 = vmatpush1.bf16.msra.mxu0 %v3491
          %3501 = vmatprep.subr.bf16.mxu0 0
          %3502 = vmatpush1.bf16.msra.mxu0 0
          %3503 = vmatprep.subr.bf16.mxu0 0
          %3504 = vmatpush1.bf16.msra.mxu0 0
          %3505 = vmatprep.subr.bf16.mxu0 0
          %3506 = vmatpush1.bf16.msra.mxu0 0
          %3507 = vmatprep.subr.bf16.mxu0 0
          %3508 = vmatpush1.bf16.msra.mxu0 0
          %3509 = vmatprep.subr.bf16.mxu0 0
          %3510 = vmatpush1.bf16.msra.mxu0 0
          %3511 = vmatprep.subr.bf16.mxu0 0
          %3512 = vmatpush1.bf16.msra.mxu0 0
          %3513 = vmatprep.subr.bf16.mxu0 0
          %3514 = vmatpush1.bf16.msra.mxu0 0
          %3515 = vmatprep.subr.bf16.mxu0 0
          %3516 = vmatpush1.bf16.msra.mxu0 0
          %3517 = vmatprep.subr.bf16.mxu0 0
          %3518 = vmatpush1.bf16.msra.mxu0 0
          %3519 = vmatprep.subr.bf16.mxu0 0
          %3520 = vmatpush1.bf16.msra.mxu0 0
          %3521 = vmatprep.subr.bf16.mxu0 0
          %3522 = vmatpush1.bf16.msra.mxu0 0
          %3523 = vmatprep.subr.bf16.mxu0 0
          %3524 = vmatpush1.bf16.msra.mxu0 0
          %3525 = vmatprep.subr.bf16.mxu0 0
          %3526 = vmatpush1.bf16.msra.mxu0 0
          %3527 = vmatprep.subr.bf16.mxu0 0
          %3528 = vmatpush1.bf16.msra.mxu0 0
          %3529 = vmatprep.mubr.bf16.mxu0 0
          %3530 = vmatmul.mubr.bf16.gmra.mrb[0].mxu0 %v3495
          %v3531 = vpop.f32.mrb[0].mxu0
          %v3532 = vadd.f32 %v3475, %v3531
          %v3533 = vpop.f32.mrb[0].mxu0
          %v3534 = vpop.f32.mrb[0].mxu0
          %v3535 = vadd.f32 %v3475, %v3534
          %v3536 = vpop.f32.mrb[0].mxu0
          %3537 = vdwg.mxu0
          %v3538 = vtanh.pop %v3532
          %v3539 = vtanh.pop %v3535
          %v3540 = vld [vmem:[%s17] sm:$0xf]
          %v3541 = vld [vmem:[%s17 + $0x4] sm:$0xf]
          %v3542 = vld [vmem:[%s17 + $0x8] sm:$0xf]
          %v3543 = vld [vmem:[%s17 + $0xc] sm:$0xf]
          %v3544 = vld [vmem:[%s18] sm:$0x1]
          %v3546 = vlaneseq
          %v3547 = vshrl.u32 %v3546, 7
          %v3548 = vsub.s32 0, %v3547
          %v3549 = vrot.slane %v3544, %v3548
          %v3553 = vunpack.c.l.b16 %v3464
          %v3554 = vunpack.c.l.b16 %v3465
          %v3555 = vpack.c.b16 %v3554, %v3553
          %v3560 = vunpack.c.l.b16 %v3540
          %v3561 = vunpack.c.l.b16 %v3541
          %v3562 = vunpack.c.l.b16 %v3542
          %v3563 = vunpack.c.l.b16 %v3543
          %v3564 = vpack.c.b16 %v3561, %v3560
          %v3565 = vpack.c.b16 %v3563, %v3562
          %v3569 = vsel %vm1162, %v3555, 0
          %3571 = vmatprep.subr.bf16.mxu0 0
          %3572 = vmatpush1.bf16.msra.mxu0 %v3564
          %3573 = vmatprep.subr.bf16.mxu0 0
          %3574 = vmatpush1.bf16.msra.mxu0 %v3565
          %3575 = vmatprep.subr.bf16.mxu0 0
          %3576 = vmatpush1.bf16.msra.mxu0 0
          %3577 = vmatprep.subr.bf16.mxu0 0
          %3578 = vmatpush1.bf16.msra.mxu0 0
          %3579 = vmatprep.subr.bf16.mxu0 0
          %3580 = vmatpush1.bf16.msra.mxu0 0
          %3581 = vmatprep.subr.bf16.mxu0 0
          %3582 = vmatpush1.bf16.msra.mxu0 0
          %3583 = vmatprep.subr.bf16.mxu0 0
          %3584 = vmatpush1.bf16.msra.mxu0 0
          %3585 = vmatprep.subr.bf16.mxu0 0
          %3586 = vmatpush1.bf16.msra.mxu0 0
          %3587 = vmatprep.subr.bf16.mxu0 0
          %3588 = vmatpush1.bf16.msra.mxu0 0
          %3589 = vmatprep.subr.bf16.mxu0 0
          %3590 = vmatpush1.bf16.msra.mxu0 0
          %3591 = vmatprep.subr.bf16.mxu0 0
          %3592 = vmatpush1.bf16.msra.mxu0 0
          %3593 = vmatprep.subr.bf16.mxu0 0
          %3594 = vmatpush1.bf16.msra.mxu0 0
          %3595 = vmatprep.subr.bf16.mxu0 0
          %3596 = vmatpush1.bf16.msra.mxu0 0
          %3597 = vmatprep.subr.bf16.mxu0 0
          %3598 = vmatpush1.bf16.msra.mxu0 0
          %3599 = vmatprep.subr.bf16.mxu0 0
          %3600 = vmatpush1.bf16.msra.mxu0 0
          %3601 = vmatprep.subr.bf16.mxu0 0
          %3602 = vmatpush1.bf16.msra.mxu0 0
          %3603 = vmatprep.mubr.bf16.mxu0 0
          %3604 = vmatmul.mubr.bf16.gmra.mrb[0].mxu0 %v3569
          %v3605 = vpop.f32.mrb[0].mxu0
          %v3606 = vadd.f32 %v3549, %v3605
          %v3607 = vpop.f32.mrb[0].mxu0
          %v3608 = vpop.f32.mrb[0].mxu0
          %v3609 = vadd.f32 %v3549, %v3608
          %v3610 = vpop.f32.mrb[0].mxu0
          %3611 = vdwg.mxu0
          %v3612 = vtanh.pop %v3606
          %v3613 = vtanh.pop %v3609
          %v3614 = vlaneseq
          %v3615 = vshrl.u32 %v3614, 7
          %v3616 = vsub.s32 7, %v3615
          %v3617 = vrot.slane %v3451, %v3616
          %v3618 = vlaneseq
          %v3619 = vshrl.u32 %v3618, 7
          %v3620 = vsub.s32 7, %v3619
          %v3621 = vrot.slane %v3452, %v3620
          %v3622 = vmul.f32 %v3456, %v3617
          %v3623 = vmul.f32 %v3457, %v3621
          %v3624 = vsel %vm1162, %v3622, 0.0
          %3625 = vadd.xlane.f32.xlu0 %v3624
          %v3626 = vpop.xlane.xlu0 %3625
          %v3627 = vsel %vm1162, %v3623, 0.0
          %3628 = vadd.xlane.f32.xlu0 %v3627
          %v3629 = vpop.xlane.xlu0 %3628
          %v3630 = vmul.f32 %v3626, 0.17677669
          %v3631 = vmul.f32 %v3629, 0.17677669
          %v3634 = vlaneseq
          %v3635 = vand.u32 %v3634, 127
          %v3636 = vlaneseq
          %v3637 = vshrl.u32 %v3636, 7
          %v3638 = vsub.s32 %v3635, %v3637
          %v3639 = vrot.slane %v3630, %v3638
          %v3640 = vlaneseq
          %v3641 = vshrl.u32 %v3640, 7
          %v3642 = vsub.s32 %v3635, %v3641
          %v3643 = vrot.slane %v3631, %v3642
          %v3644 = vsel %vm1602, %v3643, %v3639
          %vm3646 = vcmask 58368
          %v3647 = vsel %vm3646, %v3644, -inf
          %3648 = vmax.xlane.f32.xlu0 %v3647
          %v3649 = vpop.xlane.xlu0 %3648
          %v3651 = vlaneseq
          %v3652 = vshrl.u32 %v3651, 7
          %v3653 = vsub.s32 0, %v3652
          %v3654 = vrot.slane %v3649, %v3653
          %v3655 = vlaneseq
          %v3656 = vshrl.u32 %v3655, 7
          %v3657 = vsub.s32 1, %v3656
          %v3658 = vrot.slane %v3649, %v3657
          %v3661 = vsub.f32 %v3630, %v3654
          %v3662 = vsub.f32 %v3631, %v3658
          %v3663 = vmul.f32 %v3661, 1.442695
          %v3664 = vpow.pop %v3663
          %v3665 = vmul.f32 %v3662, 1.442695
          %v3666 = vpow.pop %v3665
          %3669 = vset.pattern.permute.xlu0 0
          %3670 = vperm.xlu0 %3669, %v3664
          %v3671 = vpop.permute.xlu0 %3670
          %3672 = vset.pattern.permute.xlu0 0
          %3673 = vperm.xlu0 %3672, %v3666
          %v3674 = vpop.permute.xlu0 %3673
          %v3675 = vlaneseq
          %v3676 = vshrl.u32 %v3675, 7
          %v3677 = vsub.s32 %v3635, %v3676
          %v3678 = vrot.slane %v3671, %v3677
          %v3679 = vlaneseq
          %v3680 = vshrl.u32 %v3679, 7
          %v3681 = vsub.s32 %v3635, %v3680
          %v3682 = vrot.slane %v3674, %v3681
          %v3683 = vsel %vm1602, %v3682, %v3678
          %v3685 = vsel %vm3646, %v3683, 0.0
          %3686 = vadd.xlane.f32.xlu0 %v3685
          %v3687 = vpop.xlane.xlu0 %3686
          %v3688 = vrcp.pop %v3687
          %v3690 = vlaneseq
          %v3691 = vshrl.u32 %v3690, 7
          %v3692 = vsub.s32 0, %v3691
          %v3693 = vrot.slane %v3688, %v3692
          %v3694 = vlaneseq
          %v3695 = vshrl.u32 %v3694, 7
          %v3696 = vsub.s32 1, %v3695
          %v3697 = vrot.slane %v3688, %v3696
          %v3700 = vmul.f32 %v3664, %v3693
          %v3701 = vmul.f32 %v3666, %v3697
          %3703 = vset.pattern.permute.xlu0 0
          %3704 = vperm.xlu0 %3703, %v3700
          %v3705 = vpop.permute.xlu0 %3704
          %3708 = vset.pattern.permute.xlu0 0
          %3709 = vperm.xlu0 %3708, %v3701
          %v3710 = vpop.permute.xlu0 %3709
          %v3712 = vmul.f32 %v3705, %v3456
          %v3713 = vmul.f32 %v3710, %v3457
          %v3714 = vsel %vm1162, %v3712, 0.0
          %v3715 = vrot.slane %v3714, 4
          %v3716 = vadd.f32 %v3714, %v3715
          %v3717 = vrot.slane %v3716, 2
          %v3718 = vadd.f32 %v3716, %v3717
          %v3719 = vrot.slane %v3718, 1
          %v3720 = vadd.f32 %v3718, %v3719
          %v3721 = vsel %vm1162, %v3713, 0.0
          %v3722 = vrot.slane %v3721, 4
          %v3723 = vadd.f32 %v3721, %v3722
          %v3724 = vrot.slane %v3723, 2
          %v3725 = vadd.f32 %v3723, %v3724
          %v3726 = vrot.slane %v3725, 1
          %v3727 = vadd.f32 %v3725, %v3726
          %v3728 = vmul.f32 %v3705, %v3612
          %v3729 = vmul.f32 %v3710, %v3613
          %v3730 = vsel %vm1162, %v3728, 0.0
          %v3731 = vrot.slane %v3730, 4
          %v3732 = vadd.f32 %v3730, %v3731
          %v3733 = vrot.slane %v3732, 2
          %v3734 = vadd.f32 %v3732, %v3733
          %v3735 = vrot.slane %v3734, 1
          %v3736 = vadd.f32 %v3734, %v3735
          %v3737 = vsel %vm1162, %v3729, 0.0
          %v3738 = vrot.slane %v3737, 4
          %v3739 = vadd.f32 %v3737, %v3738
          %v3740 = vrot.slane %v3739, 2
          %v3741 = vadd.f32 %v3739, %v3740
          %v3742 = vrot.slane %v3741, 1
          %v3743 = vadd.f32 %v3741, %v3742
          %v3744 = vmul.f32 %v3705, %v3538
          %v3745 = vmul.f32 %v3710, %v3539
          %v3746 = vsel %vm1162, %v3744, 0.0
          %v3747 = vrot.slane %v3746, 4
          %v3748 = vadd.f32 %v3746, %v3747
          %v3749 = vrot.slane %v3748, 2
          %v3750 = vadd.f32 %v3748, %v3749
          %v3751 = vrot.slane %v3750, 1
          %v3752 = vadd.f32 %v3750, %v3751
          %v3753 = vsel %vm1162, %v3745, 0.0
          %v3754 = vrot.slane %v3753, 4
          %v3755 = vadd.f32 %v3753, %v3754
          %v3756 = vrot.slane %v3755, 2
          %v3757 = vadd.f32 %v3755, %v3756
          %v3758 = vrot.slane %v3757, 1
          %v3759 = vadd.f32 %v3757, %v3758
          %v3760 = vpack.c.bf16 %v3720, %v3720
          %v3761 = vpack.c.bf16 %v3727, %v3727
          %v3762 = vld [vmem:[%s19] sm:$0xf]
          %v3763 = vld [vmem:[%s19 + $0x4] sm:$0xf]
          %v3764 = vld [vmem:[%s19 + $0x8] sm:$0xf]
          %v3765 = vld [vmem:[%s19 + $0xc] sm:$0xf]
          %v3766 = vpack.c.bf16 %v3451, %v3451
          %v3767 = vpack.c.bf16 %v3452, %v3452
          %s3768 = scalar_lea.vmem %s19, 16
          %v3769 = vld [vmem:[%s3768] sm:$0xf]
          %v3770 = vld [vmem:[%s3768 + $0x4] sm:$0xf]
          %v3771 = vld [vmem:[%s3768 + $0x8] sm:$0xf]
          %v3772 = vld [vmem:[%s3768 + $0xc] sm:$0xf]
          %v3775 = vunpack.c.l.b16 %v3766
          %v3776 = vunpack.c.l.b16 %v3767
          %v3777 = vrot.slane %v3775, 7
          %v3778 = vrot.slane %v3776, 6
          %v3779 = vsel %vm1602, %v3778, %v3777
          %v3780 = vpack.c.b16 %v3779, %v3779
          %v3785 = vunpack.c.l.b16 %v3769
          %v3786 = vunpack.c.l.b16 %v3770
          %v3787 = vunpack.c.l.b16 %v3771
          %v3788 = vunpack.c.l.b16 %v3772
          %v3789 = vpack.c.b16 %v3786, %v3785
          %v3790 = vpack.c.b16 %v3788, %v3787
          %v3794 = vsel %vm1162, %v3780, 0
          %3796 = vmatprep.subr.bf16.mxu0 0
          %3797 = vmatpush1.bf16.msra.mxu0 %v3789
          %3798 = vmatprep.subr.bf16.mxu0 0
          %3799 = vmatpush1.bf16.msra.mxu0 %v3790
          %3800 = vmatprep.subr.bf16.mxu0 0
          %3801 = vmatpush1.bf16.msra.mxu0 0
          %3802 = vmatprep.subr.bf16.mxu0 0
          %3803 = vmatpush1.bf16.msra.mxu0 0
          %3804 = vmatprep.subr.bf16.mxu0 0
          %3805 = vmatpush1.bf16.msra.mxu0 0
          %3806 = vmatprep.subr.bf16.mxu0 0
          %3807 = vmatpush1.bf16.msra.mxu0 0
          %3808 = vmatprep.subr.bf16.mxu0 0
          %3809 = vmatpush1.bf16.msra.mxu0 0
          %3810 = vmatprep.subr.bf16.mxu0 0
          %3811 = vmatpush1.bf16.msra.mxu0 0
          %3812 = vmatprep.subr.bf16.mxu0 0
          %3813 = vmatpush1.bf16.msra.mxu0 0
          %3814 = vmatprep.subr.bf16.mxu0 0
          %3815 = vmatpush1.bf16.msra.mxu0 0
          %3816 = vmatprep.subr.bf16.mxu0 0
          %3817 = vmatpush1.bf16.msra.mxu0 0
          %3818 = vmatprep.subr.bf16.mxu0 0
          %3819 = vmatpush1.bf16.msra.mxu0 0
          %3820 = vmatprep.subr.bf16.mxu0 0
          %3821 = vmatpush1.bf16.msra.mxu0 0
          %3822 = vmatprep.subr.bf16.mxu0 0
          %3823 = vmatpush1.bf16.msra.mxu0 0
          %3824 = vmatprep.subr.bf16.mxu0 0
          %3825 = vmatpush1.bf16.msra.mxu0 0
          %3826 = vmatprep.subr.bf16.mxu0 0
          %3827 = vmatpush1.bf16.msra.mxu0 0
          %3828 = vmatprep.mubr.bf16.mxu0 0
          %3829 = vmatmul.mubr.bf16.gmra.mrb[0].mxu0 %v3794
          %v3830 = vpop.f32.mrb[0].mxu0
          %v3831 = vadd.f32 0.0, %v3830
          %v3832 = vpop.f32.mrb[0].mxu0
          %v3833 = vpop.f32.mrb[0].mxu0
          %v3834 = vpop.f32.mrb[0].mxu0
          %3835 = vdwg.mxu0
          %v3838 = vunpack.c.l.b16 %v3760
          %v3839 = vunpack.c.l.b16 %v3761
          %v3840 = vsel %vm1602, %v3839, %v3838
          %v3841 = vpack.c.b16 %v3840, %v3840
          %v3846 = vunpack.c.l.b16 %v3762
          %v3847 = vunpack.c.l.b16 %v3763
          %v3848 = vunpack.c.l.b16 %v3764
          %v3849 = vunpack.c.l.b16 %v3765
          %v3850 = vpack.c.b16 %v3847, %v3846
          %v3851 = vpack.c.b16 %v3849, %v3848
          %v3855 = vsel %vm1162, %v3841, 0
          %3857 = vmatprep.subr.bf16.mxu0 0
          %3858 = vmatpush1.bf16.msra.mxu0 %v3850
          %3859 = vmatprep.subr.bf16.mxu0 0
          %3860 = vmatpush1.bf16.msra.mxu0 %v3851
          %3861 = vmatprep.subr.bf16.mxu0 0
          %3862 = vmatpush1.bf16.msra.mxu0 0
          %3863 = vmatprep.subr.bf16.mxu0 0
          %3864 = vmatpush1.bf16.msra.mxu0 0
          %3865 = vmatprep.subr.bf16.mxu0 0
          %3866 = vmatpush1.bf16.msra.mxu0 0
          %3867 = vmatprep.subr.bf16.mxu0 0
          %3868 = vmatpush1.bf16.msra.mxu0 0
          %3869 = vmatprep.subr.bf16.mxu0 0
          %3870 = vmatpush1.bf16.msra.mxu0 0
          %3871 = vmatprep.subr.bf16.mxu0 0
          %3872 = vmatpush1.bf16.msra.mxu0 0
          %3873 = vmatprep.subr.bf16.mxu0 0
          %3874 = vmatpush1.bf16.msra.mxu0 0
          %3875 = vmatprep.subr.bf16.mxu0 0
          %3876 = vmatpush1.bf16.msra.mxu0 0
          %3877 = vmatprep.subr.bf16.mxu0 0
          %3878 = vmatpush1.bf16.msra.mxu0 0
          %3879 = vmatprep.subr.bf16.mxu0 0
          %3880 = vmatpush1.bf16.msra.mxu0 0
          %3881 = vmatprep.subr.bf16.mxu0 0
          %3882 = vmatpush1.bf16.msra.mxu0 0
          %3883 = vmatprep.subr.bf16.mxu0 0
          %3884 = vmatpush1.bf16.msra.mxu0 0
          %3885 = vmatprep.subr.bf16.mxu0 0
          %3886 = vmatpush1.bf16.msra.mxu0 0
          %3887 = vmatprep.subr.bf16.mxu0 0
          %3888 = vmatpush1.bf16.msra.mxu0 0
          %3889 = vmatprep.mubr.bf16.mxu0 0
          %3890 = vmatmul.mubr.bf16.gmra.mrb[0].mxu0 %v3855
          %v3891 = vpop.f32.mrb[0].mxu0
          %v3892 = vadd.f32 %v3831, %v3891
          %v3893 = vpop.f32.mrb[0].mxu0
          %v3894 = vpop.f32.mrb[0].mxu0
          %v3895 = vpop.f32.mrb[0].mxu0
          %3896 = vdwg.mxu0
          %v3897 = vpack.c.bf16 %v3736, %v3736
          %v3898 = vpack.c.bf16 %v3743, %v3743
          %s3899 = scalar_lea.vmem %s19, 32
          %v3900 = vld [vmem:[%s3899] sm:$0xf]
          %v3901 = vld [vmem:[%s3899 + $0x4] sm:$0xf]
          %v3902 = vld [vmem:[%s3899 + $0x8] sm:$0xf]
          %v3903 = vld [vmem:[%s3899 + $0xc] sm:$0xf]
          %v3906 = vunpack.c.l.b16 %v3897
          %v3907 = vunpack.c.l.b16 %v3898
          %v3908 = vsel %vm1602, %v3907, %v3906
          %v3909 = vpack.c.b16 %v3908, %v3908
          %v3914 = vunpack.c.l.b16 %v3900
          %v3915 = vunpack.c.l.b16 %v3901
          %v3916 = vunpack.c.l.b16 %v3902
          %v3917 = vunpack.c.l.b16 %v3903
          %v3918 = vpack.c.b16 %v3915, %v3914
          %v3919 = vpack.c.b16 %v3917, %v3916
          %v3923 = vsel %vm1162, %v3909, 0
          %3925 = vmatprep.subr.bf16.mxu0 0
          %3926 = vmatpush1.bf16.msra.mxu0 %v3918
          %3927 = vmatprep.subr.bf16.mxu0 0
          %3928 = vmatpush1.bf16.msra.mxu0 %v3919
          %3929 = vmatprep.subr.bf16.mxu0 0
          %3930 = vmatpush1.bf16.msra.mxu0 0
          %3931 = vmatprep.subr.bf16.mxu0 0
          %3932 = vmatpush1.bf16.msra.mxu0 0
          %3933 = vmatprep.subr.bf16.mxu0 0
          %3934 = vmatpush1.bf16.msra.mxu0 0
          %3935 = vmatprep.subr.bf16.mxu0 0
          %3936 = vmatpush1.bf16.msra.mxu0 0
          %3937 = vmatprep.subr.bf16.mxu0 0
          %3938 = vmatpush1.bf16.msra.mxu0 0
          %3939 = vmatprep.subr.bf16.mxu0 0
          %3940 = vmatpush1.bf16.msra.mxu0 0
          %3941 = vmatprep.subr.bf16.mxu0 0
          %3942 = vmatpush1.bf16.msra.mxu0 0
          %3943 = vmatprep.subr.bf16.mxu0 0
          %3944 = vmatpush1.bf16.msra.mxu0 0
          %3945 = vmatprep.subr.bf16.mxu0 0
          %3946 = vmatpush1.bf16.msra.mxu0 0
          %3947 = vmatprep.subr.bf16.mxu0 0
          %3948 = vmatpush1.bf16.msra.mxu0 0
          %3949 = vmatprep.subr.bf16.mxu0 0
          %3950 = vmatpush1.bf16.msra.mxu0 0
          %3951 = vmatprep.subr.bf16.mxu0 0
          %3952 = vmatpush1.bf16.msra.mxu0 0
          %3953 = vmatprep.subr.bf16.mxu0 0
          %3954 = vmatpush1.bf16.msra.mxu0 0
          %3955 = vmatprep.subr.bf16.mxu0 0
          %3956 = vmatpush1.bf16.msra.mxu0 0
          %3957 = vmatprep.mubr.bf16.mxu0 0
          %3958 = vmatmul.mubr.bf16.gmra.mrb[0].mxu0 %v3923
          %v3959 = vpop.f32.mrb[0].mxu0
          %v3960 = vadd.f32 0.0, %v3959
          %v3961 = vpop.f32.mrb[0].mxu0
          %v3962 = vpop.f32.mrb[0].mxu0
          %v3963 = vpop.f32.mrb[0].mxu0
          %3964 = vdwg.mxu0
          %v3965 = vadd.f32 %v3892, %v3960
          %v3966 = vpack.c.bf16 %v3612, %v3612
          %v3967 = vpack.c.bf16 %v3613, %v3613
          %s3968 = scalar_lea.vmem %s19, 48
          %v3969 = vld [vmem:[%s3968] sm:$0xf]
          %v3970 = vld [vmem:[%s3968 + $0x4] sm:$0xf]
          %v3971 = vld [vmem:[%s3968 + $0x8] sm:$0xf]
          %v3972 = vld [vmem:[%s3968 + $0xc] sm:$0xf]
          %v3975 = vunpack.c.l.b16 %v3966
          %v3976 = vunpack.c.l.b16 %v3967
          %v3977 = vrot.slane %v3975, 7
          %v3978 = vrot.slane %v3976, 6
          %v3979 = vsel %vm1602, %v3978, %v3977
          %v3980 = vpack.c.b16 %v3979, %v3979
          %v3985 = vunpack.c.l.b16 %v3969
          %v3986 = vunpack.c.l.b16 %v3970
          %v3987 = vunpack.c.l.b16 %v3971
          %v3988 = vunpack.c.l.b16 %v3972
          %v3989 = vpack.c.b16 %v3986, %v3985
          %v3990 = vpack.c.b16 %v3988, %v3987
          %v3994 = vsel %vm1162, %v3980, 0
          %3996 = vmatprep.subr.bf16.mxu0 0
          %3997 = vmatpush1.bf16.msra.mxu0 %v3989
          %3998 = vmatprep.subr.bf16.mxu0 0
          %3999 = vmatpush1.bf16.msra.mxu0 %v3990
          %4000 = vmatprep.subr.bf16.mxu0 0
          %4001 = vmatpush1.bf16.msra.mxu0 0
          %4002 = vmatprep.subr.bf16.mxu0 0
          %4003 = vmatpush1.bf16.msra.mxu0 0
          %4004 = vmatprep.subr.bf16.mxu0 0
          %4005 = vmatpush1.bf16.msra.mxu0 0
          %4006 = vmatprep.subr.bf16.mxu0 0
          %4007 = vmatpush1.bf16.msra.mxu0 0
          %4008 = vmatprep.subr.bf16.mxu0 0
          %4009 = vmatpush1.bf16.msra.mxu0 0
          %4010 = vmatprep.subr.bf16.mxu0 0
          %4011 = vmatpush1.bf16.msra.mxu0 0
          %4012 = vmatprep.subr.bf16.mxu0 0
          %4013 = vmatpush1.bf16.msra.mxu0 0
          %4014 = vmatprep.subr.bf16.mxu0 0
          %4015 = vmatpush1.bf16.msra.mxu0 0
          %4016 = vmatprep.subr.bf16.mxu0 0
          %4017 = vmatpush1.bf16.msra.mxu0 0
          %4018 = vmatprep.subr.bf16.mxu0 0
          %4019 = vmatpush1.bf16.msra.mxu0 0
          %4020 = vmatprep.subr.bf16.mxu0 0
          %4021 = vmatpush1.bf16.msra.mxu0 0
          %4022 = vmatprep.subr.bf16.mxu0 0
          %4023 = vmatpush1.bf16.msra.mxu0 0
          %4024 = vmatprep.subr.bf16.mxu0 0
          %4025 = vmatpush1.bf16.msra.mxu0 0
          %4026 = vmatprep.subr.bf16.mxu0 0
          %4027 = vmatpush1.bf16.msra.mxu0 0
          %4028 = vmatprep.mubr.bf16.mxu0 0
          %4029 = vmatmul.mubr.bf16.gmra.mrb[0].mxu0 %v3994
          %v4030 = vpop.f32.mrb[0].mxu0
          %v4031 = vadd.f32 0.0, %v4030
          %v4032 = vpop.f32.mrb[0].mxu0
          %v4033 = vpop.f32.mrb[0].mxu0
          %v4034 = vpop.f32.mrb[0].mxu0
          %4035 = vdwg.mxu0
          %v4036 = vadd.f32 %v3965, %v4031
          %v4037 = vpack.c.bf16 %v3752, %v3752
          %v4038 = vpack.c.bf16 %v3759, %v3759
          %s4039 = scalar_lea.vmem %s19, 64
          %v4040 = vld [vmem:[%s4039] sm:$0xf]
          %v4041 = vld [vmem:[%s4039 + $0x4] sm:$0xf]
          %v4042 = vld [vmem:[%s4039 + $0x8] sm:$0xf]
          %v4043 = vld [vmem:[%s4039 + $0xc] sm:$0xf]
          %v4046 = vunpack.c.l.b16 %v4037
          %v4047 = vunpack.c.l.b16 %v4038
          %v4048 = vsel %vm1602, %v4047, %v4046
          %v4049 = vpack.c.b16 %v4048, %v4048
          %v4054 = vunpack.c.l.b16 %v4040
          %v4055 = vunpack.c.l.b16 %v4041
          %v4056 = vunpack.c.l.b16 %v4042
          %v4057 = vunpack.c.l.b16 %v4043
          %v4058 = vpack.c.b16 %v4055, %v4054
          %v4059 = vpack.c.b16 %v4057, %v4056
          %v4063 = vsel %vm1162, %v4049, 0
          %4065 = vmatprep.subr.bf16.mxu0 0
          %4066 = vmatpush1.bf16.msra.mxu0 %v4058
          %4067 = vmatprep.subr.bf16.mxu0 0
          %4068 = vmatpush1.bf16.msra.mxu0 %v4059
          %4069 = vmatprep.subr.bf16.mxu0 0
          %4070 = vmatpush1.bf16.msra.mxu0 0
          %4071 = vmatprep.subr.bf16.mxu0 0
          %4072 = vmatpush1.bf16.msra.mxu0 0
          %4073 = vmatprep.subr.bf16.mxu0 0
          %4074 = vmatpush1.bf16.msra.mxu0 0
          %4075 = vmatprep.subr.bf16.mxu0 0
          %4076 = vmatpush1.bf16.msra.mxu0 0
          %4077 = vmatprep.subr.bf16.mxu0 0
          %4078 = vmatpush1.bf16.msra.mxu0 0
          %4079 = vmatprep.subr.bf16.mxu0 0
          %4080 = vmatpush1.bf16.msra.mxu0 0
          %4081 = vmatprep.subr.bf16.mxu0 0
          %4082 = vmatpush1.bf16.msra.mxu0 0
          %4083 = vmatprep.subr.bf16.mxu0 0
          %4084 = vmatpush1.bf16.msra.mxu0 0
          %4085 = vmatprep.subr.bf16.mxu0 0
          %4086 = vmatpush1.bf16.msra.mxu0 0
          %4087 = vmatprep.subr.bf16.mxu0 0
          %4088 = vmatpush1.bf16.msra.mxu0 0
          %4089 = vmatprep.subr.bf16.mxu0 0
          %4090 = vmatpush1.bf16.msra.mxu0 0
          %4091 = vmatprep.subr.bf16.mxu0 0
          %4092 = vmatpush1.bf16.msra.mxu0 0
          %4093 = vmatprep.subr.bf16.mxu0 0
          %4094 = vmatpush1.bf16.msra.mxu0 0
          %4095 = vmatprep.subr.bf16.mxu0 0
          %4096 = vmatpush1.bf16.msra.mxu0 0
          %4097 = vmatprep.mubr.bf16.mxu0 0
          %4098 = vmatmul.mubr.bf16.gmra.mrb[0].mxu0 %v4063
          %v4099 = vpop.f32.mrb[0].mxu0
          %v4100 = vadd.f32 0.0, %v4099
          %v4101 = vpop.f32.mrb[0].mxu0
          %v4102 = vpop.f32.mrb[0].mxu0
          %v4103 = vpop.f32.mrb[0].mxu0
          %4104 = vdwg.mxu0
          %v4105 = vadd.f32 %v4036, %v4100
          %v4106 = vpack.c.bf16 %v3538, %v3538
          %v4107 = vpack.c.bf16 %v3539, %v3539
          %s4108 = scalar_lea.vmem %s19, 80
          %v4109 = vld [vmem:[%s4108] sm:$0xf]
          %v4110 = vld [vmem:[%s4108 + $0x4] sm:$0xf]
          %v4111 = vld [vmem:[%s4108 + $0x8] sm:$0xf]
          %v4112 = vld [vmem:[%s4108 + $0xc] sm:$0xf]
          %v4115 = vunpack.c.l.b16 %v4106
          %v4116 = vunpack.c.l.b16 %v4107
          %v4117 = vrot.slane %v4115, 7
          %v4118 = vrot.slane %v4116, 6
          %v4119 = vsel %vm1602, %v4118, %v4117
          %v4120 = vpack.c.b16 %v4119, %v4119
          %v4125 = vunpack.c.l.b16 %v4109
          %v4126 = vunpack.c.l.b16 %v4110
          %v4127 = vunpack.c.l.b16 %v4111
          %v4128 = vunpack.c.l.b16 %v4112
          %v4129 = vpack.c.b16 %v4126, %v4125
          %v4130 = vpack.c.b16 %v4128, %v4127
          %v4134 = vsel %vm1162, %v4120, 0
          %4136 = vmatprep.subr.bf16.mxu0 0
          %4137 = vmatpush1.bf16.msra.mxu0 %v4129
          %4138 = vmatprep.subr.bf16.mxu0 0
          %4139 = vmatpush1.bf16.msra.mxu0 %v4130
          %4140 = vmatprep.subr.bf16.mxu0 0
          %4141 = vmatpush1.bf16.msra.mxu0 0
          %4142 = vmatprep.subr.bf16.mxu0 0
          %4143 = vmatpush1.bf16.msra.mxu0 0
          %4144 = vmatprep.subr.bf16.mxu0 0
          %4145 = vmatpush1.bf16.msra.mxu0 0
          %4146 = vmatprep.subr.bf16.mxu0 0
          %4147 = vmatpush1.bf16.msra.mxu0 0
          %4148 = vmatprep.subr.bf16.mxu0 0
          %4149 = vmatpush1.bf16.msra.mxu0 0
          %4150 = vmatprep.subr.bf16.mxu0 0
          %4151 = vmatpush1.bf16.msra.mxu0 0
          %4152 = vmatprep.subr.bf16.mxu0 0
          %4153 = vmatpush1.bf16.msra.mxu0 0
          %4154 = vmatprep.subr.bf16.mxu0 0
          %4155 = vmatpush1.bf16.msra.mxu0 0
          %4156 = vmatprep.subr.bf16.mxu0 0
          %4157 = vmatpush1.bf16.msra.mxu0 0
          %4158 = vmatprep.subr.bf16.mxu0 0
          %4159 = vmatpush1.bf16.msra.mxu0 0
          %4160 = vmatprep.subr.bf16.mxu0 0
          %4161 = vmatpush1.bf16.msra.mxu0 0
          %4162 = vmatprep.subr.bf16.mxu0 0
          %4163 = vmatpush1.bf16.msra.mxu0 0
          %4164 = vmatprep.subr.bf16.mxu0 0
          %4165 = vmatpush1.bf16.msra.mxu0 0
          %4166 = vmatprep.subr.bf16.mxu0 0
          %4167 = vmatpush1.bf16.msra.mxu0 0
          %4168 = vmatprep.mubr.bf16.mxu0 0
          %4169 = vmatmul.mubr.bf16.gmra.mrb[0].mxu0 %v4134
          %v4170 = vpop.f32.mrb[0].mxu0
          %v4171 = vadd.f32 0.0, %v4170
          %v4172 = vpop.f32.mrb[0].mxu0
          %v4173 = vpop.f32.mrb[0].mxu0
          %v4174 = vpop.f32.mrb[0].mxu0
          %4175 = vdwg.mxu0
          %v4176 = vadd.f32 %v4105, %v4171
          %v4177 = vld [vmem:[%s20] sm:$0x1]
          %v4179 = vlaneseq
          %v4180 = vshrl.u32 %v4179, 7
          %v4181 = vsub.s32 0, %v4180
          %v4182 = vrot.slane %v4177, %v4181
          %v4184 = vadd.f32 %v4176, %v4182
          %v4185 = vtanh.pop %v4184
          %v4186 = vpack.c.bf16 %v4185, %v4185
          %4187 = vst.msk [vmem:[#allocation3] sm:$0x1] %vm1581, %v4186
        $region178: #{star_forward.1} parent=169 // pred_fallthru
          _
        %v4188 = vld [vmem:[#allocation3] sm:$0x1]
        %v4189 = vld [vmem:[%s1056] sm:$0xff]
        %v4190 = vld [vmem:[%s1056 + $0x8] sm:$0xff]
        %v4191 = vld [vmem:[%s1056 + $0x10] sm:$0xff]
        %v4192 = vld [vmem:[%s1056 + $0x18] sm:$0xff]
        %v4193 = vld [vmem:[%s1056 + $0x20] sm:$0xff]
        %v4194 = vld [vmem:[%s1056 + $0x28] sm:$0xff]
        %v4195 = vld [vmem:[%s1056 + $0x30] sm:$0xff]
        %v4196 = vld [vmem:[%s1056 + $0x38] sm:$0xff]
        %v4197 = vld [vmem:[%s1056 + $0x40] sm:$0xff]
        %v4198 = vld [vmem:[%s1056 + $0x48] sm:$0xff]
        %v4199 = vld [vmem:[%s1056 + $0x50] sm:$0xff]
        %v4200 = vld [vmem:[%s1056 + $0x58] sm:$0xff]
        %v4201 = vld [vmem:[%s1056 + $0x60] sm:$0xff]
        %v4202 = vld [vmem:[%s1056 + $0x68] sm:$0xff]
        %v4203 = vld [vmem:[%s1056 + $0x70] sm:$0xff]
        %v4204 = vld [vmem:[%s1056 + $0x78] sm:$0xff]
        %v4205 = vld [vmem:[%s1056 + $0x80] sm:$0xff]
        %v4206 = vld [vmem:[%s1056 + $0x88] sm:$0xff]
        %v4207 = vld [vmem:[%s1056 + $0x90] sm:$0xff]
        %v4208 = vld [vmem:[%s1056 + $0x98] sm:$0xff]
        %v4209 = vld [vmem:[%s1056 + $0xa0] sm:$0xff]
        %v4210 = vld [vmem:[%s1056 + $0xa8] sm:$0xff]
        %v4211 = vld [vmem:[%s1056 + $0xb0] sm:$0xff]
        %v4212 = vld [vmem:[%s1056 + $0xb8] sm:$0xff]
        %v4213 = vld [vmem:[%s1056 + $0xc0] sm:$0xff]
        %v4214 = vld [vmem:[%s1056 + $0xc8] sm:$0xff]
        %v4215 = vld [vmem:[%s1056 + $0xd0] sm:$0xff]
        %v4216 = vld [vmem:[%s1056 + $0xd8] sm:$0xff]
        %v4217 = vld [vmem:[%s1056 + $0xe0] sm:$0xff]
        %v4218 = vld [vmem:[%s1056 + $0xe8] sm:$0xff]
        %v4219 = vld [vmem:[%s1056 + $0xf0] sm:$0xff]
        %v4220 = vld [vmem:[%s1056 + $0xf8] sm:$0xff]
        %v4221 = vld [vmem:[%s1056 + $0x100] sm:$0xff]
        %v4222 = vld [vmem:[%s1056 + $0x108] sm:$0xff]
        %v4223 = vld [vmem:[%s1056 + $0x110] sm:$0xff]
        %v4224 = vld [vmem:[%s1056 + $0x118] sm:$0xff]
        %v4225 = vld [vmem:[%s1056 + $0x120] sm:$0xff]
        %v4226 = vld [vmem:[%s1056 + $0x128] sm:$0xff]
        %v4227 = vld [vmem:[%s1056 + $0x130] sm:$0xff]
        %v4228 = vld [vmem:[%s1056 + $0x138] sm:$0xff]
        %v4229 = vld [vmem:[%s1056 + $0x140] sm:$0xff]
        %v4230 = vld [vmem:[%s1056 + $0x148] sm:$0xff]
        %v4231 = vld [vmem:[%s1056 + $0x150] sm:$0xff]
        %v4232 = vld [vmem:[%s1056 + $0x158] sm:$0xff]
        %v4233 = vld [vmem:[%s1056 + $0x160] sm:$0xff]
        %v4234 = vld [vmem:[%s1056 + $0x168] sm:$0xff]
        %v4235 = vld [vmem:[%s1056 + $0x170] sm:$0xff]
        %v4236 = vld [vmem:[%s1056 + $0x178] sm:$0xff]
        %v4237 = vld [vmem:[%s1056 + $0x180] sm:$0xff]
        %v4238 = vld [vmem:[%s1056 + $0x188] sm:$0xff]
        %v4239 = vld [vmem:[%s1056 + $0x190] sm:$0xff]
        %v4240 = vld [vmem:[%s1056 + $0x198] sm:$0xff]
        %v4241 = vld [vmem:[%s1056 + $0x1a0] sm:$0xff]
        %v4242 = vld [vmem:[%s1056 + $0x1a8] sm:$0xff]
        %v4243 = vld [vmem:[%s1056 + $0x1b0] sm:$0xff]
        %v4244 = vld [vmem:[%s1056 + $0x1b8] sm:$0xff]
        %v4245 = vld [vmem:[%s1056 + $0x1c0] sm:$0xff]
        %v4246 = vld [vmem:[%s1056 + $0x1c8] sm:$0xff]
        %v4247 = vld [vmem:[%s1056 + $0x1d0] sm:$0xff]
        %v4248 = vld [vmem:[%s1056 + $0x1d8] sm:$0xff]
        %v4249 = vld [vmem:[%s1056 + $0x1e0] sm:$0xff]
        %v4250 = vld [vmem:[%s1056 + $0x1e8] sm:$0xff]
        %v4251 = vld [vmem:[%s1056 + $0x1f0] sm:$0xff]
        %v4252 = vld [vmem:[%s1056 + $0x1f8] sm:$0xff]
        %v4317 = vunpack.c.l.b16 %v4189
        %v4318 = vunpack.c.h.b16 %v4189
        %v4319 = vunpack.c.l.b16 %v4190
        %v4320 = vunpack.c.h.b16 %v4190
        %v4321 = vunpack.c.l.b16 %v4191
        %v4322 = vunpack.c.h.b16 %v4191
        %v4323 = vunpack.c.l.b16 %v4192
        %v4324 = vunpack.c.h.b16 %v4192
        %v4325 = vunpack.c.l.b16 %v4193
        %v4326 = vunpack.c.h.b16 %v4193
        %v4327 = vunpack.c.l.b16 %v4194
        %v4328 = vunpack.c.h.b16 %v4194
        %v4329 = vunpack.c.l.b16 %v4195
        %v4330 = vunpack.c.h.b16 %v4195
        %v4331 = vunpack.c.l.b16 %v4196
        %v4332 = vunpack.c.h.b16 %v4196
        %v4333 = vunpack.c.l.b16 %v4197
        %v4334 = vunpack.c.h.b16 %v4197
        %v4335 = vunpack.c.l.b16 %v4198
        %v4336 = vunpack.c.h.b16 %v4198
        %v4337 = vunpack.c.l.b16 %v4199
        %v4338 = vunpack.c.h.b16 %v4199
        %v4339 = vunpack.c.l.b16 %v4200
        %v4340 = vunpack.c.h.b16 %v4200
        %v4341 = vunpack.c.l.b16 %v4201
        %v4342 = vunpack.c.h.b16 %v4201
        %v4343 = vunpack.c.l.b16 %v4202
        %v4344 = vunpack.c.h.b16 %v4202
        %v4345 = vunpack.c.l.b16 %v4203
        %v4346 = vunpack.c.h.b16 %v4203
        %v4347 = vunpack.c.l.b16 %v4204
        %v4348 = vunpack.c.h.b16 %v4204
        %v4349 = vunpack.c.l.b16 %v4205
        %v4350 = vunpack.c.h.b16 %v4205
        %v4351 = vunpack.c.l.b16 %v4206
        %v4352 = vunpack.c.h.b16 %v4206
        %v4353 = vunpack.c.l.b16 %v4207
        %v4354 = vunpack.c.h.b16 %v4207
        %v4355 = vunpack.c.l.b16 %v4208
        %v4356 = vunpack.c.h.b16 %v4208
        %v4357 = vunpack.c.l.b16 %v4209
        %v4358 = vunpack.c.h.b16 %v4209
        %v4359 = vunpack.c.l.b16 %v4210
        %v4360 = vunpack.c.h.b16 %v4210
        %v4361 = vunpack.c.l.b16 %v4211
        %v4362 = vunpack.c.h.b16 %v4211
        %v4363 = vunpack.c.l.b16 %v4212
        %v4364 = vunpack.c.h.b16 %v4212
        %v4365 = vunpack.c.l.b16 %v4213
        %v4366 = vunpack.c.h.b16 %v4213
        %v4367 = vunpack.c.l.b16 %v4214
        %v4368 = vunpack.c.h.b16 %v4214
        %v4369 = vunpack.c.l.b16 %v4215
        %v4370 = vunpack.c.h.b16 %v4215
        %v4371 = vunpack.c.l.b16 %v4216
        %v4372 = vunpack.c.h.b16 %v4216
        %v4373 = vunpack.c.l.b16 %v4217
        %v4374 = vunpack.c.h.b16 %v4217
        %v4375 = vunpack.c.l.b16 %v4218
        %v4376 = vunpack.c.h.b16 %v4218
        %v4377 = vunpack.c.l.b16 %v4219
        %v4378 = vunpack.c.h.b16 %v4219
        %v4379 = vunpack.c.l.b16 %v4220
        %v4380 = vunpack.c.h.b16 %v4220
        %v4381 = vunpack.c.l.b16 %v4221
        %v4382 = vunpack.c.h.b16 %v4221
        %v4383 = vunpack.c.l.b16 %v4222
        %v4384 = vunpack.c.h.b16 %v4222
        %v4385 = vunpack.c.l.b16 %v4223
        %v4386 = vunpack.c.h.b16 %v4223
        %v4387 = vunpack.c.l.b16 %v4224
        %v4388 = vunpack.c.h.b16 %v4224
        %v4389 = vunpack.c.l.b16 %v4225
        %v4390 = vunpack.c.h.b16 %v4225
        %v4391 = vunpack.c.l.b16 %v4226
        %v4392 = vunpack.c.h.b16 %v4226
        %v4393 = vunpack.c.l.b16 %v4227
        %v4394 = vunpack.c.h.b16 %v4227
        %v4395 = vunpack.c.l.b16 %v4228
        %v4396 = vunpack.c.h.b16 %v4228
        %v4397 = vunpack.c.l.b16 %v4229
        %v4398 = vunpack.c.h.b16 %v4229
        %v4399 = vunpack.c.l.b16 %v4230
        %v4400 = vunpack.c.h.b16 %v4230
        %v4401 = vunpack.c.l.b16 %v4231
        %v4402 = vunpack.c.h.b16 %v4231
        %v4403 = vunpack.c.l.b16 %v4232
        %v4404 = vunpack.c.h.b16 %v4232
        %v4405 = vunpack.c.l.b16 %v4233
        %v4406 = vunpack.c.h.b16 %v4233
        %v4407 = vunpack.c.l.b16 %v4234
        %v4408 = vunpack.c.h.b16 %v4234
        %v4409 = vunpack.c.l.b16 %v4235
        %v4410 = vunpack.c.h.b16 %v4235
        %v4411 = vunpack.c.l.b16 %v4236
        %v4412 = vunpack.c.h.b16 %v4236
        %v4413 = vunpack.c.l.b16 %v4237
        %v4414 = vunpack.c.h.b16 %v4237
        %v4415 = vunpack.c.l.b16 %v4238
        %v4416 = vunpack.c.h.b16 %v4238
        %v4417 = vunpack.c.l.b16 %v4239
        %v4418 = vunpack.c.h.b16 %v4239
        %v4419 = vunpack.c.l.b16 %v4240
        %v4420 = vunpack.c.h.b16 %v4240
        %v4421 = vunpack.c.l.b16 %v4241
        %v4422 = vunpack.c.h.b16 %v4241
        %v4423 = vunpack.c.l.b16 %v4242
        %v4424 = vunpack.c.h.b16 %v4242
        %v4425 = vunpack.c.l.b16 %v4243
        %v4426 = vunpack.c.h.b16 %v4243
        %v4427 = vunpack.c.l.b16 %v4244
        %v4428 = vunpack.c.h.b16 %v4244
        %v4429 = vunpack.c.l.b16 %v4245
        %v4430 = vunpack.c.h.b16 %v4245
        %v4431 = vunpack.c.l.b16 %v4246
        %v4432 = vunpack.c.h.b16 %v4246
        %v4433 = vunpack.c.l.b16 %v4247
        %v4434 = vunpack.c.h.b16 %v4247
        %v4435 = vunpack.c.l.b16 %v4248
        %v4436 = vunpack.c.h.b16 %v4248
        %v4437 = vunpack.c.l.b16 %v4249
        %v4438 = vunpack.c.h.b16 %v4249
        %v4439 = vunpack.c.l.b16 %v4250
        %v4440 = vunpack.c.h.b16 %v4250
        %v4441 = vunpack.c.l.b16 %v4251
        %v4442 = vunpack.c.h.b16 %v4251
        %v4443 = vunpack.c.l.b16 %v4252
        %v4444 = vunpack.c.h.b16 %v4252
        %v4445 = vpack.c.b16 %v4349, %v4317
        %v4446 = vpack.c.b16 %v4350, %v4318
        %v4447 = vpack.c.b16 %v4351, %v4319
        %v4448 = vpack.c.b16 %v4352, %v4320
        %v4449 = vpack.c.b16 %v4353, %v4321
        %v4450 = vpack.c.b16 %v4354, %v4322
        %v4451 = vpack.c.b16 %v4355, %v4323
        %v4452 = vpack.c.b16 %v4356, %v4324
        %v4453 = vpack.c.b16 %v4357, %v4325
        %v4454 = vpack.c.b16 %v4358, %v4326
        %v4455 = vpack.c.b16 %v4359, %v4327
        %v4456 = vpack.c.b16 %v4360, %v4328
        %v4457 = vpack.c.b16 %v4361, %v4329
        %v4458 = vpack.c.b16 %v4362, %v4330
        %v4459 = vpack.c.b16 %v4363, %v4331
        %v4460 = vpack.c.b16 %v4364, %v4332
        %v4461 = vpack.c.b16 %v4365, %v4333
        %v4462 = vpack.c.b16 %v4366, %v4334
        %v4463 = vpack.c.b16 %v4367, %v4335
        %v4464 = vpack.c.b16 %v4368, %v4336
        %v4465 = vpack.c.b16 %v4369, %v4337
        %v4466 = vpack.c.b16 %v4370, %v4338
        %v4467 = vpack.c.b16 %v4371, %v4339
        %v4468 = vpack.c.b16 %v4372, %v4340
        %v4469 = vpack.c.b16 %v4373, %v4341
        %v4470 = vpack.c.b16 %v4374, %v4342
        %v4471 = vpack.c.b16 %v4375, %v4343
        %v4472 = vpack.c.b16 %v4376, %v4344
        %v4473 = vpack.c.b16 %v4377, %v4345
        %v4474 = vpack.c.b16 %v4378, %v4346
        %v4475 = vpack.c.b16 %v4379, %v4347
        %v4476 = vpack.c.b16 %v4380, %v4348
        %v4477 = vpack.c.b16 %v4413, %v4381
        %v4478 = vpack.c.b16 %v4414, %v4382
        %v4479 = vpack.c.b16 %v4415, %v4383
        %v4480 = vpack.c.b16 %v4416, %v4384
        %v4481 = vpack.c.b16 %v4417, %v4385
        %v4482 = vpack.c.b16 %v4418, %v4386
        %v4483 = vpack.c.b16 %v4419, %v4387
        %v4484 = vpack.c.b16 %v4420, %v4388
        %v4485 = vpack.c.b16 %v4421, %v4389
        %v4486 = vpack.c.b16 %v4422, %v4390
        %v4487 = vpack.c.b16 %v4423, %v4391
        %v4488 = vpack.c.b16 %v4424, %v4392
        %v4489 = vpack.c.b16 %v4425, %v4393
        %v4490 = vpack.c.b16 %v4426, %v4394
        %v4491 = vpack.c.b16 %v4427, %v4395
        %v4492 = vpack.c.b16 %v4428, %v4396
        %v4493 = vpack.c.b16 %v4429, %v4397
        %v4494 = vpack.c.b16 %v4430, %v4398
        %v4495 = vpack.c.b16 %v4431, %v4399
        %v4496 = vpack.c.b16 %v4432, %v4400
        %v4497 = vpack.c.b16 %v4433, %v4401
        %v4498 = vpack.c.b16 %v4434, %v4402
        %v4499 = vpack.c.b16 %v4435, %v4403
        %v4500 = vpack.c.b16 %v4436, %v4404
        %v4501 = vpack.c.b16 %v4437, %v4405
        %v4502 = vpack.c.b16 %v4438, %v4406
        %v4503 = vpack.c.b16 %v4439, %v4407
        %v4504 = vpack.c.b16 %v4440, %v4408
        %v4505 = vpack.c.b16 %v4441, %v4409
        %v4506 = vpack.c.b16 %v4442, %v4410
        %v4507 = vpack.c.b16 %v4443, %v4411
        %v4508 = vpack.c.b16 %v4444, %v4412
        %vm4573 = vcmask 261120
        %v4575 = vsel %vm4573, %v4188, 0
        %4577 = vmatprep.subr.bf16.mxu0 %v4446
        %4578 = vmatpush1.bf16.msra.mxu0 %v4445
        %4579 = vmatprep.subr.bf16.mxu0 %v4478
        %4580 = vmatpush1.bf16.msra.mxu0 %v4477
        %4581 = vmatprep.subr.bf16.mxu0 0
        %4582 = vmatpush1.bf16.msra.mxu0 0
        %4583 = vmatprep.subr.bf16.mxu0 0
        %4584 = vmatpush1.bf16.msra.mxu0 0
        %4585 = vmatprep.subr.bf16.mxu0 0
        %4586 = vmatpush1.bf16.msra.mxu0 0
        %4587 = vmatprep.subr.bf16.mxu0 0
        %4588 = vmatpush1.bf16.msra.mxu0 0
        %4589 = vmatprep.subr.bf16.mxu0 0
        %4590 = vmatpush1.bf16.msra.mxu0 0
        %4591 = vmatprep.subr.bf16.mxu0 0
        %4592 = vmatpush1.bf16.msra.mxu0 0
        %4593 = vmatprep.subr.bf16.mxu0 0
        %4594 = vmatpush1.bf16.msra.mxu0 0
        %4595 = vmatprep.subr.bf16.mxu0 0
        %4596 = vmatpush1.bf16.msra.mxu0 0
        %4597 = vmatprep.subr.bf16.mxu0 0
        %4598 = vmatpush1.bf16.msra.mxu0 0
        %4599 = vmatprep.subr.bf16.mxu0 0
        %4600 = vmatpush1.bf16.msra.mxu0 0
        %4601 = vmatprep.subr.bf16.mxu0 0
        %4602 = vmatpush1.bf16.msra.mxu0 0
        %4603 = vmatprep.subr.bf16.mxu0 0
        %4604 = vmatpush1.bf16.msra.mxu0 0
        %4605 = vmatprep.subr.bf16.mxu0 0
        %4606 = vmatpush1.bf16.msra.mxu0 0
        %4607 = vmatprep.subr.bf16.mxu0 0
        %4608 = vmatpush1.bf16.msra.mxu0 0
        %4609 = vmatprep.mubr.bf16.mxu0 0
        %4610 = vmatmul.mubr.bf16.gmra.mrb[0].mxu0 %v4575
        %v4611 = vpop.f32.mrb[0].mxu0
        %v4612 = vadd.f32 0.0, %v4611
        %v4613 = vpop.f32.mrb[0].mxu0
        %v4614 = vadd.f32 0.0, %v4613
        %v4615 = vpop.f32.mrb[0].mxu0
        %v4616 = vpop.f32.mrb[0].mxu0
        %4617 = vdwg.mxu0
        %4618 = vmatprep.subr.bf16.mxu0 %v4448
        %4619 = vmatpush1.bf16.msra.mxu0 %v4447
        %4620 = vmatprep.subr.bf16.mxu0 %v4480
        %4621 = vmatpush1.bf16.msra.mxu0 %v4479
        %4622 = vmatprep.subr.bf16.mxu0 0
        %4623 = vmatpush1.bf16.msra.mxu0 0
        %4624 = vmatprep.subr.bf16.mxu0 0
        %4625 = vmatpush1.bf16.msra.mxu0 0
        %4626 = vmatprep.subr.bf16.mxu0 0
        %4627 = vmatpush1.bf16.msra.mxu0 0
        %4628 = vmatprep.subr.bf16.mxu0 0
        %4629 = vmatpush1.bf16.msra.mxu0 0
        %4630 = vmatprep.subr.bf16.mxu0 0
        %4631 = vmatpush1.bf16.msra.mxu0 0
        %4632 = vmatprep.subr.bf16.mxu0 0
        %4633 = vmatpush1.bf16.msra.mxu0 0
        %4634 = vmatprep.subr.bf16.mxu0 0
        %4635 = vmatpush1.bf16.msra.mxu0 0
        %4636 = vmatprep.subr.bf16.mxu0 0
        %4637 = vmatpush1.bf16.msra.mxu0 0
        %4638 = vmatprep.subr.bf16.mxu0 0
        %4639 = vmatpush1.bf16.msra.mxu0 0
        %4640 = vmatprep.subr.bf16.mxu0 0
        %4641 = vmatpush1.bf16.msra.mxu0 0
        %4642 = vmatprep.subr.bf16.mxu0 0
        %4643 = vmatpush1.bf16.msra.mxu0 0
        %4644 = vmatprep.subr.bf16.mxu0 0
        %4645 = vmatpush1.bf16.msra.mxu0 0
        %4646 = vmatprep.subr.bf16.mxu0 0
        %4647 = vmatpush1.bf16.msra.mxu0 0
        %4648 = vmatprep.subr.bf16.mxu0 0
        %4649 = vmatpush1.bf16.msra.mxu0 0
        %4650 = vmatprep.mubr.bf16.mxu0 0
        %4651 = vmatmul.mubr.bf16.gmra.mrb[0].mxu0 %v4575
        %v4652 = vpop.f32.mrb[0].mxu0
        %v4653 = vadd.f32 0.0, %v4652
        %v4654 = vpop.f32.mrb[0].mxu0
        %v4655 = vadd.f32 0.0, %v4654
        %v4656 = vpop.f32.mrb[0].mxu0
        %v4657 = vpop.f32.mrb[0].mxu0
        %4658 = vdwg.mxu0
        %4659 = vmatprep.subr.bf16.mxu0 %v4450
        %4660 = vmatpush1.bf16.msra.mxu0 %v4449
        %4661 = vmatprep.subr.bf16.mxu0 %v4482
        %4662 = vmatpush1.bf16.msra.mxu0 %v4481
        %4663 = vmatprep.subr.bf16.mxu0 0
        %4664 = vmatpush1.bf16.msra.mxu0 0
        %4665 = vmatprep.subr.bf16.mxu0 0
        %4666 = vmatpush1.bf16.msra.mxu0 0
        %4667 = vmatprep.subr.bf16.mxu0 0
        %4668 = vmatpush1.bf16.msra.mxu0 0
        %4669 = vmatprep.subr.bf16.mxu0 0
        %4670 = vmatpush1.bf16.msra.mxu0 0
        %4671 = vmatprep.subr.bf16.mxu0 0
        %4672 = vmatpush1.bf16.msra.mxu0 0
        %4673 = vmatprep.subr.bf16.mxu0 0
        %4674 = vmatpush1.bf16.msra.mxu0 0
        %4675 = vmatprep.subr.bf16.mxu0 0
        %4676 = vmatpush1.bf16.msra.mxu0 0
        %4677 = vmatprep.subr.bf16.mxu0 0
        %4678 = vmatpush1.bf16.msra.mxu0 0
        %4679 = vmatprep.subr.bf16.mxu0 0
        %4680 = vmatpush1.bf16.msra.mxu0 0
        %4681 = vmatprep.subr.bf16.mxu0 0
        %4682 = vmatpush1.bf16.msra.mxu0 0
        %4683 = vmatprep.subr.bf16.mxu0 0
        %4684 = vmatpush1.bf16.msra.mxu0 0
        %4685 = vmatprep.subr.bf16.mxu0 0
        %4686 = vmatpush1.bf16.msra.mxu0 0
        %4687 = vmatprep.subr.bf16.mxu0 0
        %4688 = vmatpush1.bf16.msra.mxu0 0
        %4689 = vmatprep.subr.bf16.mxu0 0
        %4690 = vmatpush1.bf16.msra.mxu0 0
        %4691 = vmatprep.mubr.bf16.mxu0 0
        %4692 = vmatmul.mubr.bf16.gmra.mrb[0].mxu0 %v4575
        %v4693 = vpop.f32.mrb[0].mxu0
        %v4694 = vadd.f32 0.0, %v4693
        %v4695 = vpop.f32.mrb[0].mxu0
        %v4696 = vadd.f32 0.0, %v4695
        %v4697 = vpop.f32.mrb[0].mxu0
        %v4698 = vpop.f32.mrb[0].mxu0
        %4699 = vdwg.mxu0
        %4700 = vmatprep.subr.bf16.mxu0 %v4452
        %4701 = vmatpush1.bf16.msra.mxu0 %v4451
        %4702 = vmatprep.subr.bf16.mxu0 %v4484
        %4703 = vmatpush1.bf16.msra.mxu0 %v4483
        %4704 = vmatprep.subr.bf16.mxu0 0
        %4705 = vmatpush1.bf16.msra.mxu0 0
        %4706 = vmatprep.subr.bf16.mxu0 0
        %4707 = vmatpush1.bf16.msra.mxu0 0
        %4708 = vmatprep.subr.bf16.mxu0 0
        %4709 = vmatpush1.bf16.msra.mxu0 0
        %4710 = vmatprep.subr.bf16.mxu0 0
        %4711 = vmatpush1.bf16.msra.mxu0 0
        %4712 = vmatprep.subr.bf16.mxu0 0
        %4713 = vmatpush1.bf16.msra.mxu0 0
        %4714 = vmatprep.subr.bf16.mxu0 0
        %4715 = vmatpush1.bf16.msra.mxu0 0
        %4716 = vmatprep.subr.bf16.mxu0 0
        %4717 = vmatpush1.bf16.msra.mxu0 0
        %4718 = vmatprep.subr.bf16.mxu0 0
        %4719 = vmatpush1.bf16.msra.mxu0 0
        %4720 = vmatprep.subr.bf16.mxu0 0
        %4721 = vmatpush1.bf16.msra.mxu0 0
        %4722 = vmatprep.subr.bf16.mxu0 0
        %4723 = vmatpush1.bf16.msra.mxu0 0
        %4724 = vmatprep.subr.bf16.mxu0 0
        %4725 = vmatpush1.bf16.msra.mxu0 0
        %4726 = vmatprep.subr.bf16.mxu0 0
        %4727 = vmatpush1.bf16.msra.mxu0 0
        %4728 = vmatprep.subr.bf16.mxu0 0
        %4729 = vmatpush1.bf16.msra.mxu0 0
        %4730 = vmatprep.subr.bf16.mxu0 0
        %4731 = vmatpush1.bf16.msra.mxu0 0
        %4732 = vmatprep.mubr.bf16.mxu0 0
        %4733 = vmatmul.mubr.bf16.gmra.mrb[0].mxu0 %v4575
        %v4734 = vpop.f32.mrb[0].mxu0
        %v4735 = vadd.f32 0.0, %v4734
        %v4736 = vpop.f32.mrb[0].mxu0
        %v4737 = vadd.f32 0.0, %v4736
        %v4738 = vpop.f32.mrb[0].mxu0
        %v4739 = vpop.f32.mrb[0].mxu0
        %4740 = vdwg.mxu0
        %4741 = vmatprep.subr.bf16.mxu0 %v4454
        %4742 = vmatpush1.bf16.msra.mxu0 %v4453
        %4743 = vmatprep.subr.bf16.mxu0 %v4486
        %4744 = vmatpush1.bf16.msra.mxu0 %v4485
        %4745 = vmatprep.subr.bf16.mxu0 0
        %4746 = vmatpush1.bf16.msra.mxu0 0
        %4747 = vmatprep.subr.bf16.mxu0 0
        %4748 = vmatpush1.bf16.msra.mxu0 0
        %4749 = vmatprep.subr.bf16.mxu0 0
        %4750 = vmatpush1.bf16.msra.mxu0 0
        %4751 = vmatprep.subr.bf16.mxu0 0
        %4752 = vmatpush1.bf16.msra.mxu0 0
        %4753 = vmatprep.subr.bf16.mxu0 0
        %4754 = vmatpush1.bf16.msra.mxu0 0
        %4755 = vmatprep.subr.bf16.mxu0 0
        %4756 = vmatpush1.bf16.msra.mxu0 0
        %4757 = vmatprep.subr.bf16.mxu0 0
        %4758 = vmatpush1.bf16.msra.mxu0 0
        %4759 = vmatprep.subr.bf16.mxu0 0
        %4760 = vmatpush1.bf16.msra.mxu0 0
        %4761 = vmatprep.subr.bf16.mxu0 0
        %4762 = vmatpush1.bf16.msra.mxu0 0
        %4763 = vmatprep.subr.bf16.mxu0 0
        %4764 = vmatpush1.bf16.msra.mxu0 0
        %4765 = vmatprep.subr.bf16.mxu0 0
        %4766 = vmatpush1.bf16.msra.mxu0 0
        %4767 = vmatprep.subr.bf16.mxu0 0
        %4768 = vmatpush1.bf16.msra.mxu0 0
        %4769 = vmatprep.subr.bf16.mxu0 0
        %4770 = vmatpush1.bf16.msra.mxu0 0
        %4771 = vmatprep.subr.bf16.mxu0 0
        %4772 = vmatpush1.bf16.msra.mxu0 0
        %4773 = vmatprep.mubr.bf16.mxu0 0
        %4774 = vmatmul.mubr.bf16.gmra.mrb[0].mxu0 %v4575
        %v4775 = vpop.f32.mrb[0].mxu0
        %v4776 = vadd.f32 0.0, %v4775
        %v4777 = vpop.f32.mrb[0].mxu0
        %v4778 = vadd.f32 0.0, %v4777
        %v4779 = vpop.f32.mrb[0].mxu0
        %v4780 = vpop.f32.mrb[0].mxu0
        %4781 = vdwg.mxu0
        %4782 = vmatprep.subr.bf16.mxu0 %v4456
        %4783 = vmatpush1.bf16.msra.mxu0 %v4455
        %4784 = vmatprep.subr.bf16.mxu0 %v4488
        %4785 = vmatpush1.bf16.msra.mxu0 %v4487
        %4786 = vmatprep.subr.bf16.mxu0 0
        %4787 = vmatpush1.bf16.msra.mxu0 0
        %4788 = vmatprep.subr.bf16.mxu0 0
        %4789 = vmatpush1.bf16.msra.mxu0 0
        %4790 = vmatprep.subr.bf16.mxu0 0
        %4791 = vmatpush1.bf16.msra.mxu0 0
        %4792 = vmatprep.subr.bf16.mxu0 0
        %4793 = vmatpush1.bf16.msra.mxu0 0
        %4794 = vmatprep.subr.bf16.mxu0 0
        %4795 = vmatpush1.bf16.msra.mxu0 0
        %4796 = vmatprep.subr.bf16.mxu0 0
        %4797 = vmatpush1.bf16.msra.mxu0 0
        %4798 = vmatprep.subr.bf16.mxu0 0
        %4799 = vmatpush1.bf16.msra.mxu0 0
        %4800 = vmatprep.subr.bf16.mxu0 0
        %4801 = vmatpush1.bf16.msra.mxu0 0
        %4802 = vmatprep.subr.bf16.mxu0 0
        %4803 = vmatpush1.bf16.msra.mxu0 0
        %4804 = vmatprep.subr.bf16.mxu0 0
        %4805 = vmatpush1.bf16.msra.mxu0 0
        %4806 = vmatprep.subr.bf16.mxu0 0
        %4807 = vmatpush1.bf16.msra.mxu0 0
        %4808 = vmatprep.subr.bf16.mxu0 0
        %4809 = vmatpush1.bf16.msra.mxu0 0
        %4810 = vmatprep.subr.bf16.mxu0 0
        %4811 = vmatpush1.bf16.msra.mxu0 0
        %4812 = vmatprep.subr.bf16.mxu0 0
        %4813 = vmatpush1.bf16.msra.mxu0 0
        %4814 = vmatprep.mubr.bf16.mxu0 0
        %4815 = vmatmul.mubr.bf16.gmra.mrb[0].mxu0 %v4575
        %v4816 = vpop.f32.mrb[0].mxu0
        %v4817 = vadd.f32 0.0, %v4816
        %v4818 = vpop.f32.mrb[0].mxu0
        %v4819 = vadd.f32 0.0, %v4818
        %v4820 = vpop.f32.mrb[0].mxu0
        %v4821 = vpop.f32.mrb[0].mxu0
        %4822 = vdwg.mxu0
        %4823 = vmatprep.subr.bf16.mxu0 %v4458
        %4824 = vmatpush1.bf16.msra.mxu0 %v4457
        %4825 = vmatprep.subr.bf16.mxu0 %v4490
        %4826 = vmatpush1.bf16.msra.mxu0 %v4489
        %4827 = vmatprep.subr.bf16.mxu0 0
        %4828 = vmatpush1.bf16.msra.mxu0 0
        %4829 = vmatprep.subr.bf16.mxu0 0
        %4830 = vmatpush1.bf16.msra.mxu0 0
        %4831 = vmatprep.subr.bf16.mxu0 0
        %4832 = vmatpush1.bf16.msra.mxu0 0
        %4833 = vmatprep.subr.bf16.mxu0 0
        %4834 = vmatpush1.bf16.msra.mxu0 0
        %4835 = vmatprep.subr.bf16.mxu0 0
        %4836 = vmatpush1.bf16.msra.mxu0 0
        %4837 = vmatprep.subr.bf16.mxu0 0
        %4838 = vmatpush1.bf16.msra.mxu0 0
        %4839 = vmatprep.subr.bf16.mxu0 0
        %4840 = vmatpush1.bf16.msra.mxu0 0
        %4841 = vmatprep.subr.bf16.mxu0 0
        %4842 = vmatpush1.bf16.msra.mxu0 0
        %4843 = vmatprep.subr.bf16.mxu0 0
        %4844 = vmatpush1.bf16.msra.mxu0 0
        %4845 = vmatprep.subr.bf16.mxu0 0
        %4846 = vmatpush1.bf16.msra.mxu0 0
        %4847 = vmatprep.subr.bf16.mxu0 0
        %4848 = vmatpush1.bf16.msra.mxu0 0
        %4849 = vmatprep.subr.bf16.mxu0 0
        %4850 = vmatpush1.bf16.msra.mxu0 0
        %4851 = vmatprep.subr.bf16.mxu0 0
        %4852 = vmatpush1.bf16.msra.mxu0 0
        %4853 = vmatprep.subr.bf16.mxu0 0
        %4854 = vmatpush1.bf16.msra.mxu0 0
        %4855 = vmatprep.mubr.bf16.mxu0 0
        %4856 = vmatmul.mubr.bf16.gmra.mrb[0].mxu0 %v4575
        %v4857 = vpop.f32.mrb[0].mxu0
        %v4858 = vadd.f32 0.0, %v4857
        %v4859 = vpop.f32.mrb[0].mxu0
        %v4860 = vadd.f32 0.0, %v4859
        %v4861 = vpop.f32.mrb[0].mxu0
        %v4862 = vpop.f32.mrb[0].mxu0
        %4863 = vdwg.mxu0
        %4864 = vmatprep.subr.bf16.mxu0 %v4460
        %4865 = vmatpush1.bf16.msra.mxu0 %v4459
        %4866 = vmatprep.subr.bf16.mxu0 %v4492
        %4867 = vmatpush1.bf16.msra.mxu0 %v4491
        %4868 = vmatprep.subr.bf16.mxu0 0
        %4869 = vmatpush1.bf16.msra.mxu0 0
        %4870 = vmatprep.subr.bf16.mxu0 0
        %4871 = vmatpush1.bf16.msra.mxu0 0
        %4872 = vmatprep.subr.bf16.mxu0 0
        %4873 = vmatpush1.bf16.msra.mxu0 0
        %4874 = vmatprep.subr.bf16.mxu0 0
        %4875 = vmatpush1.bf16.msra.mxu0 0
        %4876 = vmatprep.subr.bf16.mxu0 0
        %4877 = vmatpush1.bf16.msra.mxu0 0
        %4878 = vmatprep.subr.bf16.mxu0 0
        %4879 = vmatpush1.bf16.msra.mxu0 0
        %4880 = vmatprep.subr.bf16.mxu0 0
        %4881 = vmatpush1.bf16.msra.mxu0 0
        %4882 = vmatprep.subr.bf16.mxu0 0
        %4883 = vmatpush1.bf16.msra.mxu0 0
        %4884 = vmatprep.subr.bf16.mxu0 0
        %4885 = vmatpush1.bf16.msra.mxu0 0
        %4886 = vmatprep.subr.bf16.mxu0 0
        %4887 = vmatpush1.bf16.msra.mxu0 0
        %4888 = vmatprep.subr.bf16.mxu0 0
        %4889 = vmatpush1.bf16.msra.mxu0 0
        %4890 = vmatprep.subr.bf16.mxu0 0
        %4891 = vmatpush1.bf16.msra.mxu0 0
        %4892 = vmatprep.subr.bf16.mxu0 0
        %4893 = vmatpush1.bf16.msra.mxu0 0
        %4894 = vmatprep.subr.bf16.mxu0 0
        %4895 = vmatpush1.bf16.msra.mxu0 0
        %4896 = vmatprep.mubr.bf16.mxu0 0
        %4897 = vmatmul.mubr.bf16.gmra.mrb[0].mxu0 %v4575
        %v4898 = vpop.f32.mrb[0].mxu0
        %v4899 = vadd.f32 0.0, %v4898
        %v4900 = vpop.f32.mrb[0].mxu0
        %v4901 = vadd.f32 0.0, %v4900
        %v4902 = vpop.f32.mrb[0].mxu0
        %v4903 = vpop.f32.mrb[0].mxu0
        %4904 = vdwg.mxu0
        %4905 = vmatprep.subr.bf16.mxu0 %v4462
        %4906 = vmatpush1.bf16.msra.mxu0 %v4461
        %4907 = vmatprep.subr.bf16.mxu0 %v4494
        %4908 = vmatpush1.bf16.msra.mxu0 %v4493
        %4909 = vmatprep.subr.bf16.mxu0 0
        %4910 = vmatpush1.bf16.msra.mxu0 0
        %4911 = vmatprep.subr.bf16.mxu0 0
        %4912 = vmatpush1.bf16.msra.mxu0 0
        %4913 = vmatprep.subr.bf16.mxu0 0
        %4914 = vmatpush1.bf16.msra.mxu0 0
        %4915 = vmatprep.subr.bf16.mxu0 0
        %4916 = vmatpush1.bf16.msra.mxu0 0
        %4917 = vmatprep.subr.bf16.mxu0 0
        %4918 = vmatpush1.bf16.msra.mxu0 0
        %4919 = vmatprep.subr.bf16.mxu0 0
        %4920 = vmatpush1.bf16.msra.mxu0 0
        %4921 = vmatprep.subr.bf16.mxu0 0
        %4922 = vmatpush1.bf16.msra.mxu0 0
        %4923 = vmatprep.subr.bf16.mxu0 0
        %4924 = vmatpush1.bf16.msra.mxu0 0
        %4925 = vmatprep.subr.bf16.mxu0 0
        %4926 = vmatpush1.bf16.msra.mxu0 0
        %4927 = vmatprep.subr.bf16.mxu0 0
        %4928 = vmatpush1.bf16.msra.mxu0 0
        %4929 = vmatprep.subr.bf16.mxu0 0
        %4930 = vmatpush1.bf16.msra.mxu0 0
        %4931 = vmatprep.subr.bf16.mxu0 0
        %4932 = vmatpush1.bf16.msra.mxu0 0
        %4933 = vmatprep.subr.bf16.mxu0 0
        %4934 = vmatpush1.bf16.msra.mxu0 0
        %4935 = vmatprep.subr.bf16.mxu0 0
        %4936 = vmatpush1.bf16.msra.mxu0 0
        %4937 = vmatprep.mubr.bf16.mxu0 0
        %4938 = vmatmul.mubr.bf16.gmra.mrb[0].mxu0 %v4575
        %v4939 = vpop.f32.mrb[0].mxu0
        %v4940 = vadd.f32 0.0, %v4939
        %v4941 = vpop.f32.mrb[0].mxu0
        %v4942 = vadd.f32 0.0, %v4941
        %v4943 = vpop.f32.mrb[0].mxu0
        %v4944 = vpop.f32.mrb[0].mxu0
        %4945 = vdwg.mxu0
        %4946 = vmatprep.subr.bf16.mxu0 %v4464
        %4947 = vmatpush1.bf16.msra.mxu0 %v4463
        %4948 = vmatprep.subr.bf16.mxu0 %v4496
        %4949 = vmatpush1.bf16.msra.mxu0 %v4495
        %4950 = vmatprep.subr.bf16.mxu0 0
        %4951 = vmatpush1.bf16.msra.mxu0 0
        %4952 = vmatprep.subr.bf16.mxu0 0
        %4953 = vmatpush1.bf16.msra.mxu0 0
        %4954 = vmatprep.subr.bf16.mxu0 0
        %4955 = vmatpush1.bf16.msra.mxu0 0
        %4956 = vmatprep.subr.bf16.mxu0 0
        %4957 = vmatpush1.bf16.msra.mxu0 0
        %4958 = vmatprep.subr.bf16.mxu0 0
        %4959 = vmatpush1.bf16.msra.mxu0 0
        %4960 = vmatprep.subr.bf16.mxu0 0
        %4961 = vmatpush1.bf16.msra.mxu0 0
        %4962 = vmatprep.subr.bf16.mxu0 0
        %4963 = vmatpush1.bf16.msra.mxu0 0
        %4964 = vmatprep.subr.bf16.mxu0 0
        %4965 = vmatpush1.bf16.msra.mxu0 0
        %4966 = vmatprep.subr.bf16.mxu0 0
        %4967 = vmatpush1.bf16.msra.mxu0 0
        %4968 = vmatprep.subr.bf16.mxu0 0
        %4969 = vmatpush1.bf16.msra.mxu0 0
        %4970 = vmatprep.subr.bf16.mxu0 0
        %4971 = vmatpush1.bf16.msra.mxu0 0
        %4972 = vmatprep.subr.bf16.mxu0 0
        %4973 = vmatpush1.bf16.msra.mxu0 0
        %4974 = vmatprep.subr.bf16.mxu0 0
        %4975 = vmatpush1.bf16.msra.mxu0 0
        %4976 = vmatprep.subr.bf16.mxu0 0
        %4977 = vmatpush1.bf16.msra.mxu0 0
        %4978 = vmatprep.mubr.bf16.mxu0 0
        %4979 = vmatmul.mubr.bf16.gmra.mrb[0].mxu0 %v4575
        %v4980 = vpop.f32.mrb[0].mxu0
        %v4981 = vadd.f32 0.0, %v4980
        %v4982 = vpop.f32.mrb[0].mxu0
        %v4983 = vadd.f32 0.0, %v4982
        %v4984 = vpop.f32.mrb[0].mxu0
        %v4985 = vpop.f32.mrb[0].mxu0
        %4986 = vdwg.mxu0
        %4987 = vmatprep.subr.bf16.mxu0 %v4466
        %4988 = vmatpush1.bf16.msra.mxu0 %v4465
        %4989 = vmatprep.subr.bf16.mxu0 %v4498
        %4990 = vmatpush1.bf16.msra.mxu0 %v4497
        %4991 = vmatprep.subr.bf16.mxu0 0
        %4992 = vmatpush1.bf16.msra.mxu0 0
        %4993 = vmatprep.subr.bf16.mxu0 0
        %4994 = vmatpush1.bf16.msra.mxu0 0
        %4995 = vmatprep.subr.bf16.mxu0 0
        %4996 = vmatpush1.bf16.msra.mxu0 0
        %4997 = vmatprep.subr.bf16.mxu0 0
        %4998 = vmatpush1.bf16.msra.mxu0 0
        %4999 = vmatprep.subr.bf16.mxu0 0
        %5000 = vmatpush1.bf16.msra.mxu0 0
        %5001 = vmatprep.subr.bf16.mxu0 0
        %5002 = vmatpush1.bf16.msra.mxu0 0
        %5003 = vmatprep.subr.bf16.mxu0 0
        %5004 = vmatpush1.bf16.msra.mxu0 0
        %5005 = vmatprep.subr.bf16.mxu0 0
        %5006 = vmatpush1.bf16.msra.mxu0 0
        %5007 = vmatprep.subr.bf16.mxu0 0
        %5008 = vmatpush1.bf16.msra.mxu0 0
        %5009 = vmatprep.subr.bf16.mxu0 0
        %5010 = vmatpush1.bf16.msra.mxu0 0
        %5011 = vmatprep.subr.bf16.mxu0 0
        %5012 = vmatpush1.bf16.msra.mxu0 0
        %5013 = vmatprep.subr.bf16.mxu0 0
        %5014 = vmatpush1.bf16.msra.mxu0 0
        %5015 = vmatprep.subr.bf16.mxu0 0
        %5016 = vmatpush1.bf16.msra.mxu0 0
        %5017 = vmatprep.subr.bf16.mxu0 0
        %5018 = vmatpush1.bf16.msra.mxu0 0
        %5019 = vmatprep.mubr.bf16.mxu0 0
        %5020 = vmatmul.mubr.bf16.gmra.mrb[0].mxu0 %v4575
        %v5021 = vpop.f32.mrb[0].mxu0
        %v5022 = vadd.f32 0.0, %v5021
        %v5023 = vpop.f32.mrb[0].mxu0
        %v5024 = vadd.f32 0.0, %v5023
        %v5025 = vpop.f32.mrb[0].mxu0
        %v5026 = vpop.f32.mrb[0].mxu0
        %5027 = vdwg.mxu0
        %5028 = vmatprep.subr.bf16.mxu0 %v4468
        %5029 = vmatpush1.bf16.msra.mxu0 %v4467
        %5030 = vmatprep.subr.bf16.mxu0 %v4500
        %5031 = vmatpush1.bf16.msra.mxu0 %v4499
        %5032 = vmatprep.subr.bf16.mxu0 0
        %5033 = vmatpush1.bf16.msra.mxu0 0
        %5034 = vmatprep.subr.bf16.mxu0 0
        %5035 = vmatpush1.bf16.msra.mxu0 0
        %5036 = vmatprep.subr.bf16.mxu0 0
        %5037 = vmatpush1.bf16.msra.mxu0 0
        %5038 = vmatprep.subr.bf16.mxu0 0
        %5039 = vmatpush1.bf16.msra.mxu0 0
        %5040 = vmatprep.subr.bf16.mxu0 0
        %5041 = vmatpush1.bf16.msra.mxu0 0
        %5042 = vmatprep.subr.bf16.mxu0 0
        %5043 = vmatpush1.bf16.msra.mxu0 0
        %5044 = vmatprep.subr.bf16.mxu0 0
        %5045 = vmatpush1.bf16.msra.mxu0 0
        %5046 = vmatprep.subr.bf16.mxu0 0
        %5047 = vmatpush1.bf16.msra.mxu0 0
        %5048 = vmatprep.subr.bf16.mxu0 0
        %5049 = vmatpush1.bf16.msra.mxu0 0
        %5050 = vmatprep.subr.bf16.mxu0 0
        %5051 = vmatpush1.bf16.msra.mxu0 0
        %5052 = vmatprep.subr.bf16.mxu0 0
        %5053 = vmatpush1.bf16.msra.mxu0 0
        %5054 = vmatprep.subr.bf16.mxu0 0
        %5055 = vmatpush1.bf16.msra.mxu0 0
        %5056 = vmatprep.subr.bf16.mxu0 0
        %5057 = vmatpush1.bf16.msra.mxu0 0
        %5058 = vmatprep.subr.bf16.mxu0 0
        %5059 = vmatpush1.bf16.msra.mxu0 0
        %5060 = vmatprep.mubr.bf16.mxu0 0
        %5061 = vmatmul.mubr.bf16.gmra.mrb[0].mxu0 %v4575
        %v5062 = vpop.f32.mrb[0].mxu0
        %v5063 = vadd.f32 0.0, %v5062
        %v5064 = vpop.f32.mrb[0].mxu0
        %v5065 = vadd.f32 0.0, %v5064
        %v5066 = vpop.f32.mrb[0].mxu0
        %v5067 = vpop.f32.mrb[0].mxu0
        %5068 = vdwg.mxu0
        %5069 = vmatprep.subr.bf16.mxu0 %v4470
        %5070 = vmatpush1.bf16.msra.mxu0 %v4469
        %5071 = vmatprep.subr.bf16.mxu0 %v4502
        %5072 = vmatpush1.bf16.msra.mxu0 %v4501
        %5073 = vmatprep.subr.bf16.mxu0 0
        %5074 = vmatpush1.bf16.msra.mxu0 0
        %5075 = vmatprep.subr.bf16.mxu0 0
        %5076 = vmatpush1.bf16.msra.mxu0 0
        %5077 = vmatprep.subr.bf16.mxu0 0
        %5078 = vmatpush1.bf16.msra.mxu0 0
        %5079 = vmatprep.subr.bf16.mxu0 0
        %5080 = vmatpush1.bf16.msra.mxu0 0
        %5081 = vmatprep.subr.bf16.mxu0 0
        %5082 = vmatpush1.bf16.msra.mxu0 0
        %5083 = vmatprep.subr.bf16.mxu0 0
        %5084 = vmatpush1.bf16.msra.mxu0 0
        %5085 = vmatprep.subr.bf16.mxu0 0
        %5086 = vmatpush1.bf16.msra.mxu0 0
        %5087 = vmatprep.subr.bf16.mxu0 0
        %5088 = vmatpush1.bf16.msra.mxu0 0
        %5089 = vmatprep.subr.bf16.mxu0 0
        %5090 = vmatpush1.bf16.msra.mxu0 0
        %5091 = vmatprep.subr.bf16.mxu0 0
        %5092 = vmatpush1.bf16.msra.mxu0 0
        %5093 = vmatprep.subr.bf16.mxu0 0
        %5094 = vmatpush1.bf16.msra.mxu0 0
        %5095 = vmatprep.subr.bf16.mxu0 0
        %5096 = vmatpush1.bf16.msra.mxu0 0
        %5097 = vmatprep.subr.bf16.mxu0 0
        %5098 = vmatpush1.bf16.msra.mxu0 0
        %5099 = vmatprep.subr.bf16.mxu0 0
        %5100 = vmatpush1.bf16.msra.mxu0 0
        %5101 = vmatprep.mubr.bf16.mxu0 0
        %5102 = vmatmul.mubr.bf16.gmra.mrb[0].mxu0 %v4575
        %v5103 = vpop.f32.mrb[0].mxu0
        %v5104 = vadd.f32 0.0, %v5103
        %v5105 = vpop.f32.mrb[0].mxu0
        %v5106 = vadd.f32 0.0, %v5105
        %v5107 = vpop.f32.mrb[0].mxu0
        %v5108 = vpop.f32.mrb[0].mxu0
        %5109 = vdwg.mxu0
        %5110 = vmatprep.subr.bf16.mxu0 %v4472
        %5111 = vmatpush1.bf16.msra.mxu0 %v4471
        %5112 = vmatprep.subr.bf16.mxu0 %v4504
        %5113 = vmatpush1.bf16.msra.mxu0 %v4503
        %5114 = vmatprep.subr.bf16.mxu0 0
        %5115 = vmatpush1.bf16.msra.mxu0 0
        %5116 = vmatprep.subr.bf16.mxu0 0
        %5117 = vmatpush1.bf16.msra.mxu0 0
        %5118 = vmatprep.subr.bf16.mxu0 0
        %5119 = vmatpush1.bf16.msra.mxu0 0
        %5120 = vmatprep.subr.bf16.mxu0 0
        %5121 = vmatpush1.bf16.msra.mxu0 0
        %5122 = vmatprep.subr.bf16.mxu0 0
        %5123 = vmatpush1.bf16.msra.mxu0 0
        %5124 = vmatprep.subr.bf16.mxu0 0
        %5125 = vmatpush1.bf16.msra.mxu0 0
        %5126 = vmatprep.subr.bf16.mxu0 0
        %5127 = vmatpush1.bf16.msra.mxu0 0
        %5128 = vmatprep.subr.bf16.mxu0 0
        %5129 = vmatpush1.bf16.msra.mxu0 0
        %5130 = vmatprep.subr.bf16.mxu0 0
        %5131 = vmatpush1.bf16.msra.mxu0 0
        %5132 = vmatprep.subr.bf16.mxu0 0
        %5133 = vmatpush1.bf16.msra.mxu0 0
        %5134 = vmatprep.subr.bf16.mxu0 0
        %5135 = vmatpush1.bf16.msra.mxu0 0
        %5136 = vmatprep.subr.bf16.mxu0 0
        %5137 = vmatpush1.bf16.msra.mxu0 0
        %5138 = vmatprep.subr.bf16.mxu0 0
        %5139 = vmatpush1.bf16.msra.mxu0 0
        %5140 = vmatprep.subr.bf16.mxu0 0
        %5141 = vmatpush1.bf16.msra.mxu0 0
        %5142 = vmatprep.mubr.bf16.mxu0 0
        %5143 = vmatmul.mubr.bf16.gmra.mrb[0].mxu0 %v4575
        %v5144 = vpop.f32.mrb[0].mxu0
        %v5145 = vadd.f32 0.0, %v5144
        %v5146 = vpop.f32.mrb[0].mxu0
        %v5147 = vadd.f32 0.0, %v5146
        %v5148 = vpop.f32.mrb[0].mxu0
        %v5149 = vpop.f32.mrb[0].mxu0
        %5150 = vdwg.mxu0
        %5151 = vmatprep.subr.bf16.mxu0 %v4474
        %5152 = vmatpush1.bf16.msra.mxu0 %v4473
        %5153 = vmatprep.subr.bf16.mxu0 %v4506
        %5154 = vmatpush1.bf16.msra.mxu0 %v4505
        %5155 = vmatprep.subr.bf16.mxu0 0
        %5156 = vmatpush1.bf16.msra.mxu0 0
        %5157 = vmatprep.subr.bf16.mxu0 0
        %5158 = vmatpush1.bf16.msra.mxu0 0
        %5159 = vmatprep.subr.bf16.mxu0 0
        %5160 = vmatpush1.bf16.msra.mxu0 0
        %5161 = vmatprep.subr.bf16.mxu0 0
        %5162 = vmatpush1.bf16.msra.mxu0 0
        %5163 = vmatprep.subr.bf16.mxu0 0
        %5164 = vmatpush1.bf16.msra.mxu0 0
        %5165 = vmatprep.subr.bf16.mxu0 0
        %5166 = vmatpush1.bf16.msra.mxu0 0
        %5167 = vmatprep.subr.bf16.mxu0 0
        %5168 = vmatpush1.bf16.msra.mxu0 0
        %5169 = vmatprep.subr.bf16.mxu0 0
        %5170 = vmatpush1.bf16.msra.mxu0 0
        %5171 = vmatprep.subr.bf16.mxu0 0
        %5172 = vmatpush1.bf16.msra.mxu0 0
        %5173 = vmatprep.subr.bf16.mxu0 0
        %5174 = vmatpush1.bf16.msra.mxu0 0
        %5175 = vmatprep.subr.bf16.mxu0 0
        %5176 = vmatpush1.bf16.msra.mxu0 0
        %5177 = vmatprep.subr.bf16.mxu0 0
        %5178 = vmatpush1.bf16.msra.mxu0 0
        %5179 = vmatprep.subr.bf16.mxu0 0
        %5180 = vmatpush1.bf16.msra.mxu0 0
        %5181 = vmatprep.subr.bf16.mxu0 0
        %5182 = vmatpush1.bf16.msra.mxu0 0
        %5183 = vmatprep.mubr.bf16.mxu0 0
        %5184 = vmatmul.mubr.bf16.gmra.mrb[0].mxu0 %v4575
        %v5185 = vpop.f32.mrb[0].mxu0
        %v5186 = vadd.f32 0.0, %v5185
        %v5187 = vpop.f32.mrb[0].mxu0
        %v5188 = vadd.f32 0.0, %v5187
        %v5189 = vpop.f32.mrb[0].mxu0
        %v5190 = vpop.f32.mrb[0].mxu0
        %5191 = vdwg.mxu0
        %5192 = vmatprep.subr.bf16.mxu0 %v4476
        %5193 = vmatpush1.bf16.msra.mxu0 %v4475
        %5194 = vmatprep.subr.bf16.mxu0 %v4508
        %5195 = vmatpush1.bf16.msra.mxu0 %v4507
        %5196 = vmatprep.subr.bf16.mxu0 0
        %5197 = vmatpush1.bf16.msra.mxu0 0
        %5198 = vmatprep.subr.bf16.mxu0 0
        %5199 = vmatpush1.bf16.msra.mxu0 0
        %5200 = vmatprep.subr.bf16.mxu0 0
        %5201 = vmatpush1.bf16.msra.mxu0 0
        %5202 = vmatprep.subr.bf16.mxu0 0
        %5203 = vmatpush1.bf16.msra.mxu0 0
        %5204 = vmatprep.subr.bf16.mxu0 0
        %5205 = vmatpush1.bf16.msra.mxu0 0
        %5206 = vmatprep.subr.bf16.mxu0 0
        %5207 = vmatpush1.bf16.msra.mxu0 0
        %5208 = vmatprep.subr.bf16.mxu0 0
        %5209 = vmatpush1.bf16.msra.mxu0 0
        %5210 = vmatprep.subr.bf16.mxu0 0
        %5211 = vmatpush1.bf16.msra.mxu0 0
        %5212 = vmatprep.subr.bf16.mxu0 0
        %5213 = vmatpush1.bf16.msra.mxu0 0
        %5214 = vmatprep.subr.bf16.mxu0 0
        %5215 = vmatpush1.bf16.msra.mxu0 0
        %5216 = vmatprep.subr.bf16.mxu0 0
        %5217 = vmatpush1.bf16.msra.mxu0 0
        %5218 = vmatprep.subr.bf16.mxu0 0
        %5219 = vmatpush1.bf16.msra.mxu0 0
        %5220 = vmatprep.subr.bf16.mxu0 0
        %5221 = vmatpush1.bf16.msra.mxu0 0
        %5222 = vmatprep.subr.bf16.mxu0 0
        %5223 = vmatpush1.bf16.msra.mxu0 0
        %5224 = vmatprep.mubr.bf16.mxu0 0
        %5225 = vmatmul.mubr.bf16.gmra.mrb[0].mxu0 %v4575
        %v5226 = vpop.f32.mrb[0].mxu0
        %v5227 = vadd.f32 0.0, %v5226
        %v5228 = vpop.f32.mrb[0].mxu0
        %v5229 = vadd.f32 0.0, %v5228
        %v5230 = vpop.f32.mrb[0].mxu0
        %v5231 = vpop.f32.mrb[0].mxu0
        %5232 = vdwg.mxu0
        %v5265 = vcombine.low %v4612, %v4614
        %v5266 = vcombine.low %v4653, %v4655
        %v5268 = vunpack.c.l.s4 1983009808
        %v5269 = vunpack.c.0.s8 %v5268
        %v5270 = vlaneseq
        %v5271 = vshrl.u32 %v5270, 7
        %v5272 = vsub.s32 %v5269, %v5271
        %v5273 = vrot.slane %v5265, %v5272
        %v5275 = vunpack.c.l.s4 1983009808
        %v5276 = vunpack.c.0.s8 %v5275
        %v5277 = vlaneseq
        %v5278 = vshrl.u32 %v5277, 7
        %v5279 = vsub.s32 %v5276, %v5278
        %v5280 = vrot.slane %v5266, %v5279
        %v5281 = vcombine.low %v5273, %v5280
        %v5282 = vcombine.low %v4694, %v4696
        %v5283 = vcombine.low %v4735, %v4737
        %v5285 = vunpack.c.l.s4 1983009808
        %v5286 = vunpack.c.0.s8 %v5285
        %v5287 = vlaneseq
        %v5288 = vshrl.u32 %v5287, 7
        %v5289 = vsub.s32 %v5286, %v5288
        %v5290 = vrot.slane %v5282, %v5289
        %v5292 = vunpack.c.l.s4 1983009808
        %v5293 = vunpack.c.0.s8 %v5292
        %v5294 = vlaneseq
        %v5295 = vshrl.u32 %v5294, 7
        %v5296 = vsub.s32 %v5293, %v5295
        %v5297 = vrot.slane %v5283, %v5296
        %v5298 = vcombine.low %v5290, %v5297
        %v5299 = vcombine.low %v4776, %v4778
        %v5300 = vcombine.low %v4817, %v4819
        %v5302 = vunpack.c.l.s4 1983009808
        %v5303 = vunpack.c.0.s8 %v5302
        %v5304 = vlaneseq
        %v5305 = vshrl.u32 %v5304, 7
        %v5306 = vsub.s32 %v5303, %v5305
        %v5307 = vrot.slane %v5299, %v5306
        %v5309 = vunpack.c.l.s4 1983009808
        %v5310 = vunpack.c.0.s8 %v5309
        %v5311 = vlaneseq
        %v5312 = vshrl.u32 %v5311, 7
        %v5313 = vsub.s32 %v5310, %v5312
        %v5314 = vrot.slane %v5300, %v5313
        %v5315 = vcombine.low %v5307, %v5314
        %v5316 = vcombine.low %v4858, %v4860
        %v5317 = vcombine.low %v4899, %v4901
        %v5319 = vunpack.c.l.s4 1983009808
        %v5320 = vunpack.c.0.s8 %v5319
        %v5321 = vlaneseq
        %v5322 = vshrl.u32 %v5321, 7
        %v5323 = vsub.s32 %v5320, %v5322
        %v5324 = vrot.slane %v5316, %v5323
        %v5326 = vunpack.c.l.s4 1983009808
        %v5327 = vunpack.c.0.s8 %v5326
        %v5328 = vlaneseq
        %v5329 = vshrl.u32 %v5328, 7
        %v5330 = vsub.s32 %v5327, %v5329
        %v5331 = vrot.slane %v5317, %v5330
        %v5332 = vcombine.low %v5324, %v5331
        %v5333 = vcombine.low %v4940, %v4942
        %v5334 = vcombine.low %v4981, %v4983
        %v5336 = vunpack.c.l.s4 1983009808
        %v5337 = vunpack.c.0.s8 %v5336
        %v5338 = vlaneseq
        %v5339 = vshrl.u32 %v5338, 7
        %v5340 = vsub.s32 %v5337, %v5339
        %v5341 = vrot.slane %v5333, %v5340
        %v5343 = vunpack.c.l.s4 1983009808
        %v5344 = vunpack.c.0.s8 %v5343
        %v5345 = vlaneseq
        %v5346 = vshrl.u32 %v5345, 7
        %v5347 = vsub.s32 %v5344, %v5346
        %v5348 = vrot.slane %v5334, %v5347
        %v5349 = vcombine.low %v5341, %v5348
        %v5350 = vcombine.low %v5022, %v5024
        %v5351 = vcombine.low %v5063, %v5065
        %v5353 = vunpack.c.l.s4 1983009808
        %v5354 = vunpack.c.0.s8 %v5353
        %v5355 = vlaneseq
        %v5356 = vshrl.u32 %v5355, 7
        %v5357 = vsub.s32 %v5354, %v5356
        %v5358 = vrot.slane %v5350, %v5357
        %v5360 = vunpack.c.l.s4 1983009808
        %v5361 = vunpack.c.0.s8 %v5360
        %v5362 = vlaneseq
        %v5363 = vshrl.u32 %v5362, 7
        %v5364 = vsub.s32 %v5361, %v5363
        %v5365 = vrot.slane %v5351, %v5364
        %v5366 = vcombine.low %v5358, %v5365
        %v5367 = vcombine.low %v5104, %v5106
        %v5368 = vcombine.low %v5145, %v5147
        %v5370 = vunpack.c.l.s4 1983009808
        %v5371 = vunpack.c.0.s8 %v5370
        %v5372 = vlaneseq
        %v5373 = vshrl.u32 %v5372, 7
        %v5374 = vsub.s32 %v5371, %v5373
        %v5375 = vrot.slane %v5367, %v5374
        %v5377 = vunpack.c.l.s4 1983009808
        %v5378 = vunpack.c.0.s8 %v5377
        %v5379 = vlaneseq
        %v5380 = vshrl.u32 %v5379, 7
        %v5381 = vsub.s32 %v5378, %v5380
        %v5382 = vrot.slane %v5368, %v5381
        %v5383 = vcombine.low %v5375, %v5382
        %v5384 = vcombine.low %v5186, %v5188
        %v5385 = vcombine.low %v5227, %v5229
        %v5387 = vunpack.c.l.s4 1983009808
        %v5388 = vunpack.c.0.s8 %v5387
        %v5389 = vlaneseq
        %v5390 = vshrl.u32 %v5389, 7
        %v5391 = vsub.s32 %v5388, %v5390
        %v5392 = vrot.slane %v5384, %v5391
        %v5394 = vunpack.c.l.s4 1983009808
        %v5395 = vunpack.c.0.s8 %v5394
        %v5396 = vlaneseq
        %v5397 = vshrl.u32 %v5396, 7
        %v5398 = vsub.s32 %v5395, %v5397
        %v5399 = vrot.slane %v5385, %v5398
        %v5400 = vcombine.low %v5392, %v5399
        %5409 = vst [vmem:[%s1114] sm:$0xff] %v5281
        %5410 = vst [vmem:[%s1114 + $0x8] sm:$0xff] %v5298
        %5411 = vst [vmem:[%s1114 + $0x10] sm:$0xff] %v5315
        %5412 = vst [vmem:[%s1114 + $0x18] sm:$0xff] %v5332
        %5413 = vst [vmem:[%s1114 + $0x20] sm:$0xff] %v5349
        %5414 = vst [vmem:[%s1114 + $0x28] sm:$0xff] %v5366
        %5415 = vst [vmem:[%s1114 + $0x30] sm:$0xff] %v5383
        %5416 = vst [vmem:[%s1114 + $0x38] sm:$0xff] %v5400
        %s5417 = sand.u32 %s511, 1
        %s5418 = scalar_lea.sflag [#allocation6], %s5417
        %s5419 = sand.u32 %s511, 1
        %s5420 = smul.addr %s5419, 64
        %s5421 = scalar_lea.vmem [#allocation5], %s5420
        // Predicated region
        $region179: #{star_forward.1} parent=169 // pred_check
          %p5422 = pneg %p521
        $region180: #{star_forward.1} parent=169 // pred_check_branch
          %5424 = sbr.rel (%p5422) target = $region182
        $region181: #{star_forward.1} parent=169 // pred_region
          %s5425 = smul.u32 32, %s36
          %s5426 = ssub.s32 40, %s5425
          %p5427 = scmp.lt.s32.totalorder %s5426, 32
          %s5428 = scalar_select %p5427, %s5426, 32
          %s5429 = smul.u32 32, %s5428
          %s5431 = ssub.s32 1024, %s5429
          %5432 = vsyncadd %s5418, %s5431
          %p5433 = scmp.ne.s32.totalorder 0, %s5429
          %s5434 = smul.addr %s5425, 32
          %s5435 = scalar_lea.hbm %s22, %s5434
          %s5436 = smul.u32 %s5428, 2
          %s5437 = sshll.u32 %s5436, 4
          %s5438 = sshll.u32 %s5421, 4
          %s5439 = int_to_ptr.vmem [resolvable:$true] %s5438
          %5441 = dma.vmem_to_hbm [thread:$0]  (%p5433), %s5439, %s5437, %s5435, %s5418
        $region182: #{star_forward.1} parent=169 // pred_fallthru
          _
      $region170: #{star_forward.1} parent=5 // pred_fallthru
        _
      %p5442 = scmp.le.s32.totalorder 2, %s31
      // Predicated region
      $region183: #{star_forward.1} parent=5 // pred_check
        %p5443 = pneg %p5442
      $region184: #{star_forward.1} parent=5 // pred_check_branch
        %5445 = sbr.rel (%p5443) target = $region186
      $region185: #{star_forward.1} parent=5 // pred_region
        %s5446 = ssub.s32 %s31, 2
        // Predicated region
        $region187: #{star_forward.1} parent=185 // pred_check
          %p5447 = pneg %p527
        $region188: #{star_forward.1} parent=185 // pred_check_branch
          %5449 = sbr.rel (%p5447) target = $region190
        $region189: #{star_forward.1} parent=185 // pred_region
          %s5450 = sand.u32 %s512, 1
          %s5451 = scalar_lea.sflag [#allocation6], %s5450
          %s5452 = sand.u32 %s512, 1
          %s5453 = smul.addr %s5452, 64
          %s5454 = scalar_lea.vmem [#allocation5], %s5453
          %5455 = dma.done %s5451, 1024
        $region190: #{star_forward.1} parent=185 // pred_fallthru
          _
      $region186: #{star_forward.1} parent=5 // pred_fallthru
        _
    $region6: #{star_forward.1} parent=1 // loop_footer
      %s35 = sadd.s32 1, %s31
    $region7: #{star_forward.1} parent=1 // loop_footer_branch
      %30 = sbr.rel target = $region3
    $region8: #{star_forward.1} parent=1 // loop_exit
      _
    %5456 = vsyncpa [#allocation6], 1
    %s5457 = scalar_lea.sflag [#allocation6], 1
    %5458 = vsyncpa %s5457, 1

</llo_original>
